<compile_context>
chip_gen: v6e
topology: v6e:2x2x1
jax: 0.10.0
libtpu: 0.0.40
codegen_flags: <defaults>
</compile_context>

<pallas_src>
import jax
import jax.numpy as jnp
from jax.experimental import pallas as pl
from jax.experimental.pallas import tpu as pltpu

IMAGE_SIZE = (256, 128)                             # (H, W) as in the PyTorch script
IN_FEATURES = 3 * IMAGE_SIZE[0] * IMAGE_SIZE[1]     # 98304
H1 = 256
H2 = 128

TK_DEFAULT = 16384            # 98304 / 16384 = 6 grid steps; 16 MiB w1 block
VMEM_LIMIT_BYTES = 48 << 20   # fits 2x16 MiB w1 buffers + small operands, < 64 MiB (v7x)


def _mlp_kernel(x_ref, w1_ref, b1_ref, w2_ref, b2_ref, w3_ref, b3_ref,
                o_ref, acc_ref):
    k = pl.program_id(0)

    @pl.when(k == 0)
    def _():
        acc_ref[...] = jnp.zeros_like(acc_ref)

    # Partial product of the big first Linear layer (tiled over K).
    # x/w1 may be bf16 (optional bandwidth optimization); accumulation is f32.
    acc_ref[...] += jnp.dot(x_ref[...], w1_ref[...],
                            preferred_element_type=jnp.float32)

    @pl.when(k == pl.num_programs(0) - 1)
    def _():
        # Fused epilogue, all resident in VMEM:
        # Layer 1 bias + ReLU
        h1 = jnp.maximum(acc_ref[...] + b1_ref[...], 0.0)
        # Layer 2: Linear(256, 128) + ReLU
        h2 = jnp.maximum(
            jnp.dot(h1, w2_ref[...], preferred_element_type=jnp.float32)
            + b2_ref[...], 0.0)
        # Layer 3: Linear(128, num_classes)
        o_ref[...] = (jnp.dot(h2, w3_ref[...],
                              preferred_element_type=jnp.float32)
                      + b3_ref[...]).astype(o_ref.dtype)


def simple_nn_forward(x_nchw, params, *, tk=TK_DEFAULT, use_bf16=False):
    """x_nchw: (B, 3, H, W) float32.  Returns (B, num_classes) float32."""
    w1, b1, w2, b2, w3, b3 = params
    B = x_nchw.shape[0]
    C = w3.shape[1]
    # nn.Flatten(): row-major flatten of (C, H, W) -> K
    x = x_nchw.reshape(B, -1)
    K = x.shape[1]
    assert K == IN_FEATURES and K % tk == 0

    if use_bf16:
        # ~2x HBM bandwidth win on the dominant w1 stream; accumulation stays
        # f32 inside the kernel. Numerics differ slightly from the f32 reference.
        x = x.astype(jnp.bfloat16)
        w1 = w1.astype(jnp.bfloat16)

    # Biases kept 2-D (1, N) for TPU-friendly layout.
    b1_2d = b1.reshape(1, H1)
    b2_2d = b2.reshape(1, H2)
    b3_2d = b3.reshape(1, C)

    grid = (K // tk,)
    return pl.pallas_call(
        _mlp_kernel,
        out_shape=jax.ShapeDtypeStruct((B, C), jnp.float32),
        grid_spec=pltpu.PrefetchScalarGridSpec(
            num_scalar_prefetch=0,
            grid=grid,
            in_specs=[
                pl.BlockSpec((B, tk), lambda k: (0, k)),     # x tile (streamed)
                pl.BlockSpec((tk, H1), lambda k: (k, 0)),    # w1 tile (dominant HBM stream)
                pl.BlockSpec((1, H1), lambda k: (0, 0)),     # b1 (grid-invariant, not re-DMA'd)
                pl.BlockSpec((H1, H2), lambda k: (0, 0)),    # w2
                pl.BlockSpec((1, H2), lambda k: (0, 0)),     # b2
                pl.BlockSpec((H2, C), lambda k: (0, 0)),     # w3
                pl.BlockSpec((1, C), lambda k: (0, 0)),      # b3
            ],
            out_specs=pl.BlockSpec((B, C), lambda k: (0, 0)),
            scratch_shapes=[pltpu.VMEM((B, H1), jnp.float32)],
        ),
        compiler_params=pltpu.CompilerParams(
            dimension_semantics=("arbitrary",),
            vmem_limit_bytes=VMEM_LIMIT_BYTES),
    )(x, w1, b1_2d, w2, b2_2d, w3, b3_2d)


def init_params(key, num_classes):
    """Deterministic init mimicking nn.Linear default (U[-1/sqrt(fan_in), +])."""
    def linear_init(k, fan_in, fan_out):
        kw, kb = jax.random.split(k)
        bound = 1.0 / jnp.sqrt(jnp.float32(fan_in))
        w = jax.random.uniform(kw, (fan_in, fan_out), jnp.float32, -bound, bound)
        b = jax.random.uniform(kb, (fan_out,), jnp.float32, -bound, bound)
        return w, b

    k1, k2, k3 = jax.random.split(key, 3)
    w1, b1 = linear_init(k1, IN_FEATURES, H1)
    w2, b2 = linear_init(k2, H1, H2)
    w3, b3 = linear_init(k3, H2, num_classes)
    return (w1, b1, w2, b2, w3, b3)


def reference_forward(x_nchw, params):
    w1, b1, w2, b2, w3, b3 = params
    x = x_nchw.reshape(x_nchw.shape[0], -1)
    h1 = jnp.maximum(x @ w1 + b1, 0.0)
    h2 = jnp.maximum(h1 @ w2 + b2, 0.0)
    return h2 @ w3 + b3


if __name__ == "__main__":
    num_classes = 10
    batch = 2

    key = jax.random.PRNGKey(0)
    k_params, k_x = jax.random.split(key)
    params = init_params(k_params, num_classes)
    x = jax.random.normal(k_x, (batch, 3, IMAGE_SIZE[0], IMAGE_SIZE[1]),
                          dtype=jnp.float32)

    # Default (f32) path: bit-compatible with the PyTorch module semantics.
    out = simple_nn_forward(x, params)
    out = jax.block_until_ready(out)

    ref = reference_forward(x, params)
    assert out.shape == (batch, num_classes)
    assert jnp.allclose(out, ref, atol=1e-3, rtol=1e-3), "mismatch vs reference"

    # Optional bf16-stream path (off by default): exercise it so it is known to
    # compile/run; numerics differ from the f32 reference so no tight assert.
    out_bf16 = jax.block_until_ready(simple_nn_forward(x, params, use_bf16=True))
    assert out_bf16.shape == (batch, num_classes)

    print("KERNEL_OK")
</pallas_src>

<mosaic_0001>
module attributes {stable_mosaic.version = 11 : i64} {
  func.func @_mlp_kernel(%arg0: i32, %arg1: memref<2x16384xf32, #tpu.memory_space<vmem>>, %arg2: memref<16384x256xf32, #tpu.memory_space<vmem>>, %arg3: memref<1x256xf32, #tpu.memory_space<vmem>>, %arg4: memref<256x128xf32, #tpu.memory_space<vmem>>, %arg5: memref<1x128xf32, #tpu.memory_space<vmem>>, %arg6: memref<128x10xf32, #tpu.memory_space<vmem>>, %arg7: memref<1x10xf32, #tpu.memory_space<vmem>>, %arg8: memref<2x10xf32, #tpu.memory_space<vmem>>, %arg9: memref<2x256xf32, #tpu.memory_space<vmem>>) attributes {dimension_semantics = [#tpu.dimension_semantics<arbitrary>], iteration_bounds = array<i64: 6>, scalar_prefetch = 0 : i64, scratch_operands = 1 : i64, tpu.core_type = #tpu.core_type<tc>, window_params = [{transform_indices = @transform_0, window_bounds = array<i64: 2, 16384>}, {transform_indices = @transform_1, window_bounds = array<i64: 16384, 256>}, {pipeline_mode = #tpu.pipeline_mode<synchronous>, transform_indices = @transform_2, window_bounds = array<i64: 1, 256>}, {pipeline_mode = #tpu.pipeline_mode<synchronous>, transform_indices = @transform_3, window_bounds = array<i64: 256, 128>}, {pipeline_mode = #tpu.pipeline_mode<synchronous>, transform_indices = @transform_4, window_bounds = array<i64: 1, 128>}, {pipeline_mode = #tpu.pipeline_mode<synchronous>, transform_indices = @transform_5, window_bounds = array<i64: 128, 10>}, {pipeline_mode = #tpu.pipeline_mode<synchronous>, transform_indices = @transform_6, window_bounds = array<i64: 1, 10>}, {pipeline_mode = #tpu.pipeline_mode<synchronous>, transform_indices = @transform_7, window_bounds = array<i64: 2, 10>}]} {
    %c0_i32 = arith.constant 0 : i32
    %0 = arith.cmpi eq, %arg0, %c0_i32 : i32
    %1 = arith.extui %0 : i1 to i32
    %c0_i32_0 = arith.constant 0 : i32
    %2 = arith.cmpi ne, %1, %c0_i32_0 : i32
    scf.if %2 {
      %cst_9 = arith.constant 0.000000e+00 : f32
      %12 = vector.broadcast %cst_9 : f32 to vector<2x256xf32>
      %c0_10 = arith.constant 0 : index
      %c0_11 = arith.constant 0 : index
      %13 = vector.load %arg9[%c0_10, %c0_11] : memref<2x256xf32, #tpu.memory_space<vmem>>, vector<2x256xf32>
      tpu.vector_store %arg9[%c0_10, %c0_11], %12 {strides = array<i32>} : memref<2x256xf32, #tpu.memory_space<vmem>>, vector<2x256xf32>,
    } else {
    }
    %c0 = arith.constant 0 : index
    %c0_1 = arith.constant 0 : index
    %3 = vector.load %arg9[%c0, %c0_1] : memref<2x256xf32, #tpu.memory_space<vmem>>, vector<2x256xf32>
    %c0_2 = arith.constant 0 : index
    %c0_3 = arith.constant 0 : index
    %4 = vector.load %arg1[%c0_2, %c0_3] : memref<2x16384xf32, #tpu.memory_space<vmem>>, vector<2x16384xf32>
    %c0_4 = arith.constant 0 : index
    %c0_5 = arith.constant 0 : index
    %5 = vector.load %arg2[%c0_4, %c0_5] : memref<16384x256xf32, #tpu.memory_space<vmem>>, vector<16384x256xf32>
    %cst = arith.constant dense<0.000000e+00> : vector<2x256xf32>
    %6 = tpu.matmul %4, %5, %cst {dimension_numbers = #tpu.dot_dimension_numbers<[1], [0], [0], [1], [0, 0, 1, 1], [], []>} : vector<2x16384xf32>, vector<16384x256xf32>, vector<2x256xf32> -> vector<2x256xf32>
    %7 = arith.addf %3, %6 : vector<2x256xf32>
    %c0_6 = arith.constant 0 : index
    %c0_7 = arith.constant 0 : index
    %8 = vector.load %arg9[%c0_6, %c0_7] : memref<2x256xf32, #tpu.memory_space<vmem>>, vector<2x256xf32>
    tpu.vector_store %arg9[%c0_6, %c0_7], %7 {strides = array<i32>} : memref<2x256xf32, #tpu.memory_space<vmem>>, vector<2x256xf32>,
    %c5_i32 = arith.constant 5 : i32
    %9 = arith.cmpi eq, %arg0, %c5_i32 : i32
    %10 = arith.extui %9 : i1 to i32
    %c0_i32_8 = arith.constant 0 : i32
    %11 = arith.cmpi ne, %10, %c0_i32_8 : i32
    scf.if %11 {
      %c0_9 = arith.constant 0 : index
      %c0_10 = arith.constant 0 : index
      %12 = vector.load %arg9[%c0_9, %c0_10] : memref<2x256xf32, #tpu.memory_space<vmem>>, vector<2x256xf32>
      %c0_11 = arith.constant 0 : index
      %c0_12 = arith.constant 0 : index
      %13 = vector.load %arg3[%c0_11, %c0_12] : memref<1x256xf32, #tpu.memory_space<vmem>>, vector<1x256xf32>
      %14 = vector.broadcast %13 : vector<1x256xf32> to vector<2x256xf32>
      %15 = arith.addf %12, %14 : vector<2x256xf32>
      %cst_13 = arith.constant 0.000000e+00 : f32
      %16 = vector.broadcast %cst_13 : f32 to vector<2x256xf32>
      %17 = arith.maximumf %15, %16 : vector<2x256xf32>
      %c0_14 = arith.constant 0 : index
      %c0_15 = arith.constant 0 : index
      %18 = vector.load %arg4[%c0_14, %c0_15] : memref<256x128xf32, #tpu.memory_space<vmem>>, vector<256x128xf32>
      %cst_16 = arith.constant dense<0.000000e+00> : vector<2x128xf32>
      %19 = tpu.matmul %17, %18, %cst_16 {dimension_numbers = #tpu.dot_dimension_numbers<[1], [0], [0], [1], [0, 0, 1, 1], [], []>} : vector<2x256xf32>, vector<256x128xf32>, vector<2x128xf32> -> vector<2x128xf32>
      %c0_17 = arith.constant 0 : index
      %c0_18 = arith.constant 0 : index
      %20 = vector.load %arg5[%c0_17, %c0_18] : memref<1x128xf32, #tpu.memory_space<vmem>>, vector<1x128xf32>
      %21 = vector.broadcast %20 : vector<1x128xf32> to vector<2x128xf32>
      %22 = arith.addf %19, %21 : vector<2x128xf32>
      %cst_19 = arith.constant 0.000000e+00 : f32
      %23 = vector.broadcast %cst_19 : f32 to vector<2x128xf32>
      %24 = arith.maximumf %22, %23 : vector<2x128xf32>
      %c0_20 = arith.constant 0 : index
      %c0_21 = arith.constant 0 : index
      %25 = vector.load %arg6[%c0_20, %c0_21] : memref<128x10xf32, #tpu.memory_space<vmem>>, vector<128x10xf32>
      %cst_22 = arith.constant dense<0.000000e+00> : vector<2x10xf32>
      %26 = tpu.matmul %24, %25, %cst_22 {dimension_numbers = #tpu.dot_dimension_numbers<[1], [0], [0], [1], [0, 0, 1, 1], [], []>} : vector<2x128xf32>, vector<128x10xf32>, vector<2x10xf32> -> vector<2x10xf32>
      %c0_23 = arith.constant 0 : index
      %c0_24 = arith.constant 0 : index
      %27 = vector.load %arg7[%c0_23, %c0_24] : memref<1x10xf32, #tpu.memory_space<vmem>>, vector<1x10xf32>
      %28 = vector.broadcast %27 : vector<1x10xf32> to vector<2x10xf32>
      %29 = arith.addf %26, %28 : vector<2x10xf32>
      %c0_25 = arith.constant 0 : index
      %c0_26 = arith.constant 0 : index
      %30 = vector.load %arg8[%c0_25, %c0_26] : memref<2x10xf32, #tpu.memory_space<vmem>>, vector<2x10xf32>
      tpu.vector_store %arg8[%c0_25, %c0_26], %29 {strides = array<i32>} : memref<2x10xf32, #tpu.memory_space<vmem>>, vector<2x10xf32>,
    } else {
    }
    return
  }
  func.func @transform_0(%arg0: i32) -> (i32, i32) {
    %c0_i32 = arith.constant 0 : i32
    %c0_i32_0 = arith.constant 0 : i32
    return %c0_i32, %arg0 : i32, i32
  }
  func.func @transform_1(%arg0: i32) -> (i32, i32) {
    %c0_i32 = arith.constant 0 : i32
    %c0_i32_0 = arith.constant 0 : i32
    return %arg0, %c0_i32 : i32, i32
  }
  func.func @transform_2(%arg0: i32) -> (i32, i32) {
    %c0_i32 = arith.constant 0 : i32
    %c0_i32_0 = arith.constant 0 : i32
    %c0_i32_1 = arith.constant 0 : i32
    return %c0_i32, %c0_i32_0 : i32, i32
  }
  func.func @transform_3(%arg0: i32) -> (i32, i32) {
    %c0_i32 = arith.constant 0 : i32
    %c0_i32_0 = arith.constant 0 : i32
    %c0_i32_1 = arith.constant 0 : i32
    return %c0_i32, %c0_i32_0 : i32, i32
  }
  func.func @transform_4(%arg0: i32) -> (i32, i32) {
    %c0_i32 = arith.constant 0 : i32
    %c0_i32_0 = arith.constant 0 : i32
    %c0_i32_1 = arith.constant 0 : i32
    return %c0_i32, %c0_i32_0 : i32, i32
  }
  func.func @transform_5(%arg0: i32) -> (i32, i32) {
    %c0_i32 = arith.constant 0 : i32
    %c0_i32_0 = arith.constant 0 : i32
    %c0_i32_1 = arith.constant 0 : i32
    return %c0_i32, %c0_i32_0 : i32, i32
  }
  func.func @transform_6(%arg0: i32) -> (i32, i32) {
    %c0_i32 = arith.constant 0 : i32
    %c0_i32_0 = arith.constant 0 : i32
    %c0_i32_1 = arith.constant 0 : i32
    return %c0_i32, %c0_i32_0 : i32, i32
  }
  func.func @transform_7(%arg0: i32) -> (i32, i32) {
    %c0_i32 = arith.constant 0 : i32
    %c0_i32_0 = arith.constant 0 : i32
    %c0_i32_1 = arith.constant 0 : i32
    return %c0_i32, %c0_i32_0 : i32, i32
  }
}

</mosaic_0001>

<llo_original>
// kernel: tpu_custom_call.1
$region0: #{tpu_custom_call.1}
  #allocation0 [shape = 'u32[]', space=smem, size = 0x4, offset = 0x4, fixed_abs, tag = 'smem constant byte address 0x4 - core index']
  #allocation1 [shape = 'u32[144,128]{1,0:T(1,128)}', space=vmem, size = 0x12000, scoped, tag = 'internal scratch']
  #allocation2 [shape = 'f32[2,256]{1,0:T(2,128)}', space=vmem, size = 0x800, scoped, tag = 'scratch operand']
  %s0 = inlined_call_operand.hbm [shape: f32[2,98304], index: 0, kind: input, shape index: {}]
  %s1 = inlined_call_operand.hbm [shape: f32[98304,256], index: 1, kind: input, shape index: {}]
  %s2 = inlined_call_operand.hbm [shape: f32[1,256], index: 2, kind: input, shape index: {}]
  %s3 = inlined_call_operand.hbm [shape: f32[256,128], index: 3, kind: input, shape index: {}]
  %s4 = inlined_call_operand.hbm [shape: f32[1,128], index: 4, kind: input, shape index: {}]
  %s5 = inlined_call_operand.vmem [shape: f32[128,10], index: 5, kind: input, shape index: {}]
  %s6 = inlined_call_operand.hbm [shape: f32[1,10], index: 6, kind: input, shape index: {}]
  %s7 = inlined_call_operand.hbm [shape: f32[2,10], index: 7, kind: output, shape index: {}]
  %s8 = sld [smem:[#allocation0]]
  $region93: #{tpu_custom_call.1} parent=0
    _
  %s10 = ssub.s32 1, %s8
  %s11 = scalar_select 0, %s10, %s8
  $region1: #{tpu_custom_call.1} parent=0
    #allocation3 [shape = 'u8[262144]{0}', space=vmem, size = 0x40000, scoped, tag = 'input window, operand 0']
    #allocation4 [shape = 's32[2]{0}', space=sflag, size = 0x8, scoped, tag = 'scoped memory for tpu_custom_call.1']
    #allocation5 [shape = 's32[2]{0}', space=sflag, size = 0x8, scoped, tag = 'scoped memory for tpu_custom_call.1']
    #allocation6 [shape = 'u8[33554432]{0}', space=vmem, size = 0x2000000, scoped, tag = 'input window, operand 1']
    #allocation7 [shape = 's32[2]{0}', space=sflag, size = 0x8, scoped, tag = 'scoped memory for tpu_custom_call.1']
    #allocation8 [shape = 'u8[1024]{0}', space=vmem, size = 0x400, scoped, tag = 'input window, operand 2, single buffered']
    #allocation9 [shape = 'u8[131072]{0}', space=vmem, size = 0x20000, scoped, tag = 'input window, operand 3, single buffered']
    #allocation10 [shape = 's32[1]{0}', space=sflag, size = 0x4, scoped, tag = 'scoped memory for tpu_custom_call.1']
    #allocation11 [shape = 'u8[512]{0}', space=vmem, size = 0x400, scoped, tag = 'input window, operand 4, single buffered']
    #allocation12 [shape = 'u8[512]{0}', space=vmem, size = 0x400, scoped, tag = 'input window, operand 6, single buffered']
    #allocation13 [shape = 's32[1]{0}', space=sflag, size = 0x4, scoped, tag = 'scoped memory for tpu_custom_call.1']
    #allocation14 [shape = 'u8[1024]{0}', space=vmem, size = 0x400, scoped, tag = 'output window, operand 0, single buffered']
    %12 = vsyncpa [#allocation4], 0
    %s13 = scalar_lea.sflag [#allocation4], 1
    %14 = vsyncpa %s13, 0
    %15 = vsyncpa [#allocation7], 0
    %s16 = scalar_lea.sflag [#allocation7], 1
    %17 = vsyncpa %s16, 0
    %18 = vsyncpa [#allocation10], 0
    %19 = vsyncpa [#allocation13], 0
    %20 = vsyncpa [#allocation5], 0
    loop: start=0, step=1, limit=8
    $region2: #{tpu_custom_call.1} parent=1 // loop_pre_header
      _
    $region3: #{tpu_custom_call.1} parent=1 // loop_header
      %s22 = sphi 0, %s26
      %p23 = scmp.ge.s32.totalorder %s22, 8
      %s32 = sphi 0, %s34
      %s35 = sphi 0, %s32
      %s36 = sphi 0, %s35
      %s52 = sphi 0, %s36
      %s58 = sphi 0, %s60
      %s61 = sphi 0, %s58
      %s62 = sphi 0, %s61
      %s78 = sphi 0, %s62
      %s82 = sphi 0, %s82
      %s84 = sphi 0, %s82
      %s85 = sphi 0, %s84
      %s99 = sphi 0, %s85
      %s103 = sphi 0, %s103
      %s105 = sphi 0, %s103
      %s106 = sphi 0, %s105
      %s120 = sphi 0, %s106
      %s124 = sphi 0, %s124
      %s126 = sphi 0, %s124
      %s127 = sphi 0, %s126
      %s141 = sphi 0, %s127
      %s145 = sphi 0, %s145
      %s147 = sphi 0, %s145
      %s148 = sphi 0, %s147
      %s162 = sphi 0, %s148
      %s166 = sphi 0, %s166
      %s168 = sphi 0, %s166
      %s169 = sphi 0, %s168
      %s183 = sphi 0, %s169
      %s187 = sphi 0, %s187
      %s189 = sphi 0, %s187
      %s190 = sphi 0, %s189
      %s204 = sphi 0, %s190
    $region4: #{tpu_custom_call.1} parent=1 // loop_header_branch
      %25 = sbr.rel (%p23) target = $region8
    $region5: #{tpu_custom_call.1} parent=1 // loop_body
      %s27 = ssub.s32 %s22, 1
      %s28 = ssub.s32 %s22, 2
      %s29 = sadd.s32 %s22, 1
      %s30 = ssub.s32 %s22, %s29
      %p31 = scmp.eq.s32.totalorder %s30, 0
      %s33 = sadd.s32 %s32, 1
      %s34 = scalar_select %p31, %s32, %s33
      %p37 = pneg %p31
      %p38 = scmp.eq.s32.totalorder %s22, 5
      %p39 = por %p37, %p38
      %p40 = scmp.ne.s32.totalorder %s32, %s35
      %p41 = scmp.eq.s32.totalorder %s22, 0
      %p42 = por %p40, %p41
      %p43 = scmp.ne.s32.totalorder %s32, %s35
      %p44 = scmp.eq.s32.totalorder %s27, 5
      %p45 = por %p43, %p44
      %p46 = scmp.ne.s32.totalorder %s35, %s36
      %p47 = scmp.eq.s32.totalorder %s27, 0
      %p48 = por %p46, %p47
      %p49 = scmp.ne.s32.totalorder %s35, %s36
      %p50 = scmp.eq.s32.totalorder %s28, 5
      %p51 = por %p49, %p50
      %p53 = scmp.ne.s32.totalorder %s36, %s52
      %p54 = scmp.eq.s32.totalorder %s28, 0
      %p55 = por %p53, %p54
      %s56 = ssub.s32 %s22, %s29
      %p57 = scmp.eq.s32.totalorder %s56, 0
      %s59 = sadd.s32 %s58, 1
      %s60 = scalar_select %p57, %s58, %s59
      %p63 = pneg %p57
      %p64 = scmp.eq.s32.totalorder %s22, 5
      %p65 = por %p63, %p64
      %p66 = scmp.ne.s32.totalorder %s58, %s61
      %p67 = scmp.eq.s32.totalorder %s22, 0
      %p68 = por %p66, %p67
      %p69 = scmp.ne.s32.totalorder %s58, %s61
      %p70 = scmp.eq.s32.totalorder %s27, 5
      %p71 = por %p69, %p70
      %p72 = scmp.ne.s32.totalorder %s61, %s62
      %p73 = scmp.eq.s32.totalorder %s27, 0
      %p74 = por %p72, %p73
      %p75 = scmp.ne.s32.totalorder %s61, %s62
      %p76 = scmp.eq.s32.totalorder %s28, 5
      %p77 = por %p75, %p76
      %p79 = scmp.ne.s32.totalorder %s62, %s78
      %p80 = scmp.eq.s32.totalorder %s28, 0
      %p81 = por %p79, %p80
      %s83 = sadd.s32 %s82, 1
      %p86 = scmp.eq.s32.totalorder %s22, 5
      %p87 = scmp.ne.s32.totalorder %s82, %s84
      %p88 = scmp.eq.s32.totalorder %s22, 0
      %p89 = por %p87, %p88
      %p90 = scmp.ne.s32.totalorder %s82, %s84
      %p91 = scmp.eq.s32.totalorder %s27, 5
      %p92 = por %p90, %p91
      %p93 = scmp.ne.s32.totalorder %s84, %s85
      %p94 = scmp.eq.s32.totalorder %s27, 0
      %p95 = por %p93, %p94
      %p96 = scmp.ne.s32.totalorder %s84, %s85
      %p97 = scmp.eq.s32.totalorder %s28, 5
      %p98 = por %p96, %p97
      %p100 = scmp.ne.s32.totalorder %s85, %s99
      %p101 = scmp.eq.s32.totalorder %s28, 0
      %p102 = por %p100, %p101
      %s104 = sadd.s32 %s103, 1
      %p107 = scmp.eq.s32.totalorder %s22, 5
      %p108 = scmp.ne.s32.totalorder %s103, %s105
      %p109 = scmp.eq.s32.totalorder %s22, 0
      %p110 = por %p108, %p109
      %p111 = scmp.ne.s32.totalorder %s103, %s105
      %p112 = scmp.eq.s32.totalorder %s27, 5
      %p113 = por %p111, %p112
      %p114 = scmp.ne.s32.totalorder %s105, %s106
      %p115 = scmp.eq.s32.totalorder %s27, 0
      %p116 = por %p114, %p115
      %p117 = scmp.ne.s32.totalorder %s105, %s106
      %p118 = scmp.eq.s32.totalorder %s28, 5
      %p119 = por %p117, %p118
      %p121 = scmp.ne.s32.totalorder %s106, %s120
      %p122 = scmp.eq.s32.totalorder %s28, 0
      %p123 = por %p121, %p122
      %s125 = sadd.s32 %s124, 1
      %p128 = scmp.eq.s32.totalorder %s22, 5
      %p129 = scmp.ne.s32.totalorder %s124, %s126
      %p130 = scmp.eq.s32.totalorder %s22, 0
      %p131 = por %p129, %p130
      %p132 = scmp.ne.s32.totalorder %s124, %s126
      %p133 = scmp.eq.s32.totalorder %s27, 5
      %p134 = por %p132, %p133
      %p135 = scmp.ne.s32.totalorder %s126, %s127
      %p136 = scmp.eq.s32.totalorder %s27, 0
      %p137 = por %p135, %p136
      %p138 = scmp.ne.s32.totalorder %s126, %s127
      %p139 = scmp.eq.s32.totalorder %s28, 5
      %p140 = por %p138, %p139
      %p142 = scmp.ne.s32.totalorder %s127, %s141
      %p143 = scmp.eq.s32.totalorder %s28, 0
      %p144 = por %p142, %p143
      %s146 = sadd.s32 %s145, 1
      %p149 = scmp.eq.s32.totalorder %s22, 5
      %p150 = scmp.ne.s32.totalorder %s145, %s147
      %p151 = scmp.eq.s32.totalorder %s22, 0
      %p152 = por %p150, %p151
      %p153 = scmp.ne.s32.totalorder %s145, %s147
      %p154 = scmp.eq.s32.totalorder %s27, 5
      %p155 = por %p153, %p154
      %p156 = scmp.ne.s32.totalorder %s147, %s148
      %p157 = scmp.eq.s32.totalorder %s27, 0
      %p158 = por %p156, %p157
      %p159 = scmp.ne.s32.totalorder %s147, %s148
      %p160 = scmp.eq.s32.totalorder %s28, 5
      %p161 = por %p159, %p160
      %p163 = scmp.ne.s32.totalorder %s148, %s162
      %p164 = scmp.eq.s32.totalorder %s28, 0
      %p165 = por %p163, %p164
      %s167 = sadd.s32 %s166, 1
      %p170 = scmp.eq.s32.totalorder %s22, 5
      %p171 = scmp.ne.s32.totalorder %s166, %s168
      %p172 = scmp.eq.s32.totalorder %s22, 0
      %p173 = por %p171, %p172
      %p174 = scmp.ne.s32.totalorder %s166, %s168
      %p175 = scmp.eq.s32.totalorder %s27, 5
      %p176 = por %p174, %p175
      %p177 = scmp.ne.s32.totalorder %s168, %s169
      %p178 = scmp.eq.s32.totalorder %s27, 0
      %p179 = por %p177, %p178
      %p180 = scmp.ne.s32.totalorder %s168, %s169
      %p181 = scmp.eq.s32.totalorder %s28, 5
      %p182 = por %p180, %p181
      %p184 = scmp.ne.s32.totalorder %s169, %s183
      %p185 = scmp.eq.s32.totalorder %s28, 0
      %p186 = por %p184, %p185
      %s188 = sadd.s32 %s187, 1
      %p191 = scmp.eq.s32.totalorder %s22, 5
      %p192 = scmp.ne.s32.totalorder %s187, %s189
      %p193 = scmp.eq.s32.totalorder %s22, 0
      %p194 = por %p192, %p193
      %p195 = scmp.ne.s32.totalorder %s187, %s189
      %p196 = scmp.eq.s32.totalorder %s27, 5
      %p197 = por %p195, %p196
      %p198 = scmp.ne.s32.totalorder %s189, %s190
      %p199 = scmp.eq.s32.totalorder %s27, 0
      %p200 = por %p198, %p199
      %p201 = scmp.ne.s32.totalorder %s189, %s190
      %p202 = scmp.eq.s32.totalorder %s28, 5
      %p203 = por %p201, %p202
      %p205 = scmp.ne.s32.totalorder %s190, %s204
      %p206 = scmp.eq.s32.totalorder %s28, 0
      %p207 = por %p205, %p206
      %p208 = scmp.le.s32.totalorder 1, %s22
      %p209 = scmp.lt.s32.totalorder %s22, 7
      %p210 = pnand %p208, %p209
      %p211 = pneg %p210
      // Predicated region
      $region9: #{tpu_custom_call.1} parent=5 // pred_check
        _
      $region10: #{tpu_custom_call.1} parent=5 // pred_check_branch
        %213 = sbr.rel (%p210) target = $region12
      $region11: #{tpu_custom_call.1} parent=5 // pred_region
        %s214 = ssub.s32 %s22, 1
        // Predicated region
        $region13: #{tpu_custom_call.1} parent=11 // pred_check
          %p215 = pneg %p95
        $region14: #{tpu_custom_call.1} parent=11 // pred_check_branch
          %217 = sbr.rel (%p215) target = $region16
        $region15: #{tpu_custom_call.1} parent=11 // pred_region
          %s219 = ssub.s32 32, 32
          %220 = vsyncadd [#allocation7], %s219
          %s222 = sshll.u32 [#allocation8], 4
          %s223 = int_to_ptr.vmem [resolvable:$true] %s222
          %225 = dma.hbm_to_vmem [thread:$0]  %s2, 32, %s223, [#allocation7]
        $region16: #{tpu_custom_call.1} parent=11 // pred_fallthru
          _
        // Predicated region
        $region17: #{tpu_custom_call.1} parent=11 // pred_check
          %p226 = pneg %p116
        $region18: #{tpu_custom_call.1} parent=11 // pred_check_branch
          %228 = sbr.rel (%p226) target = $region20
        $region19: #{tpu_custom_call.1} parent=11 // pred_region
          %s230 = ssub.s32 4096, 4096
          %231 = vsyncadd [#allocation10], %s230
          %s232 = sshll.u32 [#allocation9], 4
          %s233 = int_to_ptr.vmem [resolvable:$true] %s232
          %238 = dma.hbm_to_vmem [thread:$0]  %s3, 4096, %s233, [#allocation10], 128, 128, 8
        $region20: #{tpu_custom_call.1} parent=11 // pred_fallthru
          _
        // Predicated region
        $region21: #{tpu_custom_call.1} parent=11 // pred_check
          %p239 = pneg %p137
        $region22: #{tpu_custom_call.1} parent=11 // pred_check_branch
          %241 = sbr.rel (%p239) target = $region24
        $region23: #{tpu_custom_call.1} parent=11 // pred_region
          %s243 = ssub.s32 16, 16
          %244 = vsyncadd [#allocation10], %s243
          %s246 = sshll.u32 [#allocation11], 4
          %s247 = int_to_ptr.vmem [resolvable:$true] %s246
          %249 = dma.hbm_to_vmem [thread:$0]  %s4, 16, %s247, [#allocation10]
        $region24: #{tpu_custom_call.1} parent=11 // pred_fallthru
          _
        // Predicated region
        $region25: #{tpu_custom_call.1} parent=11 // pred_check
          %p250 = pneg %p158
        $region26: #{tpu_custom_call.1} parent=11 // pred_check_branch
          %252 = sbr.rel (%p250) target = $region28
        $region27: #{tpu_custom_call.1} parent=11 // pred_region
          _
        $region28: #{tpu_custom_call.1} parent=11 // pred_fallthru
          _
        // Predicated region
        $region29: #{tpu_custom_call.1} parent=11 // pred_check
          %p253 = pneg %p179
        $region30: #{tpu_custom_call.1} parent=11 // pred_check_branch
          %255 = sbr.rel (%p253) target = $region32
        $region31: #{tpu_custom_call.1} parent=11 // pred_region
          %s257 = ssub.s32 16, 16
          %258 = vsyncadd [#allocation13], %s257
          %s260 = sshll.u32 [#allocation12], 4
          %s261 = int_to_ptr.vmem [resolvable:$true] %s260
          %263 = dma.hbm_to_vmem [thread:$0]  %s6, 16, %s261, [#allocation13]
        $region32: #{tpu_custom_call.1} parent=11 // pred_fallthru
          _
      $region12: #{tpu_custom_call.1} parent=5 // pred_fallthru
        _
      %p264 = scmp.lt.s32.totalorder %s22, 6
      // Predicated region
      $region33: #{tpu_custom_call.1} parent=5 // pred_check
        %p265 = pneg %p264
      $region34: #{tpu_custom_call.1} parent=5 // pred_check_branch
        %267 = sbr.rel (%p265) target = $region36
      $region35: #{tpu_custom_call.1} parent=5 // pred_region
        // Predicated region
        $region37: #{tpu_custom_call.1} parent=35 // pred_check
          %p268 = pneg %p42
        $region38: #{tpu_custom_call.1} parent=35 // pred_check_branch
          %270 = sbr.rel (%p268) target = $region40
        $region39: #{tpu_custom_call.1} parent=35 // pred_region
          %s271 = sand.u32 %s32, 1
          %s272 = scalar_lea.sflag [#allocation4], %s271
          %s273 = sand.u32 %s32, 1
          %s274 = smul.addr %s273, 256
          %s275 = scalar_lea.vmem [#allocation3], %s274
          %s276 = smul.u32 128, %s22
          %s278 = ssub.s32 4096, 4096
          %279 = vsyncadd %s272, %s278
          %s280 = smul.addr %s276, 32
          %s281 = scalar_lea.hbm %s0, %s280
          %s283 = sshll.u32 %s275, 4
          %s284 = int_to_ptr.vmem [resolvable:$true] %s283
          %286 = dma.hbm_to_vmem [thread:$0]  %s281, 4096, %s284, %s272
        $region40: #{tpu_custom_call.1} parent=35 // pred_fallthru
          _
        // Predicated region
        $region41: #{tpu_custom_call.1} parent=35 // pred_check
          %p287 = pneg %p68
        $region42: #{tpu_custom_call.1} parent=35 // pred_check_branch
          %289 = sbr.rel (%p287) target = $region44
        $region43: #{tpu_custom_call.1} parent=35 // pred_region
          %s290 = sand.u32 %s22, 1
          %s291 = scalar_lea.sflag [#allocation7], %s290
          %s292 = sand.u32 %s58, 1
          %s293 = smul.addr %s292, 32768
          %s294 = scalar_lea.vmem [#allocation6], %s293
          %s295 = smul.u32 2048, %s22
          %s297 = ssub.s32 524288, 524288
          %298 = vsyncadd %s291, %s297
          %s299 = smul.addr %s295, 2
          %s300 = smul.addr %s299, 128
          %s301 = scalar_lea.hbm %s1, %s300
          %s302 = sshll.u32 %s294, 4
          %s303 = int_to_ptr.vmem [resolvable:$true] %s302
          %308 = dma.hbm_to_vmem [thread:$0]  %s301, 524288, %s303, %s291, 256, 256, 16
        $region44: #{tpu_custom_call.1} parent=35 // pred_fallthru
          _
      $region36: #{tpu_custom_call.1} parent=5 // pred_fallthru
        _
      %p309 = scmp.le.s32.totalorder 1, %s22
      %p310 = scmp.lt.s32.totalorder %s22, 7
      %p311 = pnand %p309, %p310
      %p312 = pneg %p311
      // Predicated region
      $region45: #{tpu_custom_call.1} parent=5 // pred_check
        _
      $region46: #{tpu_custom_call.1} parent=5 // pred_check_branch
        %314 = sbr.rel (%p311) target = $region48
      $region47: #{tpu_custom_call.1} parent=5 // pred_region
        %s315 = ssub.s32 %s22, 1
        %s316 = sand.u32 %s35, 1
        %s317 = scalar_lea.sflag [#allocation4], %s316
        %s318 = sand.u32 %s35, 1
        %s319 = smul.addr %s318, 256
        %s320 = scalar_lea.vmem [#allocation3], %s319
        // Predicated region
        $region49: #{tpu_custom_call.1} parent=47 // pred_check
          %p321 = pneg %p48
        $region50: #{tpu_custom_call.1} parent=47 // pred_check_branch
          %323 = sbr.rel (%p321) target = $region52
        $region51: #{tpu_custom_call.1} parent=47 // pred_region
          %324 = dma.done %s317, 4096
        $region52: #{tpu_custom_call.1} parent=47 // pred_fallthru
          _
        %s325 = sand.u32 %s27, 1
        %s326 = scalar_lea.sflag [#allocation7], %s325
        %s327 = sand.u32 %s61, 1
        %s328 = smul.addr %s327, 32768
        %s329 = scalar_lea.vmem [#allocation6], %s328
        // Predicated region
        $region53: #{tpu_custom_call.1} parent=47 // pred_check
          %p330 = pneg %p74
        $region54: #{tpu_custom_call.1} parent=47 // pred_check_branch
          %332 = sbr.rel (%p330) target = $region56
        $region55: #{tpu_custom_call.1} parent=47 // pred_region
          %333 = dma.done %s326, 524288
        $region56: #{tpu_custom_call.1} parent=47 // pred_fallthru
          _
        // Predicated region
        $region57: #{tpu_custom_call.1} parent=47 // pred_check
          %p334 = pneg %p95
        $region58: #{tpu_custom_call.1} parent=47 // pred_check_branch
          %336 = sbr.rel (%p334) target = $region60
        $region59: #{tpu_custom_call.1} parent=47 // pred_region
          %337 = dma.done [#allocation7], 32
        $region60: #{tpu_custom_call.1} parent=47 // pred_fallthru
          _
        // Predicated region
        $region61: #{tpu_custom_call.1} parent=47 // pred_check
          %p338 = pneg %p116
        $region62: #{tpu_custom_call.1} parent=47 // pred_check_branch
          %340 = sbr.rel (%p338) target = $region64
        $region63: #{tpu_custom_call.1} parent=47 // pred_region
          %341 = dma.done [#allocation10], 4096
        $region64: #{tpu_custom_call.1} parent=47 // pred_fallthru
          _
        // Predicated region
        $region65: #{tpu_custom_call.1} parent=47 // pred_check
          %p342 = pneg %p137
        $region66: #{tpu_custom_call.1} parent=47 // pred_check_branch
          %344 = sbr.rel (%p342) target = $region68
        $region67: #{tpu_custom_call.1} parent=47 // pred_region
          %345 = dma.done [#allocation10], 16
        $region68: #{tpu_custom_call.1} parent=47 // pred_fallthru
          _
        // Predicated region
        $region69: #{tpu_custom_call.1} parent=47 // pred_check
          %p346 = pneg %p179
        $region70: #{tpu_custom_call.1} parent=47 // pred_check_branch
          %348 = sbr.rel (%p346) target = $region72
        $region71: #{tpu_custom_call.1} parent=47 // pred_region
          %349 = dma.done [#allocation13], 16
        $region72: #{tpu_custom_call.1} parent=47 // pred_fallthru
          _
        %s350 = sand.u32 %s35, 1
        %s351 = scalar_lea.sflag [#allocation4], %s350
        %s352 = sand.u32 %s35, 1
        %s353 = smul.addr %s352, 256
        %s354 = scalar_lea.vmem [#allocation3], %s353
        %p355 = pneg %p48
        %p356 = pneg %p45
        %s357 = sand.u32 %s27, 1
        %s358 = scalar_lea.sflag [#allocation7], %s357
        %s359 = sand.u32 %s61, 1
        %s360 = smul.addr %s359, 32768
        %s361 = scalar_lea.vmem [#allocation6], %s360
        %p362 = pneg %p74
        %p363 = pneg %p71
        %p364 = pneg %p95
        %p365 = pneg %p92
        %p366 = pneg %p116
        %p367 = pneg %p113
        %p368 = pneg %p137
        %p369 = pneg %p134
        %p370 = pneg %p158
        %p371 = pneg %p155
        %p372 = pneg %p179
        %p373 = pneg %p176
        %p374 = pneg %p200
        %p375 = pneg %p197
        %s376 = smul.u32 128, %s27
        %s377 = smul.u32 2048, %s27
        %p378 = scmp.eq.s32.totalorder %s27, 0
        // Predicated region
        $region73: #{tpu_custom_call.1} parent=47 // pred_check
          %p379 = pneg %p378
        $region74: #{tpu_custom_call.1} parent=47 // pred_check_branch
          %381 = sbr.rel (%p379) target = $region76
        $region75: #{tpu_custom_call.1} parent=47 // pred_region
          %382 = vst [vmem:[#allocation2] sm:$0xf] 0.0
        $region76: #{tpu_custom_call.1} parent=47 // pred_fallthru
          _
        %v383 = vld [vmem:[#allocation2] sm:$0xf]
        %v384 = vld [vmem:[%s320] sm:$0xff]
        %v385 = vld [vmem:[%s320 + $0x8] sm:$0xff]
        %v386 = vld [vmem:[%s320 + $0x10] sm:$0xff]
        %v387 = vld [vmem:[%s320 + $0x18] sm:$0xff]
        %v388 = vld [vmem:[%s320 + $0x20] sm:$0xff]
        %v389 = vld [vmem:[%s320 + $0x28] sm:$0xff]
        %v390 = vld [vmem:[%s320 + $0x30] sm:$0xff]
        %v391 = vld [vmem:[%s320 + $0x38] sm:$0xff]
        %v392 = vld [vmem:[%s320 + $0x40] sm:$0xff]
        %v393 = vld [vmem:[%s320 + $0x48] sm:$0xff]
        %v394 = vld [vmem:[%s320 + $0x50] sm:$0xff]
        %v395 = vld [vmem:[%s320 + $0x58] sm:$0xff]
        %v396 = vld [vmem:[%s320 + $0x60] sm:$0xff]
        %v397 = vld [vmem:[%s320 + $0x68] sm:$0xff]
        %v398 = vld [vmem:[%s320 + $0x70] sm:$0xff]
        %v399 = vld [vmem:[%s320 + $0x78] sm:$0xff]
        %v400 = vld [vmem:[%s320 + $0x80] sm:$0xff]
        %v401 = vld [vmem:[%s320 + $0x88] sm:$0xff]
        %v402 = vld [vmem:[%s320 + $0x90] sm:$0xff]
        %v403 = vld [vmem:[%s320 + $0x98] sm:$0xff]
        %v404 = vld [vmem:[%s320 + $0xa0] sm:$0xff]
        %v405 = vld [vmem:[%s320 + $0xa8] sm:$0xff]
        %v406 = vld [vmem:[%s320 + $0xb0] sm:$0xff]
        %v407 = vld [vmem:[%s320 + $0xb8] sm:$0xff]
        %v408 = vld [vmem:[%s320 + $0xc0] sm:$0xff]
        %v409 = vld [vmem:[%s320 + $0xc8] sm:$0xff]
        %v410 = vld [vmem:[%s320 + $0xd0] sm:$0xff]
        %v411 = vld [vmem:[%s320 + $0xd8] sm:$0xff]
        %v412 = vld [vmem:[%s320 + $0xe0] sm:$0xff]
        %v413 = vld [vmem:[%s320 + $0xe8] sm:$0xff]
        %v414 = vld [vmem:[%s320 + $0xf0] sm:$0xff]
        %v415 = vld [vmem:[%s320 + $0xf8] sm:$0xff]
        %v416 = vld [vmem:[%s329] sm:$0xff]
        %v417 = vld [vmem:[%s329 + $0x8] sm:$0xff]
        %v418 = vld [vmem:[%s329 + $0x10] sm:$0xff]
        %v419 = vld [vmem:[%s329 + $0x18] sm:$0xff]
        %v420 = vld [vmem:[%s329 + $0x20] sm:$0xff]
        %v421 = vld [vmem:[%s329 + $0x28] sm:$0xff]
        %v422 = vld [vmem:[%s329 + $0x30] sm:$0xff]
        %v423 = vld [vmem:[%s329 + $0x38] sm:$0xff]
        %v424 = vld [vmem:[%s329 + $0x40] sm:$0xff]
        %v425 = vld [vmem:[%s329 + $0x48] sm:$0xff]
        %v426 = vld [vmem:[%s329 + $0x50] sm:$0xff]
        %v427 = vld [vmem:[%s329 + $0x58] sm:$0xff]
        %v428 = vld [vmem:[%s329 + $0x60] sm:$0xff]
        %v429 = vld [vmem:[%s329 + $0x68] sm:$0xff]
        %v430 = vld [vmem:[%s329 + $0x70] sm:$0xff]
        %v431 = vld [vmem:[%s329 + $0x78] sm:$0xff]
        %v432 = vld [vmem:[%s329 + $0x80] sm:$0xff]
        %v433 = vld [vmem:[%s329 + $0x88] sm:$0xff]
        %v434 = vld [vmem:[%s329 + $0x90] sm:$0xff]
        %v435 = vld [vmem:[%s329 + $0x98] sm:$0xff]
        %v436 = vld [vmem:[%s329 + $0xa0] sm:$0xff]
        %v437 = vld [vmem:[%s329 + $0xa8] sm:$0xff]
        %v438 = vld [vmem:[%s329 + $0xb0] sm:$0xff]
        %v439 = vld [vmem:[%s329 + $0xb8] sm:$0xff]
        %v440 = vld [vmem:[%s329 + $0xc0] sm:$0xff]
        %v441 = vld [vmem:[%s329 + $0xc8] sm:$0xff]
        %v442 = vld [vmem:[%s329 + $0xd0] sm:$0xff]
        %v443 = vld [vmem:[%s329 + $0xd8] sm:$0xff]
        %v444 = vld [vmem:[%s329 + $0xe0] sm:$0xff]
        %v445 = vld [vmem:[%s329 + $0xe8] sm:$0xff]
        %v446 = vld [vmem:[%s329 + $0xf0] sm:$0xff]
        %v447 = vld [vmem:[%s329 + $0xf8] sm:$0xff]
        %v448 = vld [vmem:[%s329 + $0x100] sm:$0xff]
        %v449 = vld [vmem:[%s329 + $0x108] sm:$0xff]
        %v450 = vld [vmem:[%s329 + $0x110] sm:$0xff]
        %v451 = vld [vmem:[%s329 + $0x118] sm:$0xff]
        %v452 = vld [vmem:[%s329 + $0x120] sm:$0xff]
        %v453 = vld [vmem:[%s329 + $0x128] sm:$0xff]
        %v454 = vld [vmem:[%s329 + $0x130] sm:$0xff]
        %v455 = vld [vmem:[%s329 + $0x138] sm:$0xff]
        %v456 = vld [vmem:[%s329 + $0x140] sm:$0xff]
        %v457 = vld [vmem:[%s329 + $0x148] sm:$0xff]
        %v458 = vld [vmem:[%s329 + $0x150] sm:$0xff]
        %v459 = vld [vmem:[%s329 + $0x158] sm:$0xff]
        %v460 = vld [vmem:[%s329 + $0x160] sm:$0xff]
        %v461 = vld [vmem:[%s329 + $0x168] sm:$0xff]
        %v462 = vld [vmem:[%s329 + $0x170] sm:$0xff]
        %v463 = vld [vmem:[%s329 + $0x178] sm:$0xff]
        %v464 = vld [vmem:[%s329 + $0x180] sm:$0xff]
        %v465 = vld [vmem:[%s329 + $0x188] sm:$0xff]
        %v466 = vld [vmem:[%s329 + $0x190] sm:$0xff]
        %v467 = vld [vmem:[%s329 + $0x198] sm:$0xff]
        %v468 = vld [vmem:[%s329 + $0x1a0] sm:$0xff]
        %v469 = vld [vmem:[%s329 + $0x1a8] sm:$0xff]
        %v470 = vld [vmem:[%s329 + $0x1b0] sm:$0xff]
        %v471 = vld [vmem:[%s329 + $0x1b8] sm:$0xff]
        %v472 = vld [vmem:[%s329 + $0x1c0] sm:$0xff]
        %v473 = vld [vmem:[%s329 + $0x1c8] sm:$0xff]
        %v474 = vld [vmem:[%s329 + $0x1d0] sm:$0xff]
        %v475 = vld [vmem:[%s329 + $0x1d8] sm:$0xff]
        %v476 = vld [vmem:[%s329 + $0x1e0] sm:$0xff]
        %v477 = vld [vmem:[%s329 + $0x1e8] sm:$0xff]
        %v478 = vld [vmem:[%s329 + $0x1f0] sm:$0xff]
        %v479 = vld [vmem:[%s329 + $0x1f8] sm:$0xff]
        %v480 = vld [vmem:[%s329 + $0x200] sm:$0xff]
        %v481 = vld [vmem:[%s329 + $0x208] sm:$0xff]
        %v482 = vld [vmem:[%s329 + $0x210] sm:$0xff]
        %v483 = vld [vmem:[%s329 + $0x218] sm:$0xff]
        %v484 = vld [vmem:[%s329 + $0x220] sm:$0xff]
        %v485 = vld [vmem:[%s329 + $0x228] sm:$0xff]
        %v486 = vld [vmem:[%s329 + $0x230] sm:$0xff]
        %v487 = vld [vmem:[%s329 + $0x238] sm:$0xff]
        %v488 = vld [vmem:[%s329 + $0x240] sm:$0xff]
        %v489 = vld [vmem:[%s329 + $0x248] sm:$0xff]
        %v490 = vld [vmem:[%s329 + $0x250] sm:$0xff]
        %v491 = vld [vmem:[%s329 + $0x258] sm:$0xff]
        %v492 = vld [vmem:[%s329 + $0x260] sm:$0xff]
        %v493 = vld [vmem:[%s329 + $0x268] sm:$0xff]
        %v494 = vld [vmem:[%s329 + $0x270] sm:$0xff]
        %v495 = vld [vmem:[%s329 + $0x278] sm:$0xff]
        %v496 = vld [vmem:[%s329 + $0x280] sm:$0xff]
        %v497 = vld [vmem:[%s329 + $0x288] sm:$0xff]
        %v498 = vld [vmem:[%s329 + $0x290] sm:$0xff]
        %v499 = vld [vmem:[%s329 + $0x298] sm:$0xff]
        %v500 = vld [vmem:[%s329 + $0x2a0] sm:$0xff]
        %v501 = vld [vmem:[%s329 + $0x2a8] sm:$0xff]
        %v502 = vld [vmem:[%s329 + $0x2b0] sm:$0xff]
        %v503 = vld [vmem:[%s329 + $0x2b8] sm:$0xff]
        %v504 = vld [vmem:[%s329 + $0x2c0] sm:$0xff]
        %v505 = vld [vmem:[%s329 + $0x2c8] sm:$0xff]
        %v506 = vld [vmem:[%s329 + $0x2d0] sm:$0xff]
        %v507 = vld [vmem:[%s329 + $0x2d8] sm:$0xff]
        %v508 = vld [vmem:[%s329 + $0x2e0] sm:$0xff]
        %v509 = vld [vmem:[%s329 + $0x2e8] sm:$0xff]
        %v510 = vld [vmem:[%s329 + $0x2f0] sm:$0xff]
        %v511 = vld [vmem:[%s329 + $0x2f8] sm:$0xff]
        %v512 = vld [vmem:[%s329 + $0x300] sm:$0xff]
        %v513 = vld [vmem:[%s329 + $0x308] sm:$0xff]
        %v514 = vld [vmem:[%s329 + $0x310] sm:$0xff]
        %v515 = vld [vmem:[%s329 + $0x318] sm:$0xff]
        %v516 = vld [vmem:[%s329 + $0x320] sm:$0xff]
        %v517 = vld [vmem:[%s329 + $0x328] sm:$0xff]
        %v518 = vld [vmem:[%s329 + $0x330] sm:$0xff]
        %v519 = vld [vmem:[%s329 + $0x338] sm:$0xff]
        %v520 = vld [vmem:[%s329 + $0x340] sm:$0xff]
        %v521 = vld [vmem:[%s329 + $0x348] sm:$0xff]
        %v522 = vld [vmem:[%s329 + $0x350] sm:$0xff]
        %v523 = vld [vmem:[%s329 + $0x358] sm:$0xff]
        %v524 = vld [vmem:[%s329 + $0x360] sm:$0xff]
        %v525 = vld [vmem:[%s329 + $0x368] sm:$0xff]
        %v526 = vld [vmem:[%s329 + $0x370] sm:$0xff]
        %v527 = vld [vmem:[%s329 + $0x378] sm:$0xff]
        %v528 = vld [vmem:[%s329 + $0x380] sm:$0xff]
        %v529 = vld [vmem:[%s329 + $0x388] sm:$0xff]
        %v530 = vld [vmem:[%s329 + $0x390] sm:$0xff]
        %v531 = vld [vmem:[%s329 + $0x398] sm:$0xff]
        %v532 = vld [vmem:[%s329 + $0x3a0] sm:$0xff]
        %v533 = vld [vmem:[%s329 + $0x3a8] sm:$0xff]
        %v534 = vld [vmem:[%s329 + $0x3b0] sm:$0xff]
        %v535 = vld [vmem:[%s329 + $0x3b8] sm:$0xff]
        %v536 = vld [vmem:[%s329 + $0x3c0] sm:$0xff]
        %v537 = vld [vmem:[%s329 + $0x3c8] sm:$0xff]
        %v538 = vld [vmem:[%s329 + $0x3d0] sm:$0xff]
        %v539 = vld [vmem:[%s329 + $0x3d8] sm:$0xff]
        %v540 = vld [vmem:[%s329 + $0x3e0] sm:$0xff]
        %v541 = vld [vmem:[%s329 + $0x3e8] sm:$0xff]
        %v542 = vld [vmem:[%s329 + $0x3f0] sm:$0xff]
        %v543 = vld [vmem:[%s329 + $0x3f8] sm:$0xff]
        %v544 = vld [vmem:[%s329 + $0x400] sm:$0xff]
        %v545 = vld [vmem:[%s329 + $0x408] sm:$0xff]
        %v546 = vld [vmem:[%s329 + $0x410] sm:$0xff]
        %v547 = vld [vmem:[%s329 + $0x418] sm:$0xff]
        %v548 = vld [vmem:[%s329 + $0x420] sm:$0xff]
        %v549 = vld [vmem:[%s329 + $0x428] sm:$0xff]
        %v550 = vld [vmem:[%s329 + $0x430] sm:$0xff]
        %v551 = vld [vmem:[%s329 + $0x438] sm:$0xff]
        %v552 = vld [vmem:[%s329 + $0x440] sm:$0xff]
        %v553 = vld [vmem:[%s329 + $0x448] sm:$0xff]
        %v554 = vld [vmem:[%s329 + $0x450] sm:$0xff]
        %v555 = vld [vmem:[%s329 + $0x458] sm:$0xff]
        %v556 = vld [vmem:[%s329 + $0x460] sm:$0xff]
        %v557 = vld [vmem:[%s329 + $0x468] sm:$0xff]
        %v558 = vld [vmem:[%s329 + $0x470] sm:$0xff]
        %v559 = vld [vmem:[%s329 + $0x478] sm:$0xff]
        %v560 = vld [vmem:[%s329 + $0x480] sm:$0xff]
        %v561 = vld [vmem:[%s329 + $0x488] sm:$0xff]
        %v562 = vld [vmem:[%s329 + $0x490] sm:$0xff]
        %v563 = vld [vmem:[%s329 + $0x498] sm:$0xff]
        %v564 = vld [vmem:[%s329 + $0x4a0] sm:$0xff]
        %v565 = vld [vmem:[%s329 + $0x4a8] sm:$0xff]
        %v566 = vld [vmem:[%s329 + $0x4b0] sm:$0xff]
        %v567 = vld [vmem:[%s329 + $0x4b8] sm:$0xff]
        %v568 = vld [vmem:[%s329 + $0x4c0] sm:$0xff]
        %v569 = vld [vmem:[%s329 + $0x4c8] sm:$0xff]
        %v570 = vld [vmem:[%s329 + $0x4d0] sm:$0xff]
        %v571 = vld [vmem:[%s329 + $0x4d8] sm:$0xff]
        %v572 = vld [vmem:[%s329 + $0x4e0] sm:$0xff]
        %v573 = vld [vmem:[%s329 + $0x4e8] sm:$0xff]
        %v574 = vld [vmem:[%s329 + $0x4f0] sm:$0xff]
        %v575 = vld [vmem:[%s329 + $0x4f8] sm:$0xff]
        %v576 = vld [vmem:[%s329 + $0x500] sm:$0xff]
        %v577 = vld [vmem:[%s329 + $0x508] sm:$0xff]
        %v578 = vld [vmem:[%s329 + $0x510] sm:$0xff]
        %v579 = vld [vmem:[%s329 + $0x518] sm:$0xff]
        %v580 = vld [vmem:[%s329 + $0x520] sm:$0xff]
        %v581 = vld [vmem:[%s329 + $0x528] sm:$0xff]
        %v582 = vld [vmem:[%s329 + $0x530] sm:$0xff]
        %v583 = vld [vmem:[%s329 + $0x538] sm:$0xff]
        %v584 = vld [vmem:[%s329 + $0x540] sm:$0xff]
        %v585 = vld [vmem:[%s329 + $0x548] sm:$0xff]
        %v586 = vld [vmem:[%s329 + $0x550] sm:$0xff]
        %v587 = vld [vmem:[%s329 + $0x558] sm:$0xff]
        %v588 = vld [vmem:[%s329 + $0x560] sm:$0xff]
        %v589 = vld [vmem:[%s329 + $0x568] sm:$0xff]
        %v590 = vld [vmem:[%s329 + $0x570] sm:$0xff]
        %v591 = vld [vmem:[%s329 + $0x578] sm:$0xff]
        %v592 = vld [vmem:[%s329 + $0x580] sm:$0xff]
        %v593 = vld [vmem:[%s329 + $0x588] sm:$0xff]
        %v594 = vld [vmem:[%s329 + $0x590] sm:$0xff]
        %v595 = vld [vmem:[%s329 + $0x598] sm:$0xff]
        %v596 = vld [vmem:[%s329 + $0x5a0] sm:$0xff]
        %v597 = vld [vmem:[%s329 + $0x5a8] sm:$0xff]
        %v598 = vld [vmem:[%s329 + $0x5b0] sm:$0xff]
        %v599 = vld [vmem:[%s329 + $0x5b8] sm:$0xff]
        %v600 = vld [vmem:[%s329 + $0x5c0] sm:$0xff]
        %v601 = vld [vmem:[%s329 + $0x5c8] sm:$0xff]
        %v602 = vld [vmem:[%s329 + $0x5d0] sm:$0xff]
        %v603 = vld [vmem:[%s329 + $0x5d8] sm:$0xff]
        %v604 = vld [vmem:[%s329 + $0x5e0] sm:$0xff]
        %v605 = vld [vmem:[%s329 + $0x5e8] sm:$0xff]
        %v606 = vld [vmem:[%s329 + $0x5f0] sm:$0xff]
        %v607 = vld [vmem:[%s329 + $0x5f8] sm:$0xff]
        %v608 = vld [vmem:[%s329 + $0x600] sm:$0xff]
        %v609 = vld [vmem:[%s329 + $0x608] sm:$0xff]
        %v610 = vld [vmem:[%s329 + $0x610] sm:$0xff]
        %v611 = vld [vmem:[%s329 + $0x618] sm:$0xff]
        %v612 = vld [vmem:[%s329 + $0x620] sm:$0xff]
        %v613 = vld [vmem:[%s329 + $0x628] sm:$0xff]
        %v614 = vld [vmem:[%s329 + $0x630] sm:$0xff]
        %v615 = vld [vmem:[%s329 + $0x638] sm:$0xff]
        %v616 = vld [vmem:[%s329 + $0x640] sm:$0xff]
        %v617 = vld [vmem:[%s329 + $0x648] sm:$0xff]
        %v618 = vld [vmem:[%s329 + $0x650] sm:$0xff]
        %v619 = vld [vmem:[%s329 + $0x658] sm:$0xff]
        %v620 = vld [vmem:[%s329 + $0x660] sm:$0xff]
        %v621 = vld [vmem:[%s329 + $0x668] sm:$0xff]
        %v622 = vld [vmem:[%s329 + $0x670] sm:$0xff]
        %v623 = vld [vmem:[%s329 + $0x678] sm:$0xff]
        %v624 = vld [vmem:[%s329 + $0x680] sm:$0xff]
        %v625 = vld [vmem:[%s329 + $0x688] sm:$0xff]
        %v626 = vld [vmem:[%s329 + $0x690] sm:$0xff]
        %v627 = vld [vmem:[%s329 + $0x698] sm:$0xff]
        %v628 = vld [vmem:[%s329 + $0x6a0] sm:$0xff]
        %v629 = vld [vmem:[%s329 + $0x6a8] sm:$0xff]
        %v630 = vld [vmem:[%s329 + $0x6b0] sm:$0xff]
        %v631 = vld [vmem:[%s329 + $0x6b8] sm:$0xff]
        %v632 = vld [vmem:[%s329 + $0x6c0] sm:$0xff]
        %v633 = vld [vmem:[%s329 + $0x6c8] sm:$0xff]
        %v634 = vld [vmem:[%s329 + $0x6d0] sm:$0xff]
        %v635 = vld [vmem:[%s329 + $0x6d8] sm:$0xff]
        %v636 = vld [vmem:[%s329 + $0x6e0] sm:$0xff]
        %v637 = vld [vmem:[%s329 + $0x6e8] sm:$0xff]
        %v638 = vld [vmem:[%s329 + $0x6f0] sm:$0xff]
        %v639 = vld [vmem:[%s329 + $0x6f8] sm:$0xff]
        %v640 = vld [vmem:[%s329 + $0x700] sm:$0xff]
        %v641 = vld [vmem:[%s329 + $0x708] sm:$0xff]
        %v642 = vld [vmem:[%s329 + $0x710] sm:$0xff]
        %v643 = vld [vmem:[%s329 + $0x718] sm:$0xff]
        %v644 = vld [vmem:[%s329 + $0x720] sm:$0xff]
        %v645 = vld [vmem:[%s329 + $0x728] sm:$0xff]
        %v646 = vld [vmem:[%s329 + $0x730] sm:$0xff]
        %v647 = vld [vmem:[%s329 + $0x738] sm:$0xff]
        %v648 = vld [vmem:[%s329 + $0x740] sm:$0xff]
        %v649 = vld [vmem:[%s329 + $0x748] sm:$0xff]
        %v650 = vld [vmem:[%s329 + $0x750] sm:$0xff]
        %v651 = vld [vmem:[%s329 + $0x758] sm:$0xff]
        %v652 = vld [vmem:[%s329 + $0x760] sm:$0xff]
        %v653 = vld [vmem:[%s329 + $0x768] sm:$0xff]
        %v654 = vld [vmem:[%s329 + $0x770] sm:$0xff]
        %v655 = vld [vmem:[%s329 + $0x778] sm:$0xff]
        %v656 = vld [vmem:[%s329 + $0x780] sm:$0xff]
        %v657 = vld [vmem:[%s329 + $0x788] sm:$0xff]
        %v658 = vld [vmem:[%s329 + $0x790] sm:$0xff]
        %v659 = vld [vmem:[%s329 + $0x798] sm:$0xff]
        %v660 = vld [vmem:[%s329 + $0x7a0] sm:$0xff]
        %v661 = vld [vmem:[%s329 + $0x7a8] sm:$0xff]
        %v662 = vld [vmem:[%s329 + $0x7b0] sm:$0xff]
        %v663 = vld [vmem:[%s329 + $0x7b8] sm:$0xff]
        %v664 = vld [vmem:[%s329 + $0x7c0] sm:$0xff]
        %v665 = vld [vmem:[%s329 + $0x7c8] sm:$0xff]
        %v666 = vld [vmem:[%s329 + $0x7d0] sm:$0xff]
        %v667 = vld [vmem:[%s329 + $0x7d8] sm:$0xff]
        %v668 = vld [vmem:[%s329 + $0x7e0] sm:$0xff]
        %v669 = vld [vmem:[%s329 + $0x7e8] sm:$0xff]
        %v670 = vld [vmem:[%s329 + $0x7f0] sm:$0xff]
        %v671 = vld [vmem:[%s329 + $0x7f8] sm:$0xff]
        %v672 = vld [vmem:[%s329 + $0x800] sm:$0xff]
        %v673 = vld [vmem:[%s329 + $0x808] sm:$0xff]
        %v674 = vld [vmem:[%s329 + $0x810] sm:$0xff]
        %v675 = vld [vmem:[%s329 + $0x818] sm:$0xff]
        %v676 = vld [vmem:[%s329 + $0x820] sm:$0xff]
        %v677 = vld [vmem:[%s329 + $0x828] sm:$0xff]
        %v678 = vld [vmem:[%s329 + $0x830] sm:$0xff]
        %v679 = vld [vmem:[%s329 + $0x838] sm:$0xff]
        %v680 = vld [vmem:[%s329 + $0x840] sm:$0xff]
        %v681 = vld [vmem:[%s329 + $0x848] sm:$0xff]
        %v682 = vld [vmem:[%s329 + $0x850] sm:$0xff]
        %v683 = vld [vmem:[%s329 + $0x858] sm:$0xff]
        %v684 = vld [vmem:[%s329 + $0x860] sm:$0xff]
        %v685 = vld [vmem:[%s329 + $0x868] sm:$0xff]
        %v686 = vld [vmem:[%s329 + $0x870] sm:$0xff]
        %v687 = vld [vmem:[%s329 + $0x878] sm:$0xff]
        %v688 = vld [vmem:[%s329 + $0x880] sm:$0xff]
        %v689 = vld [vmem:[%s329 + $0x888] sm:$0xff]
        %v690 = vld [vmem:[%s329 + $0x890] sm:$0xff]
        %v691 = vld [vmem:[%s329 + $0x898] sm:$0xff]
        %v692 = vld [vmem:[%s329 + $0x8a0] sm:$0xff]
        %v693 = vld [vmem:[%s329 + $0x8a8] sm:$0xff]
        %v694 = vld [vmem:[%s329 + $0x8b0] sm:$0xff]
        %v695 = vld [vmem:[%s329 + $0x8b8] sm:$0xff]
        %v696 = vld [vmem:[%s329 + $0x8c0] sm:$0xff]
        %v697 = vld [vmem:[%s329 + $0x8c8] sm:$0xff]
        %v698 = vld [vmem:[%s329 + $0x8d0] sm:$0xff]
        %v699 = vld [vmem:[%s329 + $0x8d8] sm:$0xff]
        %v700 = vld [vmem:[%s329 + $0x8e0] sm:$0xff]
        %v701 = vld [vmem:[%s329 + $0x8e8] sm:$0xff]
        %v702 = vld [vmem:[%s329 + $0x8f0] sm:$0xff]
        %v703 = vld [vmem:[%s329 + $0x8f8] sm:$0xff]
        %v704 = vld [vmem:[%s329 + $0x900] sm:$0xff]
        %v705 = vld [vmem:[%s329 + $0x908] sm:$0xff]
        %v706 = vld [vmem:[%s329 + $0x910] sm:$0xff]
        %v707 = vld [vmem:[%s329 + $0x918] sm:$0xff]
        %v708 = vld [vmem:[%s329 + $0x920] sm:$0xff]
        %v709 = vld [vmem:[%s329 + $0x928] sm:$0xff]
        %v710 = vld [vmem:[%s329 + $0x930] sm:$0xff]
        %v711 = vld [vmem:[%s329 + $0x938] sm:$0xff]
        %v712 = vld [vmem:[%s329 + $0x940] sm:$0xff]
        %v713 = vld [vmem:[%s329 + $0x948] sm:$0xff]
        %v714 = vld [vmem:[%s329 + $0x950] sm:$0xff]
        %v715 = vld [vmem:[%s329 + $0x958] sm:$0xff]
        %v716 = vld [vmem:[%s329 + $0x960] sm:$0xff]
        %v717 = vld [vmem:[%s329 + $0x968] sm:$0xff]
        %v718 = vld [vmem:[%s329 + $0x970] sm:$0xff]
        %v719 = vld [vmem:[%s329 + $0x978] sm:$0xff]
        %v720 = vld [vmem:[%s329 + $0x980] sm:$0xff]
        %v721 = vld [vmem:[%s329 + $0x988] sm:$0xff]
        %v722 = vld [vmem:[%s329 + $0x990] sm:$0xff]
        %v723 = vld [vmem:[%s329 + $0x998] sm:$0xff]
        %v724 = vld [vmem:[%s329 + $0x9a0] sm:$0xff]
        %v725 = vld [vmem:[%s329 + $0x9a8] sm:$0xff]
        %v726 = vld [vmem:[%s329 + $0x9b0] sm:$0xff]
        %v727 = vld [vmem:[%s329 + $0x9b8] sm:$0xff]
        %v728 = vld [vmem:[%s329 + $0x9c0] sm:$0xff]
        %v729 = vld [vmem:[%s329 + $0x9c8] sm:$0xff]
        %v730 = vld [vmem:[%s329 + $0x9d0] sm:$0xff]
        %v731 = vld [vmem:[%s329 + $0x9d8] sm:$0xff]
        %v732 = vld [vmem:[%s329 + $0x9e0] sm:$0xff]
        %v733 = vld [vmem:[%s329 + $0x9e8] sm:$0xff]
        %v734 = vld [vmem:[%s329 + $0x9f0] sm:$0xff]
        %v735 = vld [vmem:[%s329 + $0x9f8] sm:$0xff]
        %v736 = vld [vmem:[%s329 + $0xa00] sm:$0xff]
        %v737 = vld [vmem:[%s329 + $0xa08] sm:$0xff]
        %v738 = vld [vmem:[%s329 + $0xa10] sm:$0xff]
        %v739 = vld [vmem:[%s329 + $0xa18] sm:$0xff]
        %v740 = vld [vmem:[%s329 + $0xa20] sm:$0xff]
        %v741 = vld [vmem:[%s329 + $0xa28] sm:$0xff]
        %v742 = vld [vmem:[%s329 + $0xa30] sm:$0xff]
        %v743 = vld [vmem:[%s329 + $0xa38] sm:$0xff]
        %v744 = vld [vmem:[%s329 + $0xa40] sm:$0xff]
        %v745 = vld [vmem:[%s329 + $0xa48] sm:$0xff]
        %v746 = vld [vmem:[%s329 + $0xa50] sm:$0xff]
        %v747 = vld [vmem:[%s329 + $0xa58] sm:$0xff]
        %v748 = vld [vmem:[%s329 + $0xa60] sm:$0xff]
        %v749 = vld [vmem:[%s329 + $0xa68] sm:$0xff]
        %v750 = vld [vmem:[%s329 + $0xa70] sm:$0xff]
        %v751 = vld [vmem:[%s329 + $0xa78] sm:$0xff]
        %v752 = vld [vmem:[%s329 + $0xa80] sm:$0xff]
        %v753 = vld [vmem:[%s329 + $0xa88] sm:$0xff]
        %v754 = vld [vmem:[%s329 + $0xa90] sm:$0xff]
        %v755 = vld [vmem:[%s329 + $0xa98] sm:$0xff]
        %v756 = vld [vmem:[%s329 + $0xaa0] sm:$0xff]
        %v757 = vld [vmem:[%s329 + $0xaa8] sm:$0xff]
        %v758 = vld [vmem:[%s329 + $0xab0] sm:$0xff]
        %v759 = vld [vmem:[%s329 + $0xab8] sm:$0xff]
        %v760 = vld [vmem:[%s329 + $0xac0] sm:$0xff]
        %v761 = vld [vmem:[%s329 + $0xac8] sm:$0xff]
        %v762 = vld [vmem:[%s329 + $0xad0] sm:$0xff]
        %v763 = vld [vmem:[%s329 + $0xad8] sm:$0xff]
        %v764 = vld [vmem:[%s329 + $0xae0] sm:$0xff]
        %v765 = vld [vmem:[%s329 + $0xae8] sm:$0xff]
        %v766 = vld [vmem:[%s329 + $0xaf0] sm:$0xff]
        %v767 = vld [vmem:[%s329 + $0xaf8] sm:$0xff]
        %v768 = vld [vmem:[%s329 + $0xb00] sm:$0xff]
        %v769 = vld [vmem:[%s329 + $0xb08] sm:$0xff]
        %v770 = vld [vmem:[%s329 + $0xb10] sm:$0xff]
        %v771 = vld [vmem:[%s329 + $0xb18] sm:$0xff]
        %v772 = vld [vmem:[%s329 + $0xb20] sm:$0xff]
        %v773 = vld [vmem:[%s329 + $0xb28] sm:$0xff]
        %v774 = vld [vmem:[%s329 + $0xb30] sm:$0xff]
        %v775 = vld [vmem:[%s329 + $0xb38] sm:$0xff]
        %v776 = vld [vmem:[%s329 + $0xb40] sm:$0xff]
        %v777 = vld [vmem:[%s329 + $0xb48] sm:$0xff]
        %v778 = vld [vmem:[%s329 + $0xb50] sm:$0xff]
        %v779 = vld [vmem:[%s329 + $0xb58] sm:$0xff]
        %v780 = vld [vmem:[%s329 + $0xb60] sm:$0xff]
        %v781 = vld [vmem:[%s329 + $0xb68] sm:$0xff]
        %v782 = vld [vmem:[%s329 + $0xb70] sm:$0xff]
        %v783 = vld [vmem:[%s329 + $0xb78] sm:$0xff]
        %v784 = vld [vmem:[%s329 + $0xb80] sm:$0xff]
        %v785 = vld [vmem:[%s329 + $0xb88] sm:$0xff]
        %v786 = vld [vmem:[%s329 + $0xb90] sm:$0xff]
        %v787 = vld [vmem:[%s329 + $0xb98] sm:$0xff]
        %v788 = vld [vmem:[%s329 + $0xba0] sm:$0xff]
        %v789 = vld [vmem:[%s329 + $0xba8] sm:$0xff]
        %v790 = vld [vmem:[%s329 + $0xbb0] sm:$0xff]
        %v791 = vld [vmem:[%s329 + $0xbb8] sm:$0xff]
        %v792 = vld [vmem:[%s329 + $0xbc0] sm:$0xff]
        %v793 = vld [vmem:[%s329 + $0xbc8] sm:$0xff]
        %v794 = vld [vmem:[%s329 + $0xbd0] sm:$0xff]
        %v795 = vld [vmem:[%s329 + $0xbd8] sm:$0xff]
        %v796 = vld [vmem:[%s329 + $0xbe0] sm:$0xff]
        %v797 = vld [vmem:[%s329 + $0xbe8] sm:$0xff]
        %v798 = vld [vmem:[%s329 + $0xbf0] sm:$0xff]
        %v799 = vld [vmem:[%s329 + $0xbf8] sm:$0xff]
        %v800 = vld [vmem:[%s329 + $0xc00] sm:$0xff]
        %v801 = vld [vmem:[%s329 + $0xc08] sm:$0xff]
        %v802 = vld [vmem:[%s329 + $0xc10] sm:$0xff]
        %v803 = vld [vmem:[%s329 + $0xc18] sm:$0xff]
        %v804 = vld [vmem:[%s329 + $0xc20] sm:$0xff]
        %v805 = vld [vmem:[%s329 + $0xc28] sm:$0xff]
        %v806 = vld [vmem:[%s329 + $0xc30] sm:$0xff]
        %v807 = vld [vmem:[%s329 + $0xc38] sm:$0xff]
        %v808 = vld [vmem:[%s329 + $0xc40] sm:$0xff]
        %v809 = vld [vmem:[%s329 + $0xc48] sm:$0xff]
        %v810 = vld [vmem:[%s329 + $0xc50] sm:$0xff]
        %v811 = vld [vmem:[%s329 + $0xc58] sm:$0xff]
        %v812 = vld [vmem:[%s329 + $0xc60] sm:$0xff]
        %v813 = vld [vmem:[%s329 + $0xc68] sm:$0xff]
        %v814 = vld [vmem:[%s329 + $0xc70] sm:$0xff]
        %v815 = vld [vmem:[%s329 + $0xc78] sm:$0xff]
        %v816 = vld [vmem:[%s329 + $0xc80] sm:$0xff]
        %v817 = vld [vmem:[%s329 + $0xc88] sm:$0xff]
        %v818 = vld [vmem:[%s329 + $0xc90] sm:$0xff]
        %v819 = vld [vmem:[%s329 + $0xc98] sm:$0xff]
        %v820 = vld [vmem:[%s329 + $0xca0] sm:$0xff]
        %v821 = vld [vmem:[%s329 + $0xca8] sm:$0xff]
        %v822 = vld [vmem:[%s329 + $0xcb0] sm:$0xff]
        %v823 = vld [vmem:[%s329 + $0xcb8] sm:$0xff]
        %v824 = vld [vmem:[%s329 + $0xcc0] sm:$0xff]
        %v825 = vld [vmem:[%s329 + $0xcc8] sm:$0xff]
        %v826 = vld [vmem:[%s329 + $0xcd0] sm:$0xff]
        %v827 = vld [vmem:[%s329 + $0xcd8] sm:$0xff]
        %v828 = vld [vmem:[%s329 + $0xce0] sm:$0xff]
        %v829 = vld [vmem:[%s329 + $0xce8] sm:$0xff]
        %v830 = vld [vmem:[%s329 + $0xcf0] sm:$0xff]
        %v831 = vld [vmem:[%s329 + $0xcf8] sm:$0xff]
        %v832 = vld [vmem:[%s329 + $0xd00] sm:$0xff]
        %v833 = vld [vmem:[%s329 + $0xd08] sm:$0xff]
        %v834 = vld [vmem:[%s329 + $0xd10] sm:$0xff]
        %v835 = vld [vmem:[%s329 + $0xd18] sm:$0xff]
        %v836 = vld [vmem:[%s329 + $0xd20] sm:$0xff]
        %v837 = vld [vmem:[%s329 + $0xd28] sm:$0xff]
        %v838 = vld [vmem:[%s329 + $0xd30] sm:$0xff]
        %v839 = vld [vmem:[%s329 + $0xd38] sm:$0xff]
        %v840 = vld [vmem:[%s329 + $0xd40] sm:$0xff]
        %v841 = vld [vmem:[%s329 + $0xd48] sm:$0xff]
        %v842 = vld [vmem:[%s329 + $0xd50] sm:$0xff]
        %v843 = vld [vmem:[%s329 + $0xd58] sm:$0xff]
        %v844 = vld [vmem:[%s329 + $0xd60] sm:$0xff]
        %v845 = vld [vmem:[%s329 + $0xd68] sm:$0xff]
        %v846 = vld [vmem:[%s329 + $0xd70] sm:$0xff]
        %v847 = vld [vmem:[%s329 + $0xd78] sm:$0xff]
        %v848 = vld [vmem:[%s329 + $0xd80] sm:$0xff]
        %v849 = vld [vmem:[%s329 + $0xd88] sm:$0xff]
        %v850 = vld [vmem:[%s329 + $0xd90] sm:$0xff]
        %v851 = vld [vmem:[%s329 + $0xd98] sm:$0xff]
        %v852 = vld [vmem:[%s329 + $0xda0] sm:$0xff]
        %v853 = vld [vmem:[%s329 + $0xda8] sm:$0xff]
        %v854 = vld [vmem:[%s329 + $0xdb0] sm:$0xff]
        %v855 = vld [vmem:[%s329 + $0xdb8] sm:$0xff]
        %v856 = vld [vmem:[%s329 + $0xdc0] sm:$0xff]
        %v857 = vld [vmem:[%s329 + $0xdc8] sm:$0xff]
        %v858 = vld [vmem:[%s329 + $0xdd0] sm:$0xff]
        %v859 = vld [vmem:[%s329 + $0xdd8] sm:$0xff]
        %v860 = vld [vmem:[%s329 + $0xde0] sm:$0xff]
        %v861 = vld [vmem:[%s329 + $0xde8] sm:$0xff]
        %v862 = vld [vmem:[%s329 + $0xdf0] sm:$0xff]
        %v863 = vld [vmem:[%s329 + $0xdf8] sm:$0xff]
        %v864 = vld [vmem:[%s329 + $0xe00] sm:$0xff]
        %v865 = vld [vmem:[%s329 + $0xe08] sm:$0xff]
        %v866 = vld [vmem:[%s329 + $0xe10] sm:$0xff]
        %v867 = vld [vmem:[%s329 + $0xe18] sm:$0xff]
        %v868 = vld [vmem:[%s329 + $0xe20] sm:$0xff]
        %v869 = vld [vmem:[%s329 + $0xe28] sm:$0xff]
        %v870 = vld [vmem:[%s329 + $0xe30] sm:$0xff]
        %v871 = vld [vmem:[%s329 + $0xe38] sm:$0xff]
        %v872 = vld [vmem:[%s329 + $0xe40] sm:$0xff]
        %v873 = vld [vmem:[%s329 + $0xe48] sm:$0xff]
        %v874 = vld [vmem:[%s329 + $0xe50] sm:$0xff]
        %v875 = vld [vmem:[%s329 + $0xe58] sm:$0xff]
        %v876 = vld [vmem:[%s329 + $0xe60] sm:$0xff]
        %v877 = vld [vmem:[%s329 + $0xe68] sm:$0xff]
        %v878 = vld [vmem:[%s329 + $0xe70] sm:$0xff]
        %v879 = vld [vmem:[%s329 + $0xe78] sm:$0xff]
        %v880 = vld [vmem:[%s329 + $0xe80] sm:$0xff]
        %v881 = vld [vmem:[%s329 + $0xe88] sm:$0xff]
        %v882 = vld [vmem:[%s329 + $0xe90] sm:$0xff]
        %v883 = vld [vmem:[%s329 + $0xe98] sm:$0xff]
        %v884 = vld [vmem:[%s329 + $0xea0] sm:$0xff]
        %v885 = vld [vmem:[%s329 + $0xea8] sm:$0xff]
        %v886 = vld [vmem:[%s329 + $0xeb0] sm:$0xff]
        %v887 = vld [vmem:[%s329 + $0xeb8] sm:$0xff]
        %v888 = vld [vmem:[%s329 + $0xec0] sm:$0xff]
        %v889 = vld [vmem:[%s329 + $0xec8] sm:$0xff]
        %v890 = vld [vmem:[%s329 + $0xed0] sm:$0xff]
        %v891 = vld [vmem:[%s329 + $0xed8] sm:$0xff]
        %v892 = vld [vmem:[%s329 + $0xee0] sm:$0xff]
        %v893 = vld [vmem:[%s329 + $0xee8] sm:$0xff]
        %v894 = vld [vmem:[%s329 + $0xef0] sm:$0xff]
        %v895 = vld [vmem:[%s329 + $0xef8] sm:$0xff]
        %v896 = vld [vmem:[%s329 + $0xf00] sm:$0xff]
        %v897 = vld [vmem:[%s329 + $0xf08] sm:$0xff]
        %v898 = vld [vmem:[%s329 + $0xf10] sm:$0xff]
        %v899 = vld [vmem:[%s329 + $0xf18] sm:$0xff]
        %v900 = vld [vmem:[%s329 + $0xf20] sm:$0xff]
        %v901 = vld [vmem:[%s329 + $0xf28] sm:$0xff]
        %v902 = vld [vmem:[%s329 + $0xf30] sm:$0xff]
        %v903 = vld [vmem:[%s329 + $0xf38] sm:$0xff]
        %v904 = vld [vmem:[%s329 + $0xf40] sm:$0xff]
        %v905 = vld [vmem:[%s329 + $0xf48] sm:$0xff]
        %v906 = vld [vmem:[%s329 + $0xf50] sm:$0xff]
        %v907 = vld [vmem:[%s329 + $0xf58] sm:$0xff]
        %v908 = vld [vmem:[%s329 + $0xf60] sm:$0xff]
        %v909 = vld [vmem:[%s329 + $0xf68] sm:$0xff]
        %v910 = vld [vmem:[%s329 + $0xf70] sm:$0xff]
        %v911 = vld [vmem:[%s329 + $0xf78] sm:$0xff]
        %v912 = vld [vmem:[%s329 + $0xf80] sm:$0xff]
        %v913 = vld [vmem:[%s329 + $0xf88] sm:$0xff]
        %v914 = vld [vmem:[%s329 + $0xf90] sm:$0xff]
        %v915 = vld [vmem:[%s329 + $0xf98] sm:$0xff]
        %v916 = vld [vmem:[%s329 + $0xfa0] sm:$0xff]
        %v917 = vld [vmem:[%s329 + $0xfa8] sm:$0xff]
        %v918 = vld [vmem:[%s329 + $0xfb0] sm:$0xff]
        %v919 = vld [vmem:[%s329 + $0xfb8] sm:$0xff]
        %v920 = vld [vmem:[%s329 + $0xfc0] sm:$0xff]
        %v921 = vld [vmem:[%s329 + $0xfc8] sm:$0xff]
        %v922 = vld [vmem:[%s329 + $0xfd0] sm:$0xff]
        %v923 = vld [vmem:[%s329 + $0xfd8] sm:$0xff]
        %v924 = vld [vmem:[%s329 + $0xfe0] sm:$0xff]
        %v925 = vld [vmem:[%s329 + $0xfe8] sm:$0xff]
        %v926 = vld [vmem:[%s329 + $0xff0] sm:$0xff]
        %v927 = vld [vmem:[%s329 + $0xff8] sm:$0xff]
        %v928 = vld [vmem:[%s329 + $0x1000] sm:$0xff]
        %v929 = vld [vmem:[%s329 + $0x1008] sm:$0xff]
        %v930 = vld [vmem:[%s329 + $0x1010] sm:$0xff]
        %v931 = vld [vmem:[%s329 + $0x1018] sm:$0xff]
        %v932 = vld [vmem:[%s329 + $0x1020] sm:$0xff]
        %v933 = vld [vmem:[%s329 + $0x1028] sm:$0xff]
        %v934 = vld [vmem:[%s329 + $0x1030] sm:$0xff]
        %v935 = vld [vmem:[%s329 + $0x1038] sm:$0xff]
        %v936 = vld [vmem:[%s329 + $0x1040] sm:$0xff]
        %v937 = vld [vmem:[%s329 + $0x1048] sm:$0xff]
        %v938 = vld [vmem:[%s329 + $0x1050] sm:$0xff]
        %v939 = vld [vmem:[%s329 + $0x1058] sm:$0xff]
        %v940 = vld [vmem:[%s329 + $0x1060] sm:$0xff]
        %v941 = vld [vmem:[%s329 + $0x1068] sm:$0xff]
        %v942 = vld [vmem:[%s329 + $0x1070] sm:$0xff]
        %v943 = vld [vmem:[%s329 + $0x1078] sm:$0xff]
        %v944 = vld [vmem:[%s329 + $0x1080] sm:$0xff]
        %v945 = vld [vmem:[%s329 + $0x1088] sm:$0xff]
        %v946 = vld [vmem:[%s329 + $0x1090] sm:$0xff]
        %v947 = vld [vmem:[%s329 + $0x1098] sm:$0xff]
        %v948 = vld [vmem:[%s329 + $0x10a0] sm:$0xff]
        %v949 = vld [vmem:[%s329 + $0x10a8] sm:$0xff]
        %v950 = vld [vmem:[%s329 + $0x10b0] sm:$0xff]
        %v951 = vld [vmem:[%s329 + $0x10b8] sm:$0xff]
        %v952 = vld [vmem:[%s329 + $0x10c0] sm:$0xff]
        %v953 = vld [vmem:[%s329 + $0x10c8] sm:$0xff]
        %v954 = vld [vmem:[%s329 + $0x10d0] sm:$0xff]
        %v955 = vld [vmem:[%s329 + $0x10d8] sm:$0xff]
        %v956 = vld [vmem:[%s329 + $0x10e0] sm:$0xff]
        %v957 = vld [vmem:[%s329 + $0x10e8] sm:$0xff]
        %v958 = vld [vmem:[%s329 + $0x10f0] sm:$0xff]
        %v959 = vld [vmem:[%s329 + $0x10f8] sm:$0xff]
        %v960 = vld [vmem:[%s329 + $0x1100] sm:$0xff]
        %v961 = vld [vmem:[%s329 + $0x1108] sm:$0xff]
        %v962 = vld [vmem:[%s329 + $0x1110] sm:$0xff]
        %v963 = vld [vmem:[%s329 + $0x1118] sm:$0xff]
        %v964 = vld [vmem:[%s329 + $0x1120] sm:$0xff]
        %v965 = vld [vmem:[%s329 + $0x1128] sm:$0xff]
        %v966 = vld [vmem:[%s329 + $0x1130] sm:$0xff]
        %v967 = vld [vmem:[%s329 + $0x1138] sm:$0xff]
        %v968 = vld [vmem:[%s329 + $0x1140] sm:$0xff]
        %v969 = vld [vmem:[%s329 + $0x1148] sm:$0xff]
        %v970 = vld [vmem:[%s329 + $0x1150] sm:$0xff]
        %v971 = vld [vmem:[%s329 + $0x1158] sm:$0xff]
        %v972 = vld [vmem:[%s329 + $0x1160] sm:$0xff]
        %v973 = vld [vmem:[%s329 + $0x1168] sm:$0xff]
        %v974 = vld [vmem:[%s329 + $0x1170] sm:$0xff]
        %v975 = vld [vmem:[%s329 + $0x1178] sm:$0xff]
        %v976 = vld [vmem:[%s329 + $0x1180] sm:$0xff]
        %v977 = vld [vmem:[%s329 + $0x1188] sm:$0xff]
        %v978 = vld [vmem:[%s329 + $0x1190] sm:$0xff]
        %v979 = vld [vmem:[%s329 + $0x1198] sm:$0xff]
        %v980 = vld [vmem:[%s329 + $0x11a0] sm:$0xff]
        %v981 = vld [vmem:[%s329 + $0x11a8] sm:$0xff]
        %v982 = vld [vmem:[%s329 + $0x11b0] sm:$0xff]
        %v983 = vld [vmem:[%s329 + $0x11b8] sm:$0xff]
        %v984 = vld [vmem:[%s329 + $0x11c0] sm:$0xff]
        %v985 = vld [vmem:[%s329 + $0x11c8] sm:$0xff]
        %v986 = vld [vmem:[%s329 + $0x11d0] sm:$0xff]
        %v987 = vld [vmem:[%s329 + $0x11d8] sm:$0xff]
        %v988 = vld [vmem:[%s329 + $0x11e0] sm:$0xff]
        %v989 = vld [vmem:[%s329 + $0x11e8] sm:$0xff]
        %v990 = vld [vmem:[%s329 + $0x11f0] sm:$0xff]
        %v991 = vld [vmem:[%s329 + $0x11f8] sm:$0xff]
        %v992 = vld [vmem:[%s329 + $0x1200] sm:$0xff]
        %v993 = vld [vmem:[%s329 + $0x1208] sm:$0xff]
        %v994 = vld [vmem:[%s329 + $0x1210] sm:$0xff]
        %v995 = vld [vmem:[%s329 + $0x1218] sm:$0xff]
        %v996 = vld [vmem:[%s329 + $0x1220] sm:$0xff]
        %v997 = vld [vmem:[%s329 + $0x1228] sm:$0xff]
        %v998 = vld [vmem:[%s329 + $0x1230] sm:$0xff]
        %v999 = vld [vmem:[%s329 + $0x1238] sm:$0xff]
        %v1000 = vld [vmem:[%s329 + $0x1240] sm:$0xff]
        %v1001 = vld [vmem:[%s329 + $0x1248] sm:$0xff]
        %v1002 = vld [vmem:[%s329 + $0x1250] sm:$0xff]
        %v1003 = vld [vmem:[%s329 + $0x1258] sm:$0xff]
        %v1004 = vld [vmem:[%s329 + $0x1260] sm:$0xff]
        %v1005 = vld [vmem:[%s329 + $0x1268] sm:$0xff]
        %v1006 = vld [vmem:[%s329 + $0x1270] sm:$0xff]
        %v1007 = vld [vmem:[%s329 + $0x1278] sm:$0xff]
        %v1008 = vld [vmem:[%s329 + $0x1280] sm:$0xff]
        %v1009 = vld [vmem:[%s329 + $0x1288] sm:$0xff]
        %v1010 = vld [vmem:[%s329 + $0x1290] sm:$0xff]
        %v1011 = vld [vmem:[%s329 + $0x1298] sm:$0xff]
        %v1012 = vld [vmem:[%s329 + $0x12a0] sm:$0xff]
        %v1013 = vld [vmem:[%s329 + $0x12a8] sm:$0xff]
        %v1014 = vld [vmem:[%s329 + $0x12b0] sm:$0xff]
        %v1015 = vld [vmem:[%s329 + $0x12b8] sm:$0xff]
        %v1016 = vld [vmem:[%s329 + $0x12c0] sm:$0xff]
        %v1017 = vld [vmem:[%s329 + $0x12c8] sm:$0xff]
        %v1018 = vld [vmem:[%s329 + $0x12d0] sm:$0xff]
        %v1019 = vld [vmem:[%s329 + $0x12d8] sm:$0xff]
        %v1020 = vld [vmem:[%s329 + $0x12e0] sm:$0xff]
        %v1021 = vld [vmem:[%s329 + $0x12e8] sm:$0xff]
        %v1022 = vld [vmem:[%s329 + $0x12f0] sm:$0xff]
        %v1023 = vld [vmem:[%s329 + $0x12f8] sm:$0xff]
        %v1024 = vld [vmem:[%s329 + $0x1300] sm:$0xff]
        %v1025 = vld [vmem:[%s329 + $0x1308] sm:$0xff]
        %v1026 = vld [vmem:[%s329 + $0x1310] sm:$0xff]
        %v1027 = vld [vmem:[%s329 + $0x1318] sm:$0xff]
        %v1028 = vld [vmem:[%s329 + $0x1320] sm:$0xff]
        %v1029 = vld [vmem:[%s329 + $0x1328] sm:$0xff]
        %v1030 = vld [vmem:[%s329 + $0x1330] sm:$0xff]
        %v1031 = vld [vmem:[%s329 + $0x1338] sm:$0xff]
        %v1032 = vld [vmem:[%s329 + $0x1340] sm:$0xff]
        %v1033 = vld [vmem:[%s329 + $0x1348] sm:$0xff]
        %v1034 = vld [vmem:[%s329 + $0x1350] sm:$0xff]
        %v1035 = vld [vmem:[%s329 + $0x1358] sm:$0xff]
        %v1036 = vld [vmem:[%s329 + $0x1360] sm:$0xff]
        %v1037 = vld [vmem:[%s329 + $0x1368] sm:$0xff]
        %v1038 = vld [vmem:[%s329 + $0x1370] sm:$0xff]
        %v1039 = vld [vmem:[%s329 + $0x1378] sm:$0xff]
        %v1040 = vld [vmem:[%s329 + $0x1380] sm:$0xff]
        %v1041 = vld [vmem:[%s329 + $0x1388] sm:$0xff]
        %v1042 = vld [vmem:[%s329 + $0x1390] sm:$0xff]
        %v1043 = vld [vmem:[%s329 + $0x1398] sm:$0xff]
        %v1044 = vld [vmem:[%s329 + $0x13a0] sm:$0xff]
        %v1045 = vld [vmem:[%s329 + $0x13a8] sm:$0xff]
        %v1046 = vld [vmem:[%s329 + $0x13b0] sm:$0xff]
        %v1047 = vld [vmem:[%s329 + $0x13b8] sm:$0xff]
        %v1048 = vld [vmem:[%s329 + $0x13c0] sm:$0xff]
        %v1049 = vld [vmem:[%s329 + $0x13c8] sm:$0xff]
        %v1050 = vld [vmem:[%s329 + $0x13d0] sm:$0xff]
        %v1051 = vld [vmem:[%s329 + $0x13d8] sm:$0xff]
        %v1052 = vld [vmem:[%s329 + $0x13e0] sm:$0xff]
        %v1053 = vld [vmem:[%s329 + $0x13e8] sm:$0xff]
        %v1054 = vld [vmem:[%s329 + $0x13f0] sm:$0xff]
        %v1055 = vld [vmem:[%s329 + $0x13f8] sm:$0xff]
        %v1056 = vld [vmem:[%s329 + $0x1400] sm:$0xff]
        %v1057 = vld [vmem:[%s329 + $0x1408] sm:$0xff]
        %v1058 = vld [vmem:[%s329 + $0x1410] sm:$0xff]
        %v1059 = vld [vmem:[%s329 + $0x1418] sm:$0xff]
        %v1060 = vld [vmem:[%s329 + $0x1420] sm:$0xff]
        %v1061 = vld [vmem:[%s329 + $0x1428] sm:$0xff]
        %v1062 = vld [vmem:[%s329 + $0x1430] sm:$0xff]
        %v1063 = vld [vmem:[%s329 + $0x1438] sm:$0xff]
        %v1064 = vld [vmem:[%s329 + $0x1440] sm:$0xff]
        %v1065 = vld [vmem:[%s329 + $0x1448] sm:$0xff]
        %v1066 = vld [vmem:[%s329 + $0x1450] sm:$0xff]
        %v1067 = vld [vmem:[%s329 + $0x1458] sm:$0xff]
        %v1068 = vld [vmem:[%s329 + $0x1460] sm:$0xff]
        %v1069 = vld [vmem:[%s329 + $0x1468] sm:$0xff]
        %v1070 = vld [vmem:[%s329 + $0x1470] sm:$0xff]
        %v1071 = vld [vmem:[%s329 + $0x1478] sm:$0xff]
        %v1072 = vld [vmem:[%s329 + $0x1480] sm:$0xff]
        %v1073 = vld [vmem:[%s329 + $0x1488] sm:$0xff]
        %v1074 = vld [vmem:[%s329 + $0x1490] sm:$0xff]
        %v1075 = vld [vmem:[%s329 + $0x1498] sm:$0xff]
        %v1076 = vld [vmem:[%s329 + $0x14a0] sm:$0xff]
        %v1077 = vld [vmem:[%s329 + $0x14a8] sm:$0xff]
        %v1078 = vld [vmem:[%s329 + $0x14b0] sm:$0xff]
        %v1079 = vld [vmem:[%s329 + $0x14b8] sm:$0xff]
        %v1080 = vld [vmem:[%s329 + $0x14c0] sm:$0xff]
        %v1081 = vld [vmem:[%s329 + $0x14c8] sm:$0xff]
        %v1082 = vld [vmem:[%s329 + $0x14d0] sm:$0xff]
        %v1083 = vld [vmem:[%s329 + $0x14d8] sm:$0xff]
        %v1084 = vld [vmem:[%s329 + $0x14e0] sm:$0xff]
        %v1085 = vld [vmem:[%s329 + $0x14e8] sm:$0xff]
        %v1086 = vld [vmem:[%s329 + $0x14f0] sm:$0xff]
        %v1087 = vld [vmem:[%s329 + $0x14f8] sm:$0xff]
        %v1088 = vld [vmem:[%s329 + $0x1500] sm:$0xff]
        %v1089 = vld [vmem:[%s329 + $0x1508] sm:$0xff]
        %v1090 = vld [vmem:[%s329 + $0x1510] sm:$0xff]
        %v1091 = vld [vmem:[%s329 + $0x1518] sm:$0xff]
        %v1092 = vld [vmem:[%s329 + $0x1520] sm:$0xff]
        %v1093 = vld [vmem:[%s329 + $0x1528] sm:$0xff]
        %v1094 = vld [vmem:[%s329 + $0x1530] sm:$0xff]
        %v1095 = vld [vmem:[%s329 + $0x1538] sm:$0xff]
        %v1096 = vld [vmem:[%s329 + $0x1540] sm:$0xff]
        %v1097 = vld [vmem:[%s329 + $0x1548] sm:$0xff]
        %v1098 = vld [vmem:[%s329 + $0x1550] sm:$0xff]
        %v1099 = vld [vmem:[%s329 + $0x1558] sm:$0xff]
        %v1100 = vld [vmem:[%s329 + $0x1560] sm:$0xff]
        %v1101 = vld [vmem:[%s329 + $0x1568] sm:$0xff]
        %v1102 = vld [vmem:[%s329 + $0x1570] sm:$0xff]
        %v1103 = vld [vmem:[%s329 + $0x1578] sm:$0xff]
        %v1104 = vld [vmem:[%s329 + $0x1580] sm:$0xff]
        %v1105 = vld [vmem:[%s329 + $0x1588] sm:$0xff]
        %v1106 = vld [vmem:[%s329 + $0x1590] sm:$0xff]
        %v1107 = vld [vmem:[%s329 + $0x1598] sm:$0xff]
        %v1108 = vld [vmem:[%s329 + $0x15a0] sm:$0xff]
        %v1109 = vld [vmem:[%s329 + $0x15a8] sm:$0xff]
        %v1110 = vld [vmem:[%s329 + $0x15b0] sm:$0xff]
        %v1111 = vld [vmem:[%s329 + $0x15b8] sm:$0xff]
        %v1112 = vld [vmem:[%s329 + $0x15c0] sm:$0xff]
        %v1113 = vld [vmem:[%s329 + $0x15c8] sm:$0xff]
        %v1114 = vld [vmem:[%s329 + $0x15d0] sm:$0xff]
        %v1115 = vld [vmem:[%s329 + $0x15d8] sm:$0xff]
        %v1116 = vld [vmem:[%s329 + $0x15e0] sm:$0xff]
        %v1117 = vld [vmem:[%s329 + $0x15e8] sm:$0xff]
        %v1118 = vld [vmem:[%s329 + $0x15f0] sm:$0xff]
        %v1119 = vld [vmem:[%s329 + $0x15f8] sm:$0xff]
        %v1120 = vld [vmem:[%s329 + $0x1600] sm:$0xff]
        %v1121 = vld [vmem:[%s329 + $0x1608] sm:$0xff]
        %v1122 = vld [vmem:[%s329 + $0x1610] sm:$0xff]
        %v1123 = vld [vmem:[%s329 + $0x1618] sm:$0xff]
        %v1124 = vld [vmem:[%s329 + $0x1620] sm:$0xff]
        %v1125 = vld [vmem:[%s329 + $0x1628] sm:$0xff]
        %v1126 = vld [vmem:[%s329 + $0x1630] sm:$0xff]
        %v1127 = vld [vmem:[%s329 + $0x1638] sm:$0xff]
        %v1128 = vld [vmem:[%s329 + $0x1640] sm:$0xff]
        %v1129 = vld [vmem:[%s329 + $0x1648] sm:$0xff]
        %v1130 = vld [vmem:[%s329 + $0x1650] sm:$0xff]
        %v1131 = vld [vmem:[%s329 + $0x1658] sm:$0xff]
        %v1132 = vld [vmem:[%s329 + $0x1660] sm:$0xff]
        %v1133 = vld [vmem:[%s329 + $0x1668] sm:$0xff]
        %v1134 = vld [vmem:[%s329 + $0x1670] sm:$0xff]
        %v1135 = vld [vmem:[%s329 + $0x1678] sm:$0xff]
        %v1136 = vld [vmem:[%s329 + $0x1680] sm:$0xff]
        %v1137 = vld [vmem:[%s329 + $0x1688] sm:$0xff]
        %v1138 = vld [vmem:[%s329 + $0x1690] sm:$0xff]
        %v1139 = vld [vmem:[%s329 + $0x1698] sm:$0xff]
        %v1140 = vld [vmem:[%s329 + $0x16a0] sm:$0xff]
        %v1141 = vld [vmem:[%s329 + $0x16a8] sm:$0xff]
        %v1142 = vld [vmem:[%s329 + $0x16b0] sm:$0xff]
        %v1143 = vld [vmem:[%s329 + $0x16b8] sm:$0xff]
        %v1144 = vld [vmem:[%s329 + $0x16c0] sm:$0xff]
        %v1145 = vld [vmem:[%s329 + $0x16c8] sm:$0xff]
        %v1146 = vld [vmem:[%s329 + $0x16d0] sm:$0xff]
        %v1147 = vld [vmem:[%s329 + $0x16d8] sm:$0xff]
        %v1148 = vld [vmem:[%s329 + $0x16e0] sm:$0xff]
        %v1149 = vld [vmem:[%s329 + $0x16e8] sm:$0xff]
        %v1150 = vld [vmem:[%s329 + $0x16f0] sm:$0xff]
        %v1151 = vld [vmem:[%s329 + $0x16f8] sm:$0xff]
        %v1152 = vld [vmem:[%s329 + $0x1700] sm:$0xff]
        %v1153 = vld [vmem:[%s329 + $0x1708] sm:$0xff]
        %v1154 = vld [vmem:[%s329 + $0x1710] sm:$0xff]
        %v1155 = vld [vmem:[%s329 + $0x1718] sm:$0xff]
        %v1156 = vld [vmem:[%s329 + $0x1720] sm:$0xff]
        %v1157 = vld [vmem:[%s329 + $0x1728] sm:$0xff]
        %v1158 = vld [vmem:[%s329 + $0x1730] sm:$0xff]
        %v1159 = vld [vmem:[%s329 + $0x1738] sm:$0xff]
        %v1160 = vld [vmem:[%s329 + $0x1740] sm:$0xff]
        %v1161 = vld [vmem:[%s329 + $0x1748] sm:$0xff]
        %v1162 = vld [vmem:[%s329 + $0x1750] sm:$0xff]
        %v1163 = vld [vmem:[%s329 + $0x1758] sm:$0xff]
        %v1164 = vld [vmem:[%s329 + $0x1760] sm:$0xff]
        %v1165 = vld [vmem:[%s329 + $0x1768] sm:$0xff]
        %v1166 = vld [vmem:[%s329 + $0x1770] sm:$0xff]
        %v1167 = vld [vmem:[%s329 + $0x1778] sm:$0xff]
        %v1168 = vld [vmem:[%s329 + $0x1780] sm:$0xff]
        %v1169 = vld [vmem:[%s329 + $0x1788] sm:$0xff]
        %v1170 = vld [vmem:[%s329 + $0x1790] sm:$0xff]
        %v1171 = vld [vmem:[%s329 + $0x1798] sm:$0xff]
        %v1172 = vld [vmem:[%s329 + $0x17a0] sm:$0xff]
        %v1173 = vld [vmem:[%s329 + $0x17a8] sm:$0xff]
        %v1174 = vld [vmem:[%s329 + $0x17b0] sm:$0xff]
        %v1175 = vld [vmem:[%s329 + $0x17b8] sm:$0xff]
        %v1176 = vld [vmem:[%s329 + $0x17c0] sm:$0xff]
        %v1177 = vld [vmem:[%s329 + $0x17c8] sm:$0xff]
        %v1178 = vld [vmem:[%s329 + $0x17d0] sm:$0xff]
        %v1179 = vld [vmem:[%s329 + $0x17d8] sm:$0xff]
        %v1180 = vld [vmem:[%s329 + $0x17e0] sm:$0xff]
        %v1181 = vld [vmem:[%s329 + $0x17e8] sm:$0xff]
        %v1182 = vld [vmem:[%s329 + $0x17f0] sm:$0xff]
        %v1183 = vld [vmem:[%s329 + $0x17f8] sm:$0xff]
        %v1184 = vld [vmem:[%s329 + $0x1800] sm:$0xff]
        %v1185 = vld [vmem:[%s329 + $0x1808] sm:$0xff]
        %v1186 = vld [vmem:[%s329 + $0x1810] sm:$0xff]
        %v1187 = vld [vmem:[%s329 + $0x1818] sm:$0xff]
        %v1188 = vld [vmem:[%s329 + $0x1820] sm:$0xff]
        %v1189 = vld [vmem:[%s329 + $0x1828] sm:$0xff]
        %v1190 = vld [vmem:[%s329 + $0x1830] sm:$0xff]
        %v1191 = vld [vmem:[%s329 + $0x1838] sm:$0xff]
        %v1192 = vld [vmem:[%s329 + $0x1840] sm:$0xff]
        %v1193 = vld [vmem:[%s329 + $0x1848] sm:$0xff]
        %v1194 = vld [vmem:[%s329 + $0x1850] sm:$0xff]
        %v1195 = vld [vmem:[%s329 + $0x1858] sm:$0xff]
        %v1196 = vld [vmem:[%s329 + $0x1860] sm:$0xff]
        %v1197 = vld [vmem:[%s329 + $0x1868] sm:$0xff]
        %v1198 = vld [vmem:[%s329 + $0x1870] sm:$0xff]
        %v1199 = vld [vmem:[%s329 + $0x1878] sm:$0xff]
        %v1200 = vld [vmem:[%s329 + $0x1880] sm:$0xff]
        %v1201 = vld [vmem:[%s329 + $0x1888] sm:$0xff]
        %v1202 = vld [vmem:[%s329 + $0x1890] sm:$0xff]
        %v1203 = vld [vmem:[%s329 + $0x1898] sm:$0xff]
        %v1204 = vld [vmem:[%s329 + $0x18a0] sm:$0xff]
        %v1205 = vld [vmem:[%s329 + $0x18a8] sm:$0xff]
        %v1206 = vld [vmem:[%s329 + $0x18b0] sm:$0xff]
        %v1207 = vld [vmem:[%s329 + $0x18b8] sm:$0xff]
        %v1208 = vld [vmem:[%s329 + $0x18c0] sm:$0xff]
        %v1209 = vld [vmem:[%s329 + $0x18c8] sm:$0xff]
        %v1210 = vld [vmem:[%s329 + $0x18d0] sm:$0xff]
        %v1211 = vld [vmem:[%s329 + $0x18d8] sm:$0xff]
        %v1212 = vld [vmem:[%s329 + $0x18e0] sm:$0xff]
        %v1213 = vld [vmem:[%s329 + $0x18e8] sm:$0xff]
        %v1214 = vld [vmem:[%s329 + $0x18f0] sm:$0xff]
        %v1215 = vld [vmem:[%s329 + $0x18f8] sm:$0xff]
        %v1216 = vld [vmem:[%s329 + $0x1900] sm:$0xff]
        %v1217 = vld [vmem:[%s329 + $0x1908] sm:$0xff]
        %v1218 = vld [vmem:[%s329 + $0x1910] sm:$0xff]
        %v1219 = vld [vmem:[%s329 + $0x1918] sm:$0xff]
        %v1220 = vld [vmem:[%s329 + $0x1920] sm:$0xff]
        %v1221 = vld [vmem:[%s329 + $0x1928] sm:$0xff]
        %v1222 = vld [vmem:[%s329 + $0x1930] sm:$0xff]
        %v1223 = vld [vmem:[%s329 + $0x1938] sm:$0xff]
        %v1224 = vld [vmem:[%s329 + $0x1940] sm:$0xff]
        %v1225 = vld [vmem:[%s329 + $0x1948] sm:$0xff]
        %v1226 = vld [vmem:[%s329 + $0x1950] sm:$0xff]
        %v1227 = vld [vmem:[%s329 + $0x1958] sm:$0xff]
        %v1228 = vld [vmem:[%s329 + $0x1960] sm:$0xff]
        %v1229 = vld [vmem:[%s329 + $0x1968] sm:$0xff]
        %v1230 = vld [vmem:[%s329 + $0x1970] sm:$0xff]
        %v1231 = vld [vmem:[%s329 + $0x1978] sm:$0xff]
        %v1232 = vld [vmem:[%s329 + $0x1980] sm:$0xff]
        %v1233 = vld [vmem:[%s329 + $0x1988] sm:$0xff]
        %v1234 = vld [vmem:[%s329 + $0x1990] sm:$0xff]
        %v1235 = vld [vmem:[%s329 + $0x1998] sm:$0xff]
        %v1236 = vld [vmem:[%s329 + $0x19a0] sm:$0xff]
        %v1237 = vld [vmem:[%s329 + $0x19a8] sm:$0xff]
        %v1238 = vld [vmem:[%s329 + $0x19b0] sm:$0xff]
        %v1239 = vld [vmem:[%s329 + $0x19b8] sm:$0xff]
        %v1240 = vld [vmem:[%s329 + $0x19c0] sm:$0xff]
        %v1241 = vld [vmem:[%s329 + $0x19c8] sm:$0xff]
        %v1242 = vld [vmem:[%s329 + $0x19d0] sm:$0xff]
        %v1243 = vld [vmem:[%s329 + $0x19d8] sm:$0xff]
        %v1244 = vld [vmem:[%s329 + $0x19e0] sm:$0xff]
        %v1245 = vld [vmem:[%s329 + $0x19e8] sm:$0xff]
        %v1246 = vld [vmem:[%s329 + $0x19f0] sm:$0xff]
        %v1247 = vld [vmem:[%s329 + $0x19f8] sm:$0xff]
        %v1248 = vld [vmem:[%s329 + $0x1a00] sm:$0xff]
        %v1249 = vld [vmem:[%s329 + $0x1a08] sm:$0xff]
        %v1250 = vld [vmem:[%s329 + $0x1a10] sm:$0xff]
        %v1251 = vld [vmem:[%s329 + $0x1a18] sm:$0xff]
        %v1252 = vld [vmem:[%s329 + $0x1a20] sm:$0xff]
        %v1253 = vld [vmem:[%s329 + $0x1a28] sm:$0xff]
        %v1254 = vld [vmem:[%s329 + $0x1a30] sm:$0xff]
        %v1255 = vld [vmem:[%s329 + $0x1a38] sm:$0xff]
        %v1256 = vld [vmem:[%s329 + $0x1a40] sm:$0xff]
        %v1257 = vld [vmem:[%s329 + $0x1a48] sm:$0xff]
        %v1258 = vld [vmem:[%s329 + $0x1a50] sm:$0xff]
        %v1259 = vld [vmem:[%s329 + $0x1a58] sm:$0xff]
        %v1260 = vld [vmem:[%s329 + $0x1a60] sm:$0xff]
        %v1261 = vld [vmem:[%s329 + $0x1a68] sm:$0xff]
        %v1262 = vld [vmem:[%s329 + $0x1a70] sm:$0xff]
        %v1263 = vld [vmem:[%s329 + $0x1a78] sm:$0xff]
        %v1264 = vld [vmem:[%s329 + $0x1a80] sm:$0xff]
        %v1265 = vld [vmem:[%s329 + $0x1a88] sm:$0xff]
        %v1266 = vld [vmem:[%s329 + $0x1a90] sm:$0xff]
        %v1267 = vld [vmem:[%s329 + $0x1a98] sm:$0xff]
        %v1268 = vld [vmem:[%s329 + $0x1aa0] sm:$0xff]
        %v1269 = vld [vmem:[%s329 + $0x1aa8] sm:$0xff]
        %v1270 = vld [vmem:[%s329 + $0x1ab0] sm:$0xff]
        %v1271 = vld [vmem:[%s329 + $0x1ab8] sm:$0xff]
        %v1272 = vld [vmem:[%s329 + $0x1ac0] sm:$0xff]
        %v1273 = vld [vmem:[%s329 + $0x1ac8] sm:$0xff]
        %v1274 = vld [vmem:[%s329 + $0x1ad0] sm:$0xff]
        %v1275 = vld [vmem:[%s329 + $0x1ad8] sm:$0xff]
        %v1276 = vld [vmem:[%s329 + $0x1ae0] sm:$0xff]
        %v1277 = vld [vmem:[%s329 + $0x1ae8] sm:$0xff]
        %v1278 = vld [vmem:[%s329 + $0x1af0] sm:$0xff]
        %v1279 = vld [vmem:[%s329 + $0x1af8] sm:$0xff]
        %v1280 = vld [vmem:[%s329 + $0x1b00] sm:$0xff]
        %v1281 = vld [vmem:[%s329 + $0x1b08] sm:$0xff]
        %v1282 = vld [vmem:[%s329 + $0x1b10] sm:$0xff]
        %v1283 = vld [vmem:[%s329 + $0x1b18] sm:$0xff]
        %v1284 = vld [vmem:[%s329 + $0x1b20] sm:$0xff]
        %v1285 = vld [vmem:[%s329 + $0x1b28] sm:$0xff]
        %v1286 = vld [vmem:[%s329 + $0x1b30] sm:$0xff]
        %v1287 = vld [vmem:[%s329 + $0x1b38] sm:$0xff]
        %v1288 = vld [vmem:[%s329 + $0x1b40] sm:$0xff]
        %v1289 = vld [vmem:[%s329 + $0x1b48] sm:$0xff]
        %v1290 = vld [vmem:[%s329 + $0x1b50] sm:$0xff]
        %v1291 = vld [vmem:[%s329 + $0x1b58] sm:$0xff]
        %v1292 = vld [vmem:[%s329 + $0x1b60] sm:$0xff]
        %v1293 = vld [vmem:[%s329 + $0x1b68] sm:$0xff]
        %v1294 = vld [vmem:[%s329 + $0x1b70] sm:$0xff]
        %v1295 = vld [vmem:[%s329 + $0x1b78] sm:$0xff]
        %v1296 = vld [vmem:[%s329 + $0x1b80] sm:$0xff]
        %v1297 = vld [vmem:[%s329 + $0x1b88] sm:$0xff]
        %v1298 = vld [vmem:[%s329 + $0x1b90] sm:$0xff]
        %v1299 = vld [vmem:[%s329 + $0x1b98] sm:$0xff]
        %v1300 = vld [vmem:[%s329 + $0x1ba0] sm:$0xff]
        %v1301 = vld [vmem:[%s329 + $0x1ba8] sm:$0xff]
        %v1302 = vld [vmem:[%s329 + $0x1bb0] sm:$0xff]
        %v1303 = vld [vmem:[%s329 + $0x1bb8] sm:$0xff]
        %v1304 = vld [vmem:[%s329 + $0x1bc0] sm:$0xff]
        %v1305 = vld [vmem:[%s329 + $0x1bc8] sm:$0xff]
        %v1306 = vld [vmem:[%s329 + $0x1bd0] sm:$0xff]
        %v1307 = vld [vmem:[%s329 + $0x1bd8] sm:$0xff]
        %v1308 = vld [vmem:[%s329 + $0x1be0] sm:$0xff]
        %v1309 = vld [vmem:[%s329 + $0x1be8] sm:$0xff]
        %v1310 = vld [vmem:[%s329 + $0x1bf0] sm:$0xff]
        %v1311 = vld [vmem:[%s329 + $0x1bf8] sm:$0xff]
        %v1312 = vld [vmem:[%s329 + $0x1c00] sm:$0xff]
        %v1313 = vld [vmem:[%s329 + $0x1c08] sm:$0xff]
        %v1314 = vld [vmem:[%s329 + $0x1c10] sm:$0xff]
        %v1315 = vld [vmem:[%s329 + $0x1c18] sm:$0xff]
        %v1316 = vld [vmem:[%s329 + $0x1c20] sm:$0xff]
        %v1317 = vld [vmem:[%s329 + $0x1c28] sm:$0xff]
        %v1318 = vld [vmem:[%s329 + $0x1c30] sm:$0xff]
        %v1319 = vld [vmem:[%s329 + $0x1c38] sm:$0xff]
        %v1320 = vld [vmem:[%s329 + $0x1c40] sm:$0xff]
        %v1321 = vld [vmem:[%s329 + $0x1c48] sm:$0xff]
        %v1322 = vld [vmem:[%s329 + $0x1c50] sm:$0xff]
        %v1323 = vld [vmem:[%s329 + $0x1c58] sm:$0xff]
        %v1324 = vld [vmem:[%s329 + $0x1c60] sm:$0xff]
        %v1325 = vld [vmem:[%s329 + $0x1c68] sm:$0xff]
        %v1326 = vld [vmem:[%s329 + $0x1c70] sm:$0xff]
        %v1327 = vld [vmem:[%s329 + $0x1c78] sm:$0xff]
        %v1328 = vld [vmem:[%s329 + $0x1c80] sm:$0xff]
        %v1329 = vld [vmem:[%s329 + $0x1c88] sm:$0xff]
        %v1330 = vld [vmem:[%s329 + $0x1c90] sm:$0xff]
        %v1331 = vld [vmem:[%s329 + $0x1c98] sm:$0xff]
        %v1332 = vld [vmem:[%s329 + $0x1ca0] sm:$0xff]
        %v1333 = vld [vmem:[%s329 + $0x1ca8] sm:$0xff]
        %v1334 = vld [vmem:[%s329 + $0x1cb0] sm:$0xff]
        %v1335 = vld [vmem:[%s329 + $0x1cb8] sm:$0xff]
        %v1336 = vld [vmem:[%s329 + $0x1cc0] sm:$0xff]
        %v1337 = vld [vmem:[%s329 + $0x1cc8] sm:$0xff]
        %v1338 = vld [vmem:[%s329 + $0x1cd0] sm:$0xff]
        %v1339 = vld [vmem:[%s329 + $0x1cd8] sm:$0xff]
        %v1340 = vld [vmem:[%s329 + $0x1ce0] sm:$0xff]
        %v1341 = vld [vmem:[%s329 + $0x1ce8] sm:$0xff]
        %v1342 = vld [vmem:[%s329 + $0x1cf0] sm:$0xff]
        %v1343 = vld [vmem:[%s329 + $0x1cf8] sm:$0xff]
        %v1344 = vld [vmem:[%s329 + $0x1d00] sm:$0xff]
        %v1345 = vld [vmem:[%s329 + $0x1d08] sm:$0xff]
        %v1346 = vld [vmem:[%s329 + $0x1d10] sm:$0xff]
        %v1347 = vld [vmem:[%s329 + $0x1d18] sm:$0xff]
        %v1348 = vld [vmem:[%s329 + $0x1d20] sm:$0xff]
        %v1349 = vld [vmem:[%s329 + $0x1d28] sm:$0xff]
        %v1350 = vld [vmem:[%s329 + $0x1d30] sm:$0xff]
        %v1351 = vld [vmem:[%s329 + $0x1d38] sm:$0xff]
        %v1352 = vld [vmem:[%s329 + $0x1d40] sm:$0xff]
        %v1353 = vld [vmem:[%s329 + $0x1d48] sm:$0xff]
        %v1354 = vld [vmem:[%s329 + $0x1d50] sm:$0xff]
        %v1355 = vld [vmem:[%s329 + $0x1d58] sm:$0xff]
        %v1356 = vld [vmem:[%s329 + $0x1d60] sm:$0xff]
        %v1357 = vld [vmem:[%s329 + $0x1d68] sm:$0xff]
        %v1358 = vld [vmem:[%s329 + $0x1d70] sm:$0xff]
        %v1359 = vld [vmem:[%s329 + $0x1d78] sm:$0xff]
        %v1360 = vld [vmem:[%s329 + $0x1d80] sm:$0xff]
        %v1361 = vld [vmem:[%s329 + $0x1d88] sm:$0xff]
        %v1362 = vld [vmem:[%s329 + $0x1d90] sm:$0xff]
        %v1363 = vld [vmem:[%s329 + $0x1d98] sm:$0xff]
        %v1364 = vld [vmem:[%s329 + $0x1da0] sm:$0xff]
        %v1365 = vld [vmem:[%s329 + $0x1da8] sm:$0xff]
        %v1366 = vld [vmem:[%s329 + $0x1db0] sm:$0xff]
        %v1367 = vld [vmem:[%s329 + $0x1db8] sm:$0xff]
        %v1368 = vld [vmem:[%s329 + $0x1dc0] sm:$0xff]
        %v1369 = vld [vmem:[%s329 + $0x1dc8] sm:$0xff]
        %v1370 = vld [vmem:[%s329 + $0x1dd0] sm:$0xff]
        %v1371 = vld [vmem:[%s329 + $0x1dd8] sm:$0xff]
        %v1372 = vld [vmem:[%s329 + $0x1de0] sm:$0xff]
        %v1373 = vld [vmem:[%s329 + $0x1de8] sm:$0xff]
        %v1374 = vld [vmem:[%s329 + $0x1df0] sm:$0xff]
        %v1375 = vld [vmem:[%s329 + $0x1df8] sm:$0xff]
        %v1376 = vld [vmem:[%s329 + $0x1e00] sm:$0xff]
        %v1377 = vld [vmem:[%s329 + $0x1e08] sm:$0xff]
        %v1378 = vld [vmem:[%s329 + $0x1e10] sm:$0xff]
        %v1379 = vld [vmem:[%s329 + $0x1e18] sm:$0xff]
        %v1380 = vld [vmem:[%s329 + $0x1e20] sm:$0xff]
        %v1381 = vld [vmem:[%s329 + $0x1e28] sm:$0xff]
        %v1382 = vld [vmem:[%s329 + $0x1e30] sm:$0xff]
        %v1383 = vld [vmem:[%s329 + $0x1e38] sm:$0xff]
        %v1384 = vld [vmem:[%s329 + $0x1e40] sm:$0xff]
        %v1385 = vld [vmem:[%s329 + $0x1e48] sm:$0xff]
        %v1386 = vld [vmem:[%s329 + $0x1e50] sm:$0xff]
        %v1387 = vld [vmem:[%s329 + $0x1e58] sm:$0xff]
        %v1388 = vld [vmem:[%s329 + $0x1e60] sm:$0xff]
        %v1389 = vld [vmem:[%s329 + $0x1e68] sm:$0xff]
        %v1390 = vld [vmem:[%s329 + $0x1e70] sm:$0xff]
        %v1391 = vld [vmem:[%s329 + $0x1e78] sm:$0xff]
        %v1392 = vld [vmem:[%s329 + $0x1e80] sm:$0xff]
        %v1393 = vld [vmem:[%s329 + $0x1e88] sm:$0xff]
        %v1394 = vld [vmem:[%s329 + $0x1e90] sm:$0xff]
        %v1395 = vld [vmem:[%s329 + $0x1e98] sm:$0xff]
        %v1396 = vld [vmem:[%s329 + $0x1ea0] sm:$0xff]
        %v1397 = vld [vmem:[%s329 + $0x1ea8] sm:$0xff]
        %v1398 = vld [vmem:[%s329 + $0x1eb0] sm:$0xff]
        %v1399 = vld [vmem:[%s329 + $0x1eb8] sm:$0xff]
        %v1400 = vld [vmem:[%s329 + $0x1ec0] sm:$0xff]
        %v1401 = vld [vmem:[%s329 + $0x1ec8] sm:$0xff]
        %v1402 = vld [vmem:[%s329 + $0x1ed0] sm:$0xff]
        %v1403 = vld [vmem:[%s329 + $0x1ed8] sm:$0xff]
        %v1404 = vld [vmem:[%s329 + $0x1ee0] sm:$0xff]
        %v1405 = vld [vmem:[%s329 + $0x1ee8] sm:$0xff]
        %v1406 = vld [vmem:[%s329 + $0x1ef0] sm:$0xff]
        %v1407 = vld [vmem:[%s329 + $0x1ef8] sm:$0xff]
        %v1408 = vld [vmem:[%s329 + $0x1f00] sm:$0xff]
        %v1409 = vld [vmem:[%s329 + $0x1f08] sm:$0xff]
        %v1410 = vld [vmem:[%s329 + $0x1f10] sm:$0xff]
        %v1411 = vld [vmem:[%s329 + $0x1f18] sm:$0xff]
        %v1412 = vld [vmem:[%s329 + $0x1f20] sm:$0xff]
        %v1413 = vld [vmem:[%s329 + $0x1f28] sm:$0xff]
        %v1414 = vld [vmem:[%s329 + $0x1f30] sm:$0xff]
        %v1415 = vld [vmem:[%s329 + $0x1f38] sm:$0xff]
        %v1416 = vld [vmem:[%s329 + $0x1f40] sm:$0xff]
        %v1417 = vld [vmem:[%s329 + $0x1f48] sm:$0xff]
        %v1418 = vld [vmem:[%s329 + $0x1f50] sm:$0xff]
        %v1419 = vld [vmem:[%s329 + $0x1f58] sm:$0xff]
        %v1420 = vld [vmem:[%s329 + $0x1f60] sm:$0xff]
        %v1421 = vld [vmem:[%s329 + $0x1f68] sm:$0xff]
        %v1422 = vld [vmem:[%s329 + $0x1f70] sm:$0xff]
        %v1423 = vld [vmem:[%s329 + $0x1f78] sm:$0xff]
        %v1424 = vld [vmem:[%s329 + $0x1f80] sm:$0xff]
        %v1425 = vld [vmem:[%s329 + $0x1f88] sm:$0xff]
        %v1426 = vld [vmem:[%s329 + $0x1f90] sm:$0xff]
        %v1427 = vld [vmem:[%s329 + $0x1f98] sm:$0xff]
        %v1428 = vld [vmem:[%s329 + $0x1fa0] sm:$0xff]
        %v1429 = vld [vmem:[%s329 + $0x1fa8] sm:$0xff]
        %v1430 = vld [vmem:[%s329 + $0x1fb0] sm:$0xff]
        %v1431 = vld [vmem:[%s329 + $0x1fb8] sm:$0xff]
        %v1432 = vld [vmem:[%s329 + $0x1fc0] sm:$0xff]
        %v1433 = vld [vmem:[%s329 + $0x1fc8] sm:$0xff]
        %v1434 = vld [vmem:[%s329 + $0x1fd0] sm:$0xff]
        %v1435 = vld [vmem:[%s329 + $0x1fd8] sm:$0xff]
        %v1436 = vld [vmem:[%s329 + $0x1fe0] sm:$0xff]
        %v1437 = vld [vmem:[%s329 + $0x1fe8] sm:$0xff]
        %v1438 = vld [vmem:[%s329 + $0x1ff0] sm:$0xff]
        %v1439 = vld [vmem:[%s329 + $0x1ff8] sm:$0xff]
        %v1440 = vld [vmem:[%s329 + $0x2000] sm:$0xff]
        %v1441 = vld [vmem:[%s329 + $0x2008] sm:$0xff]
        %v1442 = vld [vmem:[%s329 + $0x2010] sm:$0xff]
        %v1443 = vld [vmem:[%s329 + $0x2018] sm:$0xff]
        %v1444 = vld [vmem:[%s329 + $0x2020] sm:$0xff]
        %v1445 = vld [vmem:[%s329 + $0x2028] sm:$0xff]
        %v1446 = vld [vmem:[%s329 + $0x2030] sm:$0xff]
        %v1447 = vld [vmem:[%s329 + $0x2038] sm:$0xff]
        %v1448 = vld [vmem:[%s329 + $0x2040] sm:$0xff]
        %v1449 = vld [vmem:[%s329 + $0x2048] sm:$0xff]
        %v1450 = vld [vmem:[%s329 + $0x2050] sm:$0xff]
        %v1451 = vld [vmem:[%s329 + $0x2058] sm:$0xff]
        %v1452 = vld [vmem:[%s329 + $0x2060] sm:$0xff]
        %v1453 = vld [vmem:[%s329 + $0x2068] sm:$0xff]
        %v1454 = vld [vmem:[%s329 + $0x2070] sm:$0xff]
        %v1455 = vld [vmem:[%s329 + $0x2078] sm:$0xff]
        %v1456 = vld [vmem:[%s329 + $0x2080] sm:$0xff]
        %v1457 = vld [vmem:[%s329 + $0x2088] sm:$0xff]
        %v1458 = vld [vmem:[%s329 + $0x2090] sm:$0xff]
        %v1459 = vld [vmem:[%s329 + $0x2098] sm:$0xff]
        %v1460 = vld [vmem:[%s329 + $0x20a0] sm:$0xff]
        %v1461 = vld [vmem:[%s329 + $0x20a8] sm:$0xff]
        %v1462 = vld [vmem:[%s329 + $0x20b0] sm:$0xff]
        %v1463 = vld [vmem:[%s329 + $0x20b8] sm:$0xff]
        %v1464 = vld [vmem:[%s329 + $0x20c0] sm:$0xff]
        %v1465 = vld [vmem:[%s329 + $0x20c8] sm:$0xff]
        %v1466 = vld [vmem:[%s329 + $0x20d0] sm:$0xff]
        %v1467 = vld [vmem:[%s329 + $0x20d8] sm:$0xff]
        %v1468 = vld [vmem:[%s329 + $0x20e0] sm:$0xff]
        %v1469 = vld [vmem:[%s329 + $0x20e8] sm:$0xff]
        %v1470 = vld [vmem:[%s329 + $0x20f0] sm:$0xff]
        %v1471 = vld [vmem:[%s329 + $0x20f8] sm:$0xff]
        %v1472 = vld [vmem:[%s329 + $0x2100] sm:$0xff]
        %v1473 = vld [vmem:[%s329 + $0x2108] sm:$0xff]
        %v1474 = vld [vmem:[%s329 + $0x2110] sm:$0xff]
        %v1475 = vld [vmem:[%s329 + $0x2118] sm:$0xff]
        %v1476 = vld [vmem:[%s329 + $0x2120] sm:$0xff]
        %v1477 = vld [vmem:[%s329 + $0x2128] sm:$0xff]
        %v1478 = vld [vmem:[%s329 + $0x2130] sm:$0xff]
        %v1479 = vld [vmem:[%s329 + $0x2138] sm:$0xff]
        %v1480 = vld [vmem:[%s329 + $0x2140] sm:$0xff]
        %v1481 = vld [vmem:[%s329 + $0x2148] sm:$0xff]
        %v1482 = vld [vmem:[%s329 + $0x2150] sm:$0xff]
        %v1483 = vld [vmem:[%s329 + $0x2158] sm:$0xff]
        %v1484 = vld [vmem:[%s329 + $0x2160] sm:$0xff]
        %v1485 = vld [vmem:[%s329 + $0x2168] sm:$0xff]
        %v1486 = vld [vmem:[%s329 + $0x2170] sm:$0xff]
        %v1487 = vld [vmem:[%s329 + $0x2178] sm:$0xff]
        %v1488 = vld [vmem:[%s329 + $0x2180] sm:$0xff]
        %v1489 = vld [vmem:[%s329 + $0x2188] sm:$0xff]
        %v1490 = vld [vmem:[%s329 + $0x2190] sm:$0xff]
        %v1491 = vld [vmem:[%s329 + $0x2198] sm:$0xff]
        %v1492 = vld [vmem:[%s329 + $0x21a0] sm:$0xff]
        %v1493 = vld [vmem:[%s329 + $0x21a8] sm:$0xff]
        %v1494 = vld [vmem:[%s329 + $0x21b0] sm:$0xff]
        %v1495 = vld [vmem:[%s329 + $0x21b8] sm:$0xff]
        %v1496 = vld [vmem:[%s329 + $0x21c0] sm:$0xff]
        %v1497 = vld [vmem:[%s329 + $0x21c8] sm:$0xff]
        %v1498 = vld [vmem:[%s329 + $0x21d0] sm:$0xff]
        %v1499 = vld [vmem:[%s329 + $0x21d8] sm:$0xff]
        %v1500 = vld [vmem:[%s329 + $0x21e0] sm:$0xff]
        %v1501 = vld [vmem:[%s329 + $0x21e8] sm:$0xff]
        %v1502 = vld [vmem:[%s329 + $0x21f0] sm:$0xff]
        %v1503 = vld [vmem:[%s329 + $0x21f8] sm:$0xff]
        %v1504 = vld [vmem:[%s329 + $0x2200] sm:$0xff]
        %v1505 = vld [vmem:[%s329 + $0x2208] sm:$0xff]
        %v1506 = vld [vmem:[%s329 + $0x2210] sm:$0xff]
        %v1507 = vld [vmem:[%s329 + $0x2218] sm:$0xff]
        %v1508 = vld [vmem:[%s329 + $0x2220] sm:$0xff]
        %v1509 = vld [vmem:[%s329 + $0x2228] sm:$0xff]
        %v1510 = vld [vmem:[%s329 + $0x2230] sm:$0xff]
        %v1511 = vld [vmem:[%s329 + $0x2238] sm:$0xff]
        %v1512 = vld [vmem:[%s329 + $0x2240] sm:$0xff]
        %v1513 = vld [vmem:[%s329 + $0x2248] sm:$0xff]
        %v1514 = vld [vmem:[%s329 + $0x2250] sm:$0xff]
        %v1515 = vld [vmem:[%s329 + $0x2258] sm:$0xff]
        %v1516 = vld [vmem:[%s329 + $0x2260] sm:$0xff]
        %v1517 = vld [vmem:[%s329 + $0x2268] sm:$0xff]
        %v1518 = vld [vmem:[%s329 + $0x2270] sm:$0xff]
        %v1519 = vld [vmem:[%s329 + $0x2278] sm:$0xff]
        %v1520 = vld [vmem:[%s329 + $0x2280] sm:$0xff]
        %v1521 = vld [vmem:[%s329 + $0x2288] sm:$0xff]
        %v1522 = vld [vmem:[%s329 + $0x2290] sm:$0xff]
        %v1523 = vld [vmem:[%s329 + $0x2298] sm:$0xff]
        %v1524 = vld [vmem:[%s329 + $0x22a0] sm:$0xff]
        %v1525 = vld [vmem:[%s329 + $0x22a8] sm:$0xff]
        %v1526 = vld [vmem:[%s329 + $0x22b0] sm:$0xff]
        %v1527 = vld [vmem:[%s329 + $0x22b8] sm:$0xff]
        %v1528 = vld [vmem:[%s329 + $0x22c0] sm:$0xff]
        %v1529 = vld [vmem:[%s329 + $0x22c8] sm:$0xff]
        %v1530 = vld [vmem:[%s329 + $0x22d0] sm:$0xff]
        %v1531 = vld [vmem:[%s329 + $0x22d8] sm:$0xff]
        %v1532 = vld [vmem:[%s329 + $0x22e0] sm:$0xff]
        %v1533 = vld [vmem:[%s329 + $0x22e8] sm:$0xff]
        %v1534 = vld [vmem:[%s329 + $0x22f0] sm:$0xff]
        %v1535 = vld [vmem:[%s329 + $0x22f8] sm:$0xff]
        %v1536 = vld [vmem:[%s329 + $0x2300] sm:$0xff]
        %v1537 = vld [vmem:[%s329 + $0x2308] sm:$0xff]
        %v1538 = vld [vmem:[%s329 + $0x2310] sm:$0xff]
        %v1539 = vld [vmem:[%s329 + $0x2318] sm:$0xff]
        %v1540 = vld [vmem:[%s329 + $0x2320] sm:$0xff]
        %v1541 = vld [vmem:[%s329 + $0x2328] sm:$0xff]
        %v1542 = vld [vmem:[%s329 + $0x2330] sm:$0xff]
        %v1543 = vld [vmem:[%s329 + $0x2338] sm:$0xff]
        %v1544 = vld [vmem:[%s329 + $0x2340] sm:$0xff]
        %v1545 = vld [vmem:[%s329 + $0x2348] sm:$0xff]
        %v1546 = vld [vmem:[%s329 + $0x2350] sm:$0xff]
        %v1547 = vld [vmem:[%s329 + $0x2358] sm:$0xff]
        %v1548 = vld [vmem:[%s329 + $0x2360] sm:$0xff]
        %v1549 = vld [vmem:[%s329 + $0x2368] sm:$0xff]
        %v1550 = vld [vmem:[%s329 + $0x2370] sm:$0xff]
        %v1551 = vld [vmem:[%s329 + $0x2378] sm:$0xff]
        %v1552 = vld [vmem:[%s329 + $0x2380] sm:$0xff]
        %v1553 = vld [vmem:[%s329 + $0x2388] sm:$0xff]
        %v1554 = vld [vmem:[%s329 + $0x2390] sm:$0xff]
        %v1555 = vld [vmem:[%s329 + $0x2398] sm:$0xff]
        %v1556 = vld [vmem:[%s329 + $0x23a0] sm:$0xff]
        %v1557 = vld [vmem:[%s329 + $0x23a8] sm:$0xff]
        %v1558 = vld [vmem:[%s329 + $0x23b0] sm:$0xff]
        %v1559 = vld [vmem:[%s329 + $0x23b8] sm:$0xff]
        %v1560 = vld [vmem:[%s329 + $0x23c0] sm:$0xff]
        %v1561 = vld [vmem:[%s329 + $0x23c8] sm:$0xff]
        %v1562 = vld [vmem:[%s329 + $0x23d0] sm:$0xff]
        %v1563 = vld [vmem:[%s329 + $0x23d8] sm:$0xff]
        %v1564 = vld [vmem:[%s329 + $0x23e0] sm:$0xff]
        %v1565 = vld [vmem:[%s329 + $0x23e8] sm:$0xff]
        %v1566 = vld [vmem:[%s329 + $0x23f0] sm:$0xff]
        %v1567 = vld [vmem:[%s329 + $0x23f8] sm:$0xff]
        %v1568 = vld [vmem:[%s329 + $0x2400] sm:$0xff]
        %v1569 = vld [vmem:[%s329 + $0x2408] sm:$0xff]
        %v1570 = vld [vmem:[%s329 + $0x2410] sm:$0xff]
        %v1571 = vld [vmem:[%s329 + $0x2418] sm:$0xff]
        %v1572 = vld [vmem:[%s329 + $0x2420] sm:$0xff]
        %v1573 = vld [vmem:[%s329 + $0x2428] sm:$0xff]
        %v1574 = vld [vmem:[%s329 + $0x2430] sm:$0xff]
        %v1575 = vld [vmem:[%s329 + $0x2438] sm:$0xff]
        %v1576 = vld [vmem:[%s329 + $0x2440] sm:$0xff]
        %v1577 = vld [vmem:[%s329 + $0x2448] sm:$0xff]
        %v1578 = vld [vmem:[%s329 + $0x2450] sm:$0xff]
        %v1579 = vld [vmem:[%s329 + $0x2458] sm:$0xff]
        %v1580 = vld [vmem:[%s329 + $0x2460] sm:$0xff]
        %v1581 = vld [vmem:[%s329 + $0x2468] sm:$0xff]
        %v1582 = vld [vmem:[%s329 + $0x2470] sm:$0xff]
        %v1583 = vld [vmem:[%s329 + $0x2478] sm:$0xff]
        %v1584 = vld [vmem:[%s329 + $0x2480] sm:$0xff]
        %v1585 = vld [vmem:[%s329 + $0x2488] sm:$0xff]
        %v1586 = vld [vmem:[%s329 + $0x2490] sm:$0xff]
        %v1587 = vld [vmem:[%s329 + $0x2498] sm:$0xff]
        %v1588 = vld [vmem:[%s329 + $0x24a0] sm:$0xff]
        %v1589 = vld [vmem:[%s329 + $0x24a8] sm:$0xff]
        %v1590 = vld [vmem:[%s329 + $0x24b0] sm:$0xff]
        %v1591 = vld [vmem:[%s329 + $0x24b8] sm:$0xff]
        %v1592 = vld [vmem:[%s329 + $0x24c0] sm:$0xff]
        %v1593 = vld [vmem:[%s329 + $0x24c8] sm:$0xff]
        %v1594 = vld [vmem:[%s329 + $0x24d0] sm:$0xff]
        %v1595 = vld [vmem:[%s329 + $0x24d8] sm:$0xff]
        %v1596 = vld [vmem:[%s329 + $0x24e0] sm:$0xff]
        %v1597 = vld [vmem:[%s329 + $0x24e8] sm:$0xff]
        %v1598 = vld [vmem:[%s329 + $0x24f0] sm:$0xff]
        %v1599 = vld [vmem:[%s329 + $0x24f8] sm:$0xff]
        %v1600 = vld [vmem:[%s329 + $0x2500] sm:$0xff]
        %v1601 = vld [vmem:[%s329 + $0x2508] sm:$0xff]
        %v1602 = vld [vmem:[%s329 + $0x2510] sm:$0xff]
        %v1603 = vld [vmem:[%s329 + $0x2518] sm:$0xff]
        %v1604 = vld [vmem:[%s329 + $0x2520] sm:$0xff]
        %v1605 = vld [vmem:[%s329 + $0x2528] sm:$0xff]
        %v1606 = vld [vmem:[%s329 + $0x2530] sm:$0xff]
        %v1607 = vld [vmem:[%s329 + $0x2538] sm:$0xff]
        %v1608 = vld [vmem:[%s329 + $0x2540] sm:$0xff]
        %v1609 = vld [vmem:[%s329 + $0x2548] sm:$0xff]
        %v1610 = vld [vmem:[%s329 + $0x2550] sm:$0xff]
        %v1611 = vld [vmem:[%s329 + $0x2558] sm:$0xff]
        %v1612 = vld [vmem:[%s329 + $0x2560] sm:$0xff]
        %v1613 = vld [vmem:[%s329 + $0x2568] sm:$0xff]
        %v1614 = vld [vmem:[%s329 + $0x2570] sm:$0xff]
        %v1615 = vld [vmem:[%s329 + $0x2578] sm:$0xff]
        %v1616 = vld [vmem:[%s329 + $0x2580] sm:$0xff]
        %v1617 = vld [vmem:[%s329 + $0x2588] sm:$0xff]
        %v1618 = vld [vmem:[%s329 + $0x2590] sm:$0xff]
        %v1619 = vld [vmem:[%s329 + $0x2598] sm:$0xff]
        %v1620 = vld [vmem:[%s329 + $0x25a0] sm:$0xff]
        %v1621 = vld [vmem:[%s329 + $0x25a8] sm:$0xff]
        %v1622 = vld [vmem:[%s329 + $0x25b0] sm:$0xff]
        %v1623 = vld [vmem:[%s329 + $0x25b8] sm:$0xff]
        %v1624 = vld [vmem:[%s329 + $0x25c0] sm:$0xff]
        %v1625 = vld [vmem:[%s329 + $0x25c8] sm:$0xff]
        %v1626 = vld [vmem:[%s329 + $0x25d0] sm:$0xff]
        %v1627 = vld [vmem:[%s329 + $0x25d8] sm:$0xff]
        %v1628 = vld [vmem:[%s329 + $0x25e0] sm:$0xff]
        %v1629 = vld [vmem:[%s329 + $0x25e8] sm:$0xff]
        %v1630 = vld [vmem:[%s329 + $0x25f0] sm:$0xff]
        %v1631 = vld [vmem:[%s329 + $0x25f8] sm:$0xff]
        %v1632 = vld [vmem:[%s329 + $0x2600] sm:$0xff]
        %v1633 = vld [vmem:[%s329 + $0x2608] sm:$0xff]
        %v1634 = vld [vmem:[%s329 + $0x2610] sm:$0xff]
        %v1635 = vld [vmem:[%s329 + $0x2618] sm:$0xff]
        %v1636 = vld [vmem:[%s329 + $0x2620] sm:$0xff]
        %v1637 = vld [vmem:[%s329 + $0x2628] sm:$0xff]
        %v1638 = vld [vmem:[%s329 + $0x2630] sm:$0xff]
        %v1639 = vld [vmem:[%s329 + $0x2638] sm:$0xff]
        %v1640 = vld [vmem:[%s329 + $0x2640] sm:$0xff]
        %v1641 = vld [vmem:[%s329 + $0x2648] sm:$0xff]
        %v1642 = vld [vmem:[%s329 + $0x2650] sm:$0xff]
        %v1643 = vld [vmem:[%s329 + $0x2658] sm:$0xff]
        %v1644 = vld [vmem:[%s329 + $0x2660] sm:$0xff]
        %v1645 = vld [vmem:[%s329 + $0x2668] sm:$0xff]
        %v1646 = vld [vmem:[%s329 + $0x2670] sm:$0xff]
        %v1647 = vld [vmem:[%s329 + $0x2678] sm:$0xff]
        %v1648 = vld [vmem:[%s329 + $0x2680] sm:$0xff]
        %v1649 = vld [vmem:[%s329 + $0x2688] sm:$0xff]
        %v1650 = vld [vmem:[%s329 + $0x2690] sm:$0xff]
        %v1651 = vld [vmem:[%s329 + $0x2698] sm:$0xff]
        %v1652 = vld [vmem:[%s329 + $0x26a0] sm:$0xff]
        %v1653 = vld [vmem:[%s329 + $0x26a8] sm:$0xff]
        %v1654 = vld [vmem:[%s329 + $0x26b0] sm:$0xff]
        %v1655 = vld [vmem:[%s329 + $0x26b8] sm:$0xff]
        %v1656 = vld [vmem:[%s329 + $0x26c0] sm:$0xff]
        %v1657 = vld [vmem:[%s329 + $0x26c8] sm:$0xff]
        %v1658 = vld [vmem:[%s329 + $0x26d0] sm:$0xff]
        %v1659 = vld [vmem:[%s329 + $0x26d8] sm:$0xff]
        %v1660 = vld [vmem:[%s329 + $0x26e0] sm:$0xff]
        %v1661 = vld [vmem:[%s329 + $0x26e8] sm:$0xff]
        %v1662 = vld [vmem:[%s329 + $0x26f0] sm:$0xff]
        %v1663 = vld [vmem:[%s329 + $0x26f8] sm:$0xff]
        %v1664 = vld [vmem:[%s329 + $0x2700] sm:$0xff]
        %v1665 = vld [vmem:[%s329 + $0x2708] sm:$0xff]
        %v1666 = vld [vmem:[%s329 + $0x2710] sm:$0xff]
        %v1667 = vld [vmem:[%s329 + $0x2718] sm:$0xff]
        %v1668 = vld [vmem:[%s329 + $0x2720] sm:$0xff]
        %v1669 = vld [vmem:[%s329 + $0x2728] sm:$0xff]
        %v1670 = vld [vmem:[%s329 + $0x2730] sm:$0xff]
        %v1671 = vld [vmem:[%s329 + $0x2738] sm:$0xff]
        %v1672 = vld [vmem:[%s329 + $0x2740] sm:$0xff]
        %v1673 = vld [vmem:[%s329 + $0x2748] sm:$0xff]
        %v1674 = vld [vmem:[%s329 + $0x2750] sm:$0xff]
        %v1675 = vld [vmem:[%s329 + $0x2758] sm:$0xff]
        %v1676 = vld [vmem:[%s329 + $0x2760] sm:$0xff]
        %v1677 = vld [vmem:[%s329 + $0x2768] sm:$0xff]
        %v1678 = vld [vmem:[%s329 + $0x2770] sm:$0xff]
        %v1679 = vld [vmem:[%s329 + $0x2778] sm:$0xff]
        %v1680 = vld [vmem:[%s329 + $0x2780] sm:$0xff]
        %v1681 = vld [vmem:[%s329 + $0x2788] sm:$0xff]
        %v1682 = vld [vmem:[%s329 + $0x2790] sm:$0xff]
        %v1683 = vld [vmem:[%s329 + $0x2798] sm:$0xff]
        %v1684 = vld [vmem:[%s329 + $0x27a0] sm:$0xff]
        %v1685 = vld [vmem:[%s329 + $0x27a8] sm:$0xff]
        %v1686 = vld [vmem:[%s329 + $0x27b0] sm:$0xff]
        %v1687 = vld [vmem:[%s329 + $0x27b8] sm:$0xff]
        %v1688 = vld [vmem:[%s329 + $0x27c0] sm:$0xff]
        %v1689 = vld [vmem:[%s329 + $0x27c8] sm:$0xff]
        %v1690 = vld [vmem:[%s329 + $0x27d0] sm:$0xff]
        %v1691 = vld [vmem:[%s329 + $0x27d8] sm:$0xff]
        %v1692 = vld [vmem:[%s329 + $0x27e0] sm:$0xff]
        %v1693 = vld [vmem:[%s329 + $0x27e8] sm:$0xff]
        %v1694 = vld [vmem:[%s329 + $0x27f0] sm:$0xff]
        %v1695 = vld [vmem:[%s329 + $0x27f8] sm:$0xff]
        %v1696 = vld [vmem:[%s329 + $0x2800] sm:$0xff]
        %v1697 = vld [vmem:[%s329 + $0x2808] sm:$0xff]
        %v1698 = vld [vmem:[%s329 + $0x2810] sm:$0xff]
        %v1699 = vld [vmem:[%s329 + $0x2818] sm:$0xff]
        %v1700 = vld [vmem:[%s329 + $0x2820] sm:$0xff]
        %v1701 = vld [vmem:[%s329 + $0x2828] sm:$0xff]
        %v1702 = vld [vmem:[%s329 + $0x2830] sm:$0xff]
        %v1703 = vld [vmem:[%s329 + $0x2838] sm:$0xff]
        %v1704 = vld [vmem:[%s329 + $0x2840] sm:$0xff]
        %v1705 = vld [vmem:[%s329 + $0x2848] sm:$0xff]
        %v1706 = vld [vmem:[%s329 + $0x2850] sm:$0xff]
        %v1707 = vld [vmem:[%s329 + $0x2858] sm:$0xff]
        %v1708 = vld [vmem:[%s329 + $0x2860] sm:$0xff]
        %v1709 = vld [vmem:[%s329 + $0x2868] sm:$0xff]
        %v1710 = vld [vmem:[%s329 + $0x2870] sm:$0xff]
        %v1711 = vld [vmem:[%s329 + $0x2878] sm:$0xff]
        %v1712 = vld [vmem:[%s329 + $0x2880] sm:$0xff]
        %v1713 = vld [vmem:[%s329 + $0x2888] sm:$0xff]
        %v1714 = vld [vmem:[%s329 + $0x2890] sm:$0xff]
        %v1715 = vld [vmem:[%s329 + $0x2898] sm:$0xff]
        %v1716 = vld [vmem:[%s329 + $0x28a0] sm:$0xff]
        %v1717 = vld [vmem:[%s329 + $0x28a8] sm:$0xff]
        %v1718 = vld [vmem:[%s329 + $0x28b0] sm:$0xff]
        %v1719 = vld [vmem:[%s329 + $0x28b8] sm:$0xff]
        %v1720 = vld [vmem:[%s329 + $0x28c0] sm:$0xff]
        %v1721 = vld [vmem:[%s329 + $0x28c8] sm:$0xff]
        %v1722 = vld [vmem:[%s329 + $0x28d0] sm:$0xff]
        %v1723 = vld [vmem:[%s329 + $0x28d8] sm:$0xff]
        %v1724 = vld [vmem:[%s329 + $0x28e0] sm:$0xff]
        %v1725 = vld [vmem:[%s329 + $0x28e8] sm:$0xff]
        %v1726 = vld [vmem:[%s329 + $0x28f0] sm:$0xff]
        %v1727 = vld [vmem:[%s329 + $0x28f8] sm:$0xff]
        %v1728 = vld [vmem:[%s329 + $0x2900] sm:$0xff]
        %v1729 = vld [vmem:[%s329 + $0x2908] sm:$0xff]
        %v1730 = vld [vmem:[%s329 + $0x2910] sm:$0xff]
        %v1731 = vld [vmem:[%s329 + $0x2918] sm:$0xff]
        %v1732 = vld [vmem:[%s329 + $0x2920] sm:$0xff]
        %v1733 = vld [vmem:[%s329 + $0x2928] sm:$0xff]
        %v1734 = vld [vmem:[%s329 + $0x2930] sm:$0xff]
        %v1735 = vld [vmem:[%s329 + $0x2938] sm:$0xff]
        %v1736 = vld [vmem:[%s329 + $0x2940] sm:$0xff]
        %v1737 = vld [vmem:[%s329 + $0x2948] sm:$0xff]
        %v1738 = vld [vmem:[%s329 + $0x2950] sm:$0xff]
        %v1739 = vld [vmem:[%s329 + $0x2958] sm:$0xff]
        %v1740 = vld [vmem:[%s329 + $0x2960] sm:$0xff]
        %v1741 = vld [vmem:[%s329 + $0x2968] sm:$0xff]
        %v1742 = vld [vmem:[%s329 + $0x2970] sm:$0xff]
        %v1743 = vld [vmem:[%s329 + $0x2978] sm:$0xff]
        %v1744 = vld [vmem:[%s329 + $0x2980] sm:$0xff]
        %v1745 = vld [vmem:[%s329 + $0x2988] sm:$0xff]
        %v1746 = vld [vmem:[%s329 + $0x2990] sm:$0xff]
        %v1747 = vld [vmem:[%s329 + $0x2998] sm:$0xff]
        %v1748 = vld [vmem:[%s329 + $0x29a0] sm:$0xff]
        %v1749 = vld [vmem:[%s329 + $0x29a8] sm:$0xff]
        %v1750 = vld [vmem:[%s329 + $0x29b0] sm:$0xff]
        %v1751 = vld [vmem:[%s329 + $0x29b8] sm:$0xff]
        %v1752 = vld [vmem:[%s329 + $0x29c0] sm:$0xff]
        %v1753 = vld [vmem:[%s329 + $0x29c8] sm:$0xff]
        %v1754 = vld [vmem:[%s329 + $0x29d0] sm:$0xff]
        %v1755 = vld [vmem:[%s329 + $0x29d8] sm:$0xff]
        %v1756 = vld [vmem:[%s329 + $0x29e0] sm:$0xff]
        %v1757 = vld [vmem:[%s329 + $0x29e8] sm:$0xff]
        %v1758 = vld [vmem:[%s329 + $0x29f0] sm:$0xff]
        %v1759 = vld [vmem:[%s329 + $0x29f8] sm:$0xff]
        %v1760 = vld [vmem:[%s329 + $0x2a00] sm:$0xff]
        %v1761 = vld [vmem:[%s329 + $0x2a08] sm:$0xff]
        %v1762 = vld [vmem:[%s329 + $0x2a10] sm:$0xff]
        %v1763 = vld [vmem:[%s329 + $0x2a18] sm:$0xff]
        %v1764 = vld [vmem:[%s329 + $0x2a20] sm:$0xff]
        %v1765 = vld [vmem:[%s329 + $0x2a28] sm:$0xff]
        %v1766 = vld [vmem:[%s329 + $0x2a30] sm:$0xff]
        %v1767 = vld [vmem:[%s329 + $0x2a38] sm:$0xff]
        %v1768 = vld [vmem:[%s329 + $0x2a40] sm:$0xff]
        %v1769 = vld [vmem:[%s329 + $0x2a48] sm:$0xff]
        %v1770 = vld [vmem:[%s329 + $0x2a50] sm:$0xff]
        %v1771 = vld [vmem:[%s329 + $0x2a58] sm:$0xff]
        %v1772 = vld [vmem:[%s329 + $0x2a60] sm:$0xff]
        %v1773 = vld [vmem:[%s329 + $0x2a68] sm:$0xff]
        %v1774 = vld [vmem:[%s329 + $0x2a70] sm:$0xff]
        %v1775 = vld [vmem:[%s329 + $0x2a78] sm:$0xff]
        %v1776 = vld [vmem:[%s329 + $0x2a80] sm:$0xff]
        %v1777 = vld [vmem:[%s329 + $0x2a88] sm:$0xff]
        %v1778 = vld [vmem:[%s329 + $0x2a90] sm:$0xff]
        %v1779 = vld [vmem:[%s329 + $0x2a98] sm:$0xff]
        %v1780 = vld [vmem:[%s329 + $0x2aa0] sm:$0xff]
        %v1781 = vld [vmem:[%s329 + $0x2aa8] sm:$0xff]
        %v1782 = vld [vmem:[%s329 + $0x2ab0] sm:$0xff]
        %v1783 = vld [vmem:[%s329 + $0x2ab8] sm:$0xff]
        %v1784 = vld [vmem:[%s329 + $0x2ac0] sm:$0xff]
        %v1785 = vld [vmem:[%s329 + $0x2ac8] sm:$0xff]
        %v1786 = vld [vmem:[%s329 + $0x2ad0] sm:$0xff]
        %v1787 = vld [vmem:[%s329 + $0x2ad8] sm:$0xff]
        %v1788 = vld [vmem:[%s329 + $0x2ae0] sm:$0xff]
        %v1789 = vld [vmem:[%s329 + $0x2ae8] sm:$0xff]
        %v1790 = vld [vmem:[%s329 + $0x2af0] sm:$0xff]
        %v1791 = vld [vmem:[%s329 + $0x2af8] sm:$0xff]
        %v1792 = vld [vmem:[%s329 + $0x2b00] sm:$0xff]
        %v1793 = vld [vmem:[%s329 + $0x2b08] sm:$0xff]
        %v1794 = vld [vmem:[%s329 + $0x2b10] sm:$0xff]
        %v1795 = vld [vmem:[%s329 + $0x2b18] sm:$0xff]
        %v1796 = vld [vmem:[%s329 + $0x2b20] sm:$0xff]
        %v1797 = vld [vmem:[%s329 + $0x2b28] sm:$0xff]
        %v1798 = vld [vmem:[%s329 + $0x2b30] sm:$0xff]
        %v1799 = vld [vmem:[%s329 + $0x2b38] sm:$0xff]
        %v1800 = vld [vmem:[%s329 + $0x2b40] sm:$0xff]
        %v1801 = vld [vmem:[%s329 + $0x2b48] sm:$0xff]
        %v1802 = vld [vmem:[%s329 + $0x2b50] sm:$0xff]
        %v1803 = vld [vmem:[%s329 + $0x2b58] sm:$0xff]
        %v1804 = vld [vmem:[%s329 + $0x2b60] sm:$0xff]
        %v1805 = vld [vmem:[%s329 + $0x2b68] sm:$0xff]
        %v1806 = vld [vmem:[%s329 + $0x2b70] sm:$0xff]
        %v1807 = vld [vmem:[%s329 + $0x2b78] sm:$0xff]
        %v1808 = vld [vmem:[%s329 + $0x2b80] sm:$0xff]
        %v1809 = vld [vmem:[%s329 + $0x2b88] sm:$0xff]
        %v1810 = vld [vmem:[%s329 + $0x2b90] sm:$0xff]
        %v1811 = vld [vmem:[%s329 + $0x2b98] sm:$0xff]
        %v1812 = vld [vmem:[%s329 + $0x2ba0] sm:$0xff]
        %v1813 = vld [vmem:[%s329 + $0x2ba8] sm:$0xff]
        %v1814 = vld [vmem:[%s329 + $0x2bb0] sm:$0xff]
        %v1815 = vld [vmem:[%s329 + $0x2bb8] sm:$0xff]
        %v1816 = vld [vmem:[%s329 + $0x2bc0] sm:$0xff]
        %v1817 = vld [vmem:[%s329 + $0x2bc8] sm:$0xff]
        %v1818 = vld [vmem:[%s329 + $0x2bd0] sm:$0xff]
        %v1819 = vld [vmem:[%s329 + $0x2bd8] sm:$0xff]
        %v1820 = vld [vmem:[%s329 + $0x2be0] sm:$0xff]
        %v1821 = vld [vmem:[%s329 + $0x2be8] sm:$0xff]
        %v1822 = vld [vmem:[%s329 + $0x2bf0] sm:$0xff]
        %v1823 = vld [vmem:[%s329 + $0x2bf8] sm:$0xff]
        %v1824 = vld [vmem:[%s329 + $0x2c00] sm:$0xff]
        %v1825 = vld [vmem:[%s329 + $0x2c08] sm:$0xff]
        %v1826 = vld [vmem:[%s329 + $0x2c10] sm:$0xff]
        %v1827 = vld [vmem:[%s329 + $0x2c18] sm:$0xff]
        %v1828 = vld [vmem:[%s329 + $0x2c20] sm:$0xff]
        %v1829 = vld [vmem:[%s329 + $0x2c28] sm:$0xff]
        %v1830 = vld [vmem:[%s329 + $0x2c30] sm:$0xff]
        %v1831 = vld [vmem:[%s329 + $0x2c38] sm:$0xff]
        %v1832 = vld [vmem:[%s329 + $0x2c40] sm:$0xff]
        %v1833 = vld [vmem:[%s329 + $0x2c48] sm:$0xff]
        %v1834 = vld [vmem:[%s329 + $0x2c50] sm:$0xff]
        %v1835 = vld [vmem:[%s329 + $0x2c58] sm:$0xff]
        %v1836 = vld [vmem:[%s329 + $0x2c60] sm:$0xff]
        %v1837 = vld [vmem:[%s329 + $0x2c68] sm:$0xff]
        %v1838 = vld [vmem:[%s329 + $0x2c70] sm:$0xff]
        %v1839 = vld [vmem:[%s329 + $0x2c78] sm:$0xff]
        %v1840 = vld [vmem:[%s329 + $0x2c80] sm:$0xff]
        %v1841 = vld [vmem:[%s329 + $0x2c88] sm:$0xff]
        %v1842 = vld [vmem:[%s329 + $0x2c90] sm:$0xff]
        %v1843 = vld [vmem:[%s329 + $0x2c98] sm:$0xff]
        %v1844 = vld [vmem:[%s329 + $0x2ca0] sm:$0xff]
        %v1845 = vld [vmem:[%s329 + $0x2ca8] sm:$0xff]
        %v1846 = vld [vmem:[%s329 + $0x2cb0] sm:$0xff]
        %v1847 = vld [vmem:[%s329 + $0x2cb8] sm:$0xff]
        %v1848 = vld [vmem:[%s329 + $0x2cc0] sm:$0xff]
        %v1849 = vld [vmem:[%s329 + $0x2cc8] sm:$0xff]
        %v1850 = vld [vmem:[%s329 + $0x2cd0] sm:$0xff]
        %v1851 = vld [vmem:[%s329 + $0x2cd8] sm:$0xff]
        %v1852 = vld [vmem:[%s329 + $0x2ce0] sm:$0xff]
        %v1853 = vld [vmem:[%s329 + $0x2ce8] sm:$0xff]
        %v1854 = vld [vmem:[%s329 + $0x2cf0] sm:$0xff]
        %v1855 = vld [vmem:[%s329 + $0x2cf8] sm:$0xff]
        %v1856 = vld [vmem:[%s329 + $0x2d00] sm:$0xff]
        %v1857 = vld [vmem:[%s329 + $0x2d08] sm:$0xff]
        %v1858 = vld [vmem:[%s329 + $0x2d10] sm:$0xff]
        %v1859 = vld [vmem:[%s329 + $0x2d18] sm:$0xff]
        %v1860 = vld [vmem:[%s329 + $0x2d20] sm:$0xff]
        %v1861 = vld [vmem:[%s329 + $0x2d28] sm:$0xff]
        %v1862 = vld [vmem:[%s329 + $0x2d30] sm:$0xff]
        %v1863 = vld [vmem:[%s329 + $0x2d38] sm:$0xff]
        %v1864 = vld [vmem:[%s329 + $0x2d40] sm:$0xff]
        %v1865 = vld [vmem:[%s329 + $0x2d48] sm:$0xff]
        %v1866 = vld [vmem:[%s329 + $0x2d50] sm:$0xff]
        %v1867 = vld [vmem:[%s329 + $0x2d58] sm:$0xff]
        %v1868 = vld [vmem:[%s329 + $0x2d60] sm:$0xff]
        %v1869 = vld [vmem:[%s329 + $0x2d68] sm:$0xff]
        %v1870 = vld [vmem:[%s329 + $0x2d70] sm:$0xff]
        %v1871 = vld [vmem:[%s329 + $0x2d78] sm:$0xff]
        %v1872 = vld [vmem:[%s329 + $0x2d80] sm:$0xff]
        %v1873 = vld [vmem:[%s329 + $0x2d88] sm:$0xff]
        %v1874 = vld [vmem:[%s329 + $0x2d90] sm:$0xff]
        %v1875 = vld [vmem:[%s329 + $0x2d98] sm:$0xff]
        %v1876 = vld [vmem:[%s329 + $0x2da0] sm:$0xff]
        %v1877 = vld [vmem:[%s329 + $0x2da8] sm:$0xff]
        %v1878 = vld [vmem:[%s329 + $0x2db0] sm:$0xff]
        %v1879 = vld [vmem:[%s329 + $0x2db8] sm:$0xff]
        %v1880 = vld [vmem:[%s329 + $0x2dc0] sm:$0xff]
        %v1881 = vld [vmem:[%s329 + $0x2dc8] sm:$0xff]
        %v1882 = vld [vmem:[%s329 + $0x2dd0] sm:$0xff]
        %v1883 = vld [vmem:[%s329 + $0x2dd8] sm:$0xff]
        %v1884 = vld [vmem:[%s329 + $0x2de0] sm:$0xff]
        %v1885 = vld [vmem:[%s329 + $0x2de8] sm:$0xff]
        %v1886 = vld [vmem:[%s329 + $0x2df0] sm:$0xff]
        %v1887 = vld [vmem:[%s329 + $0x2df8] sm:$0xff]
        %v1888 = vld [vmem:[%s329 + $0x2e00] sm:$0xff]
        %v1889 = vld [vmem:[%s329 + $0x2e08] sm:$0xff]
        %v1890 = vld [vmem:[%s329 + $0x2e10] sm:$0xff]
        %v1891 = vld [vmem:[%s329 + $0x2e18] sm:$0xff]
        %v1892 = vld [vmem:[%s329 + $0x2e20] sm:$0xff]
        %v1893 = vld [vmem:[%s329 + $0x2e28] sm:$0xff]
        %v1894 = vld [vmem:[%s329 + $0x2e30] sm:$0xff]
        %v1895 = vld [vmem:[%s329 + $0x2e38] sm:$0xff]
        %v1896 = vld [vmem:[%s329 + $0x2e40] sm:$0xff]
        %v1897 = vld [vmem:[%s329 + $0x2e48] sm:$0xff]
        %v1898 = vld [vmem:[%s329 + $0x2e50] sm:$0xff]
        %v1899 = vld [vmem:[%s329 + $0x2e58] sm:$0xff]
        %v1900 = vld [vmem:[%s329 + $0x2e60] sm:$0xff]
        %v1901 = vld [vmem:[%s329 + $0x2e68] sm:$0xff]
        %v1902 = vld [vmem:[%s329 + $0x2e70] sm:$0xff]
        %v1903 = vld [vmem:[%s329 + $0x2e78] sm:$0xff]
        %v1904 = vld [vmem:[%s329 + $0x2e80] sm:$0xff]
        %v1905 = vld [vmem:[%s329 + $0x2e88] sm:$0xff]
        %v1906 = vld [vmem:[%s329 + $0x2e90] sm:$0xff]
        %v1907 = vld [vmem:[%s329 + $0x2e98] sm:$0xff]
        %v1908 = vld [vmem:[%s329 + $0x2ea0] sm:$0xff]
        %v1909 = vld [vmem:[%s329 + $0x2ea8] sm:$0xff]
        %v1910 = vld [vmem:[%s329 + $0x2eb0] sm:$0xff]
        %v1911 = vld [vmem:[%s329 + $0x2eb8] sm:$0xff]
        %v1912 = vld [vmem:[%s329 + $0x2ec0] sm:$0xff]
        %v1913 = vld [vmem:[%s329 + $0x2ec8] sm:$0xff]
        %v1914 = vld [vmem:[%s329 + $0x2ed0] sm:$0xff]
        %v1915 = vld [vmem:[%s329 + $0x2ed8] sm:$0xff]
        %v1916 = vld [vmem:[%s329 + $0x2ee0] sm:$0xff]
        %v1917 = vld [vmem:[%s329 + $0x2ee8] sm:$0xff]
        %v1918 = vld [vmem:[%s329 + $0x2ef0] sm:$0xff]
        %v1919 = vld [vmem:[%s329 + $0x2ef8] sm:$0xff]
        %v1920 = vld [vmem:[%s329 + $0x2f00] sm:$0xff]
        %v1921 = vld [vmem:[%s329 + $0x2f08] sm:$0xff]
        %v1922 = vld [vmem:[%s329 + $0x2f10] sm:$0xff]
        %v1923 = vld [vmem:[%s329 + $0x2f18] sm:$0xff]
        %v1924 = vld [vmem:[%s329 + $0x2f20] sm:$0xff]
        %v1925 = vld [vmem:[%s329 + $0x2f28] sm:$0xff]
        %v1926 = vld [vmem:[%s329 + $0x2f30] sm:$0xff]
        %v1927 = vld [vmem:[%s329 + $0x2f38] sm:$0xff]
        %v1928 = vld [vmem:[%s329 + $0x2f40] sm:$0xff]
        %v1929 = vld [vmem:[%s329 + $0x2f48] sm:$0xff]
        %v1930 = vld [vmem:[%s329 + $0x2f50] sm:$0xff]
        %v1931 = vld [vmem:[%s329 + $0x2f58] sm:$0xff]
        %v1932 = vld [vmem:[%s329 + $0x2f60] sm:$0xff]
        %v1933 = vld [vmem:[%s329 + $0x2f68] sm:$0xff]
        %v1934 = vld [vmem:[%s329 + $0x2f70] sm:$0xff]
        %v1935 = vld [vmem:[%s329 + $0x2f78] sm:$0xff]
        %v1936 = vld [vmem:[%s329 + $0x2f80] sm:$0xff]
        %v1937 = vld [vmem:[%s329 + $0x2f88] sm:$0xff]
        %v1938 = vld [vmem:[%s329 + $0x2f90] sm:$0xff]
        %v1939 = vld [vmem:[%s329 + $0x2f98] sm:$0xff]
        %v1940 = vld [vmem:[%s329 + $0x2fa0] sm:$0xff]
        %v1941 = vld [vmem:[%s329 + $0x2fa8] sm:$0xff]
        %v1942 = vld [vmem:[%s329 + $0x2fb0] sm:$0xff]
        %v1943 = vld [vmem:[%s329 + $0x2fb8] sm:$0xff]
        %v1944 = vld [vmem:[%s329 + $0x2fc0] sm:$0xff]
        %v1945 = vld [vmem:[%s329 + $0x2fc8] sm:$0xff]
        %v1946 = vld [vmem:[%s329 + $0x2fd0] sm:$0xff]
        %v1947 = vld [vmem:[%s329 + $0x2fd8] sm:$0xff]
        %v1948 = vld [vmem:[%s329 + $0x2fe0] sm:$0xff]
        %v1949 = vld [vmem:[%s329 + $0x2fe8] sm:$0xff]
        %v1950 = vld [vmem:[%s329 + $0x2ff0] sm:$0xff]
        %v1951 = vld [vmem:[%s329 + $0x2ff8] sm:$0xff]
        %v1952 = vld [vmem:[%s329 + $0x3000] sm:$0xff]
        %v1953 = vld [vmem:[%s329 + $0x3008] sm:$0xff]
        %v1954 = vld [vmem:[%s329 + $0x3010] sm:$0xff]
        %v1955 = vld [vmem:[%s329 + $0x3018] sm:$0xff]
        %v1956 = vld [vmem:[%s329 + $0x3020] sm:$0xff]
        %v1957 = vld [vmem:[%s329 + $0x3028] sm:$0xff]
        %v1958 = vld [vmem:[%s329 + $0x3030] sm:$0xff]
        %v1959 = vld [vmem:[%s329 + $0x3038] sm:$0xff]
        %v1960 = vld [vmem:[%s329 + $0x3040] sm:$0xff]
        %v1961 = vld [vmem:[%s329 + $0x3048] sm:$0xff]
        %v1962 = vld [vmem:[%s329 + $0x3050] sm:$0xff]
        %v1963 = vld [vmem:[%s329 + $0x3058] sm:$0xff]
        %v1964 = vld [vmem:[%s329 + $0x3060] sm:$0xff]
        %v1965 = vld [vmem:[%s329 + $0x3068] sm:$0xff]
        %v1966 = vld [vmem:[%s329 + $0x3070] sm:$0xff]
        %v1967 = vld [vmem:[%s329 + $0x3078] sm:$0xff]
        %v1968 = vld [vmem:[%s329 + $0x3080] sm:$0xff]
        %v1969 = vld [vmem:[%s329 + $0x3088] sm:$0xff]
        %v1970 = vld [vmem:[%s329 + $0x3090] sm:$0xff]
        %v1971 = vld [vmem:[%s329 + $0x3098] sm:$0xff]
        %v1972 = vld [vmem:[%s329 + $0x30a0] sm:$0xff]
        %v1973 = vld [vmem:[%s329 + $0x30a8] sm:$0xff]
        %v1974 = vld [vmem:[%s329 + $0x30b0] sm:$0xff]
        %v1975 = vld [vmem:[%s329 + $0x30b8] sm:$0xff]
        %v1976 = vld [vmem:[%s329 + $0x30c0] sm:$0xff]
        %v1977 = vld [vmem:[%s329 + $0x30c8] sm:$0xff]
        %v1978 = vld [vmem:[%s329 + $0x30d0] sm:$0xff]
        %v1979 = vld [vmem:[%s329 + $0x30d8] sm:$0xff]
        %v1980 = vld [vmem:[%s329 + $0x30e0] sm:$0xff]
        %v1981 = vld [vmem:[%s329 + $0x30e8] sm:$0xff]
        %v1982 = vld [vmem:[%s329 + $0x30f0] sm:$0xff]
        %v1983 = vld [vmem:[%s329 + $0x30f8] sm:$0xff]
        %v1984 = vld [vmem:[%s329 + $0x3100] sm:$0xff]
        %v1985 = vld [vmem:[%s329 + $0x3108] sm:$0xff]
        %v1986 = vld [vmem:[%s329 + $0x3110] sm:$0xff]
        %v1987 = vld [vmem:[%s329 + $0x3118] sm:$0xff]
        %v1988 = vld [vmem:[%s329 + $0x3120] sm:$0xff]
        %v1989 = vld [vmem:[%s329 + $0x3128] sm:$0xff]
        %v1990 = vld [vmem:[%s329 + $0x3130] sm:$0xff]
        %v1991 = vld [vmem:[%s329 + $0x3138] sm:$0xff]
        %v1992 = vld [vmem:[%s329 + $0x3140] sm:$0xff]
        %v1993 = vld [vmem:[%s329 + $0x3148] sm:$0xff]
        %v1994 = vld [vmem:[%s329 + $0x3150] sm:$0xff]
        %v1995 = vld [vmem:[%s329 + $0x3158] sm:$0xff]
        %v1996 = vld [vmem:[%s329 + $0x3160] sm:$0xff]
        %v1997 = vld [vmem:[%s329 + $0x3168] sm:$0xff]
        %v1998 = vld [vmem:[%s329 + $0x3170] sm:$0xff]
        %v1999 = vld [vmem:[%s329 + $0x3178] sm:$0xff]
        %v2000 = vld [vmem:[%s329 + $0x3180] sm:$0xff]
        %v2001 = vld [vmem:[%s329 + $0x3188] sm:$0xff]
        %v2002 = vld [vmem:[%s329 + $0x3190] sm:$0xff]
        %v2003 = vld [vmem:[%s329 + $0x3198] sm:$0xff]
        %v2004 = vld [vmem:[%s329 + $0x31a0] sm:$0xff]
        %v2005 = vld [vmem:[%s329 + $0x31a8] sm:$0xff]
        %v2006 = vld [vmem:[%s329 + $0x31b0] sm:$0xff]
        %v2007 = vld [vmem:[%s329 + $0x31b8] sm:$0xff]
        %v2008 = vld [vmem:[%s329 + $0x31c0] sm:$0xff]
        %v2009 = vld [vmem:[%s329 + $0x31c8] sm:$0xff]
        %v2010 = vld [vmem:[%s329 + $0x31d0] sm:$0xff]
        %v2011 = vld [vmem:[%s329 + $0x31d8] sm:$0xff]
        %v2012 = vld [vmem:[%s329 + $0x31e0] sm:$0xff]
        %v2013 = vld [vmem:[%s329 + $0x31e8] sm:$0xff]
        %v2014 = vld [vmem:[%s329 + $0x31f0] sm:$0xff]
        %v2015 = vld [vmem:[%s329 + $0x31f8] sm:$0xff]
        %v2016 = vld [vmem:[%s329 + $0x3200] sm:$0xff]
        %v2017 = vld [vmem:[%s329 + $0x3208] sm:$0xff]
        %v2018 = vld [vmem:[%s329 + $0x3210] sm:$0xff]
        %v2019 = vld [vmem:[%s329 + $0x3218] sm:$0xff]
        %v2020 = vld [vmem:[%s329 + $0x3220] sm:$0xff]
        %v2021 = vld [vmem:[%s329 + $0x3228] sm:$0xff]
        %v2022 = vld [vmem:[%s329 + $0x3230] sm:$0xff]
        %v2023 = vld [vmem:[%s329 + $0x3238] sm:$0xff]
        %v2024 = vld [vmem:[%s329 + $0x3240] sm:$0xff]
        %v2025 = vld [vmem:[%s329 + $0x3248] sm:$0xff]
        %v2026 = vld [vmem:[%s329 + $0x3250] sm:$0xff]
        %v2027 = vld [vmem:[%s329 + $0x3258] sm:$0xff]
        %v2028 = vld [vmem:[%s329 + $0x3260] sm:$0xff]
        %v2029 = vld [vmem:[%s329 + $0x3268] sm:$0xff]
        %v2030 = vld [vmem:[%s329 + $0x3270] sm:$0xff]
        %v2031 = vld [vmem:[%s329 + $0x3278] sm:$0xff]
        %v2032 = vld [vmem:[%s329 + $0x3280] sm:$0xff]
        %v2033 = vld [vmem:[%s329 + $0x3288] sm:$0xff]
        %v2034 = vld [vmem:[%s329 + $0x3290] sm:$0xff]
        %v2035 = vld [vmem:[%s329 + $0x3298] sm:$0xff]
        %v2036 = vld [vmem:[%s329 + $0x32a0] sm:$0xff]
        %v2037 = vld [vmem:[%s329 + $0x32a8] sm:$0xff]
        %v2038 = vld [vmem:[%s329 + $0x32b0] sm:$0xff]
        %v2039 = vld [vmem:[%s329 + $0x32b8] sm:$0xff]
        %v2040 = vld [vmem:[%s329 + $0x32c0] sm:$0xff]
        %v2041 = vld [vmem:[%s329 + $0x32c8] sm:$0xff]
        %v2042 = vld [vmem:[%s329 + $0x32d0] sm:$0xff]
        %v2043 = vld [vmem:[%s329 + $0x32d8] sm:$0xff]
        %v2044 = vld [vmem:[%s329 + $0x32e0] sm:$0xff]
        %v2045 = vld [vmem:[%s329 + $0x32e8] sm:$0xff]
        %v2046 = vld [vmem:[%s329 + $0x32f0] sm:$0xff]
        %v2047 = vld [vmem:[%s329 + $0x32f8] sm:$0xff]
        %v2048 = vld [vmem:[%s329 + $0x3300] sm:$0xff]
        %v2049 = vld [vmem:[%s329 + $0x3308] sm:$0xff]
        %v2050 = vld [vmem:[%s329 + $0x3310] sm:$0xff]
        %v2051 = vld [vmem:[%s329 + $0x3318] sm:$0xff]
        %v2052 = vld [vmem:[%s329 + $0x3320] sm:$0xff]
        %v2053 = vld [vmem:[%s329 + $0x3328] sm:$0xff]
        %v2054 = vld [vmem:[%s329 + $0x3330] sm:$0xff]
        %v2055 = vld [vmem:[%s329 + $0x3338] sm:$0xff]
        %v2056 = vld [vmem:[%s329 + $0x3340] sm:$0xff]
        %v2057 = vld [vmem:[%s329 + $0x3348] sm:$0xff]
        %v2058 = vld [vmem:[%s329 + $0x3350] sm:$0xff]
        %v2059 = vld [vmem:[%s329 + $0x3358] sm:$0xff]
        %v2060 = vld [vmem:[%s329 + $0x3360] sm:$0xff]
        %v2061 = vld [vmem:[%s329 + $0x3368] sm:$0xff]
        %v2062 = vld [vmem:[%s329 + $0x3370] sm:$0xff]
        %v2063 = vld [vmem:[%s329 + $0x3378] sm:$0xff]
        %v2064 = vld [vmem:[%s329 + $0x3380] sm:$0xff]
        %v2065 = vld [vmem:[%s329 + $0x3388] sm:$0xff]
        %v2066 = vld [vmem:[%s329 + $0x3390] sm:$0xff]
        %v2067 = vld [vmem:[%s329 + $0x3398] sm:$0xff]
        %v2068 = vld [vmem:[%s329 + $0x33a0] sm:$0xff]
        %v2069 = vld [vmem:[%s329 + $0x33a8] sm:$0xff]
        %v2070 = vld [vmem:[%s329 + $0x33b0] sm:$0xff]
        %v2071 = vld [vmem:[%s329 + $0x33b8] sm:$0xff]
        %v2072 = vld [vmem:[%s329 + $0x33c0] sm:$0xff]
        %v2073 = vld [vmem:[%s329 + $0x33c8] sm:$0xff]
        %v2074 = vld [vmem:[%s329 + $0x33d0] sm:$0xff]
        %v2075 = vld [vmem:[%s329 + $0x33d8] sm:$0xff]
        %v2076 = vld [vmem:[%s329 + $0x33e0] sm:$0xff]
        %v2077 = vld [vmem:[%s329 + $0x33e8] sm:$0xff]
        %v2078 = vld [vmem:[%s329 + $0x33f0] sm:$0xff]
        %v2079 = vld [vmem:[%s329 + $0x33f8] sm:$0xff]
        %v2080 = vld [vmem:[%s329 + $0x3400] sm:$0xff]
        %v2081 = vld [vmem:[%s329 + $0x3408] sm:$0xff]
        %v2082 = vld [vmem:[%s329 + $0x3410] sm:$0xff]
        %v2083 = vld [vmem:[%s329 + $0x3418] sm:$0xff]
        %v2084 = vld [vmem:[%s329 + $0x3420] sm:$0xff]
        %v2085 = vld [vmem:[%s329 + $0x3428] sm:$0xff]
        %v2086 = vld [vmem:[%s329 + $0x3430] sm:$0xff]
        %v2087 = vld [vmem:[%s329 + $0x3438] sm:$0xff]
        %v2088 = vld [vmem:[%s329 + $0x3440] sm:$0xff]
        %v2089 = vld [vmem:[%s329 + $0x3448] sm:$0xff]
        %v2090 = vld [vmem:[%s329 + $0x3450] sm:$0xff]
        %v2091 = vld [vmem:[%s329 + $0x3458] sm:$0xff]
        %v2092 = vld [vmem:[%s329 + $0x3460] sm:$0xff]
        %v2093 = vld [vmem:[%s329 + $0x3468] sm:$0xff]
        %v2094 = vld [vmem:[%s329 + $0x3470] sm:$0xff]
        %v2095 = vld [vmem:[%s329 + $0x3478] sm:$0xff]
        %v2096 = vld [vmem:[%s329 + $0x3480] sm:$0xff]
        %v2097 = vld [vmem:[%s329 + $0x3488] sm:$0xff]
        %v2098 = vld [vmem:[%s329 + $0x3490] sm:$0xff]
        %v2099 = vld [vmem:[%s329 + $0x3498] sm:$0xff]
        %v2100 = vld [vmem:[%s329 + $0x34a0] sm:$0xff]
        %v2101 = vld [vmem:[%s329 + $0x34a8] sm:$0xff]
        %v2102 = vld [vmem:[%s329 + $0x34b0] sm:$0xff]
        %v2103 = vld [vmem:[%s329 + $0x34b8] sm:$0xff]
        %v2104 = vld [vmem:[%s329 + $0x34c0] sm:$0xff]
        %v2105 = vld [vmem:[%s329 + $0x34c8] sm:$0xff]
        %v2106 = vld [vmem:[%s329 + $0x34d0] sm:$0xff]
        %v2107 = vld [vmem:[%s329 + $0x34d8] sm:$0xff]
        %v2108 = vld [vmem:[%s329 + $0x34e0] sm:$0xff]
        %v2109 = vld [vmem:[%s329 + $0x34e8] sm:$0xff]
        %v2110 = vld [vmem:[%s329 + $0x34f0] sm:$0xff]
        %v2111 = vld [vmem:[%s329 + $0x34f8] sm:$0xff]
        %v2112 = vld [vmem:[%s329 + $0x3500] sm:$0xff]
        %v2113 = vld [vmem:[%s329 + $0x3508] sm:$0xff]
        %v2114 = vld [vmem:[%s329 + $0x3510] sm:$0xff]
        %v2115 = vld [vmem:[%s329 + $0x3518] sm:$0xff]
        %v2116 = vld [vmem:[%s329 + $0x3520] sm:$0xff]
        %v2117 = vld [vmem:[%s329 + $0x3528] sm:$0xff]
        %v2118 = vld [vmem:[%s329 + $0x3530] sm:$0xff]
        %v2119 = vld [vmem:[%s329 + $0x3538] sm:$0xff]
        %v2120 = vld [vmem:[%s329 + $0x3540] sm:$0xff]
        %v2121 = vld [vmem:[%s329 + $0x3548] sm:$0xff]
        %v2122 = vld [vmem:[%s329 + $0x3550] sm:$0xff]
        %v2123 = vld [vmem:[%s329 + $0x3558] sm:$0xff]
        %v2124 = vld [vmem:[%s329 + $0x3560] sm:$0xff]
        %v2125 = vld [vmem:[%s329 + $0x3568] sm:$0xff]
        %v2126 = vld [vmem:[%s329 + $0x3570] sm:$0xff]
        %v2127 = vld [vmem:[%s329 + $0x3578] sm:$0xff]
        %v2128 = vld [vmem:[%s329 + $0x3580] sm:$0xff]
        %v2129 = vld [vmem:[%s329 + $0x3588] sm:$0xff]
        %v2130 = vld [vmem:[%s329 + $0x3590] sm:$0xff]
        %v2131 = vld [vmem:[%s329 + $0x3598] sm:$0xff]
        %v2132 = vld [vmem:[%s329 + $0x35a0] sm:$0xff]
        %v2133 = vld [vmem:[%s329 + $0x35a8] sm:$0xff]
        %v2134 = vld [vmem:[%s329 + $0x35b0] sm:$0xff]
        %v2135 = vld [vmem:[%s329 + $0x35b8] sm:$0xff]
        %v2136 = vld [vmem:[%s329 + $0x35c0] sm:$0xff]
        %v2137 = vld [vmem:[%s329 + $0x35c8] sm:$0xff]
        %v2138 = vld [vmem:[%s329 + $0x35d0] sm:$0xff]
        %v2139 = vld [vmem:[%s329 + $0x35d8] sm:$0xff]
        %v2140 = vld [vmem:[%s329 + $0x35e0] sm:$0xff]
        %v2141 = vld [vmem:[%s329 + $0x35e8] sm:$0xff]
        %v2142 = vld [vmem:[%s329 + $0x35f0] sm:$0xff]
        %v2143 = vld [vmem:[%s329 + $0x35f8] sm:$0xff]
        %v2144 = vld [vmem:[%s329 + $0x3600] sm:$0xff]
        %v2145 = vld [vmem:[%s329 + $0x3608] sm:$0xff]
        %v2146 = vld [vmem:[%s329 + $0x3610] sm:$0xff]
        %v2147 = vld [vmem:[%s329 + $0x3618] sm:$0xff]
        %v2148 = vld [vmem:[%s329 + $0x3620] sm:$0xff]
        %v2149 = vld [vmem:[%s329 + $0x3628] sm:$0xff]
        %v2150 = vld [vmem:[%s329 + $0x3630] sm:$0xff]
        %v2151 = vld [vmem:[%s329 + $0x3638] sm:$0xff]
        %v2152 = vld [vmem:[%s329 + $0x3640] sm:$0xff]
        %v2153 = vld [vmem:[%s329 + $0x3648] sm:$0xff]
        %v2154 = vld [vmem:[%s329 + $0x3650] sm:$0xff]
        %v2155 = vld [vmem:[%s329 + $0x3658] sm:$0xff]
        %v2156 = vld [vmem:[%s329 + $0x3660] sm:$0xff]
        %v2157 = vld [vmem:[%s329 + $0x3668] sm:$0xff]
        %v2158 = vld [vmem:[%s329 + $0x3670] sm:$0xff]
        %v2159 = vld [vmem:[%s329 + $0x3678] sm:$0xff]
        %v2160 = vld [vmem:[%s329 + $0x3680] sm:$0xff]
        %v2161 = vld [vmem:[%s329 + $0x3688] sm:$0xff]
        %v2162 = vld [vmem:[%s329 + $0x3690] sm:$0xff]
        %v2163 = vld [vmem:[%s329 + $0x3698] sm:$0xff]
        %v2164 = vld [vmem:[%s329 + $0x36a0] sm:$0xff]
        %v2165 = vld [vmem:[%s329 + $0x36a8] sm:$0xff]
        %v2166 = vld [vmem:[%s329 + $0x36b0] sm:$0xff]
        %v2167 = vld [vmem:[%s329 + $0x36b8] sm:$0xff]
        %v2168 = vld [vmem:[%s329 + $0x36c0] sm:$0xff]
        %v2169 = vld [vmem:[%s329 + $0x36c8] sm:$0xff]
        %v2170 = vld [vmem:[%s329 + $0x36d0] sm:$0xff]
        %v2171 = vld [vmem:[%s329 + $0x36d8] sm:$0xff]
        %v2172 = vld [vmem:[%s329 + $0x36e0] sm:$0xff]
        %v2173 = vld [vmem:[%s329 + $0x36e8] sm:$0xff]
        %v2174 = vld [vmem:[%s329 + $0x36f0] sm:$0xff]
        %v2175 = vld [vmem:[%s329 + $0x36f8] sm:$0xff]
        %v2176 = vld [vmem:[%s329 + $0x3700] sm:$0xff]
        %v2177 = vld [vmem:[%s329 + $0x3708] sm:$0xff]
        %v2178 = vld [vmem:[%s329 + $0x3710] sm:$0xff]
        %v2179 = vld [vmem:[%s329 + $0x3718] sm:$0xff]
        %v2180 = vld [vmem:[%s329 + $0x3720] sm:$0xff]
        %v2181 = vld [vmem:[%s329 + $0x3728] sm:$0xff]
        %v2182 = vld [vmem:[%s329 + $0x3730] sm:$0xff]
        %v2183 = vld [vmem:[%s329 + $0x3738] sm:$0xff]
        %v2184 = vld [vmem:[%s329 + $0x3740] sm:$0xff]
        %v2185 = vld [vmem:[%s329 + $0x3748] sm:$0xff]
        %v2186 = vld [vmem:[%s329 + $0x3750] sm:$0xff]
        %v2187 = vld [vmem:[%s329 + $0x3758] sm:$0xff]
        %v2188 = vld [vmem:[%s329 + $0x3760] sm:$0xff]
        %v2189 = vld [vmem:[%s329 + $0x3768] sm:$0xff]
        %v2190 = vld [vmem:[%s329 + $0x3770] sm:$0xff]
        %v2191 = vld [vmem:[%s329 + $0x3778] sm:$0xff]
        %v2192 = vld [vmem:[%s329 + $0x3780] sm:$0xff]
        %v2193 = vld [vmem:[%s329 + $0x3788] sm:$0xff]
        %v2194 = vld [vmem:[%s329 + $0x3790] sm:$0xff]
        %v2195 = vld [vmem:[%s329 + $0x3798] sm:$0xff]
        %v2196 = vld [vmem:[%s329 + $0x37a0] sm:$0xff]
        %v2197 = vld [vmem:[%s329 + $0x37a8] sm:$0xff]
        %v2198 = vld [vmem:[%s329 + $0x37b0] sm:$0xff]
        %v2199 = vld [vmem:[%s329 + $0x37b8] sm:$0xff]
        %v2200 = vld [vmem:[%s329 + $0x37c0] sm:$0xff]
        %v2201 = vld [vmem:[%s329 + $0x37c8] sm:$0xff]
        %v2202 = vld [vmem:[%s329 + $0x37d0] sm:$0xff]
        %v2203 = vld [vmem:[%s329 + $0x37d8] sm:$0xff]
        %v2204 = vld [vmem:[%s329 + $0x37e0] sm:$0xff]
        %v2205 = vld [vmem:[%s329 + $0x37e8] sm:$0xff]
        %v2206 = vld [vmem:[%s329 + $0x37f0] sm:$0xff]
        %v2207 = vld [vmem:[%s329 + $0x37f8] sm:$0xff]
        %v2208 = vld [vmem:[%s329 + $0x3800] sm:$0xff]
        %v2209 = vld [vmem:[%s329 + $0x3808] sm:$0xff]
        %v2210 = vld [vmem:[%s329 + $0x3810] sm:$0xff]
        %v2211 = vld [vmem:[%s329 + $0x3818] sm:$0xff]
        %v2212 = vld [vmem:[%s329 + $0x3820] sm:$0xff]
        %v2213 = vld [vmem:[%s329 + $0x3828] sm:$0xff]
        %v2214 = vld [vmem:[%s329 + $0x3830] sm:$0xff]
        %v2215 = vld [vmem:[%s329 + $0x3838] sm:$0xff]
        %v2216 = vld [vmem:[%s329 + $0x3840] sm:$0xff]
        %v2217 = vld [vmem:[%s329 + $0x3848] sm:$0xff]
        %v2218 = vld [vmem:[%s329 + $0x3850] sm:$0xff]
        %v2219 = vld [vmem:[%s329 + $0x3858] sm:$0xff]
        %v2220 = vld [vmem:[%s329 + $0x3860] sm:$0xff]
        %v2221 = vld [vmem:[%s329 + $0x3868] sm:$0xff]
        %v2222 = vld [vmem:[%s329 + $0x3870] sm:$0xff]
        %v2223 = vld [vmem:[%s329 + $0x3878] sm:$0xff]
        %v2224 = vld [vmem:[%s329 + $0x3880] sm:$0xff]
        %v2225 = vld [vmem:[%s329 + $0x3888] sm:$0xff]
        %v2226 = vld [vmem:[%s329 + $0x3890] sm:$0xff]
        %v2227 = vld [vmem:[%s329 + $0x3898] sm:$0xff]
        %v2228 = vld [vmem:[%s329 + $0x38a0] sm:$0xff]
        %v2229 = vld [vmem:[%s329 + $0x38a8] sm:$0xff]
        %v2230 = vld [vmem:[%s329 + $0x38b0] sm:$0xff]
        %v2231 = vld [vmem:[%s329 + $0x38b8] sm:$0xff]
        %v2232 = vld [vmem:[%s329 + $0x38c0] sm:$0xff]
        %v2233 = vld [vmem:[%s329 + $0x38c8] sm:$0xff]
        %v2234 = vld [vmem:[%s329 + $0x38d0] sm:$0xff]
        %v2235 = vld [vmem:[%s329 + $0x38d8] sm:$0xff]
        %v2236 = vld [vmem:[%s329 + $0x38e0] sm:$0xff]
        %v2237 = vld [vmem:[%s329 + $0x38e8] sm:$0xff]
        %v2238 = vld [vmem:[%s329 + $0x38f0] sm:$0xff]
        %v2239 = vld [vmem:[%s329 + $0x38f8] sm:$0xff]
        %v2240 = vld [vmem:[%s329 + $0x3900] sm:$0xff]
        %v2241 = vld [vmem:[%s329 + $0x3908] sm:$0xff]
        %v2242 = vld [vmem:[%s329 + $0x3910] sm:$0xff]
        %v2243 = vld [vmem:[%s329 + $0x3918] sm:$0xff]
        %v2244 = vld [vmem:[%s329 + $0x3920] sm:$0xff]
        %v2245 = vld [vmem:[%s329 + $0x3928] sm:$0xff]
        %v2246 = vld [vmem:[%s329 + $0x3930] sm:$0xff]
        %v2247 = vld [vmem:[%s329 + $0x3938] sm:$0xff]
        %v2248 = vld [vmem:[%s329 + $0x3940] sm:$0xff]
        %v2249 = vld [vmem:[%s329 + $0x3948] sm:$0xff]
        %v2250 = vld [vmem:[%s329 + $0x3950] sm:$0xff]
        %v2251 = vld [vmem:[%s329 + $0x3958] sm:$0xff]
        %v2252 = vld [vmem:[%s329 + $0x3960] sm:$0xff]
        %v2253 = vld [vmem:[%s329 + $0x3968] sm:$0xff]
        %v2254 = vld [vmem:[%s329 + $0x3970] sm:$0xff]
        %v2255 = vld [vmem:[%s329 + $0x3978] sm:$0xff]
        %v2256 = vld [vmem:[%s329 + $0x3980] sm:$0xff]
        %v2257 = vld [vmem:[%s329 + $0x3988] sm:$0xff]
        %v2258 = vld [vmem:[%s329 + $0x3990] sm:$0xff]
        %v2259 = vld [vmem:[%s329 + $0x3998] sm:$0xff]
        %v2260 = vld [vmem:[%s329 + $0x39a0] sm:$0xff]
        %v2261 = vld [vmem:[%s329 + $0x39a8] sm:$0xff]
        %v2262 = vld [vmem:[%s329 + $0x39b0] sm:$0xff]
        %v2263 = vld [vmem:[%s329 + $0x39b8] sm:$0xff]
        %v2264 = vld [vmem:[%s329 + $0x39c0] sm:$0xff]
        %v2265 = vld [vmem:[%s329 + $0x39c8] sm:$0xff]
        %v2266 = vld [vmem:[%s329 + $0x39d0] sm:$0xff]
        %v2267 = vld [vmem:[%s329 + $0x39d8] sm:$0xff]
        %v2268 = vld [vmem:[%s329 + $0x39e0] sm:$0xff]
        %v2269 = vld [vmem:[%s329 + $0x39e8] sm:$0xff]
        %v2270 = vld [vmem:[%s329 + $0x39f0] sm:$0xff]
        %v2271 = vld [vmem:[%s329 + $0x39f8] sm:$0xff]
        %v2272 = vld [vmem:[%s329 + $0x3a00] sm:$0xff]
        %v2273 = vld [vmem:[%s329 + $0x3a08] sm:$0xff]
        %v2274 = vld [vmem:[%s329 + $0x3a10] sm:$0xff]
        %v2275 = vld [vmem:[%s329 + $0x3a18] sm:$0xff]
        %v2276 = vld [vmem:[%s329 + $0x3a20] sm:$0xff]
        %v2277 = vld [vmem:[%s329 + $0x3a28] sm:$0xff]
        %v2278 = vld [vmem:[%s329 + $0x3a30] sm:$0xff]
        %v2279 = vld [vmem:[%s329 + $0x3a38] sm:$0xff]
        %v2280 = vld [vmem:[%s329 + $0x3a40] sm:$0xff]
        %v2281 = vld [vmem:[%s329 + $0x3a48] sm:$0xff]
        %v2282 = vld [vmem:[%s329 + $0x3a50] sm:$0xff]
        %v2283 = vld [vmem:[%s329 + $0x3a58] sm:$0xff]
        %v2284 = vld [vmem:[%s329 + $0x3a60] sm:$0xff]
        %v2285 = vld [vmem:[%s329 + $0x3a68] sm:$0xff]
        %v2286 = vld [vmem:[%s329 + $0x3a70] sm:$0xff]
        %v2287 = vld [vmem:[%s329 + $0x3a78] sm:$0xff]
        %v2288 = vld [vmem:[%s329 + $0x3a80] sm:$0xff]
        %v2289 = vld [vmem:[%s329 + $0x3a88] sm:$0xff]
        %v2290 = vld [vmem:[%s329 + $0x3a90] sm:$0xff]
        %v2291 = vld [vmem:[%s329 + $0x3a98] sm:$0xff]
        %v2292 = vld [vmem:[%s329 + $0x3aa0] sm:$0xff]
        %v2293 = vld [vmem:[%s329 + $0x3aa8] sm:$0xff]
        %v2294 = vld [vmem:[%s329 + $0x3ab0] sm:$0xff]
        %v2295 = vld [vmem:[%s329 + $0x3ab8] sm:$0xff]
        %v2296 = vld [vmem:[%s329 + $0x3ac0] sm:$0xff]
        %v2297 = vld [vmem:[%s329 + $0x3ac8] sm:$0xff]
        %v2298 = vld [vmem:[%s329 + $0x3ad0] sm:$0xff]
        %v2299 = vld [vmem:[%s329 + $0x3ad8] sm:$0xff]
        %v2300 = vld [vmem:[%s329 + $0x3ae0] sm:$0xff]
        %v2301 = vld [vmem:[%s329 + $0x3ae8] sm:$0xff]
        %v2302 = vld [vmem:[%s329 + $0x3af0] sm:$0xff]
        %v2303 = vld [vmem:[%s329 + $0x3af8] sm:$0xff]
        %v2304 = vld [vmem:[%s329 + $0x3b00] sm:$0xff]
        %v2305 = vld [vmem:[%s329 + $0x3b08] sm:$0xff]
        %v2306 = vld [vmem:[%s329 + $0x3b10] sm:$0xff]
        %v2307 = vld [vmem:[%s329 + $0x3b18] sm:$0xff]
        %v2308 = vld [vmem:[%s329 + $0x3b20] sm:$0xff]
        %v2309 = vld [vmem:[%s329 + $0x3b28] sm:$0xff]
        %v2310 = vld [vmem:[%s329 + $0x3b30] sm:$0xff]
        %v2311 = vld [vmem:[%s329 + $0x3b38] sm:$0xff]
        %v2312 = vld [vmem:[%s329 + $0x3b40] sm:$0xff]
        %v2313 = vld [vmem:[%s329 + $0x3b48] sm:$0xff]
        %v2314 = vld [vmem:[%s329 + $0x3b50] sm:$0xff]
        %v2315 = vld [vmem:[%s329 + $0x3b58] sm:$0xff]
        %v2316 = vld [vmem:[%s329 + $0x3b60] sm:$0xff]
        %v2317 = vld [vmem:[%s329 + $0x3b68] sm:$0xff]
        %v2318 = vld [vmem:[%s329 + $0x3b70] sm:$0xff]
        %v2319 = vld [vmem:[%s329 + $0x3b78] sm:$0xff]
        %v2320 = vld [vmem:[%s329 + $0x3b80] sm:$0xff]
        %v2321 = vld [vmem:[%s329 + $0x3b88] sm:$0xff]
        %v2322 = vld [vmem:[%s329 + $0x3b90] sm:$0xff]
        %v2323 = vld [vmem:[%s329 + $0x3b98] sm:$0xff]
        %v2324 = vld [vmem:[%s329 + $0x3ba0] sm:$0xff]
        %v2325 = vld [vmem:[%s329 + $0x3ba8] sm:$0xff]
        %v2326 = vld [vmem:[%s329 + $0x3bb0] sm:$0xff]
        %v2327 = vld [vmem:[%s329 + $0x3bb8] sm:$0xff]
        %v2328 = vld [vmem:[%s329 + $0x3bc0] sm:$0xff]
        %v2329 = vld [vmem:[%s329 + $0x3bc8] sm:$0xff]
        %v2330 = vld [vmem:[%s329 + $0x3bd0] sm:$0xff]
        %v2331 = vld [vmem:[%s329 + $0x3bd8] sm:$0xff]
        %v2332 = vld [vmem:[%s329 + $0x3be0] sm:$0xff]
        %v2333 = vld [vmem:[%s329 + $0x3be8] sm:$0xff]
        %v2334 = vld [vmem:[%s329 + $0x3bf0] sm:$0xff]
        %v2335 = vld [vmem:[%s329 + $0x3bf8] sm:$0xff]
        %v2336 = vld [vmem:[%s329 + $0x3c00] sm:$0xff]
        %v2337 = vld [vmem:[%s329 + $0x3c08] sm:$0xff]
        %v2338 = vld [vmem:[%s329 + $0x3c10] sm:$0xff]
        %v2339 = vld [vmem:[%s329 + $0x3c18] sm:$0xff]
        %v2340 = vld [vmem:[%s329 + $0x3c20] sm:$0xff]
        %v2341 = vld [vmem:[%s329 + $0x3c28] sm:$0xff]
        %v2342 = vld [vmem:[%s329 + $0x3c30] sm:$0xff]
        %v2343 = vld [vmem:[%s329 + $0x3c38] sm:$0xff]
        %v2344 = vld [vmem:[%s329 + $0x3c40] sm:$0xff]
        %v2345 = vld [vmem:[%s329 + $0x3c48] sm:$0xff]
        %v2346 = vld [vmem:[%s329 + $0x3c50] sm:$0xff]
        %v2347 = vld [vmem:[%s329 + $0x3c58] sm:$0xff]
        %v2348 = vld [vmem:[%s329 + $0x3c60] sm:$0xff]
        %v2349 = vld [vmem:[%s329 + $0x3c68] sm:$0xff]
        %v2350 = vld [vmem:[%s329 + $0x3c70] sm:$0xff]
        %v2351 = vld [vmem:[%s329 + $0x3c78] sm:$0xff]
        %v2352 = vld [vmem:[%s329 + $0x3c80] sm:$0xff]
        %v2353 = vld [vmem:[%s329 + $0x3c88] sm:$0xff]
        %v2354 = vld [vmem:[%s329 + $0x3c90] sm:$0xff]
        %v2355 = vld [vmem:[%s329 + $0x3c98] sm:$0xff]
        %v2356 = vld [vmem:[%s329 + $0x3ca0] sm:$0xff]
        %v2357 = vld [vmem:[%s329 + $0x3ca8] sm:$0xff]
        %v2358 = vld [vmem:[%s329 + $0x3cb0] sm:$0xff]
        %v2359 = vld [vmem:[%s329 + $0x3cb8] sm:$0xff]
        %v2360 = vld [vmem:[%s329 + $0x3cc0] sm:$0xff]
        %v2361 = vld [vmem:[%s329 + $0x3cc8] sm:$0xff]
        %v2362 = vld [vmem:[%s329 + $0x3cd0] sm:$0xff]
        %v2363 = vld [vmem:[%s329 + $0x3cd8] sm:$0xff]
        %v2364 = vld [vmem:[%s329 + $0x3ce0] sm:$0xff]
        %v2365 = vld [vmem:[%s329 + $0x3ce8] sm:$0xff]
        %v2366 = vld [vmem:[%s329 + $0x3cf0] sm:$0xff]
        %v2367 = vld [vmem:[%s329 + $0x3cf8] sm:$0xff]
        %v2368 = vld [vmem:[%s329 + $0x3d00] sm:$0xff]
        %v2369 = vld [vmem:[%s329 + $0x3d08] sm:$0xff]
        %v2370 = vld [vmem:[%s329 + $0x3d10] sm:$0xff]
        %v2371 = vld [vmem:[%s329 + $0x3d18] sm:$0xff]
        %v2372 = vld [vmem:[%s329 + $0x3d20] sm:$0xff]
        %v2373 = vld [vmem:[%s329 + $0x3d28] sm:$0xff]
        %v2374 = vld [vmem:[%s329 + $0x3d30] sm:$0xff]
        %v2375 = vld [vmem:[%s329 + $0x3d38] sm:$0xff]
        %v2376 = vld [vmem:[%s329 + $0x3d40] sm:$0xff]
        %v2377 = vld [vmem:[%s329 + $0x3d48] sm:$0xff]
        %v2378 = vld [vmem:[%s329 + $0x3d50] sm:$0xff]
        %v2379 = vld [vmem:[%s329 + $0x3d58] sm:$0xff]
        %v2380 = vld [vmem:[%s329 + $0x3d60] sm:$0xff]
        %v2381 = vld [vmem:[%s329 + $0x3d68] sm:$0xff]
        %v2382 = vld [vmem:[%s329 + $0x3d70] sm:$0xff]
        %v2383 = vld [vmem:[%s329 + $0x3d78] sm:$0xff]
        %v2384 = vld [vmem:[%s329 + $0x3d80] sm:$0xff]
        %v2385 = vld [vmem:[%s329 + $0x3d88] sm:$0xff]
        %v2386 = vld [vmem:[%s329 + $0x3d90] sm:$0xff]
        %v2387 = vld [vmem:[%s329 + $0x3d98] sm:$0xff]
        %v2388 = vld [vmem:[%s329 + $0x3da0] sm:$0xff]
        %v2389 = vld [vmem:[%s329 + $0x3da8] sm:$0xff]
        %v2390 = vld [vmem:[%s329 + $0x3db0] sm:$0xff]
        %v2391 = vld [vmem:[%s329 + $0x3db8] sm:$0xff]
        %v2392 = vld [vmem:[%s329 + $0x3dc0] sm:$0xff]
        %v2393 = vld [vmem:[%s329 + $0x3dc8] sm:$0xff]
        %v2394 = vld [vmem:[%s329 + $0x3dd0] sm:$0xff]
        %v2395 = vld [vmem:[%s329 + $0x3dd8] sm:$0xff]
        %v2396 = vld [vmem:[%s329 + $0x3de0] sm:$0xff]
        %v2397 = vld [vmem:[%s329 + $0x3de8] sm:$0xff]
        %v2398 = vld [vmem:[%s329 + $0x3df0] sm:$0xff]
        %v2399 = vld [vmem:[%s329 + $0x3df8] sm:$0xff]
        %v2400 = vld [vmem:[%s329 + $0x3e00] sm:$0xff]
        %v2401 = vld [vmem:[%s329 + $0x3e08] sm:$0xff]
        %v2402 = vld [vmem:[%s329 + $0x3e10] sm:$0xff]
        %v2403 = vld [vmem:[%s329 + $0x3e18] sm:$0xff]
        %v2404 = vld [vmem:[%s329 + $0x3e20] sm:$0xff]
        %v2405 = vld [vmem:[%s329 + $0x3e28] sm:$0xff]
        %v2406 = vld [vmem:[%s329 + $0x3e30] sm:$0xff]
        %v2407 = vld [vmem:[%s329 + $0x3e38] sm:$0xff]
        %v2408 = vld [vmem:[%s329 + $0x3e40] sm:$0xff]
        %v2409 = vld [vmem:[%s329 + $0x3e48] sm:$0xff]
        %v2410 = vld [vmem:[%s329 + $0x3e50] sm:$0xff]
        %v2411 = vld [vmem:[%s329 + $0x3e58] sm:$0xff]
        %v2412 = vld [vmem:[%s329 + $0x3e60] sm:$0xff]
        %v2413 = vld [vmem:[%s329 + $0x3e68] sm:$0xff]
        %v2414 = vld [vmem:[%s329 + $0x3e70] sm:$0xff]
        %v2415 = vld [vmem:[%s329 + $0x3e78] sm:$0xff]
        %v2416 = vld [vmem:[%s329 + $0x3e80] sm:$0xff]
        %v2417 = vld [vmem:[%s329 + $0x3e88] sm:$0xff]
        %v2418 = vld [vmem:[%s329 + $0x3e90] sm:$0xff]
        %v2419 = vld [vmem:[%s329 + $0x3e98] sm:$0xff]
        %v2420 = vld [vmem:[%s329 + $0x3ea0] sm:$0xff]
        %v2421 = vld [vmem:[%s329 + $0x3ea8] sm:$0xff]
        %v2422 = vld [vmem:[%s329 + $0x3eb0] sm:$0xff]
        %v2423 = vld [vmem:[%s329 + $0x3eb8] sm:$0xff]
        %v2424 = vld [vmem:[%s329 + $0x3ec0] sm:$0xff]
        %v2425 = vld [vmem:[%s329 + $0x3ec8] sm:$0xff]
        %v2426 = vld [vmem:[%s329 + $0x3ed0] sm:$0xff]
        %v2427 = vld [vmem:[%s329 + $0x3ed8] sm:$0xff]
        %v2428 = vld [vmem:[%s329 + $0x3ee0] sm:$0xff]
        %v2429 = vld [vmem:[%s329 + $0x3ee8] sm:$0xff]
        %v2430 = vld [vmem:[%s329 + $0x3ef0] sm:$0xff]
        %v2431 = vld [vmem:[%s329 + $0x3ef8] sm:$0xff]
        %v2432 = vld [vmem:[%s329 + $0x3f00] sm:$0xff]
        %v2433 = vld [vmem:[%s329 + $0x3f08] sm:$0xff]
        %v2434 = vld [vmem:[%s329 + $0x3f10] sm:$0xff]
        %v2435 = vld [vmem:[%s329 + $0x3f18] sm:$0xff]
        %v2436 = vld [vmem:[%s329 + $0x3f20] sm:$0xff]
        %v2437 = vld [vmem:[%s329 + $0x3f28] sm:$0xff]
        %v2438 = vld [vmem:[%s329 + $0x3f30] sm:$0xff]
        %v2439 = vld [vmem:[%s329 + $0x3f38] sm:$0xff]
        %v2440 = vld [vmem:[%s329 + $0x3f40] sm:$0xff]
        %v2441 = vld [vmem:[%s329 + $0x3f48] sm:$0xff]
        %v2442 = vld [vmem:[%s329 + $0x3f50] sm:$0xff]
        %v2443 = vld [vmem:[%s329 + $0x3f58] sm:$0xff]
        %v2444 = vld [vmem:[%s329 + $0x3f60] sm:$0xff]
        %v2445 = vld [vmem:[%s329 + $0x3f68] sm:$0xff]
        %v2446 = vld [vmem:[%s329 + $0x3f70] sm:$0xff]
        %v2447 = vld [vmem:[%s329 + $0x3f78] sm:$0xff]
        %v2448 = vld [vmem:[%s329 + $0x3f80] sm:$0xff]
        %v2449 = vld [vmem:[%s329 + $0x3f88] sm:$0xff]
        %v2450 = vld [vmem:[%s329 + $0x3f90] sm:$0xff]
        %v2451 = vld [vmem:[%s329 + $0x3f98] sm:$0xff]
        %v2452 = vld [vmem:[%s329 + $0x3fa0] sm:$0xff]
        %v2453 = vld [vmem:[%s329 + $0x3fa8] sm:$0xff]
        %v2454 = vld [vmem:[%s329 + $0x3fb0] sm:$0xff]
        %v2455 = vld [vmem:[%s329 + $0x3fb8] sm:$0xff]
        %v2456 = vld [vmem:[%s329 + $0x3fc0] sm:$0xff]
        %v2457 = vld [vmem:[%s329 + $0x3fc8] sm:$0xff]
        %v2458 = vld [vmem:[%s329 + $0x3fd0] sm:$0xff]
        %v2459 = vld [vmem:[%s329 + $0x3fd8] sm:$0xff]
        %v2460 = vld [vmem:[%s329 + $0x3fe0] sm:$0xff]
        %v2461 = vld [vmem:[%s329 + $0x3fe8] sm:$0xff]
        %v2462 = vld [vmem:[%s329 + $0x3ff0] sm:$0xff]
        %v2463 = vld [vmem:[%s329 + $0x3ff8] sm:$0xff]
        %v2464 = vld [vmem:[%s329 + $0x4000] sm:$0xff]
        %v2465 = vld [vmem:[%s329 + $0x4008] sm:$0xff]
        %v2466 = vld [vmem:[%s329 + $0x4010] sm:$0xff]
        %v2467 = vld [vmem:[%s329 + $0x4018] sm:$0xff]
        %v2468 = vld [vmem:[%s329 + $0x4020] sm:$0xff]
        %v2469 = vld [vmem:[%s329 + $0x4028] sm:$0xff]
        %v2470 = vld [vmem:[%s329 + $0x4030] sm:$0xff]
        %v2471 = vld [vmem:[%s329 + $0x4038] sm:$0xff]
        %v2472 = vld [vmem:[%s329 + $0x4040] sm:$0xff]
        %v2473 = vld [vmem:[%s329 + $0x4048] sm:$0xff]
        %v2474 = vld [vmem:[%s329 + $0x4050] sm:$0xff]
        %v2475 = vld [vmem:[%s329 + $0x4058] sm:$0xff]
        %v2476 = vld [vmem:[%s329 + $0x4060] sm:$0xff]
        %v2477 = vld [vmem:[%s329 + $0x4068] sm:$0xff]
        %v2478 = vld [vmem:[%s329 + $0x4070] sm:$0xff]
        %v2479 = vld [vmem:[%s329 + $0x4078] sm:$0xff]
        %v2480 = vld [vmem:[%s329 + $0x4080] sm:$0xff]
        %v2481 = vld [vmem:[%s329 + $0x4088] sm:$0xff]
        %v2482 = vld [vmem:[%s329 + $0x4090] sm:$0xff]
        %v2483 = vld [vmem:[%s329 + $0x4098] sm:$0xff]
        %v2484 = vld [vmem:[%s329 + $0x40a0] sm:$0xff]
        %v2485 = vld [vmem:[%s329 + $0x40a8] sm:$0xff]
        %v2486 = vld [vmem:[%s329 + $0x40b0] sm:$0xff]
        %v2487 = vld [vmem:[%s329 + $0x40b8] sm:$0xff]
        %v2488 = vld [vmem:[%s329 + $0x40c0] sm:$0xff]
        %v2489 = vld [vmem:[%s329 + $0x40c8] sm:$0xff]
        %v2490 = vld [vmem:[%s329 + $0x40d0] sm:$0xff]
        %v2491 = vld [vmem:[%s329 + $0x40d8] sm:$0xff]
        %v2492 = vld [vmem:[%s329 + $0x40e0] sm:$0xff]
        %v2493 = vld [vmem:[%s329 + $0x40e8] sm:$0xff]
        %v2494 = vld [vmem:[%s329 + $0x40f0] sm:$0xff]
        %v2495 = vld [vmem:[%s329 + $0x40f8] sm:$0xff]
        %v2496 = vld [vmem:[%s329 + $0x4100] sm:$0xff]
        %v2497 = vld [vmem:[%s329 + $0x4108] sm:$0xff]
        %v2498 = vld [vmem:[%s329 + $0x4110] sm:$0xff]
        %v2499 = vld [vmem:[%s329 + $0x4118] sm:$0xff]
        %v2500 = vld [vmem:[%s329 + $0x4120] sm:$0xff]
        %v2501 = vld [vmem:[%s329 + $0x4128] sm:$0xff]
        %v2502 = vld [vmem:[%s329 + $0x4130] sm:$0xff]
        %v2503 = vld [vmem:[%s329 + $0x4138] sm:$0xff]
        %v2504 = vld [vmem:[%s329 + $0x4140] sm:$0xff]
        %v2505 = vld [vmem:[%s329 + $0x4148] sm:$0xff]
        %v2506 = vld [vmem:[%s329 + $0x4150] sm:$0xff]
        %v2507 = vld [vmem:[%s329 + $0x4158] sm:$0xff]
        %v2508 = vld [vmem:[%s329 + $0x4160] sm:$0xff]
        %v2509 = vld [vmem:[%s329 + $0x4168] sm:$0xff]
        %v2510 = vld [vmem:[%s329 + $0x4170] sm:$0xff]
        %v2511 = vld [vmem:[%s329 + $0x4178] sm:$0xff]
        %v2512 = vld [vmem:[%s329 + $0x4180] sm:$0xff]
        %v2513 = vld [vmem:[%s329 + $0x4188] sm:$0xff]
        %v2514 = vld [vmem:[%s329 + $0x4190] sm:$0xff]
        %v2515 = vld [vmem:[%s329 + $0x4198] sm:$0xff]
        %v2516 = vld [vmem:[%s329 + $0x41a0] sm:$0xff]
        %v2517 = vld [vmem:[%s329 + $0x41a8] sm:$0xff]
        %v2518 = vld [vmem:[%s329 + $0x41b0] sm:$0xff]
        %v2519 = vld [vmem:[%s329 + $0x41b8] sm:$0xff]
        %v2520 = vld [vmem:[%s329 + $0x41c0] sm:$0xff]
        %v2521 = vld [vmem:[%s329 + $0x41c8] sm:$0xff]
        %v2522 = vld [vmem:[%s329 + $0x41d0] sm:$0xff]
        %v2523 = vld [vmem:[%s329 + $0x41d8] sm:$0xff]
        %v2524 = vld [vmem:[%s329 + $0x41e0] sm:$0xff]
        %v2525 = vld [vmem:[%s329 + $0x41e8] sm:$0xff]
        %v2526 = vld [vmem:[%s329 + $0x41f0] sm:$0xff]
        %v2527 = vld [vmem:[%s329 + $0x41f8] sm:$0xff]
        %v2528 = vld [vmem:[%s329 + $0x4200] sm:$0xff]
        %v2529 = vld [vmem:[%s329 + $0x4208] sm:$0xff]
        %v2530 = vld [vmem:[%s329 + $0x4210] sm:$0xff]
        %v2531 = vld [vmem:[%s329 + $0x4218] sm:$0xff]
        %v2532 = vld [vmem:[%s329 + $0x4220] sm:$0xff]
        %v2533 = vld [vmem:[%s329 + $0x4228] sm:$0xff]
        %v2534 = vld [vmem:[%s329 + $0x4230] sm:$0xff]
        %v2535 = vld [vmem:[%s329 + $0x4238] sm:$0xff]
        %v2536 = vld [vmem:[%s329 + $0x4240] sm:$0xff]
        %v2537 = vld [vmem:[%s329 + $0x4248] sm:$0xff]
        %v2538 = vld [vmem:[%s329 + $0x4250] sm:$0xff]
        %v2539 = vld [vmem:[%s329 + $0x4258] sm:$0xff]
        %v2540 = vld [vmem:[%s329 + $0x4260] sm:$0xff]
        %v2541 = vld [vmem:[%s329 + $0x4268] sm:$0xff]
        %v2542 = vld [vmem:[%s329 + $0x4270] sm:$0xff]
        %v2543 = vld [vmem:[%s329 + $0x4278] sm:$0xff]
        %v2544 = vld [vmem:[%s329 + $0x4280] sm:$0xff]
        %v2545 = vld [vmem:[%s329 + $0x4288] sm:$0xff]
        %v2546 = vld [vmem:[%s329 + $0x4290] sm:$0xff]
        %v2547 = vld [vmem:[%s329 + $0x4298] sm:$0xff]
        %v2548 = vld [vmem:[%s329 + $0x42a0] sm:$0xff]
        %v2549 = vld [vmem:[%s329 + $0x42a8] sm:$0xff]
        %v2550 = vld [vmem:[%s329 + $0x42b0] sm:$0xff]
        %v2551 = vld [vmem:[%s329 + $0x42b8] sm:$0xff]
        %v2552 = vld [vmem:[%s329 + $0x42c0] sm:$0xff]
        %v2553 = vld [vmem:[%s329 + $0x42c8] sm:$0xff]
        %v2554 = vld [vmem:[%s329 + $0x42d0] sm:$0xff]
        %v2555 = vld [vmem:[%s329 + $0x42d8] sm:$0xff]
        %v2556 = vld [vmem:[%s329 + $0x42e0] sm:$0xff]
        %v2557 = vld [vmem:[%s329 + $0x42e8] sm:$0xff]
        %v2558 = vld [vmem:[%s329 + $0x42f0] sm:$0xff]
        %v2559 = vld [vmem:[%s329 + $0x42f8] sm:$0xff]
        %v2560 = vld [vmem:[%s329 + $0x4300] sm:$0xff]
        %v2561 = vld [vmem:[%s329 + $0x4308] sm:$0xff]
        %v2562 = vld [vmem:[%s329 + $0x4310] sm:$0xff]
        %v2563 = vld [vmem:[%s329 + $0x4318] sm:$0xff]
        %v2564 = vld [vmem:[%s329 + $0x4320] sm:$0xff]
        %v2565 = vld [vmem:[%s329 + $0x4328] sm:$0xff]
        %v2566 = vld [vmem:[%s329 + $0x4330] sm:$0xff]
        %v2567 = vld [vmem:[%s329 + $0x4338] sm:$0xff]
        %v2568 = vld [vmem:[%s329 + $0x4340] sm:$0xff]
        %v2569 = vld [vmem:[%s329 + $0x4348] sm:$0xff]
        %v2570 = vld [vmem:[%s329 + $0x4350] sm:$0xff]
        %v2571 = vld [vmem:[%s329 + $0x4358] sm:$0xff]
        %v2572 = vld [vmem:[%s329 + $0x4360] sm:$0xff]
        %v2573 = vld [vmem:[%s329 + $0x4368] sm:$0xff]
        %v2574 = vld [vmem:[%s329 + $0x4370] sm:$0xff]
        %v2575 = vld [vmem:[%s329 + $0x4378] sm:$0xff]
        %v2576 = vld [vmem:[%s329 + $0x4380] sm:$0xff]
        %v2577 = vld [vmem:[%s329 + $0x4388] sm:$0xff]
        %v2578 = vld [vmem:[%s329 + $0x4390] sm:$0xff]
        %v2579 = vld [vmem:[%s329 + $0x4398] sm:$0xff]
        %v2580 = vld [vmem:[%s329 + $0x43a0] sm:$0xff]
        %v2581 = vld [vmem:[%s329 + $0x43a8] sm:$0xff]
        %v2582 = vld [vmem:[%s329 + $0x43b0] sm:$0xff]
        %v2583 = vld [vmem:[%s329 + $0x43b8] sm:$0xff]
        %v2584 = vld [vmem:[%s329 + $0x43c0] sm:$0xff]
        %v2585 = vld [vmem:[%s329 + $0x43c8] sm:$0xff]
        %v2586 = vld [vmem:[%s329 + $0x43d0] sm:$0xff]
        %v2587 = vld [vmem:[%s329 + $0x43d8] sm:$0xff]
        %v2588 = vld [vmem:[%s329 + $0x43e0] sm:$0xff]
        %v2589 = vld [vmem:[%s329 + $0x43e8] sm:$0xff]
        %v2590 = vld [vmem:[%s329 + $0x43f0] sm:$0xff]
        %v2591 = vld [vmem:[%s329 + $0x43f8] sm:$0xff]
        %v2592 = vld [vmem:[%s329 + $0x4400] sm:$0xff]
        %v2593 = vld [vmem:[%s329 + $0x4408] sm:$0xff]
        %v2594 = vld [vmem:[%s329 + $0x4410] sm:$0xff]
        %v2595 = vld [vmem:[%s329 + $0x4418] sm:$0xff]
        %v2596 = vld [vmem:[%s329 + $0x4420] sm:$0xff]
        %v2597 = vld [vmem:[%s329 + $0x4428] sm:$0xff]
        %v2598 = vld [vmem:[%s329 + $0x4430] sm:$0xff]
        %v2599 = vld [vmem:[%s329 + $0x4438] sm:$0xff]
        %v2600 = vld [vmem:[%s329 + $0x4440] sm:$0xff]
        %v2601 = vld [vmem:[%s329 + $0x4448] sm:$0xff]
        %v2602 = vld [vmem:[%s329 + $0x4450] sm:$0xff]
        %v2603 = vld [vmem:[%s329 + $0x4458] sm:$0xff]
        %v2604 = vld [vmem:[%s329 + $0x4460] sm:$0xff]
        %v2605 = vld [vmem:[%s329 + $0x4468] sm:$0xff]
        %v2606 = vld [vmem:[%s329 + $0x4470] sm:$0xff]
        %v2607 = vld [vmem:[%s329 + $0x4478] sm:$0xff]
        %v2608 = vld [vmem:[%s329 + $0x4480] sm:$0xff]
        %v2609 = vld [vmem:[%s329 + $0x4488] sm:$0xff]
        %v2610 = vld [vmem:[%s329 + $0x4490] sm:$0xff]
        %v2611 = vld [vmem:[%s329 + $0x4498] sm:$0xff]
        %v2612 = vld [vmem:[%s329 + $0x44a0] sm:$0xff]
        %v2613 = vld [vmem:[%s329 + $0x44a8] sm:$0xff]
        %v2614 = vld [vmem:[%s329 + $0x44b0] sm:$0xff]
        %v2615 = vld [vmem:[%s329 + $0x44b8] sm:$0xff]
        %v2616 = vld [vmem:[%s329 + $0x44c0] sm:$0xff]
        %v2617 = vld [vmem:[%s329 + $0x44c8] sm:$0xff]
        %v2618 = vld [vmem:[%s329 + $0x44d0] sm:$0xff]
        %v2619 = vld [vmem:[%s329 + $0x44d8] sm:$0xff]
        %v2620 = vld [vmem:[%s329 + $0x44e0] sm:$0xff]
        %v2621 = vld [vmem:[%s329 + $0x44e8] sm:$0xff]
        %v2622 = vld [vmem:[%s329 + $0x44f0] sm:$0xff]
        %v2623 = vld [vmem:[%s329 + $0x44f8] sm:$0xff]
        %v2624 = vld [vmem:[%s329 + $0x4500] sm:$0xff]
        %v2625 = vld [vmem:[%s329 + $0x4508] sm:$0xff]
        %v2626 = vld [vmem:[%s329 + $0x4510] sm:$0xff]
        %v2627 = vld [vmem:[%s329 + $0x4518] sm:$0xff]
        %v2628 = vld [vmem:[%s329 + $0x4520] sm:$0xff]
        %v2629 = vld [vmem:[%s329 + $0x4528] sm:$0xff]
        %v2630 = vld [vmem:[%s329 + $0x4530] sm:$0xff]
        %v2631 = vld [vmem:[%s329 + $0x4538] sm:$0xff]
        %v2632 = vld [vmem:[%s329 + $0x4540] sm:$0xff]
        %v2633 = vld [vmem:[%s329 + $0x4548] sm:$0xff]
        %v2634 = vld [vmem:[%s329 + $0x4550] sm:$0xff]
        %v2635 = vld [vmem:[%s329 + $0x4558] sm:$0xff]
        %v2636 = vld [vmem:[%s329 + $0x4560] sm:$0xff]
        %v2637 = vld [vmem:[%s329 + $0x4568] sm:$0xff]
        %v2638 = vld [vmem:[%s329 + $0x4570] sm:$0xff]
        %v2639 = vld [vmem:[%s329 + $0x4578] sm:$0xff]
        %v2640 = vld [vmem:[%s329 + $0x4580] sm:$0xff]
        %v2641 = vld [vmem:[%s329 + $0x4588] sm:$0xff]
        %v2642 = vld [vmem:[%s329 + $0x4590] sm:$0xff]
        %v2643 = vld [vmem:[%s329 + $0x4598] sm:$0xff]
        %v2644 = vld [vmem:[%s329 + $0x45a0] sm:$0xff]
        %v2645 = vld [vmem:[%s329 + $0x45a8] sm:$0xff]
        %v2646 = vld [vmem:[%s329 + $0x45b0] sm:$0xff]
        %v2647 = vld [vmem:[%s329 + $0x45b8] sm:$0xff]
        %v2648 = vld [vmem:[%s329 + $0x45c0] sm:$0xff]
        %v2649 = vld [vmem:[%s329 + $0x45c8] sm:$0xff]
        %v2650 = vld [vmem:[%s329 + $0x45d0] sm:$0xff]
        %v2651 = vld [vmem:[%s329 + $0x45d8] sm:$0xff]
        %v2652 = vld [vmem:[%s329 + $0x45e0] sm:$0xff]
        %v2653 = vld [vmem:[%s329 + $0x45e8] sm:$0xff]
        %v2654 = vld [vmem:[%s329 + $0x45f0] sm:$0xff]
        %v2655 = vld [vmem:[%s329 + $0x45f8] sm:$0xff]
        %v2656 = vld [vmem:[%s329 + $0x4600] sm:$0xff]
        %v2657 = vld [vmem:[%s329 + $0x4608] sm:$0xff]
        %v2658 = vld [vmem:[%s329 + $0x4610] sm:$0xff]
        %v2659 = vld [vmem:[%s329 + $0x4618] sm:$0xff]
        %v2660 = vld [vmem:[%s329 + $0x4620] sm:$0xff]
        %v2661 = vld [vmem:[%s329 + $0x4628] sm:$0xff]
        %v2662 = vld [vmem:[%s329 + $0x4630] sm:$0xff]
        %v2663 = vld [vmem:[%s329 + $0x4638] sm:$0xff]
        %v2664 = vld [vmem:[%s329 + $0x4640] sm:$0xff]
        %v2665 = vld [vmem:[%s329 + $0x4648] sm:$0xff]
        %v2666 = vld [vmem:[%s329 + $0x4650] sm:$0xff]
        %v2667 = vld [vmem:[%s329 + $0x4658] sm:$0xff]
        %v2668 = vld [vmem:[%s329 + $0x4660] sm:$0xff]
        %v2669 = vld [vmem:[%s329 + $0x4668] sm:$0xff]
        %v2670 = vld [vmem:[%s329 + $0x4670] sm:$0xff]
        %v2671 = vld [vmem:[%s329 + $0x4678] sm:$0xff]
        %v2672 = vld [vmem:[%s329 + $0x4680] sm:$0xff]
        %v2673 = vld [vmem:[%s329 + $0x4688] sm:$0xff]
        %v2674 = vld [vmem:[%s329 + $0x4690] sm:$0xff]
        %v2675 = vld [vmem:[%s329 + $0x4698] sm:$0xff]
        %v2676 = vld [vmem:[%s329 + $0x46a0] sm:$0xff]
        %v2677 = vld [vmem:[%s329 + $0x46a8] sm:$0xff]
        %v2678 = vld [vmem:[%s329 + $0x46b0] sm:$0xff]
        %v2679 = vld [vmem:[%s329 + $0x46b8] sm:$0xff]
        %v2680 = vld [vmem:[%s329 + $0x46c0] sm:$0xff]
        %v2681 = vld [vmem:[%s329 + $0x46c8] sm:$0xff]
        %v2682 = vld [vmem:[%s329 + $0x46d0] sm:$0xff]
        %v2683 = vld [vmem:[%s329 + $0x46d8] sm:$0xff]
        %v2684 = vld [vmem:[%s329 + $0x46e0] sm:$0xff]
        %v2685 = vld [vmem:[%s329 + $0x46e8] sm:$0xff]
        %v2686 = vld [vmem:[%s329 + $0x46f0] sm:$0xff]
        %v2687 = vld [vmem:[%s329 + $0x46f8] sm:$0xff]
        %v2688 = vld [vmem:[%s329 + $0x4700] sm:$0xff]
        %v2689 = vld [vmem:[%s329 + $0x4708] sm:$0xff]
        %v2690 = vld [vmem:[%s329 + $0x4710] sm:$0xff]
        %v2691 = vld [vmem:[%s329 + $0x4718] sm:$0xff]
        %v2692 = vld [vmem:[%s329 + $0x4720] sm:$0xff]
        %v2693 = vld [vmem:[%s329 + $0x4728] sm:$0xff]
        %v2694 = vld [vmem:[%s329 + $0x4730] sm:$0xff]
        %v2695 = vld [vmem:[%s329 + $0x4738] sm:$0xff]
        %v2696 = vld [vmem:[%s329 + $0x4740] sm:$0xff]
        %v2697 = vld [vmem:[%s329 + $0x4748] sm:$0xff]
        %v2698 = vld [vmem:[%s329 + $0x4750] sm:$0xff]
        %v2699 = vld [vmem:[%s329 + $0x4758] sm:$0xff]
        %v2700 = vld [vmem:[%s329 + $0x4760] sm:$0xff]
        %v2701 = vld [vmem:[%s329 + $0x4768] sm:$0xff]
        %v2702 = vld [vmem:[%s329 + $0x4770] sm:$0xff]
        %v2703 = vld [vmem:[%s329 + $0x4778] sm:$0xff]
        %v2704 = vld [vmem:[%s329 + $0x4780] sm:$0xff]
        %v2705 = vld [vmem:[%s329 + $0x4788] sm:$0xff]
        %v2706 = vld [vmem:[%s329 + $0x4790] sm:$0xff]
        %v2707 = vld [vmem:[%s329 + $0x4798] sm:$0xff]
        %v2708 = vld [vmem:[%s329 + $0x47a0] sm:$0xff]
        %v2709 = vld [vmem:[%s329 + $0x47a8] sm:$0xff]
        %v2710 = vld [vmem:[%s329 + $0x47b0] sm:$0xff]
        %v2711 = vld [vmem:[%s329 + $0x47b8] sm:$0xff]
        %v2712 = vld [vmem:[%s329 + $0x47c0] sm:$0xff]
        %v2713 = vld [vmem:[%s329 + $0x47c8] sm:$0xff]
        %v2714 = vld [vmem:[%s329 + $0x47d0] sm:$0xff]
        %v2715 = vld [vmem:[%s329 + $0x47d8] sm:$0xff]
        %v2716 = vld [vmem:[%s329 + $0x47e0] sm:$0xff]
        %v2717 = vld [vmem:[%s329 + $0x47e8] sm:$0xff]
        %v2718 = vld [vmem:[%s329 + $0x47f0] sm:$0xff]
        %v2719 = vld [vmem:[%s329 + $0x47f8] sm:$0xff]
        %v2720 = vld [vmem:[%s329 + $0x4800] sm:$0xff]
        %v2721 = vld [vmem:[%s329 + $0x4808] sm:$0xff]
        %v2722 = vld [vmem:[%s329 + $0x4810] sm:$0xff]
        %v2723 = vld [vmem:[%s329 + $0x4818] sm:$0xff]
        %v2724 = vld [vmem:[%s329 + $0x4820] sm:$0xff]
        %v2725 = vld [vmem:[%s329 + $0x4828] sm:$0xff]
        %v2726 = vld [vmem:[%s329 + $0x4830] sm:$0xff]
        %v2727 = vld [vmem:[%s329 + $0x4838] sm:$0xff]
        %v2728 = vld [vmem:[%s329 + $0x4840] sm:$0xff]
        %v2729 = vld [vmem:[%s329 + $0x4848] sm:$0xff]
        %v2730 = vld [vmem:[%s329 + $0x4850] sm:$0xff]
        %v2731 = vld [vmem:[%s329 + $0x4858] sm:$0xff]
        %v2732 = vld [vmem:[%s329 + $0x4860] sm:$0xff]
        %v2733 = vld [vmem:[%s329 + $0x4868] sm:$0xff]
        %v2734 = vld [vmem:[%s329 + $0x4870] sm:$0xff]
        %v2735 = vld [vmem:[%s329 + $0x4878] sm:$0xff]
        %v2736 = vld [vmem:[%s329 + $0x4880] sm:$0xff]
        %v2737 = vld [vmem:[%s329 + $0x4888] sm:$0xff]
        %v2738 = vld [vmem:[%s329 + $0x4890] sm:$0xff]
        %v2739 = vld [vmem:[%s329 + $0x4898] sm:$0xff]
        %v2740 = vld [vmem:[%s329 + $0x48a0] sm:$0xff]
        %v2741 = vld [vmem:[%s329 + $0x48a8] sm:$0xff]
        %v2742 = vld [vmem:[%s329 + $0x48b0] sm:$0xff]
        %v2743 = vld [vmem:[%s329 + $0x48b8] sm:$0xff]
        %v2744 = vld [vmem:[%s329 + $0x48c0] sm:$0xff]
        %v2745 = vld [vmem:[%s329 + $0x48c8] sm:$0xff]
        %v2746 = vld [vmem:[%s329 + $0x48d0] sm:$0xff]
        %v2747 = vld [vmem:[%s329 + $0x48d8] sm:$0xff]
        %v2748 = vld [vmem:[%s329 + $0x48e0] sm:$0xff]
        %v2749 = vld [vmem:[%s329 + $0x48e8] sm:$0xff]
        %v2750 = vld [vmem:[%s329 + $0x48f0] sm:$0xff]
        %v2751 = vld [vmem:[%s329 + $0x48f8] sm:$0xff]
        %v2752 = vld [vmem:[%s329 + $0x4900] sm:$0xff]
        %v2753 = vld [vmem:[%s329 + $0x4908] sm:$0xff]
        %v2754 = vld [vmem:[%s329 + $0x4910] sm:$0xff]
        %v2755 = vld [vmem:[%s329 + $0x4918] sm:$0xff]
        %v2756 = vld [vmem:[%s329 + $0x4920] sm:$0xff]
        %v2757 = vld [vmem:[%s329 + $0x4928] sm:$0xff]
        %v2758 = vld [vmem:[%s329 + $0x4930] sm:$0xff]
        %v2759 = vld [vmem:[%s329 + $0x4938] sm:$0xff]
        %v2760 = vld [vmem:[%s329 + $0x4940] sm:$0xff]
        %v2761 = vld [vmem:[%s329 + $0x4948] sm:$0xff]
        %v2762 = vld [vmem:[%s329 + $0x4950] sm:$0xff]
        %v2763 = vld [vmem:[%s329 + $0x4958] sm:$0xff]
        %v2764 = vld [vmem:[%s329 + $0x4960] sm:$0xff]
        %v2765 = vld [vmem:[%s329 + $0x4968] sm:$0xff]
        %v2766 = vld [vmem:[%s329 + $0x4970] sm:$0xff]
        %v2767 = vld [vmem:[%s329 + $0x4978] sm:$0xff]
        %v2768 = vld [vmem:[%s329 + $0x4980] sm:$0xff]
        %v2769 = vld [vmem:[%s329 + $0x4988] sm:$0xff]
        %v2770 = vld [vmem:[%s329 + $0x4990] sm:$0xff]
        %v2771 = vld [vmem:[%s329 + $0x4998] sm:$0xff]
        %v2772 = vld [vmem:[%s329 + $0x49a0] sm:$0xff]
        %v2773 = vld [vmem:[%s329 + $0x49a8] sm:$0xff]
        %v2774 = vld [vmem:[%s329 + $0x49b0] sm:$0xff]
        %v2775 = vld [vmem:[%s329 + $0x49b8] sm:$0xff]
        %v2776 = vld [vmem:[%s329 + $0x49c0] sm:$0xff]
        %v2777 = vld [vmem:[%s329 + $0x49c8] sm:$0xff]
        %v2778 = vld [vmem:[%s329 + $0x49d0] sm:$0xff]
        %v2779 = vld [vmem:[%s329 + $0x49d8] sm:$0xff]
        %v2780 = vld [vmem:[%s329 + $0x49e0] sm:$0xff]
        %v2781 = vld [vmem:[%s329 + $0x49e8] sm:$0xff]
        %v2782 = vld [vmem:[%s329 + $0x49f0] sm:$0xff]
        %v2783 = vld [vmem:[%s329 + $0x49f8] sm:$0xff]
        %v2784 = vld [vmem:[%s329 + $0x4a00] sm:$0xff]
        %v2785 = vld [vmem:[%s329 + $0x4a08] sm:$0xff]
        %v2786 = vld [vmem:[%s329 + $0x4a10] sm:$0xff]
        %v2787 = vld [vmem:[%s329 + $0x4a18] sm:$0xff]
        %v2788 = vld [vmem:[%s329 + $0x4a20] sm:$0xff]
        %v2789 = vld [vmem:[%s329 + $0x4a28] sm:$0xff]
        %v2790 = vld [vmem:[%s329 + $0x4a30] sm:$0xff]
        %v2791 = vld [vmem:[%s329 + $0x4a38] sm:$0xff]
        %v2792 = vld [vmem:[%s329 + $0x4a40] sm:$0xff]
        %v2793 = vld [vmem:[%s329 + $0x4a48] sm:$0xff]
        %v2794 = vld [vmem:[%s329 + $0x4a50] sm:$0xff]
        %v2795 = vld [vmem:[%s329 + $0x4a58] sm:$0xff]
        %v2796 = vld [vmem:[%s329 + $0x4a60] sm:$0xff]
        %v2797 = vld [vmem:[%s329 + $0x4a68] sm:$0xff]
        %v2798 = vld [vmem:[%s329 + $0x4a70] sm:$0xff]
        %v2799 = vld [vmem:[%s329 + $0x4a78] sm:$0xff]
        %v2800 = vld [vmem:[%s329 + $0x4a80] sm:$0xff]
        %v2801 = vld [vmem:[%s329 + $0x4a88] sm:$0xff]
        %v2802 = vld [vmem:[%s329 + $0x4a90] sm:$0xff]
        %v2803 = vld [vmem:[%s329 + $0x4a98] sm:$0xff]
        %v2804 = vld [vmem:[%s329 + $0x4aa0] sm:$0xff]
        %v2805 = vld [vmem:[%s329 + $0x4aa8] sm:$0xff]
        %v2806 = vld [vmem:[%s329 + $0x4ab0] sm:$0xff]
        %v2807 = vld [vmem:[%s329 + $0x4ab8] sm:$0xff]
        %v2808 = vld [vmem:[%s329 + $0x4ac0] sm:$0xff]
        %v2809 = vld [vmem:[%s329 + $0x4ac8] sm:$0xff]
        %v2810 = vld [vmem:[%s329 + $0x4ad0] sm:$0xff]
        %v2811 = vld [vmem:[%s329 + $0x4ad8] sm:$0xff]
        %v2812 = vld [vmem:[%s329 + $0x4ae0] sm:$0xff]
        %v2813 = vld [vmem:[%s329 + $0x4ae8] sm:$0xff]
        %v2814 = vld [vmem:[%s329 + $0x4af0] sm:$0xff]
        %v2815 = vld [vmem:[%s329 + $0x4af8] sm:$0xff]
        %v2816 = vld [vmem:[%s329 + $0x4b00] sm:$0xff]
        %v2817 = vld [vmem:[%s329 + $0x4b08] sm:$0xff]
        %v2818 = vld [vmem:[%s329 + $0x4b10] sm:$0xff]
        %v2819 = vld [vmem:[%s329 + $0x4b18] sm:$0xff]
        %v2820 = vld [vmem:[%s329 + $0x4b20] sm:$0xff]
        %v2821 = vld [vmem:[%s329 + $0x4b28] sm:$0xff]
        %v2822 = vld [vmem:[%s329 + $0x4b30] sm:$0xff]
        %v2823 = vld [vmem:[%s329 + $0x4b38] sm:$0xff]
        %v2824 = vld [vmem:[%s329 + $0x4b40] sm:$0xff]
        %v2825 = vld [vmem:[%s329 + $0x4b48] sm:$0xff]
        %v2826 = vld [vmem:[%s329 + $0x4b50] sm:$0xff]
        %v2827 = vld [vmem:[%s329 + $0x4b58] sm:$0xff]
        %v2828 = vld [vmem:[%s329 + $0x4b60] sm:$0xff]
        %v2829 = vld [vmem:[%s329 + $0x4b68] sm:$0xff]
        %v2830 = vld [vmem:[%s329 + $0x4b70] sm:$0xff]
        %v2831 = vld [vmem:[%s329 + $0x4b78] sm:$0xff]
        %v2832 = vld [vmem:[%s329 + $0x4b80] sm:$0xff]
        %v2833 = vld [vmem:[%s329 + $0x4b88] sm:$0xff]
        %v2834 = vld [vmem:[%s329 + $0x4b90] sm:$0xff]
        %v2835 = vld [vmem:[%s329 + $0x4b98] sm:$0xff]
        %v2836 = vld [vmem:[%s329 + $0x4ba0] sm:$0xff]
        %v2837 = vld [vmem:[%s329 + $0x4ba8] sm:$0xff]
        %v2838 = vld [vmem:[%s329 + $0x4bb0] sm:$0xff]
        %v2839 = vld [vmem:[%s329 + $0x4bb8] sm:$0xff]
        %v2840 = vld [vmem:[%s329 + $0x4bc0] sm:$0xff]
        %v2841 = vld [vmem:[%s329 + $0x4bc8] sm:$0xff]
        %v2842 = vld [vmem:[%s329 + $0x4bd0] sm:$0xff]
        %v2843 = vld [vmem:[%s329 + $0x4bd8] sm:$0xff]
        %v2844 = vld [vmem:[%s329 + $0x4be0] sm:$0xff]
        %v2845 = vld [vmem:[%s329 + $0x4be8] sm:$0xff]
        %v2846 = vld [vmem:[%s329 + $0x4bf0] sm:$0xff]
        %v2847 = vld [vmem:[%s329 + $0x4bf8] sm:$0xff]
        %v2848 = vld [vmem:[%s329 + $0x4c00] sm:$0xff]
        %v2849 = vld [vmem:[%s329 + $0x4c08] sm:$0xff]
        %v2850 = vld [vmem:[%s329 + $0x4c10] sm:$0xff]
        %v2851 = vld [vmem:[%s329 + $0x4c18] sm:$0xff]
        %v2852 = vld [vmem:[%s329 + $0x4c20] sm:$0xff]
        %v2853 = vld [vmem:[%s329 + $0x4c28] sm:$0xff]
        %v2854 = vld [vmem:[%s329 + $0x4c30] sm:$0xff]
        %v2855 = vld [vmem:[%s329 + $0x4c38] sm:$0xff]
        %v2856 = vld [vmem:[%s329 + $0x4c40] sm:$0xff]
        %v2857 = vld [vmem:[%s329 + $0x4c48] sm:$0xff]
        %v2858 = vld [vmem:[%s329 + $0x4c50] sm:$0xff]
        %v2859 = vld [vmem:[%s329 + $0x4c58] sm:$0xff]
        %v2860 = vld [vmem:[%s329 + $0x4c60] sm:$0xff]
        %v2861 = vld [vmem:[%s329 + $0x4c68] sm:$0xff]
        %v2862 = vld [vmem:[%s329 + $0x4c70] sm:$0xff]
        %v2863 = vld [vmem:[%s329 + $0x4c78] sm:$0xff]
        %v2864 = vld [vmem:[%s329 + $0x4c80] sm:$0xff]
        %v2865 = vld [vmem:[%s329 + $0x4c88] sm:$0xff]
        %v2866 = vld [vmem:[%s329 + $0x4c90] sm:$0xff]
        %v2867 = vld [vmem:[%s329 + $0x4c98] sm:$0xff]
        %v2868 = vld [vmem:[%s329 + $0x4ca0] sm:$0xff]
        %v2869 = vld [vmem:[%s329 + $0x4ca8] sm:$0xff]
        %v2870 = vld [vmem:[%s329 + $0x4cb0] sm:$0xff]
        %v2871 = vld [vmem:[%s329 + $0x4cb8] sm:$0xff]
        %v2872 = vld [vmem:[%s329 + $0x4cc0] sm:$0xff]
        %v2873 = vld [vmem:[%s329 + $0x4cc8] sm:$0xff]
        %v2874 = vld [vmem:[%s329 + $0x4cd0] sm:$0xff]
        %v2875 = vld [vmem:[%s329 + $0x4cd8] sm:$0xff]
        %v2876 = vld [vmem:[%s329 + $0x4ce0] sm:$0xff]
        %v2877 = vld [vmem:[%s329 + $0x4ce8] sm:$0xff]
        %v2878 = vld [vmem:[%s329 + $0x4cf0] sm:$0xff]
        %v2879 = vld [vmem:[%s329 + $0x4cf8] sm:$0xff]
        %v2880 = vld [vmem:[%s329 + $0x4d00] sm:$0xff]
        %v2881 = vld [vmem:[%s329 + $0x4d08] sm:$0xff]
        %v2882 = vld [vmem:[%s329 + $0x4d10] sm:$0xff]
        %v2883 = vld [vmem:[%s329 + $0x4d18] sm:$0xff]
        %v2884 = vld [vmem:[%s329 + $0x4d20] sm:$0xff]
        %v2885 = vld [vmem:[%s329 + $0x4d28] sm:$0xff]
        %v2886 = vld [vmem:[%s329 + $0x4d30] sm:$0xff]
        %v2887 = vld [vmem:[%s329 + $0x4d38] sm:$0xff]
        %v2888 = vld [vmem:[%s329 + $0x4d40] sm:$0xff]
        %v2889 = vld [vmem:[%s329 + $0x4d48] sm:$0xff]
        %v2890 = vld [vmem:[%s329 + $0x4d50] sm:$0xff]
        %v2891 = vld [vmem:[%s329 + $0x4d58] sm:$0xff]
        %v2892 = vld [vmem:[%s329 + $0x4d60] sm:$0xff]
        %v2893 = vld [vmem:[%s329 + $0x4d68] sm:$0xff]
        %v2894 = vld [vmem:[%s329 + $0x4d70] sm:$0xff]
        %v2895 = vld [vmem:[%s329 + $0x4d78] sm:$0xff]
        %v2896 = vld [vmem:[%s329 + $0x4d80] sm:$0xff]
        %v2897 = vld [vmem:[%s329 + $0x4d88] sm:$0xff]
        %v2898 = vld [vmem:[%s329 + $0x4d90] sm:$0xff]
        %v2899 = vld [vmem:[%s329 + $0x4d98] sm:$0xff]
        %v2900 = vld [vmem:[%s329 + $0x4da0] sm:$0xff]
        %v2901 = vld [vmem:[%s329 + $0x4da8] sm:$0xff]
        %v2902 = vld [vmem:[%s329 + $0x4db0] sm:$0xff]
        %v2903 = vld [vmem:[%s329 + $0x4db8] sm:$0xff]
        %v2904 = vld [vmem:[%s329 + $0x4dc0] sm:$0xff]
        %v2905 = vld [vmem:[%s329 + $0x4dc8] sm:$0xff]
        %v2906 = vld [vmem:[%s329 + $0x4dd0] sm:$0xff]
        %v2907 = vld [vmem:[%s329 + $0x4dd8] sm:$0xff]
        %v2908 = vld [vmem:[%s329 + $0x4de0] sm:$0xff]
        %v2909 = vld [vmem:[%s329 + $0x4de8] sm:$0xff]
        %v2910 = vld [vmem:[%s329 + $0x4df0] sm:$0xff]
        %v2911 = vld [vmem:[%s329 + $0x4df8] sm:$0xff]
        %v2912 = vld [vmem:[%s329 + $0x4e00] sm:$0xff]
        %v2913 = vld [vmem:[%s329 + $0x4e08] sm:$0xff]
        %v2914 = vld [vmem:[%s329 + $0x4e10] sm:$0xff]
        %v2915 = vld [vmem:[%s329 + $0x4e18] sm:$0xff]
        %v2916 = vld [vmem:[%s329 + $0x4e20] sm:$0xff]
        %v2917 = vld [vmem:[%s329 + $0x4e28] sm:$0xff]
        %v2918 = vld [vmem:[%s329 + $0x4e30] sm:$0xff]
        %v2919 = vld [vmem:[%s329 + $0x4e38] sm:$0xff]
        %v2920 = vld [vmem:[%s329 + $0x4e40] sm:$0xff]
        %v2921 = vld [vmem:[%s329 + $0x4e48] sm:$0xff]
        %v2922 = vld [vmem:[%s329 + $0x4e50] sm:$0xff]
        %v2923 = vld [vmem:[%s329 + $0x4e58] sm:$0xff]
        %v2924 = vld [vmem:[%s329 + $0x4e60] sm:$0xff]
        %v2925 = vld [vmem:[%s329 + $0x4e68] sm:$0xff]
        %v2926 = vld [vmem:[%s329 + $0x4e70] sm:$0xff]
        %v2927 = vld [vmem:[%s329 + $0x4e78] sm:$0xff]
        %v2928 = vld [vmem:[%s329 + $0x4e80] sm:$0xff]
        %v2929 = vld [vmem:[%s329 + $0x4e88] sm:$0xff]
        %v2930 = vld [vmem:[%s329 + $0x4e90] sm:$0xff]
        %v2931 = vld [vmem:[%s329 + $0x4e98] sm:$0xff]
        %v2932 = vld [vmem:[%s329 + $0x4ea0] sm:$0xff]
        %v2933 = vld [vmem:[%s329 + $0x4ea8] sm:$0xff]
        %v2934 = vld [vmem:[%s329 + $0x4eb0] sm:$0xff]
        %v2935 = vld [vmem:[%s329 + $0x4eb8] sm:$0xff]
        %v2936 = vld [vmem:[%s329 + $0x4ec0] sm:$0xff]
        %v2937 = vld [vmem:[%s329 + $0x4ec8] sm:$0xff]
        %v2938 = vld [vmem:[%s329 + $0x4ed0] sm:$0xff]
        %v2939 = vld [vmem:[%s329 + $0x4ed8] sm:$0xff]
        %v2940 = vld [vmem:[%s329 + $0x4ee0] sm:$0xff]
        %v2941 = vld [vmem:[%s329 + $0x4ee8] sm:$0xff]
        %v2942 = vld [vmem:[%s329 + $0x4ef0] sm:$0xff]
        %v2943 = vld [vmem:[%s329 + $0x4ef8] sm:$0xff]
        %v2944 = vld [vmem:[%s329 + $0x4f00] sm:$0xff]
        %v2945 = vld [vmem:[%s329 + $0x4f08] sm:$0xff]
        %v2946 = vld [vmem:[%s329 + $0x4f10] sm:$0xff]
        %v2947 = vld [vmem:[%s329 + $0x4f18] sm:$0xff]
        %v2948 = vld [vmem:[%s329 + $0x4f20] sm:$0xff]
        %v2949 = vld [vmem:[%s329 + $0x4f28] sm:$0xff]
        %v2950 = vld [vmem:[%s329 + $0x4f30] sm:$0xff]
        %v2951 = vld [vmem:[%s329 + $0x4f38] sm:$0xff]
        %v2952 = vld [vmem:[%s329 + $0x4f40] sm:$0xff]
        %v2953 = vld [vmem:[%s329 + $0x4f48] sm:$0xff]
        %v2954 = vld [vmem:[%s329 + $0x4f50] sm:$0xff]
        %v2955 = vld [vmem:[%s329 + $0x4f58] sm:$0xff]
        %v2956 = vld [vmem:[%s329 + $0x4f60] sm:$0xff]
        %v2957 = vld [vmem:[%s329 + $0x4f68] sm:$0xff]
        %v2958 = vld [vmem:[%s329 + $0x4f70] sm:$0xff]
        %v2959 = vld [vmem:[%s329 + $0x4f78] sm:$0xff]
        %v2960 = vld [vmem:[%s329 + $0x4f80] sm:$0xff]
        %v2961 = vld [vmem:[%s329 + $0x4f88] sm:$0xff]
        %v2962 = vld [vmem:[%s329 + $0x4f90] sm:$0xff]
        %v2963 = vld [vmem:[%s329 + $0x4f98] sm:$0xff]
        %v2964 = vld [vmem:[%s329 + $0x4fa0] sm:$0xff]
        %v2965 = vld [vmem:[%s329 + $0x4fa8] sm:$0xff]
        %v2966 = vld [vmem:[%s329 + $0x4fb0] sm:$0xff]
        %v2967 = vld [vmem:[%s329 + $0x4fb8] sm:$0xff]
        %v2968 = vld [vmem:[%s329 + $0x4fc0] sm:$0xff]
        %v2969 = vld [vmem:[%s329 + $0x4fc8] sm:$0xff]
        %v2970 = vld [vmem:[%s329 + $0x4fd0] sm:$0xff]
        %v2971 = vld [vmem:[%s329 + $0x4fd8] sm:$0xff]
        %v2972 = vld [vmem:[%s329 + $0x4fe0] sm:$0xff]
        %v2973 = vld [vmem:[%s329 + $0x4fe8] sm:$0xff]
        %v2974 = vld [vmem:[%s329 + $0x4ff0] sm:$0xff]
        %v2975 = vld [vmem:[%s329 + $0x4ff8] sm:$0xff]
        %v2976 = vld [vmem:[%s329 + $0x5000] sm:$0xff]
        %v2977 = vld [vmem:[%s329 + $0x5008] sm:$0xff]
        %v2978 = vld [vmem:[%s329 + $0x5010] sm:$0xff]
        %v2979 = vld [vmem:[%s329 + $0x5018] sm:$0xff]
        %v2980 = vld [vmem:[%s329 + $0x5020] sm:$0xff]
        %v2981 = vld [vmem:[%s329 + $0x5028] sm:$0xff]
        %v2982 = vld [vmem:[%s329 + $0x5030] sm:$0xff]
        %v2983 = vld [vmem:[%s329 + $0x5038] sm:$0xff]
        %v2984 = vld [vmem:[%s329 + $0x5040] sm:$0xff]
        %v2985 = vld [vmem:[%s329 + $0x5048] sm:$0xff]
        %v2986 = vld [vmem:[%s329 + $0x5050] sm:$0xff]
        %v2987 = vld [vmem:[%s329 + $0x5058] sm:$0xff]
        %v2988 = vld [vmem:[%s329 + $0x5060] sm:$0xff]
        %v2989 = vld [vmem:[%s329 + $0x5068] sm:$0xff]
        %v2990 = vld [vmem:[%s329 + $0x5070] sm:$0xff]
        %v2991 = vld [vmem:[%s329 + $0x5078] sm:$0xff]
        %v2992 = vld [vmem:[%s329 + $0x5080] sm:$0xff]
        %v2993 = vld [vmem:[%s329 + $0x5088] sm:$0xff]
        %v2994 = vld [vmem:[%s329 + $0x5090] sm:$0xff]
        %v2995 = vld [vmem:[%s329 + $0x5098] sm:$0xff]
        %v2996 = vld [vmem:[%s329 + $0x50a0] sm:$0xff]
        %v2997 = vld [vmem:[%s329 + $0x50a8] sm:$0xff]
        %v2998 = vld [vmem:[%s329 + $0x50b0] sm:$0xff]
        %v2999 = vld [vmem:[%s329 + $0x50b8] sm:$0xff]
        %v3000 = vld [vmem:[%s329 + $0x50c0] sm:$0xff]
        %v3001 = vld [vmem:[%s329 + $0x50c8] sm:$0xff]
        %v3002 = vld [vmem:[%s329 + $0x50d0] sm:$0xff]
        %v3003 = vld [vmem:[%s329 + $0x50d8] sm:$0xff]
        %v3004 = vld [vmem:[%s329 + $0x50e0] sm:$0xff]
        %v3005 = vld [vmem:[%s329 + $0x50e8] sm:$0xff]
        %v3006 = vld [vmem:[%s329 + $0x50f0] sm:$0xff]
        %v3007 = vld [vmem:[%s329 + $0x50f8] sm:$0xff]
        %v3008 = vld [vmem:[%s329 + $0x5100] sm:$0xff]
        %v3009 = vld [vmem:[%s329 + $0x5108] sm:$0xff]
        %v3010 = vld [vmem:[%s329 + $0x5110] sm:$0xff]
        %v3011 = vld [vmem:[%s329 + $0x5118] sm:$0xff]
        %v3012 = vld [vmem:[%s329 + $0x5120] sm:$0xff]
        %v3013 = vld [vmem:[%s329 + $0x5128] sm:$0xff]
        %v3014 = vld [vmem:[%s329 + $0x5130] sm:$0xff]
        %v3015 = vld [vmem:[%s329 + $0x5138] sm:$0xff]
        %v3016 = vld [vmem:[%s329 + $0x5140] sm:$0xff]
        %v3017 = vld [vmem:[%s329 + $0x5148] sm:$0xff]
        %v3018 = vld [vmem:[%s329 + $0x5150] sm:$0xff]
        %v3019 = vld [vmem:[%s329 + $0x5158] sm:$0xff]
        %v3020 = vld [vmem:[%s329 + $0x5160] sm:$0xff]
        %v3021 = vld [vmem:[%s329 + $0x5168] sm:$0xff]
        %v3022 = vld [vmem:[%s329 + $0x5170] sm:$0xff]
        %v3023 = vld [vmem:[%s329 + $0x5178] sm:$0xff]
        %v3024 = vld [vmem:[%s329 + $0x5180] sm:$0xff]
        %v3025 = vld [vmem:[%s329 + $0x5188] sm:$0xff]
        %v3026 = vld [vmem:[%s329 + $0x5190] sm:$0xff]
        %v3027 = vld [vmem:[%s329 + $0x5198] sm:$0xff]
        %v3028 = vld [vmem:[%s329 + $0x51a0] sm:$0xff]
        %v3029 = vld [vmem:[%s329 + $0x51a8] sm:$0xff]
        %v3030 = vld [vmem:[%s329 + $0x51b0] sm:$0xff]
        %v3031 = vld [vmem:[%s329 + $0x51b8] sm:$0xff]
        %v3032 = vld [vmem:[%s329 + $0x51c0] sm:$0xff]
        %v3033 = vld [vmem:[%s329 + $0x51c8] sm:$0xff]
        %v3034 = vld [vmem:[%s329 + $0x51d0] sm:$0xff]
        %v3035 = vld [vmem:[%s329 + $0x51d8] sm:$0xff]
        %v3036 = vld [vmem:[%s329 + $0x51e0] sm:$0xff]
        %v3037 = vld [vmem:[%s329 + $0x51e8] sm:$0xff]
        %v3038 = vld [vmem:[%s329 + $0x51f0] sm:$0xff]
        %v3039 = vld [vmem:[%s329 + $0x51f8] sm:$0xff]
        %v3040 = vld [vmem:[%s329 + $0x5200] sm:$0xff]
        %v3041 = vld [vmem:[%s329 + $0x5208] sm:$0xff]
        %v3042 = vld [vmem:[%s329 + $0x5210] sm:$0xff]
        %v3043 = vld [vmem:[%s329 + $0x5218] sm:$0xff]
        %v3044 = vld [vmem:[%s329 + $0x5220] sm:$0xff]
        %v3045 = vld [vmem:[%s329 + $0x5228] sm:$0xff]
        %v3046 = vld [vmem:[%s329 + $0x5230] sm:$0xff]
        %v3047 = vld [vmem:[%s329 + $0x5238] sm:$0xff]
        %v3048 = vld [vmem:[%s329 + $0x5240] sm:$0xff]
        %v3049 = vld [vmem:[%s329 + $0x5248] sm:$0xff]
        %v3050 = vld [vmem:[%s329 + $0x5250] sm:$0xff]
        %v3051 = vld [vmem:[%s329 + $0x5258] sm:$0xff]
        %v3052 = vld [vmem:[%s329 + $0x5260] sm:$0xff]
        %v3053 = vld [vmem:[%s329 + $0x5268] sm:$0xff]
        %v3054 = vld [vmem:[%s329 + $0x5270] sm:$0xff]
        %v3055 = vld [vmem:[%s329 + $0x5278] sm:$0xff]
        %v3056 = vld [vmem:[%s329 + $0x5280] sm:$0xff]
        %v3057 = vld [vmem:[%s329 + $0x5288] sm:$0xff]
        %v3058 = vld [vmem:[%s329 + $0x5290] sm:$0xff]
        %v3059 = vld [vmem:[%s329 + $0x5298] sm:$0xff]
        %v3060 = vld [vmem:[%s329 + $0x52a0] sm:$0xff]
        %v3061 = vld [vmem:[%s329 + $0x52a8] sm:$0xff]
        %v3062 = vld [vmem:[%s329 + $0x52b0] sm:$0xff]
        %v3063 = vld [vmem:[%s329 + $0x52b8] sm:$0xff]
        %v3064 = vld [vmem:[%s329 + $0x52c0] sm:$0xff]
        %v3065 = vld [vmem:[%s329 + $0x52c8] sm:$0xff]
        %v3066 = vld [vmem:[%s329 + $0x52d0] sm:$0xff]
        %v3067 = vld [vmem:[%s329 + $0x52d8] sm:$0xff]
        %v3068 = vld [vmem:[%s329 + $0x52e0] sm:$0xff]
        %v3069 = vld [vmem:[%s329 + $0x52e8] sm:$0xff]
        %v3070 = vld [vmem:[%s329 + $0x52f0] sm:$0xff]
        %v3071 = vld [vmem:[%s329 + $0x52f8] sm:$0xff]
        %v3072 = vld [vmem:[%s329 + $0x5300] sm:$0xff]
        %v3073 = vld [vmem:[%s329 + $0x5308] sm:$0xff]
        %v3074 = vld [vmem:[%s329 + $0x5310] sm:$0xff]
        %v3075 = vld [vmem:[%s329 + $0x5318] sm:$0xff]
        %v3076 = vld [vmem:[%s329 + $0x5320] sm:$0xff]
        %v3077 = vld [vmem:[%s329 + $0x5328] sm:$0xff]
        %v3078 = vld [vmem:[%s329 + $0x5330] sm:$0xff]
        %v3079 = vld [vmem:[%s329 + $0x5338] sm:$0xff]
        %v3080 = vld [vmem:[%s329 + $0x5340] sm:$0xff]
        %v3081 = vld [vmem:[%s329 + $0x5348] sm:$0xff]
        %v3082 = vld [vmem:[%s329 + $0x5350] sm:$0xff]
        %v3083 = vld [vmem:[%s329 + $0x5358] sm:$0xff]
        %v3084 = vld [vmem:[%s329 + $0x5360] sm:$0xff]
        %v3085 = vld [vmem:[%s329 + $0x5368] sm:$0xff]
        %v3086 = vld [vmem:[%s329 + $0x5370] sm:$0xff]
        %v3087 = vld [vmem:[%s329 + $0x5378] sm:$0xff]
        %v3088 = vld [vmem:[%s329 + $0x5380] sm:$0xff]
        %v3089 = vld [vmem:[%s329 + $0x5388] sm:$0xff]
        %v3090 = vld [vmem:[%s329 + $0x5390] sm:$0xff]
        %v3091 = vld [vmem:[%s329 + $0x5398] sm:$0xff]
        %v3092 = vld [vmem:[%s329 + $0x53a0] sm:$0xff]
        %v3093 = vld [vmem:[%s329 + $0x53a8] sm:$0xff]
        %v3094 = vld [vmem:[%s329 + $0x53b0] sm:$0xff]
        %v3095 = vld [vmem:[%s329 + $0x53b8] sm:$0xff]
        %v3096 = vld [vmem:[%s329 + $0x53c0] sm:$0xff]
        %v3097 = vld [vmem:[%s329 + $0x53c8] sm:$0xff]
        %v3098 = vld [vmem:[%s329 + $0x53d0] sm:$0xff]
        %v3099 = vld [vmem:[%s329 + $0x53d8] sm:$0xff]
        %v3100 = vld [vmem:[%s329 + $0x53e0] sm:$0xff]
        %v3101 = vld [vmem:[%s329 + $0x53e8] sm:$0xff]
        %v3102 = vld [vmem:[%s329 + $0x53f0] sm:$0xff]
        %v3103 = vld [vmem:[%s329 + $0x53f8] sm:$0xff]
        %v3104 = vld [vmem:[%s329 + $0x5400] sm:$0xff]
        %v3105 = vld [vmem:[%s329 + $0x5408] sm:$0xff]
        %v3106 = vld [vmem:[%s329 + $0x5410] sm:$0xff]
        %v3107 = vld [vmem:[%s329 + $0x5418] sm:$0xff]
        %v3108 = vld [vmem:[%s329 + $0x5420] sm:$0xff]
        %v3109 = vld [vmem:[%s329 + $0x5428] sm:$0xff]
        %v3110 = vld [vmem:[%s329 + $0x5430] sm:$0xff]
        %v3111 = vld [vmem:[%s329 + $0x5438] sm:$0xff]
        %v3112 = vld [vmem:[%s329 + $0x5440] sm:$0xff]
        %v3113 = vld [vmem:[%s329 + $0x5448] sm:$0xff]
        %v3114 = vld [vmem:[%s329 + $0x5450] sm:$0xff]
        %v3115 = vld [vmem:[%s329 + $0x5458] sm:$0xff]
        %v3116 = vld [vmem:[%s329 + $0x5460] sm:$0xff]
        %v3117 = vld [vmem:[%s329 + $0x5468] sm:$0xff]
        %v3118 = vld [vmem:[%s329 + $0x5470] sm:$0xff]
        %v3119 = vld [vmem:[%s329 + $0x5478] sm:$0xff]
        %v3120 = vld [vmem:[%s329 + $0x5480] sm:$0xff]
        %v3121 = vld [vmem:[%s329 + $0x5488] sm:$0xff]
        %v3122 = vld [vmem:[%s329 + $0x5490] sm:$0xff]
        %v3123 = vld [vmem:[%s329 + $0x5498] sm:$0xff]
        %v3124 = vld [vmem:[%s329 + $0x54a0] sm:$0xff]
        %v3125 = vld [vmem:[%s329 + $0x54a8] sm:$0xff]
        %v3126 = vld [vmem:[%s329 + $0x54b0] sm:$0xff]
        %v3127 = vld [vmem:[%s329 + $0x54b8] sm:$0xff]
        %v3128 = vld [vmem:[%s329 + $0x54c0] sm:$0xff]
        %v3129 = vld [vmem:[%s329 + $0x54c8] sm:$0xff]
        %v3130 = vld [vmem:[%s329 + $0x54d0] sm:$0xff]
        %v3131 = vld [vmem:[%s329 + $0x54d8] sm:$0xff]
        %v3132 = vld [vmem:[%s329 + $0x54e0] sm:$0xff]
        %v3133 = vld [vmem:[%s329 + $0x54e8] sm:$0xff]
        %v3134 = vld [vmem:[%s329 + $0x54f0] sm:$0xff]
        %v3135 = vld [vmem:[%s329 + $0x54f8] sm:$0xff]
        %v3136 = vld [vmem:[%s329 + $0x5500] sm:$0xff]
        %v3137 = vld [vmem:[%s329 + $0x5508] sm:$0xff]
        %v3138 = vld [vmem:[%s329 + $0x5510] sm:$0xff]
        %v3139 = vld [vmem:[%s329 + $0x5518] sm:$0xff]
        %v3140 = vld [vmem:[%s329 + $0x5520] sm:$0xff]
        %v3141 = vld [vmem:[%s329 + $0x5528] sm:$0xff]
        %v3142 = vld [vmem:[%s329 + $0x5530] sm:$0xff]
        %v3143 = vld [vmem:[%s329 + $0x5538] sm:$0xff]
        %v3144 = vld [vmem:[%s329 + $0x5540] sm:$0xff]
        %v3145 = vld [vmem:[%s329 + $0x5548] sm:$0xff]
        %v3146 = vld [vmem:[%s329 + $0x5550] sm:$0xff]
        %v3147 = vld [vmem:[%s329 + $0x5558] sm:$0xff]
        %v3148 = vld [vmem:[%s329 + $0x5560] sm:$0xff]
        %v3149 = vld [vmem:[%s329 + $0x5568] sm:$0xff]
        %v3150 = vld [vmem:[%s329 + $0x5570] sm:$0xff]
        %v3151 = vld [vmem:[%s329 + $0x5578] sm:$0xff]
        %v3152 = vld [vmem:[%s329 + $0x5580] sm:$0xff]
        %v3153 = vld [vmem:[%s329 + $0x5588] sm:$0xff]
        %v3154 = vld [vmem:[%s329 + $0x5590] sm:$0xff]
        %v3155 = vld [vmem:[%s329 + $0x5598] sm:$0xff]
        %v3156 = vld [vmem:[%s329 + $0x55a0] sm:$0xff]
        %v3157 = vld [vmem:[%s329 + $0x55a8] sm:$0xff]
        %v3158 = vld [vmem:[%s329 + $0x55b0] sm:$0xff]
        %v3159 = vld [vmem:[%s329 + $0x55b8] sm:$0xff]
        %v3160 = vld [vmem:[%s329 + $0x55c0] sm:$0xff]
        %v3161 = vld [vmem:[%s329 + $0x55c8] sm:$0xff]
        %v3162 = vld [vmem:[%s329 + $0x55d0] sm:$0xff]
        %v3163 = vld [vmem:[%s329 + $0x55d8] sm:$0xff]
        %v3164 = vld [vmem:[%s329 + $0x55e0] sm:$0xff]
        %v3165 = vld [vmem:[%s329 + $0x55e8] sm:$0xff]
        %v3166 = vld [vmem:[%s329 + $0x55f0] sm:$0xff]
        %v3167 = vld [vmem:[%s329 + $0x55f8] sm:$0xff]
        %v3168 = vld [vmem:[%s329 + $0x5600] sm:$0xff]
        %v3169 = vld [vmem:[%s329 + $0x5608] sm:$0xff]
        %v3170 = vld [vmem:[%s329 + $0x5610] sm:$0xff]
        %v3171 = vld [vmem:[%s329 + $0x5618] sm:$0xff]
        %v3172 = vld [vmem:[%s329 + $0x5620] sm:$0xff]
        %v3173 = vld [vmem:[%s329 + $0x5628] sm:$0xff]
        %v3174 = vld [vmem:[%s329 + $0x5630] sm:$0xff]
        %v3175 = vld [vmem:[%s329 + $0x5638] sm:$0xff]
        %v3176 = vld [vmem:[%s329 + $0x5640] sm:$0xff]
        %v3177 = vld [vmem:[%s329 + $0x5648] sm:$0xff]
        %v3178 = vld [vmem:[%s329 + $0x5650] sm:$0xff]
        %v3179 = vld [vmem:[%s329 + $0x5658] sm:$0xff]
        %v3180 = vld [vmem:[%s329 + $0x5660] sm:$0xff]
        %v3181 = vld [vmem:[%s329 + $0x5668] sm:$0xff]
        %v3182 = vld [vmem:[%s329 + $0x5670] sm:$0xff]
        %v3183 = vld [vmem:[%s329 + $0x5678] sm:$0xff]
        %v3184 = vld [vmem:[%s329 + $0x5680] sm:$0xff]
        %v3185 = vld [vmem:[%s329 + $0x5688] sm:$0xff]
        %v3186 = vld [vmem:[%s329 + $0x5690] sm:$0xff]
        %v3187 = vld [vmem:[%s329 + $0x5698] sm:$0xff]
        %v3188 = vld [vmem:[%s329 + $0x56a0] sm:$0xff]
        %v3189 = vld [vmem:[%s329 + $0x56a8] sm:$0xff]
        %v3190 = vld [vmem:[%s329 + $0x56b0] sm:$0xff]
        %v3191 = vld [vmem:[%s329 + $0x56b8] sm:$0xff]
        %v3192 = vld [vmem:[%s329 + $0x56c0] sm:$0xff]
        %v3193 = vld [vmem:[%s329 + $0x56c8] sm:$0xff]
        %v3194 = vld [vmem:[%s329 + $0x56d0] sm:$0xff]
        %v3195 = vld [vmem:[%s329 + $0x56d8] sm:$0xff]
        %v3196 = vld [vmem:[%s329 + $0x56e0] sm:$0xff]
        %v3197 = vld [vmem:[%s329 + $0x56e8] sm:$0xff]
        %v3198 = vld [vmem:[%s329 + $0x56f0] sm:$0xff]
        %v3199 = vld [vmem:[%s329 + $0x56f8] sm:$0xff]
        %v3200 = vld [vmem:[%s329 + $0x5700] sm:$0xff]
        %v3201 = vld [vmem:[%s329 + $0x5708] sm:$0xff]
        %v3202 = vld [vmem:[%s329 + $0x5710] sm:$0xff]
        %v3203 = vld [vmem:[%s329 + $0x5718] sm:$0xff]
        %v3204 = vld [vmem:[%s329 + $0x5720] sm:$0xff]
        %v3205 = vld [vmem:[%s329 + $0x5728] sm:$0xff]
        %v3206 = vld [vmem:[%s329 + $0x5730] sm:$0xff]
        %v3207 = vld [vmem:[%s329 + $0x5738] sm:$0xff]
        %v3208 = vld [vmem:[%s329 + $0x5740] sm:$0xff]
        %v3209 = vld [vmem:[%s329 + $0x5748] sm:$0xff]
        %v3210 = vld [vmem:[%s329 + $0x5750] sm:$0xff]
        %v3211 = vld [vmem:[%s329 + $0x5758] sm:$0xff]
        %v3212 = vld [vmem:[%s329 + $0x5760] sm:$0xff]
        %v3213 = vld [vmem:[%s329 + $0x5768] sm:$0xff]
        %v3214 = vld [vmem:[%s329 + $0x5770] sm:$0xff]
        %v3215 = vld [vmem:[%s329 + $0x5778] sm:$0xff]
        %v3216 = vld [vmem:[%s329 + $0x5780] sm:$0xff]
        %v3217 = vld [vmem:[%s329 + $0x5788] sm:$0xff]
        %v3218 = vld [vmem:[%s329 + $0x5790] sm:$0xff]
        %v3219 = vld [vmem:[%s329 + $0x5798] sm:$0xff]
        %v3220 = vld [vmem:[%s329 + $0x57a0] sm:$0xff]
        %v3221 = vld [vmem:[%s329 + $0x57a8] sm:$0xff]
        %v3222 = vld [vmem:[%s329 + $0x57b0] sm:$0xff]
        %v3223 = vld [vmem:[%s329 + $0x57b8] sm:$0xff]
        %v3224 = vld [vmem:[%s329 + $0x57c0] sm:$0xff]
        %v3225 = vld [vmem:[%s329 + $0x57c8] sm:$0xff]
        %v3226 = vld [vmem:[%s329 + $0x57d0] sm:$0xff]
        %v3227 = vld [vmem:[%s329 + $0x57d8] sm:$0xff]
        %v3228 = vld [vmem:[%s329 + $0x57e0] sm:$0xff]
        %v3229 = vld [vmem:[%s329 + $0x57e8] sm:$0xff]
        %v3230 = vld [vmem:[%s329 + $0x57f0] sm:$0xff]
        %v3231 = vld [vmem:[%s329 + $0x57f8] sm:$0xff]
        %v3232 = vld [vmem:[%s329 + $0x5800] sm:$0xff]
        %v3233 = vld [vmem:[%s329 + $0x5808] sm:$0xff]
        %v3234 = vld [vmem:[%s329 + $0x5810] sm:$0xff]
        %v3235 = vld [vmem:[%s329 + $0x5818] sm:$0xff]
        %v3236 = vld [vmem:[%s329 + $0x5820] sm:$0xff]
        %v3237 = vld [vmem:[%s329 + $0x5828] sm:$0xff]
        %v3238 = vld [vmem:[%s329 + $0x5830] sm:$0xff]
        %v3239 = vld [vmem:[%s329 + $0x5838] sm:$0xff]
        %v3240 = vld [vmem:[%s329 + $0x5840] sm:$0xff]
        %v3241 = vld [vmem:[%s329 + $0x5848] sm:$0xff]
        %v3242 = vld [vmem:[%s329 + $0x5850] sm:$0xff]
        %v3243 = vld [vmem:[%s329 + $0x5858] sm:$0xff]
        %v3244 = vld [vmem:[%s329 + $0x5860] sm:$0xff]
        %v3245 = vld [vmem:[%s329 + $0x5868] sm:$0xff]
        %v3246 = vld [vmem:[%s329 + $0x5870] sm:$0xff]
        %v3247 = vld [vmem:[%s329 + $0x5878] sm:$0xff]
        %v3248 = vld [vmem:[%s329 + $0x5880] sm:$0xff]
        %v3249 = vld [vmem:[%s329 + $0x5888] sm:$0xff]
        %v3250 = vld [vmem:[%s329 + $0x5890] sm:$0xff]
        %v3251 = vld [vmem:[%s329 + $0x5898] sm:$0xff]
        %v3252 = vld [vmem:[%s329 + $0x58a0] sm:$0xff]
        %v3253 = vld [vmem:[%s329 + $0x58a8] sm:$0xff]
        %v3254 = vld [vmem:[%s329 + $0x58b0] sm:$0xff]
        %v3255 = vld [vmem:[%s329 + $0x58b8] sm:$0xff]
        %v3256 = vld [vmem:[%s329 + $0x58c0] sm:$0xff]
        %v3257 = vld [vmem:[%s329 + $0x58c8] sm:$0xff]
        %v3258 = vld [vmem:[%s329 + $0x58d0] sm:$0xff]
        %v3259 = vld [vmem:[%s329 + $0x58d8] sm:$0xff]
        %v3260 = vld [vmem:[%s329 + $0x58e0] sm:$0xff]
        %v3261 = vld [vmem:[%s329 + $0x58e8] sm:$0xff]
        %v3262 = vld [vmem:[%s329 + $0x58f0] sm:$0xff]
        %v3263 = vld [vmem:[%s329 + $0x58f8] sm:$0xff]
        %v3264 = vld [vmem:[%s329 + $0x5900] sm:$0xff]
        %v3265 = vld [vmem:[%s329 + $0x5908] sm:$0xff]
        %v3266 = vld [vmem:[%s329 + $0x5910] sm:$0xff]
        %v3267 = vld [vmem:[%s329 + $0x5918] sm:$0xff]
        %v3268 = vld [vmem:[%s329 + $0x5920] sm:$0xff]
        %v3269 = vld [vmem:[%s329 + $0x5928] sm:$0xff]
        %v3270 = vld [vmem:[%s329 + $0x5930] sm:$0xff]
        %v3271 = vld [vmem:[%s329 + $0x5938] sm:$0xff]
        %v3272 = vld [vmem:[%s329 + $0x5940] sm:$0xff]
        %v3273 = vld [vmem:[%s329 + $0x5948] sm:$0xff]
        %v3274 = vld [vmem:[%s329 + $0x5950] sm:$0xff]
        %v3275 = vld [vmem:[%s329 + $0x5958] sm:$0xff]
        %v3276 = vld [vmem:[%s329 + $0x5960] sm:$0xff]
        %v3277 = vld [vmem:[%s329 + $0x5968] sm:$0xff]
        %v3278 = vld [vmem:[%s329 + $0x5970] sm:$0xff]
        %v3279 = vld [vmem:[%s329 + $0x5978] sm:$0xff]
        %v3280 = vld [vmem:[%s329 + $0x5980] sm:$0xff]
        %v3281 = vld [vmem:[%s329 + $0x5988] sm:$0xff]
        %v3282 = vld [vmem:[%s329 + $0x5990] sm:$0xff]
        %v3283 = vld [vmem:[%s329 + $0x5998] sm:$0xff]
        %v3284 = vld [vmem:[%s329 + $0x59a0] sm:$0xff]
        %v3285 = vld [vmem:[%s329 + $0x59a8] sm:$0xff]
        %v3286 = vld [vmem:[%s329 + $0x59b0] sm:$0xff]
        %v3287 = vld [vmem:[%s329 + $0x59b8] sm:$0xff]
        %v3288 = vld [vmem:[%s329 + $0x59c0] sm:$0xff]
        %v3289 = vld [vmem:[%s329 + $0x59c8] sm:$0xff]
        %v3290 = vld [vmem:[%s329 + $0x59d0] sm:$0xff]
        %v3291 = vld [vmem:[%s329 + $0x59d8] sm:$0xff]
        %v3292 = vld [vmem:[%s329 + $0x59e0] sm:$0xff]
        %v3293 = vld [vmem:[%s329 + $0x59e8] sm:$0xff]
        %v3294 = vld [vmem:[%s329 + $0x59f0] sm:$0xff]
        %v3295 = vld [vmem:[%s329 + $0x59f8] sm:$0xff]
        %v3296 = vld [vmem:[%s329 + $0x5a00] sm:$0xff]
        %v3297 = vld [vmem:[%s329 + $0x5a08] sm:$0xff]
        %v3298 = vld [vmem:[%s329 + $0x5a10] sm:$0xff]
        %v3299 = vld [vmem:[%s329 + $0x5a18] sm:$0xff]
        %v3300 = vld [vmem:[%s329 + $0x5a20] sm:$0xff]
        %v3301 = vld [vmem:[%s329 + $0x5a28] sm:$0xff]
        %v3302 = vld [vmem:[%s329 + $0x5a30] sm:$0xff]
        %v3303 = vld [vmem:[%s329 + $0x5a38] sm:$0xff]
        %v3304 = vld [vmem:[%s329 + $0x5a40] sm:$0xff]
        %v3305 = vld [vmem:[%s329 + $0x5a48] sm:$0xff]
        %v3306 = vld [vmem:[%s329 + $0x5a50] sm:$0xff]
        %v3307 = vld [vmem:[%s329 + $0x5a58] sm:$0xff]
        %v3308 = vld [vmem:[%s329 + $0x5a60] sm:$0xff]
        %v3309 = vld [vmem:[%s329 + $0x5a68] sm:$0xff]
        %v3310 = vld [vmem:[%s329 + $0x5a70] sm:$0xff]
        %v3311 = vld [vmem:[%s329 + $0x5a78] sm:$0xff]
        %v3312 = vld [vmem:[%s329 + $0x5a80] sm:$0xff]
        %v3313 = vld [vmem:[%s329 + $0x5a88] sm:$0xff]
        %v3314 = vld [vmem:[%s329 + $0x5a90] sm:$0xff]
        %v3315 = vld [vmem:[%s329 + $0x5a98] sm:$0xff]
        %v3316 = vld [vmem:[%s329 + $0x5aa0] sm:$0xff]
        %v3317 = vld [vmem:[%s329 + $0x5aa8] sm:$0xff]
        %v3318 = vld [vmem:[%s329 + $0x5ab0] sm:$0xff]
        %v3319 = vld [vmem:[%s329 + $0x5ab8] sm:$0xff]
        %v3320 = vld [vmem:[%s329 + $0x5ac0] sm:$0xff]
        %v3321 = vld [vmem:[%s329 + $0x5ac8] sm:$0xff]
        %v3322 = vld [vmem:[%s329 + $0x5ad0] sm:$0xff]
        %v3323 = vld [vmem:[%s329 + $0x5ad8] sm:$0xff]
        %v3324 = vld [vmem:[%s329 + $0x5ae0] sm:$0xff]
        %v3325 = vld [vmem:[%s329 + $0x5ae8] sm:$0xff]
        %v3326 = vld [vmem:[%s329 + $0x5af0] sm:$0xff]
        %v3327 = vld [vmem:[%s329 + $0x5af8] sm:$0xff]
        %v3328 = vld [vmem:[%s329 + $0x5b00] sm:$0xff]
        %v3329 = vld [vmem:[%s329 + $0x5b08] sm:$0xff]
        %v3330 = vld [vmem:[%s329 + $0x5b10] sm:$0xff]
        %v3331 = vld [vmem:[%s329 + $0x5b18] sm:$0xff]
        %v3332 = vld [vmem:[%s329 + $0x5b20] sm:$0xff]
        %v3333 = vld [vmem:[%s329 + $0x5b28] sm:$0xff]
        %v3334 = vld [vmem:[%s329 + $0x5b30] sm:$0xff]
        %v3335 = vld [vmem:[%s329 + $0x5b38] sm:$0xff]
        %v3336 = vld [vmem:[%s329 + $0x5b40] sm:$0xff]
        %v3337 = vld [vmem:[%s329 + $0x5b48] sm:$0xff]
        %v3338 = vld [vmem:[%s329 + $0x5b50] sm:$0xff]
        %v3339 = vld [vmem:[%s329 + $0x5b58] sm:$0xff]
        %v3340 = vld [vmem:[%s329 + $0x5b60] sm:$0xff]
        %v3341 = vld [vmem:[%s329 + $0x5b68] sm:$0xff]
        %v3342 = vld [vmem:[%s329 + $0x5b70] sm:$0xff]
        %v3343 = vld [vmem:[%s329 + $0x5b78] sm:$0xff]
        %v3344 = vld [vmem:[%s329 + $0x5b80] sm:$0xff]
        %v3345 = vld [vmem:[%s329 + $0x5b88] sm:$0xff]
        %v3346 = vld [vmem:[%s329 + $0x5b90] sm:$0xff]
        %v3347 = vld [vmem:[%s329 + $0x5b98] sm:$0xff]
        %v3348 = vld [vmem:[%s329 + $0x5ba0] sm:$0xff]
        %v3349 = vld [vmem:[%s329 + $0x5ba8] sm:$0xff]
        %v3350 = vld [vmem:[%s329 + $0x5bb0] sm:$0xff]
        %v3351 = vld [vmem:[%s329 + $0x5bb8] sm:$0xff]
        %v3352 = vld [vmem:[%s329 + $0x5bc0] sm:$0xff]
        %v3353 = vld [vmem:[%s329 + $0x5bc8] sm:$0xff]
        %v3354 = vld [vmem:[%s329 + $0x5bd0] sm:$0xff]
        %v3355 = vld [vmem:[%s329 + $0x5bd8] sm:$0xff]
        %v3356 = vld [vmem:[%s329 + $0x5be0] sm:$0xff]
        %v3357 = vld [vmem:[%s329 + $0x5be8] sm:$0xff]
        %v3358 = vld [vmem:[%s329 + $0x5bf0] sm:$0xff]
        %v3359 = vld [vmem:[%s329 + $0x5bf8] sm:$0xff]
        %v3360 = vld [vmem:[%s329 + $0x5c00] sm:$0xff]
        %v3361 = vld [vmem:[%s329 + $0x5c08] sm:$0xff]
        %v3362 = vld [vmem:[%s329 + $0x5c10] sm:$0xff]
        %v3363 = vld [vmem:[%s329 + $0x5c18] sm:$0xff]
        %v3364 = vld [vmem:[%s329 + $0x5c20] sm:$0xff]
        %v3365 = vld [vmem:[%s329 + $0x5c28] sm:$0xff]
        %v3366 = vld [vmem:[%s329 + $0x5c30] sm:$0xff]
        %v3367 = vld [vmem:[%s329 + $0x5c38] sm:$0xff]
        %v3368 = vld [vmem:[%s329 + $0x5c40] sm:$0xff]
        %v3369 = vld [vmem:[%s329 + $0x5c48] sm:$0xff]
        %v3370 = vld [vmem:[%s329 + $0x5c50] sm:$0xff]
        %v3371 = vld [vmem:[%s329 + $0x5c58] sm:$0xff]
        %v3372 = vld [vmem:[%s329 + $0x5c60] sm:$0xff]
        %v3373 = vld [vmem:[%s329 + $0x5c68] sm:$0xff]
        %v3374 = vld [vmem:[%s329 + $0x5c70] sm:$0xff]
        %v3375 = vld [vmem:[%s329 + $0x5c78] sm:$0xff]
        %v3376 = vld [vmem:[%s329 + $0x5c80] sm:$0xff]
        %v3377 = vld [vmem:[%s329 + $0x5c88] sm:$0xff]
        %v3378 = vld [vmem:[%s329 + $0x5c90] sm:$0xff]
        %v3379 = vld [vmem:[%s329 + $0x5c98] sm:$0xff]
        %v3380 = vld [vmem:[%s329 + $0x5ca0] sm:$0xff]
        %v3381 = vld [vmem:[%s329 + $0x5ca8] sm:$0xff]
        %v3382 = vld [vmem:[%s329 + $0x5cb0] sm:$0xff]
        %v3383 = vld [vmem:[%s329 + $0x5cb8] sm:$0xff]
        %v3384 = vld [vmem:[%s329 + $0x5cc0] sm:$0xff]
        %v3385 = vld [vmem:[%s329 + $0x5cc8] sm:$0xff]
        %v3386 = vld [vmem:[%s329 + $0x5cd0] sm:$0xff]
        %v3387 = vld [vmem:[%s329 + $0x5cd8] sm:$0xff]
        %v3388 = vld [vmem:[%s329 + $0x5ce0] sm:$0xff]
        %v3389 = vld [vmem:[%s329 + $0x5ce8] sm:$0xff]
        %v3390 = vld [vmem:[%s329 + $0x5cf0] sm:$0xff]
        %v3391 = vld [vmem:[%s329 + $0x5cf8] sm:$0xff]
        %v3392 = vld [vmem:[%s329 + $0x5d00] sm:$0xff]
        %v3393 = vld [vmem:[%s329 + $0x5d08] sm:$0xff]
        %v3394 = vld [vmem:[%s329 + $0x5d10] sm:$0xff]
        %v3395 = vld [vmem:[%s329 + $0x5d18] sm:$0xff]
        %v3396 = vld [vmem:[%s329 + $0x5d20] sm:$0xff]
        %v3397 = vld [vmem:[%s329 + $0x5d28] sm:$0xff]
        %v3398 = vld [vmem:[%s329 + $0x5d30] sm:$0xff]
        %v3399 = vld [vmem:[%s329 + $0x5d38] sm:$0xff]
        %v3400 = vld [vmem:[%s329 + $0x5d40] sm:$0xff]
        %v3401 = vld [vmem:[%s329 + $0x5d48] sm:$0xff]
        %v3402 = vld [vmem:[%s329 + $0x5d50] sm:$0xff]
        %v3403 = vld [vmem:[%s329 + $0x5d58] sm:$0xff]
        %v3404 = vld [vmem:[%s329 + $0x5d60] sm:$0xff]
        %v3405 = vld [vmem:[%s329 + $0x5d68] sm:$0xff]
        %v3406 = vld [vmem:[%s329 + $0x5d70] sm:$0xff]
        %v3407 = vld [vmem:[%s329 + $0x5d78] sm:$0xff]
        %v3408 = vld [vmem:[%s329 + $0x5d80] sm:$0xff]
        %v3409 = vld [vmem:[%s329 + $0x5d88] sm:$0xff]
        %v3410 = vld [vmem:[%s329 + $0x5d90] sm:$0xff]
        %v3411 = vld [vmem:[%s329 + $0x5d98] sm:$0xff]
        %v3412 = vld [vmem:[%s329 + $0x5da0] sm:$0xff]
        %v3413 = vld [vmem:[%s329 + $0x5da8] sm:$0xff]
        %v3414 = vld [vmem:[%s329 + $0x5db0] sm:$0xff]
        %v3415 = vld [vmem:[%s329 + $0x5db8] sm:$0xff]
        %v3416 = vld [vmem:[%s329 + $0x5dc0] sm:$0xff]
        %v3417 = vld [vmem:[%s329 + $0x5dc8] sm:$0xff]
        %v3418 = vld [vmem:[%s329 + $0x5dd0] sm:$0xff]
        %v3419 = vld [vmem:[%s329 + $0x5dd8] sm:$0xff]
        %v3420 = vld [vmem:[%s329 + $0x5de0] sm:$0xff]
        %v3421 = vld [vmem:[%s329 + $0x5de8] sm:$0xff]
        %v3422 = vld [vmem:[%s329 + $0x5df0] sm:$0xff]
        %v3423 = vld [vmem:[%s329 + $0x5df8] sm:$0xff]
        %v3424 = vld [vmem:[%s329 + $0x5e00] sm:$0xff]
        %v3425 = vld [vmem:[%s329 + $0x5e08] sm:$0xff]
        %v3426 = vld [vmem:[%s329 + $0x5e10] sm:$0xff]
        %v3427 = vld [vmem:[%s329 + $0x5e18] sm:$0xff]
        %v3428 = vld [vmem:[%s329 + $0x5e20] sm:$0xff]
        %v3429 = vld [vmem:[%s329 + $0x5e28] sm:$0xff]
        %v3430 = vld [vmem:[%s329 + $0x5e30] sm:$0xff]
        %v3431 = vld [vmem:[%s329 + $0x5e38] sm:$0xff]
        %v3432 = vld [vmem:[%s329 + $0x5e40] sm:$0xff]
        %v3433 = vld [vmem:[%s329 + $0x5e48] sm:$0xff]
        %v3434 = vld [vmem:[%s329 + $0x5e50] sm:$0xff]
        %v3435 = vld [vmem:[%s329 + $0x5e58] sm:$0xff]
        %v3436 = vld [vmem:[%s329 + $0x5e60] sm:$0xff]
        %v3437 = vld [vmem:[%s329 + $0x5e68] sm:$0xff]
        %v3438 = vld [vmem:[%s329 + $0x5e70] sm:$0xff]
        %v3439 = vld [vmem:[%s329 + $0x5e78] sm:$0xff]
        %v3440 = vld [vmem:[%s329 + $0x5e80] sm:$0xff]
        %v3441 = vld [vmem:[%s329 + $0x5e88] sm:$0xff]
        %v3442 = vld [vmem:[%s329 + $0x5e90] sm:$0xff]
        %v3443 = vld [vmem:[%s329 + $0x5e98] sm:$0xff]
        %v3444 = vld [vmem:[%s329 + $0x5ea0] sm:$0xff]
        %v3445 = vld [vmem:[%s329 + $0x5ea8] sm:$0xff]
        %v3446 = vld [vmem:[%s329 + $0x5eb0] sm:$0xff]
        %v3447 = vld [vmem:[%s329 + $0x5eb8] sm:$0xff]
        %v3448 = vld [vmem:[%s329 + $0x5ec0] sm:$0xff]
        %v3449 = vld [vmem:[%s329 + $0x5ec8] sm:$0xff]
        %v3450 = vld [vmem:[%s329 + $0x5ed0] sm:$0xff]
        %v3451 = vld [vmem:[%s329 + $0x5ed8] sm:$0xff]
        %v3452 = vld [vmem:[%s329 + $0x5ee0] sm:$0xff]
        %v3453 = vld [vmem:[%s329 + $0x5ee8] sm:$0xff]
        %v3454 = vld [vmem:[%s329 + $0x5ef0] sm:$0xff]
        %v3455 = vld [vmem:[%s329 + $0x5ef8] sm:$0xff]
        %v3456 = vld [vmem:[%s329 + $0x5f00] sm:$0xff]
        %v3457 = vld [vmem:[%s329 + $0x5f08] sm:$0xff]
        %v3458 = vld [vmem:[%s329 + $0x5f10] sm:$0xff]
        %v3459 = vld [vmem:[%s329 + $0x5f18] sm:$0xff]
        %v3460 = vld [vmem:[%s329 + $0x5f20] sm:$0xff]
        %v3461 = vld [vmem:[%s329 + $0x5f28] sm:$0xff]
        %v3462 = vld [vmem:[%s329 + $0x5f30] sm:$0xff]
        %v3463 = vld [vmem:[%s329 + $0x5f38] sm:$0xff]
        %v3464 = vld [vmem:[%s329 + $0x5f40] sm:$0xff]
        %v3465 = vld [vmem:[%s329 + $0x5f48] sm:$0xff]
        %v3466 = vld [vmem:[%s329 + $0x5f50] sm:$0xff]
        %v3467 = vld [vmem:[%s329 + $0x5f58] sm:$0xff]
        %v3468 = vld [vmem:[%s329 + $0x5f60] sm:$0xff]
        %v3469 = vld [vmem:[%s329 + $0x5f68] sm:$0xff]
        %v3470 = vld [vmem:[%s329 + $0x5f70] sm:$0xff]
        %v3471 = vld [vmem:[%s329 + $0x5f78] sm:$0xff]
        %v3472 = vld [vmem:[%s329 + $0x5f80] sm:$0xff]
        %v3473 = vld [vmem:[%s329 + $0x5f88] sm:$0xff]
        %v3474 = vld [vmem:[%s329 + $0x5f90] sm:$0xff]
        %v3475 = vld [vmem:[%s329 + $0x5f98] sm:$0xff]
        %v3476 = vld [vmem:[%s329 + $0x5fa0] sm:$0xff]
        %v3477 = vld [vmem:[%s329 + $0x5fa8] sm:$0xff]
        %v3478 = vld [vmem:[%s329 + $0x5fb0] sm:$0xff]
        %v3479 = vld [vmem:[%s329 + $0x5fb8] sm:$0xff]
        %v3480 = vld [vmem:[%s329 + $0x5fc0] sm:$0xff]
        %v3481 = vld [vmem:[%s329 + $0x5fc8] sm:$0xff]
        %v3482 = vld [vmem:[%s329 + $0x5fd0] sm:$0xff]
        %v3483 = vld [vmem:[%s329 + $0x5fd8] sm:$0xff]
        %v3484 = vld [vmem:[%s329 + $0x5fe0] sm:$0xff]
        %v3485 = vld [vmem:[%s329 + $0x5fe8] sm:$0xff]
        %v3486 = vld [vmem:[%s329 + $0x5ff0] sm:$0xff]
        %v3487 = vld [vmem:[%s329 + $0x5ff8] sm:$0xff]
        %v3488 = vld [vmem:[%s329 + $0x6000] sm:$0xff]
        %v3489 = vld [vmem:[%s329 + $0x6008] sm:$0xff]
        %v3490 = vld [vmem:[%s329 + $0x6010] sm:$0xff]
        %v3491 = vld [vmem:[%s329 + $0x6018] sm:$0xff]
        %v3492 = vld [vmem:[%s329 + $0x6020] sm:$0xff]
        %v3493 = vld [vmem:[%s329 + $0x6028] sm:$0xff]
        %v3494 = vld [vmem:[%s329 + $0x6030] sm:$0xff]
        %v3495 = vld [vmem:[%s329 + $0x6038] sm:$0xff]
        %v3496 = vld [vmem:[%s329 + $0x6040] sm:$0xff]
        %v3497 = vld [vmem:[%s329 + $0x6048] sm:$0xff]
        %v3498 = vld [vmem:[%s329 + $0x6050] sm:$0xff]
        %v3499 = vld [vmem:[%s329 + $0x6058] sm:$0xff]
        %v3500 = vld [vmem:[%s329 + $0x6060] sm:$0xff]
        %v3501 = vld [vmem:[%s329 + $0x6068] sm:$0xff]
        %v3502 = vld [vmem:[%s329 + $0x6070] sm:$0xff]
        %v3503 = vld [vmem:[%s329 + $0x6078] sm:$0xff]
        %v3504 = vld [vmem:[%s329 + $0x6080] sm:$0xff]
        %v3505 = vld [vmem:[%s329 + $0x6088] sm:$0xff]
        %v3506 = vld [vmem:[%s329 + $0x6090] sm:$0xff]
        %v3507 = vld [vmem:[%s329 + $0x6098] sm:$0xff]
        %v3508 = vld [vmem:[%s329 + $0x60a0] sm:$0xff]
        %v3509 = vld [vmem:[%s329 + $0x60a8] sm:$0xff]
        %v3510 = vld [vmem:[%s329 + $0x60b0] sm:$0xff]
        %v3511 = vld [vmem:[%s329 + $0x60b8] sm:$0xff]
        %v3512 = vld [vmem:[%s329 + $0x60c0] sm:$0xff]
        %v3513 = vld [vmem:[%s329 + $0x60c8] sm:$0xff]
        %v3514 = vld [vmem:[%s329 + $0x60d0] sm:$0xff]
        %v3515 = vld [vmem:[%s329 + $0x60d8] sm:$0xff]
        %v3516 = vld [vmem:[%s329 + $0x60e0] sm:$0xff]
        %v3517 = vld [vmem:[%s329 + $0x60e8] sm:$0xff]
        %v3518 = vld [vmem:[%s329 + $0x60f0] sm:$0xff]
        %v3519 = vld [vmem:[%s329 + $0x60f8] sm:$0xff]
        %v3520 = vld [vmem:[%s329 + $0x6100] sm:$0xff]
        %v3521 = vld [vmem:[%s329 + $0x6108] sm:$0xff]
        %v3522 = vld [vmem:[%s329 + $0x6110] sm:$0xff]
        %v3523 = vld [vmem:[%s329 + $0x6118] sm:$0xff]
        %v3524 = vld [vmem:[%s329 + $0x6120] sm:$0xff]
        %v3525 = vld [vmem:[%s329 + $0x6128] sm:$0xff]
        %v3526 = vld [vmem:[%s329 + $0x6130] sm:$0xff]
        %v3527 = vld [vmem:[%s329 + $0x6138] sm:$0xff]
        %v3528 = vld [vmem:[%s329 + $0x6140] sm:$0xff]
        %v3529 = vld [vmem:[%s329 + $0x6148] sm:$0xff]
        %v3530 = vld [vmem:[%s329 + $0x6150] sm:$0xff]
        %v3531 = vld [vmem:[%s329 + $0x6158] sm:$0xff]
        %v3532 = vld [vmem:[%s329 + $0x6160] sm:$0xff]
        %v3533 = vld [vmem:[%s329 + $0x6168] sm:$0xff]
        %v3534 = vld [vmem:[%s329 + $0x6170] sm:$0xff]
        %v3535 = vld [vmem:[%s329 + $0x6178] sm:$0xff]
        %v3536 = vld [vmem:[%s329 + $0x6180] sm:$0xff]
        %v3537 = vld [vmem:[%s329 + $0x6188] sm:$0xff]
        %v3538 = vld [vmem:[%s329 + $0x6190] sm:$0xff]
        %v3539 = vld [vmem:[%s329 + $0x6198] sm:$0xff]
        %v3540 = vld [vmem:[%s329 + $0x61a0] sm:$0xff]
        %v3541 = vld [vmem:[%s329 + $0x61a8] sm:$0xff]
        %v3542 = vld [vmem:[%s329 + $0x61b0] sm:$0xff]
        %v3543 = vld [vmem:[%s329 + $0x61b8] sm:$0xff]
        %v3544 = vld [vmem:[%s329 + $0x61c0] sm:$0xff]
        %v3545 = vld [vmem:[%s329 + $0x61c8] sm:$0xff]
        %v3546 = vld [vmem:[%s329 + $0x61d0] sm:$0xff]
        %v3547 = vld [vmem:[%s329 + $0x61d8] sm:$0xff]
        %v3548 = vld [vmem:[%s329 + $0x61e0] sm:$0xff]
        %v3549 = vld [vmem:[%s329 + $0x61e8] sm:$0xff]
        %v3550 = vld [vmem:[%s329 + $0x61f0] sm:$0xff]
        %v3551 = vld [vmem:[%s329 + $0x61f8] sm:$0xff]
        %v3552 = vld [vmem:[%s329 + $0x6200] sm:$0xff]
        %v3553 = vld [vmem:[%s329 + $0x6208] sm:$0xff]
        %v3554 = vld [vmem:[%s329 + $0x6210] sm:$0xff]
        %v3555 = vld [vmem:[%s329 + $0x6218] sm:$0xff]
        %v3556 = vld [vmem:[%s329 + $0x6220] sm:$0xff]
        %v3557 = vld [vmem:[%s329 + $0x6228] sm:$0xff]
        %v3558 = vld [vmem:[%s329 + $0x6230] sm:$0xff]
        %v3559 = vld [vmem:[%s329 + $0x6238] sm:$0xff]
        %v3560 = vld [vmem:[%s329 + $0x6240] sm:$0xff]
        %v3561 = vld [vmem:[%s329 + $0x6248] sm:$0xff]
        %v3562 = vld [vmem:[%s329 + $0x6250] sm:$0xff]
        %v3563 = vld [vmem:[%s329 + $0x6258] sm:$0xff]
        %v3564 = vld [vmem:[%s329 + $0x6260] sm:$0xff]
        %v3565 = vld [vmem:[%s329 + $0x6268] sm:$0xff]
        %v3566 = vld [vmem:[%s329 + $0x6270] sm:$0xff]
        %v3567 = vld [vmem:[%s329 + $0x6278] sm:$0xff]
        %v3568 = vld [vmem:[%s329 + $0x6280] sm:$0xff]
        %v3569 = vld [vmem:[%s329 + $0x6288] sm:$0xff]
        %v3570 = vld [vmem:[%s329 + $0x6290] sm:$0xff]
        %v3571 = vld [vmem:[%s329 + $0x6298] sm:$0xff]
        %v3572 = vld [vmem:[%s329 + $0x62a0] sm:$0xff]
        %v3573 = vld [vmem:[%s329 + $0x62a8] sm:$0xff]
        %v3574 = vld [vmem:[%s329 + $0x62b0] sm:$0xff]
        %v3575 = vld [vmem:[%s329 + $0x62b8] sm:$0xff]
        %v3576 = vld [vmem:[%s329 + $0x62c0] sm:$0xff]
        %v3577 = vld [vmem:[%s329 + $0x62c8] sm:$0xff]
        %v3578 = vld [vmem:[%s329 + $0x62d0] sm:$0xff]
        %v3579 = vld [vmem:[%s329 + $0x62d8] sm:$0xff]
        %v3580 = vld [vmem:[%s329 + $0x62e0] sm:$0xff]
        %v3581 = vld [vmem:[%s329 + $0x62e8] sm:$0xff]
        %v3582 = vld [vmem:[%s329 + $0x62f0] sm:$0xff]
        %v3583 = vld [vmem:[%s329 + $0x62f8] sm:$0xff]
        %v3584 = vld [vmem:[%s329 + $0x6300] sm:$0xff]
        %v3585 = vld [vmem:[%s329 + $0x6308] sm:$0xff]
        %v3586 = vld [vmem:[%s329 + $0x6310] sm:$0xff]
        %v3587 = vld [vmem:[%s329 + $0x6318] sm:$0xff]
        %v3588 = vld [vmem:[%s329 + $0x6320] sm:$0xff]
        %v3589 = vld [vmem:[%s329 + $0x6328] sm:$0xff]
        %v3590 = vld [vmem:[%s329 + $0x6330] sm:$0xff]
        %v3591 = vld [vmem:[%s329 + $0x6338] sm:$0xff]
        %v3592 = vld [vmem:[%s329 + $0x6340] sm:$0xff]
        %v3593 = vld [vmem:[%s329 + $0x6348] sm:$0xff]
        %v3594 = vld [vmem:[%s329 + $0x6350] sm:$0xff]
        %v3595 = vld [vmem:[%s329 + $0x6358] sm:$0xff]
        %v3596 = vld [vmem:[%s329 + $0x6360] sm:$0xff]
        %v3597 = vld [vmem:[%s329 + $0x6368] sm:$0xff]
        %v3598 = vld [vmem:[%s329 + $0x6370] sm:$0xff]
        %v3599 = vld [vmem:[%s329 + $0x6378] sm:$0xff]
        %v3600 = vld [vmem:[%s329 + $0x6380] sm:$0xff]
        %v3601 = vld [vmem:[%s329 + $0x6388] sm:$0xff]
        %v3602 = vld [vmem:[%s329 + $0x6390] sm:$0xff]
        %v3603 = vld [vmem:[%s329 + $0x6398] sm:$0xff]
        %v3604 = vld [vmem:[%s329 + $0x63a0] sm:$0xff]
        %v3605 = vld [vmem:[%s329 + $0x63a8] sm:$0xff]
        %v3606 = vld [vmem:[%s329 + $0x63b0] sm:$0xff]
        %v3607 = vld [vmem:[%s329 + $0x63b8] sm:$0xff]
        %v3608 = vld [vmem:[%s329 + $0x63c0] sm:$0xff]
        %v3609 = vld [vmem:[%s329 + $0x63c8] sm:$0xff]
        %v3610 = vld [vmem:[%s329 + $0x63d0] sm:$0xff]
        %v3611 = vld [vmem:[%s329 + $0x63d8] sm:$0xff]
        %v3612 = vld [vmem:[%s329 + $0x63e0] sm:$0xff]
        %v3613 = vld [vmem:[%s329 + $0x63e8] sm:$0xff]
        %v3614 = vld [vmem:[%s329 + $0x63f0] sm:$0xff]
        %v3615 = vld [vmem:[%s329 + $0x63f8] sm:$0xff]
        %v3616 = vld [vmem:[%s329 + $0x6400] sm:$0xff]
        %v3617 = vld [vmem:[%s329 + $0x6408] sm:$0xff]
        %v3618 = vld [vmem:[%s329 + $0x6410] sm:$0xff]
        %v3619 = vld [vmem:[%s329 + $0x6418] sm:$0xff]
        %v3620 = vld [vmem:[%s329 + $0x6420] sm:$0xff]
        %v3621 = vld [vmem:[%s329 + $0x6428] sm:$0xff]
        %v3622 = vld [vmem:[%s329 + $0x6430] sm:$0xff]
        %v3623 = vld [vmem:[%s329 + $0x6438] sm:$0xff]
        %v3624 = vld [vmem:[%s329 + $0x6440] sm:$0xff]
        %v3625 = vld [vmem:[%s329 + $0x6448] sm:$0xff]
        %v3626 = vld [vmem:[%s329 + $0x6450] sm:$0xff]
        %v3627 = vld [vmem:[%s329 + $0x6458] sm:$0xff]
        %v3628 = vld [vmem:[%s329 + $0x6460] sm:$0xff]
        %v3629 = vld [vmem:[%s329 + $0x6468] sm:$0xff]
        %v3630 = vld [vmem:[%s329 + $0x6470] sm:$0xff]
        %v3631 = vld [vmem:[%s329 + $0x6478] sm:$0xff]
        %v3632 = vld [vmem:[%s329 + $0x6480] sm:$0xff]
        %v3633 = vld [vmem:[%s329 + $0x6488] sm:$0xff]
        %v3634 = vld [vmem:[%s329 + $0x6490] sm:$0xff]
        %v3635 = vld [vmem:[%s329 + $0x6498] sm:$0xff]
        %v3636 = vld [vmem:[%s329 + $0x64a0] sm:$0xff]
        %v3637 = vld [vmem:[%s329 + $0x64a8] sm:$0xff]
        %v3638 = vld [vmem:[%s329 + $0x64b0] sm:$0xff]
        %v3639 = vld [vmem:[%s329 + $0x64b8] sm:$0xff]
        %v3640 = vld [vmem:[%s329 + $0x64c0] sm:$0xff]
        %v3641 = vld [vmem:[%s329 + $0x64c8] sm:$0xff]
        %v3642 = vld [vmem:[%s329 + $0x64d0] sm:$0xff]
        %v3643 = vld [vmem:[%s329 + $0x64d8] sm:$0xff]
        %v3644 = vld [vmem:[%s329 + $0x64e0] sm:$0xff]
        %v3645 = vld [vmem:[%s329 + $0x64e8] sm:$0xff]
        %v3646 = vld [vmem:[%s329 + $0x64f0] sm:$0xff]
        %v3647 = vld [vmem:[%s329 + $0x64f8] sm:$0xff]
        %v3648 = vld [vmem:[%s329 + $0x6500] sm:$0xff]
        %v3649 = vld [vmem:[%s329 + $0x6508] sm:$0xff]
        %v3650 = vld [vmem:[%s329 + $0x6510] sm:$0xff]
        %v3651 = vld [vmem:[%s329 + $0x6518] sm:$0xff]
        %v3652 = vld [vmem:[%s329 + $0x6520] sm:$0xff]
        %v3653 = vld [vmem:[%s329 + $0x6528] sm:$0xff]
        %v3654 = vld [vmem:[%s329 + $0x6530] sm:$0xff]
        %v3655 = vld [vmem:[%s329 + $0x6538] sm:$0xff]
        %v3656 = vld [vmem:[%s329 + $0x6540] sm:$0xff]
        %v3657 = vld [vmem:[%s329 + $0x6548] sm:$0xff]
        %v3658 = vld [vmem:[%s329 + $0x6550] sm:$0xff]
        %v3659 = vld [vmem:[%s329 + $0x6558] sm:$0xff]
        %v3660 = vld [vmem:[%s329 + $0x6560] sm:$0xff]
        %v3661 = vld [vmem:[%s329 + $0x6568] sm:$0xff]
        %v3662 = vld [vmem:[%s329 + $0x6570] sm:$0xff]
        %v3663 = vld [vmem:[%s329 + $0x6578] sm:$0xff]
        %v3664 = vld [vmem:[%s329 + $0x6580] sm:$0xff]
        %v3665 = vld [vmem:[%s329 + $0x6588] sm:$0xff]
        %v3666 = vld [vmem:[%s329 + $0x6590] sm:$0xff]
        %v3667 = vld [vmem:[%s329 + $0x6598] sm:$0xff]
        %v3668 = vld [vmem:[%s329 + $0x65a0] sm:$0xff]
        %v3669 = vld [vmem:[%s329 + $0x65a8] sm:$0xff]
        %v3670 = vld [vmem:[%s329 + $0x65b0] sm:$0xff]
        %v3671 = vld [vmem:[%s329 + $0x65b8] sm:$0xff]
        %v3672 = vld [vmem:[%s329 + $0x65c0] sm:$0xff]
        %v3673 = vld [vmem:[%s329 + $0x65c8] sm:$0xff]
        %v3674 = vld [vmem:[%s329 + $0x65d0] sm:$0xff]
        %v3675 = vld [vmem:[%s329 + $0x65d8] sm:$0xff]
        %v3676 = vld [vmem:[%s329 + $0x65e0] sm:$0xff]
        %v3677 = vld [vmem:[%s329 + $0x65e8] sm:$0xff]
        %v3678 = vld [vmem:[%s329 + $0x65f0] sm:$0xff]
        %v3679 = vld [vmem:[%s329 + $0x65f8] sm:$0xff]
        %v3680 = vld [vmem:[%s329 + $0x6600] sm:$0xff]
        %v3681 = vld [vmem:[%s329 + $0x6608] sm:$0xff]
        %v3682 = vld [vmem:[%s329 + $0x6610] sm:$0xff]
        %v3683 = vld [vmem:[%s329 + $0x6618] sm:$0xff]
        %v3684 = vld [vmem:[%s329 + $0x6620] sm:$0xff]
        %v3685 = vld [vmem:[%s329 + $0x6628] sm:$0xff]
        %v3686 = vld [vmem:[%s329 + $0x6630] sm:$0xff]
        %v3687 = vld [vmem:[%s329 + $0x6638] sm:$0xff]
        %v3688 = vld [vmem:[%s329 + $0x6640] sm:$0xff]
        %v3689 = vld [vmem:[%s329 + $0x6648] sm:$0xff]
        %v3690 = vld [vmem:[%s329 + $0x6650] sm:$0xff]
        %v3691 = vld [vmem:[%s329 + $0x6658] sm:$0xff]
        %v3692 = vld [vmem:[%s329 + $0x6660] sm:$0xff]
        %v3693 = vld [vmem:[%s329 + $0x6668] sm:$0xff]
        %v3694 = vld [vmem:[%s329 + $0x6670] sm:$0xff]
        %v3695 = vld [vmem:[%s329 + $0x6678] sm:$0xff]
        %v3696 = vld [vmem:[%s329 + $0x6680] sm:$0xff]
        %v3697 = vld [vmem:[%s329 + $0x6688] sm:$0xff]
        %v3698 = vld [vmem:[%s329 + $0x6690] sm:$0xff]
        %v3699 = vld [vmem:[%s329 + $0x6698] sm:$0xff]
        %v3700 = vld [vmem:[%s329 + $0x66a0] sm:$0xff]
        %v3701 = vld [vmem:[%s329 + $0x66a8] sm:$0xff]
        %v3702 = vld [vmem:[%s329 + $0x66b0] sm:$0xff]
        %v3703 = vld [vmem:[%s329 + $0x66b8] sm:$0xff]
        %v3704 = vld [vmem:[%s329 + $0x66c0] sm:$0xff]
        %v3705 = vld [vmem:[%s329 + $0x66c8] sm:$0xff]
        %v3706 = vld [vmem:[%s329 + $0x66d0] sm:$0xff]
        %v3707 = vld [vmem:[%s329 + $0x66d8] sm:$0xff]
        %v3708 = vld [vmem:[%s329 + $0x66e0] sm:$0xff]
        %v3709 = vld [vmem:[%s329 + $0x66e8] sm:$0xff]
        %v3710 = vld [vmem:[%s329 + $0x66f0] sm:$0xff]
        %v3711 = vld [vmem:[%s329 + $0x66f8] sm:$0xff]
        %v3712 = vld [vmem:[%s329 + $0x6700] sm:$0xff]
        %v3713 = vld [vmem:[%s329 + $0x6708] sm:$0xff]
        %v3714 = vld [vmem:[%s329 + $0x6710] sm:$0xff]
        %v3715 = vld [vmem:[%s329 + $0x6718] sm:$0xff]
        %v3716 = vld [vmem:[%s329 + $0x6720] sm:$0xff]
        %v3717 = vld [vmem:[%s329 + $0x6728] sm:$0xff]
        %v3718 = vld [vmem:[%s329 + $0x6730] sm:$0xff]
        %v3719 = vld [vmem:[%s329 + $0x6738] sm:$0xff]
        %v3720 = vld [vmem:[%s329 + $0x6740] sm:$0xff]
        %v3721 = vld [vmem:[%s329 + $0x6748] sm:$0xff]
        %v3722 = vld [vmem:[%s329 + $0x6750] sm:$0xff]
        %v3723 = vld [vmem:[%s329 + $0x6758] sm:$0xff]
        %v3724 = vld [vmem:[%s329 + $0x6760] sm:$0xff]
        %v3725 = vld [vmem:[%s329 + $0x6768] sm:$0xff]
        %v3726 = vld [vmem:[%s329 + $0x6770] sm:$0xff]
        %v3727 = vld [vmem:[%s329 + $0x6778] sm:$0xff]
        %v3728 = vld [vmem:[%s329 + $0x6780] sm:$0xff]
        %v3729 = vld [vmem:[%s329 + $0x6788] sm:$0xff]
        %v3730 = vld [vmem:[%s329 + $0x6790] sm:$0xff]
        %v3731 = vld [vmem:[%s329 + $0x6798] sm:$0xff]
        %v3732 = vld [vmem:[%s329 + $0x67a0] sm:$0xff]
        %v3733 = vld [vmem:[%s329 + $0x67a8] sm:$0xff]
        %v3734 = vld [vmem:[%s329 + $0x67b0] sm:$0xff]
        %v3735 = vld [vmem:[%s329 + $0x67b8] sm:$0xff]
        %v3736 = vld [vmem:[%s329 + $0x67c0] sm:$0xff]
        %v3737 = vld [vmem:[%s329 + $0x67c8] sm:$0xff]
        %v3738 = vld [vmem:[%s329 + $0x67d0] sm:$0xff]
        %v3739 = vld [vmem:[%s329 + $0x67d8] sm:$0xff]
        %v3740 = vld [vmem:[%s329 + $0x67e0] sm:$0xff]
        %v3741 = vld [vmem:[%s329 + $0x67e8] sm:$0xff]
        %v3742 = vld [vmem:[%s329 + $0x67f0] sm:$0xff]
        %v3743 = vld [vmem:[%s329 + $0x67f8] sm:$0xff]
        %v3744 = vld [vmem:[%s329 + $0x6800] sm:$0xff]
        %v3745 = vld [vmem:[%s329 + $0x6808] sm:$0xff]
        %v3746 = vld [vmem:[%s329 + $0x6810] sm:$0xff]
        %v3747 = vld [vmem:[%s329 + $0x6818] sm:$0xff]
        %v3748 = vld [vmem:[%s329 + $0x6820] sm:$0xff]
        %v3749 = vld [vmem:[%s329 + $0x6828] sm:$0xff]
        %v3750 = vld [vmem:[%s329 + $0x6830] sm:$0xff]
        %v3751 = vld [vmem:[%s329 + $0x6838] sm:$0xff]
        %v3752 = vld [vmem:[%s329 + $0x6840] sm:$0xff]
        %v3753 = vld [vmem:[%s329 + $0x6848] sm:$0xff]
        %v3754 = vld [vmem:[%s329 + $0x6850] sm:$0xff]
        %v3755 = vld [vmem:[%s329 + $0x6858] sm:$0xff]
        %v3756 = vld [vmem:[%s329 + $0x6860] sm:$0xff]
        %v3757 = vld [vmem:[%s329 + $0x6868] sm:$0xff]
        %v3758 = vld [vmem:[%s329 + $0x6870] sm:$0xff]
        %v3759 = vld [vmem:[%s329 + $0x6878] sm:$0xff]
        %v3760 = vld [vmem:[%s329 + $0x6880] sm:$0xff]
        %v3761 = vld [vmem:[%s329 + $0x6888] sm:$0xff]
        %v3762 = vld [vmem:[%s329 + $0x6890] sm:$0xff]
        %v3763 = vld [vmem:[%s329 + $0x6898] sm:$0xff]
        %v3764 = vld [vmem:[%s329 + $0x68a0] sm:$0xff]
        %v3765 = vld [vmem:[%s329 + $0x68a8] sm:$0xff]
        %v3766 = vld [vmem:[%s329 + $0x68b0] sm:$0xff]
        %v3767 = vld [vmem:[%s329 + $0x68b8] sm:$0xff]
        %v3768 = vld [vmem:[%s329 + $0x68c0] sm:$0xff]
        %v3769 = vld [vmem:[%s329 + $0x68c8] sm:$0xff]
        %v3770 = vld [vmem:[%s329 + $0x68d0] sm:$0xff]
        %v3771 = vld [vmem:[%s329 + $0x68d8] sm:$0xff]
        %v3772 = vld [vmem:[%s329 + $0x68e0] sm:$0xff]
        %v3773 = vld [vmem:[%s329 + $0x68e8] sm:$0xff]
        %v3774 = vld [vmem:[%s329 + $0x68f0] sm:$0xff]
        %v3775 = vld [vmem:[%s329 + $0x68f8] sm:$0xff]
        %v3776 = vld [vmem:[%s329 + $0x6900] sm:$0xff]
        %v3777 = vld [vmem:[%s329 + $0x6908] sm:$0xff]
        %v3778 = vld [vmem:[%s329 + $0x6910] sm:$0xff]
        %v3779 = vld [vmem:[%s329 + $0x6918] sm:$0xff]
        %v3780 = vld [vmem:[%s329 + $0x6920] sm:$0xff]
        %v3781 = vld [vmem:[%s329 + $0x6928] sm:$0xff]
        %v3782 = vld [vmem:[%s329 + $0x6930] sm:$0xff]
        %v3783 = vld [vmem:[%s329 + $0x6938] sm:$0xff]
        %v3784 = vld [vmem:[%s329 + $0x6940] sm:$0xff]
        %v3785 = vld [vmem:[%s329 + $0x6948] sm:$0xff]
        %v3786 = vld [vmem:[%s329 + $0x6950] sm:$0xff]
        %v3787 = vld [vmem:[%s329 + $0x6958] sm:$0xff]
        %v3788 = vld [vmem:[%s329 + $0x6960] sm:$0xff]
        %v3789 = vld [vmem:[%s329 + $0x6968] sm:$0xff]
        %v3790 = vld [vmem:[%s329 + $0x6970] sm:$0xff]
        %v3791 = vld [vmem:[%s329 + $0x6978] sm:$0xff]
        %v3792 = vld [vmem:[%s329 + $0x6980] sm:$0xff]
        %v3793 = vld [vmem:[%s329 + $0x6988] sm:$0xff]
        %v3794 = vld [vmem:[%s329 + $0x6990] sm:$0xff]
        %v3795 = vld [vmem:[%s329 + $0x6998] sm:$0xff]
        %v3796 = vld [vmem:[%s329 + $0x69a0] sm:$0xff]
        %v3797 = vld [vmem:[%s329 + $0x69a8] sm:$0xff]
        %v3798 = vld [vmem:[%s329 + $0x69b0] sm:$0xff]
        %v3799 = vld [vmem:[%s329 + $0x69b8] sm:$0xff]
        %v3800 = vld [vmem:[%s329 + $0x69c0] sm:$0xff]
        %v3801 = vld [vmem:[%s329 + $0x69c8] sm:$0xff]
        %v3802 = vld [vmem:[%s329 + $0x69d0] sm:$0xff]
        %v3803 = vld [vmem:[%s329 + $0x69d8] sm:$0xff]
        %v3804 = vld [vmem:[%s329 + $0x69e0] sm:$0xff]
        %v3805 = vld [vmem:[%s329 + $0x69e8] sm:$0xff]
        %v3806 = vld [vmem:[%s329 + $0x69f0] sm:$0xff]
        %v3807 = vld [vmem:[%s329 + $0x69f8] sm:$0xff]
        %v3808 = vld [vmem:[%s329 + $0x6a00] sm:$0xff]
        %v3809 = vld [vmem:[%s329 + $0x6a08] sm:$0xff]
        %v3810 = vld [vmem:[%s329 + $0x6a10] sm:$0xff]
        %v3811 = vld [vmem:[%s329 + $0x6a18] sm:$0xff]
        %v3812 = vld [vmem:[%s329 + $0x6a20] sm:$0xff]
        %v3813 = vld [vmem:[%s329 + $0x6a28] sm:$0xff]
        %v3814 = vld [vmem:[%s329 + $0x6a30] sm:$0xff]
        %v3815 = vld [vmem:[%s329 + $0x6a38] sm:$0xff]
        %v3816 = vld [vmem:[%s329 + $0x6a40] sm:$0xff]
        %v3817 = vld [vmem:[%s329 + $0x6a48] sm:$0xff]
        %v3818 = vld [vmem:[%s329 + $0x6a50] sm:$0xff]
        %v3819 = vld [vmem:[%s329 + $0x6a58] sm:$0xff]
        %v3820 = vld [vmem:[%s329 + $0x6a60] sm:$0xff]
        %v3821 = vld [vmem:[%s329 + $0x6a68] sm:$0xff]
        %v3822 = vld [vmem:[%s329 + $0x6a70] sm:$0xff]
        %v3823 = vld [vmem:[%s329 + $0x6a78] sm:$0xff]
        %v3824 = vld [vmem:[%s329 + $0x6a80] sm:$0xff]
        %v3825 = vld [vmem:[%s329 + $0x6a88] sm:$0xff]
        %v3826 = vld [vmem:[%s329 + $0x6a90] sm:$0xff]
        %v3827 = vld [vmem:[%s329 + $0x6a98] sm:$0xff]
        %v3828 = vld [vmem:[%s329 + $0x6aa0] sm:$0xff]
        %v3829 = vld [vmem:[%s329 + $0x6aa8] sm:$0xff]
        %v3830 = vld [vmem:[%s329 + $0x6ab0] sm:$0xff]
        %v3831 = vld [vmem:[%s329 + $0x6ab8] sm:$0xff]
        %v3832 = vld [vmem:[%s329 + $0x6ac0] sm:$0xff]
        %v3833 = vld [vmem:[%s329 + $0x6ac8] sm:$0xff]
        %v3834 = vld [vmem:[%s329 + $0x6ad0] sm:$0xff]
        %v3835 = vld [vmem:[%s329 + $0x6ad8] sm:$0xff]
        %v3836 = vld [vmem:[%s329 + $0x6ae0] sm:$0xff]
        %v3837 = vld [vmem:[%s329 + $0x6ae8] sm:$0xff]
        %v3838 = vld [vmem:[%s329 + $0x6af0] sm:$0xff]
        %v3839 = vld [vmem:[%s329 + $0x6af8] sm:$0xff]
        %v3840 = vld [vmem:[%s329 + $0x6b00] sm:$0xff]
        %v3841 = vld [vmem:[%s329 + $0x6b08] sm:$0xff]
        %v3842 = vld [vmem:[%s329 + $0x6b10] sm:$0xff]
        %v3843 = vld [vmem:[%s329 + $0x6b18] sm:$0xff]
        %v3844 = vld [vmem:[%s329 + $0x6b20] sm:$0xff]
        %v3845 = vld [vmem:[%s329 + $0x6b28] sm:$0xff]
        %v3846 = vld [vmem:[%s329 + $0x6b30] sm:$0xff]
        %v3847 = vld [vmem:[%s329 + $0x6b38] sm:$0xff]
        %v3848 = vld [vmem:[%s329 + $0x6b40] sm:$0xff]
        %v3849 = vld [vmem:[%s329 + $0x6b48] sm:$0xff]
        %v3850 = vld [vmem:[%s329 + $0x6b50] sm:$0xff]
        %v3851 = vld [vmem:[%s329 + $0x6b58] sm:$0xff]
        %v3852 = vld [vmem:[%s329 + $0x6b60] sm:$0xff]
        %v3853 = vld [vmem:[%s329 + $0x6b68] sm:$0xff]
        %v3854 = vld [vmem:[%s329 + $0x6b70] sm:$0xff]
        %v3855 = vld [vmem:[%s329 + $0x6b78] sm:$0xff]
        %v3856 = vld [vmem:[%s329 + $0x6b80] sm:$0xff]
        %v3857 = vld [vmem:[%s329 + $0x6b88] sm:$0xff]
        %v3858 = vld [vmem:[%s329 + $0x6b90] sm:$0xff]
        %v3859 = vld [vmem:[%s329 + $0x6b98] sm:$0xff]
        %v3860 = vld [vmem:[%s329 + $0x6ba0] sm:$0xff]
        %v3861 = vld [vmem:[%s329 + $0x6ba8] sm:$0xff]
        %v3862 = vld [vmem:[%s329 + $0x6bb0] sm:$0xff]
        %v3863 = vld [vmem:[%s329 + $0x6bb8] sm:$0xff]
        %v3864 = vld [vmem:[%s329 + $0x6bc0] sm:$0xff]
        %v3865 = vld [vmem:[%s329 + $0x6bc8] sm:$0xff]
        %v3866 = vld [vmem:[%s329 + $0x6bd0] sm:$0xff]
        %v3867 = vld [vmem:[%s329 + $0x6bd8] sm:$0xff]
        %v3868 = vld [vmem:[%s329 + $0x6be0] sm:$0xff]
        %v3869 = vld [vmem:[%s329 + $0x6be8] sm:$0xff]
        %v3870 = vld [vmem:[%s329 + $0x6bf0] sm:$0xff]
        %v3871 = vld [vmem:[%s329 + $0x6bf8] sm:$0xff]
        %v3872 = vld [vmem:[%s329 + $0x6c00] sm:$0xff]
        %v3873 = vld [vmem:[%s329 + $0x6c08] sm:$0xff]
        %v3874 = vld [vmem:[%s329 + $0x6c10] sm:$0xff]
        %v3875 = vld [vmem:[%s329 + $0x6c18] sm:$0xff]
        %v3876 = vld [vmem:[%s329 + $0x6c20] sm:$0xff]
        %v3877 = vld [vmem:[%s329 + $0x6c28] sm:$0xff]
        %v3878 = vld [vmem:[%s329 + $0x6c30] sm:$0xff]
        %v3879 = vld [vmem:[%s329 + $0x6c38] sm:$0xff]
        %v3880 = vld [vmem:[%s329 + $0x6c40] sm:$0xff]
        %v3881 = vld [vmem:[%s329 + $0x6c48] sm:$0xff]
        %v3882 = vld [vmem:[%s329 + $0x6c50] sm:$0xff]
        %v3883 = vld [vmem:[%s329 + $0x6c58] sm:$0xff]
        %v3884 = vld [vmem:[%s329 + $0x6c60] sm:$0xff]
        %v3885 = vld [vmem:[%s329 + $0x6c68] sm:$0xff]
        %v3886 = vld [vmem:[%s329 + $0x6c70] sm:$0xff]
        %v3887 = vld [vmem:[%s329 + $0x6c78] sm:$0xff]
        %v3888 = vld [vmem:[%s329 + $0x6c80] sm:$0xff]
        %v3889 = vld [vmem:[%s329 + $0x6c88] sm:$0xff]
        %v3890 = vld [vmem:[%s329 + $0x6c90] sm:$0xff]
        %v3891 = vld [vmem:[%s329 + $0x6c98] sm:$0xff]
        %v3892 = vld [vmem:[%s329 + $0x6ca0] sm:$0xff]
        %v3893 = vld [vmem:[%s329 + $0x6ca8] sm:$0xff]
        %v3894 = vld [vmem:[%s329 + $0x6cb0] sm:$0xff]
        %v3895 = vld [vmem:[%s329 + $0x6cb8] sm:$0xff]
        %v3896 = vld [vmem:[%s329 + $0x6cc0] sm:$0xff]
        %v3897 = vld [vmem:[%s329 + $0x6cc8] sm:$0xff]
        %v3898 = vld [vmem:[%s329 + $0x6cd0] sm:$0xff]
        %v3899 = vld [vmem:[%s329 + $0x6cd8] sm:$0xff]
        %v3900 = vld [vmem:[%s329 + $0x6ce0] sm:$0xff]
        %v3901 = vld [vmem:[%s329 + $0x6ce8] sm:$0xff]
        %v3902 = vld [vmem:[%s329 + $0x6cf0] sm:$0xff]
        %v3903 = vld [vmem:[%s329 + $0x6cf8] sm:$0xff]
        %v3904 = vld [vmem:[%s329 + $0x6d00] sm:$0xff]
        %v3905 = vld [vmem:[%s329 + $0x6d08] sm:$0xff]
        %v3906 = vld [vmem:[%s329 + $0x6d10] sm:$0xff]
        %v3907 = vld [vmem:[%s329 + $0x6d18] sm:$0xff]
        %v3908 = vld [vmem:[%s329 + $0x6d20] sm:$0xff]
        %v3909 = vld [vmem:[%s329 + $0x6d28] sm:$0xff]
        %v3910 = vld [vmem:[%s329 + $0x6d30] sm:$0xff]
        %v3911 = vld [vmem:[%s329 + $0x6d38] sm:$0xff]
        %v3912 = vld [vmem:[%s329 + $0x6d40] sm:$0xff]
        %v3913 = vld [vmem:[%s329 + $0x6d48] sm:$0xff]
        %v3914 = vld [vmem:[%s329 + $0x6d50] sm:$0xff]
        %v3915 = vld [vmem:[%s329 + $0x6d58] sm:$0xff]
        %v3916 = vld [vmem:[%s329 + $0x6d60] sm:$0xff]
        %v3917 = vld [vmem:[%s329 + $0x6d68] sm:$0xff]
        %v3918 = vld [vmem:[%s329 + $0x6d70] sm:$0xff]
        %v3919 = vld [vmem:[%s329 + $0x6d78] sm:$0xff]
        %v3920 = vld [vmem:[%s329 + $0x6d80] sm:$0xff]
        %v3921 = vld [vmem:[%s329 + $0x6d88] sm:$0xff]
        %v3922 = vld [vmem:[%s329 + $0x6d90] sm:$0xff]
        %v3923 = vld [vmem:[%s329 + $0x6d98] sm:$0xff]
        %v3924 = vld [vmem:[%s329 + $0x6da0] sm:$0xff]
        %v3925 = vld [vmem:[%s329 + $0x6da8] sm:$0xff]
        %v3926 = vld [vmem:[%s329 + $0x6db0] sm:$0xff]
        %v3927 = vld [vmem:[%s329 + $0x6db8] sm:$0xff]
        %v3928 = vld [vmem:[%s329 + $0x6dc0] sm:$0xff]
        %v3929 = vld [vmem:[%s329 + $0x6dc8] sm:$0xff]
        %v3930 = vld [vmem:[%s329 + $0x6dd0] sm:$0xff]
        %v3931 = vld [vmem:[%s329 + $0x6dd8] sm:$0xff]
        %v3932 = vld [vmem:[%s329 + $0x6de0] sm:$0xff]
        %v3933 = vld [vmem:[%s329 + $0x6de8] sm:$0xff]
        %v3934 = vld [vmem:[%s329 + $0x6df0] sm:$0xff]
        %v3935 = vld [vmem:[%s329 + $0x6df8] sm:$0xff]
        %v3936 = vld [vmem:[%s329 + $0x6e00] sm:$0xff]
        %v3937 = vld [vmem:[%s329 + $0x6e08] sm:$0xff]
        %v3938 = vld [vmem:[%s329 + $0x6e10] sm:$0xff]
        %v3939 = vld [vmem:[%s329 + $0x6e18] sm:$0xff]
        %v3940 = vld [vmem:[%s329 + $0x6e20] sm:$0xff]
        %v3941 = vld [vmem:[%s329 + $0x6e28] sm:$0xff]
        %v3942 = vld [vmem:[%s329 + $0x6e30] sm:$0xff]
        %v3943 = vld [vmem:[%s329 + $0x6e38] sm:$0xff]
        %v3944 = vld [vmem:[%s329 + $0x6e40] sm:$0xff]
        %v3945 = vld [vmem:[%s329 + $0x6e48] sm:$0xff]
        %v3946 = vld [vmem:[%s329 + $0x6e50] sm:$0xff]
        %v3947 = vld [vmem:[%s329 + $0x6e58] sm:$0xff]
        %v3948 = vld [vmem:[%s329 + $0x6e60] sm:$0xff]
        %v3949 = vld [vmem:[%s329 + $0x6e68] sm:$0xff]
        %v3950 = vld [vmem:[%s329 + $0x6e70] sm:$0xff]
        %v3951 = vld [vmem:[%s329 + $0x6e78] sm:$0xff]
        %v3952 = vld [vmem:[%s329 + $0x6e80] sm:$0xff]
        %v3953 = vld [vmem:[%s329 + $0x6e88] sm:$0xff]
        %v3954 = vld [vmem:[%s329 + $0x6e90] sm:$0xff]
        %v3955 = vld [vmem:[%s329 + $0x6e98] sm:$0xff]
        %v3956 = vld [vmem:[%s329 + $0x6ea0] sm:$0xff]
        %v3957 = vld [vmem:[%s329 + $0x6ea8] sm:$0xff]
        %v3958 = vld [vmem:[%s329 + $0x6eb0] sm:$0xff]
        %v3959 = vld [vmem:[%s329 + $0x6eb8] sm:$0xff]
        %v3960 = vld [vmem:[%s329 + $0x6ec0] sm:$0xff]
        %v3961 = vld [vmem:[%s329 + $0x6ec8] sm:$0xff]
        %v3962 = vld [vmem:[%s329 + $0x6ed0] sm:$0xff]
        %v3963 = vld [vmem:[%s329 + $0x6ed8] sm:$0xff]
        %v3964 = vld [vmem:[%s329 + $0x6ee0] sm:$0xff]
        %v3965 = vld [vmem:[%s329 + $0x6ee8] sm:$0xff]
        %v3966 = vld [vmem:[%s329 + $0x6ef0] sm:$0xff]
        %v3967 = vld [vmem:[%s329 + $0x6ef8] sm:$0xff]
        %v3968 = vld [vmem:[%s329 + $0x6f00] sm:$0xff]
        %v3969 = vld [vmem:[%s329 + $0x6f08] sm:$0xff]
        %v3970 = vld [vmem:[%s329 + $0x6f10] sm:$0xff]
        %v3971 = vld [vmem:[%s329 + $0x6f18] sm:$0xff]
        %v3972 = vld [vmem:[%s329 + $0x6f20] sm:$0xff]
        %v3973 = vld [vmem:[%s329 + $0x6f28] sm:$0xff]
        %v3974 = vld [vmem:[%s329 + $0x6f30] sm:$0xff]
        %v3975 = vld [vmem:[%s329 + $0x6f38] sm:$0xff]
        %v3976 = vld [vmem:[%s329 + $0x6f40] sm:$0xff]
        %v3977 = vld [vmem:[%s329 + $0x6f48] sm:$0xff]
        %v3978 = vld [vmem:[%s329 + $0x6f50] sm:$0xff]
        %v3979 = vld [vmem:[%s329 + $0x6f58] sm:$0xff]
        %v3980 = vld [vmem:[%s329 + $0x6f60] sm:$0xff]
        %v3981 = vld [vmem:[%s329 + $0x6f68] sm:$0xff]
        %v3982 = vld [vmem:[%s329 + $0x6f70] sm:$0xff]
        %v3983 = vld [vmem:[%s329 + $0x6f78] sm:$0xff]
        %v3984 = vld [vmem:[%s329 + $0x6f80] sm:$0xff]
        %v3985 = vld [vmem:[%s329 + $0x6f88] sm:$0xff]
        %v3986 = vld [vmem:[%s329 + $0x6f90] sm:$0xff]
        %v3987 = vld [vmem:[%s329 + $0x6f98] sm:$0xff]
        %v3988 = vld [vmem:[%s329 + $0x6fa0] sm:$0xff]
        %v3989 = vld [vmem:[%s329 + $0x6fa8] sm:$0xff]
        %v3990 = vld [vmem:[%s329 + $0x6fb0] sm:$0xff]
        %v3991 = vld [vmem:[%s329 + $0x6fb8] sm:$0xff]
        %v3992 = vld [vmem:[%s329 + $0x6fc0] sm:$0xff]
        %v3993 = vld [vmem:[%s329 + $0x6fc8] sm:$0xff]
        %v3994 = vld [vmem:[%s329 + $0x6fd0] sm:$0xff]
        %v3995 = vld [vmem:[%s329 + $0x6fd8] sm:$0xff]
        %v3996 = vld [vmem:[%s329 + $0x6fe0] sm:$0xff]
        %v3997 = vld [vmem:[%s329 + $0x6fe8] sm:$0xff]
        %v3998 = vld [vmem:[%s329 + $0x6ff0] sm:$0xff]
        %v3999 = vld [vmem:[%s329 + $0x6ff8] sm:$0xff]
        %v4000 = vld [vmem:[%s329 + $0x7000] sm:$0xff]
        %v4001 = vld [vmem:[%s329 + $0x7008] sm:$0xff]
        %v4002 = vld [vmem:[%s329 + $0x7010] sm:$0xff]
        %v4003 = vld [vmem:[%s329 + $0x7018] sm:$0xff]
        %v4004 = vld [vmem:[%s329 + $0x7020] sm:$0xff]
        %v4005 = vld [vmem:[%s329 + $0x7028] sm:$0xff]
        %v4006 = vld [vmem:[%s329 + $0x7030] sm:$0xff]
        %v4007 = vld [vmem:[%s329 + $0x7038] sm:$0xff]
        %v4008 = vld [vmem:[%s329 + $0x7040] sm:$0xff]
        %v4009 = vld [vmem:[%s329 + $0x7048] sm:$0xff]
        %v4010 = vld [vmem:[%s329 + $0x7050] sm:$0xff]
        %v4011 = vld [vmem:[%s329 + $0x7058] sm:$0xff]
        %v4012 = vld [vmem:[%s329 + $0x7060] sm:$0xff]
        %v4013 = vld [vmem:[%s329 + $0x7068] sm:$0xff]
        %v4014 = vld [vmem:[%s329 + $0x7070] sm:$0xff]
        %v4015 = vld [vmem:[%s329 + $0x7078] sm:$0xff]
        %v4016 = vld [vmem:[%s329 + $0x7080] sm:$0xff]
        %v4017 = vld [vmem:[%s329 + $0x7088] sm:$0xff]
        %v4018 = vld [vmem:[%s329 + $0x7090] sm:$0xff]
        %v4019 = vld [vmem:[%s329 + $0x7098] sm:$0xff]
        %v4020 = vld [vmem:[%s329 + $0x70a0] sm:$0xff]
        %v4021 = vld [vmem:[%s329 + $0x70a8] sm:$0xff]
        %v4022 = vld [vmem:[%s329 + $0x70b0] sm:$0xff]
        %v4023 = vld [vmem:[%s329 + $0x70b8] sm:$0xff]
        %v4024 = vld [vmem:[%s329 + $0x70c0] sm:$0xff]
        %v4025 = vld [vmem:[%s329 + $0x70c8] sm:$0xff]
        %v4026 = vld [vmem:[%s329 + $0x70d0] sm:$0xff]
        %v4027 = vld [vmem:[%s329 + $0x70d8] sm:$0xff]
        %v4028 = vld [vmem:[%s329 + $0x70e0] sm:$0xff]
        %v4029 = vld [vmem:[%s329 + $0x70e8] sm:$0xff]
        %v4030 = vld [vmem:[%s329 + $0x70f0] sm:$0xff]
        %v4031 = vld [vmem:[%s329 + $0x70f8] sm:$0xff]
        %v4032 = vld [vmem:[%s329 + $0x7100] sm:$0xff]
        %v4033 = vld [vmem:[%s329 + $0x7108] sm:$0xff]
        %v4034 = vld [vmem:[%s329 + $0x7110] sm:$0xff]
        %v4035 = vld [vmem:[%s329 + $0x7118] sm:$0xff]
        %v4036 = vld [vmem:[%s329 + $0x7120] sm:$0xff]
        %v4037 = vld [vmem:[%s329 + $0x7128] sm:$0xff]
        %v4038 = vld [vmem:[%s329 + $0x7130] sm:$0xff]
        %v4039 = vld [vmem:[%s329 + $0x7138] sm:$0xff]
        %v4040 = vld [vmem:[%s329 + $0x7140] sm:$0xff]
        %v4041 = vld [vmem:[%s329 + $0x7148] sm:$0xff]
        %v4042 = vld [vmem:[%s329 + $0x7150] sm:$0xff]
        %v4043 = vld [vmem:[%s329 + $0x7158] sm:$0xff]
        %v4044 = vld [vmem:[%s329 + $0x7160] sm:$0xff]
        %v4045 = vld [vmem:[%s329 + $0x7168] sm:$0xff]
        %v4046 = vld [vmem:[%s329 + $0x7170] sm:$0xff]
        %v4047 = vld [vmem:[%s329 + $0x7178] sm:$0xff]
        %v4048 = vld [vmem:[%s329 + $0x7180] sm:$0xff]
        %v4049 = vld [vmem:[%s329 + $0x7188] sm:$0xff]
        %v4050 = vld [vmem:[%s329 + $0x7190] sm:$0xff]
        %v4051 = vld [vmem:[%s329 + $0x7198] sm:$0xff]
        %v4052 = vld [vmem:[%s329 + $0x71a0] sm:$0xff]
        %v4053 = vld [vmem:[%s329 + $0x71a8] sm:$0xff]
        %v4054 = vld [vmem:[%s329 + $0x71b0] sm:$0xff]
        %v4055 = vld [vmem:[%s329 + $0x71b8] sm:$0xff]
        %v4056 = vld [vmem:[%s329 + $0x71c0] sm:$0xff]
        %v4057 = vld [vmem:[%s329 + $0x71c8] sm:$0xff]
        %v4058 = vld [vmem:[%s329 + $0x71d0] sm:$0xff]
        %v4059 = vld [vmem:[%s329 + $0x71d8] sm:$0xff]
        %v4060 = vld [vmem:[%s329 + $0x71e0] sm:$0xff]
        %v4061 = vld [vmem:[%s329 + $0x71e8] sm:$0xff]
        %v4062 = vld [vmem:[%s329 + $0x71f0] sm:$0xff]
        %v4063 = vld [vmem:[%s329 + $0x71f8] sm:$0xff]
        %v4064 = vld [vmem:[%s329 + $0x7200] sm:$0xff]
        %v4065 = vld [vmem:[%s329 + $0x7208] sm:$0xff]
        %v4066 = vld [vmem:[%s329 + $0x7210] sm:$0xff]
        %v4067 = vld [vmem:[%s329 + $0x7218] sm:$0xff]
        %v4068 = vld [vmem:[%s329 + $0x7220] sm:$0xff]
        %v4069 = vld [vmem:[%s329 + $0x7228] sm:$0xff]
        %v4070 = vld [vmem:[%s329 + $0x7230] sm:$0xff]
        %v4071 = vld [vmem:[%s329 + $0x7238] sm:$0xff]
        %v4072 = vld [vmem:[%s329 + $0x7240] sm:$0xff]
        %v4073 = vld [vmem:[%s329 + $0x7248] sm:$0xff]
        %v4074 = vld [vmem:[%s329 + $0x7250] sm:$0xff]
        %v4075 = vld [vmem:[%s329 + $0x7258] sm:$0xff]
        %v4076 = vld [vmem:[%s329 + $0x7260] sm:$0xff]
        %v4077 = vld [vmem:[%s329 + $0x7268] sm:$0xff]
        %v4078 = vld [vmem:[%s329 + $0x7270] sm:$0xff]
        %v4079 = vld [vmem:[%s329 + $0x7278] sm:$0xff]
        %v4080 = vld [vmem:[%s329 + $0x7280] sm:$0xff]
        %v4081 = vld [vmem:[%s329 + $0x7288] sm:$0xff]
        %v4082 = vld [vmem:[%s329 + $0x7290] sm:$0xff]
        %v4083 = vld [vmem:[%s329 + $0x7298] sm:$0xff]
        %v4084 = vld [vmem:[%s329 + $0x72a0] sm:$0xff]
        %v4085 = vld [vmem:[%s329 + $0x72a8] sm:$0xff]
        %v4086 = vld [vmem:[%s329 + $0x72b0] sm:$0xff]
        %v4087 = vld [vmem:[%s329 + $0x72b8] sm:$0xff]
        %v4088 = vld [vmem:[%s329 + $0x72c0] sm:$0xff]
        %v4089 = vld [vmem:[%s329 + $0x72c8] sm:$0xff]
        %v4090 = vld [vmem:[%s329 + $0x72d0] sm:$0xff]
        %v4091 = vld [vmem:[%s329 + $0x72d8] sm:$0xff]
        %v4092 = vld [vmem:[%s329 + $0x72e0] sm:$0xff]
        %v4093 = vld [vmem:[%s329 + $0x72e8] sm:$0xff]
        %v4094 = vld [vmem:[%s329 + $0x72f0] sm:$0xff]
        %v4095 = vld [vmem:[%s329 + $0x72f8] sm:$0xff]
        %v4096 = vld [vmem:[%s329 + $0x7300] sm:$0xff]
        %v4097 = vld [vmem:[%s329 + $0x7308] sm:$0xff]
        %v4098 = vld [vmem:[%s329 + $0x7310] sm:$0xff]
        %v4099 = vld [vmem:[%s329 + $0x7318] sm:$0xff]
        %v4100 = vld [vmem:[%s329 + $0x7320] sm:$0xff]
        %v4101 = vld [vmem:[%s329 + $0x7328] sm:$0xff]
        %v4102 = vld [vmem:[%s329 + $0x7330] sm:$0xff]
        %v4103 = vld [vmem:[%s329 + $0x7338] sm:$0xff]
        %v4104 = vld [vmem:[%s329 + $0x7340] sm:$0xff]
        %v4105 = vld [vmem:[%s329 + $0x7348] sm:$0xff]
        %v4106 = vld [vmem:[%s329 + $0x7350] sm:$0xff]
        %v4107 = vld [vmem:[%s329 + $0x7358] sm:$0xff]
        %v4108 = vld [vmem:[%s329 + $0x7360] sm:$0xff]
        %v4109 = vld [vmem:[%s329 + $0x7368] sm:$0xff]
        %v4110 = vld [vmem:[%s329 + $0x7370] sm:$0xff]
        %v4111 = vld [vmem:[%s329 + $0x7378] sm:$0xff]
        %v4112 = vld [vmem:[%s329 + $0x7380] sm:$0xff]
        %v4113 = vld [vmem:[%s329 + $0x7388] sm:$0xff]
        %v4114 = vld [vmem:[%s329 + $0x7390] sm:$0xff]
        %v4115 = vld [vmem:[%s329 + $0x7398] sm:$0xff]
        %v4116 = vld [vmem:[%s329 + $0x73a0] sm:$0xff]
        %v4117 = vld [vmem:[%s329 + $0x73a8] sm:$0xff]
        %v4118 = vld [vmem:[%s329 + $0x73b0] sm:$0xff]
        %v4119 = vld [vmem:[%s329 + $0x73b8] sm:$0xff]
        %v4120 = vld [vmem:[%s329 + $0x73c0] sm:$0xff]
        %v4121 = vld [vmem:[%s329 + $0x73c8] sm:$0xff]
        %v4122 = vld [vmem:[%s329 + $0x73d0] sm:$0xff]
        %v4123 = vld [vmem:[%s329 + $0x73d8] sm:$0xff]
        %v4124 = vld [vmem:[%s329 + $0x73e0] sm:$0xff]
        %v4125 = vld [vmem:[%s329 + $0x73e8] sm:$0xff]
        %v4126 = vld [vmem:[%s329 + $0x73f0] sm:$0xff]
        %v4127 = vld [vmem:[%s329 + $0x73f8] sm:$0xff]
        %v4128 = vld [vmem:[%s329 + $0x7400] sm:$0xff]
        %v4129 = vld [vmem:[%s329 + $0x7408] sm:$0xff]
        %v4130 = vld [vmem:[%s329 + $0x7410] sm:$0xff]
        %v4131 = vld [vmem:[%s329 + $0x7418] sm:$0xff]
        %v4132 = vld [vmem:[%s329 + $0x7420] sm:$0xff]
        %v4133 = vld [vmem:[%s329 + $0x7428] sm:$0xff]
        %v4134 = vld [vmem:[%s329 + $0x7430] sm:$0xff]
        %v4135 = vld [vmem:[%s329 + $0x7438] sm:$0xff]
        %v4136 = vld [vmem:[%s329 + $0x7440] sm:$0xff]
        %v4137 = vld [vmem:[%s329 + $0x7448] sm:$0xff]
        %v4138 = vld [vmem:[%s329 + $0x7450] sm:$0xff]
        %v4139 = vld [vmem:[%s329 + $0x7458] sm:$0xff]
        %v4140 = vld [vmem:[%s329 + $0x7460] sm:$0xff]
        %v4141 = vld [vmem:[%s329 + $0x7468] sm:$0xff]
        %v4142 = vld [vmem:[%s329 + $0x7470] sm:$0xff]
        %v4143 = vld [vmem:[%s329 + $0x7478] sm:$0xff]
        %v4144 = vld [vmem:[%s329 + $0x7480] sm:$0xff]
        %v4145 = vld [vmem:[%s329 + $0x7488] sm:$0xff]
        %v4146 = vld [vmem:[%s329 + $0x7490] sm:$0xff]
        %v4147 = vld [vmem:[%s329 + $0x7498] sm:$0xff]
        %v4148 = vld [vmem:[%s329 + $0x74a0] sm:$0xff]
        %v4149 = vld [vmem:[%s329 + $0x74a8] sm:$0xff]
        %v4150 = vld [vmem:[%s329 + $0x74b0] sm:$0xff]
        %v4151 = vld [vmem:[%s329 + $0x74b8] sm:$0xff]
        %v4152 = vld [vmem:[%s329 + $0x74c0] sm:$0xff]
        %v4153 = vld [vmem:[%s329 + $0x74c8] sm:$0xff]
        %v4154 = vld [vmem:[%s329 + $0x74d0] sm:$0xff]
        %v4155 = vld [vmem:[%s329 + $0x74d8] sm:$0xff]
        %v4156 = vld [vmem:[%s329 + $0x74e0] sm:$0xff]
        %v4157 = vld [vmem:[%s329 + $0x74e8] sm:$0xff]
        %v4158 = vld [vmem:[%s329 + $0x74f0] sm:$0xff]
        %v4159 = vld [vmem:[%s329 + $0x74f8] sm:$0xff]
        %v4160 = vld [vmem:[%s329 + $0x7500] sm:$0xff]
        %v4161 = vld [vmem:[%s329 + $0x7508] sm:$0xff]
        %v4162 = vld [vmem:[%s329 + $0x7510] sm:$0xff]
        %v4163 = vld [vmem:[%s329 + $0x7518] sm:$0xff]
        %v4164 = vld [vmem:[%s329 + $0x7520] sm:$0xff]
        %v4165 = vld [vmem:[%s329 + $0x7528] sm:$0xff]
        %v4166 = vld [vmem:[%s329 + $0x7530] sm:$0xff]
        %v4167 = vld [vmem:[%s329 + $0x7538] sm:$0xff]
        %v4168 = vld [vmem:[%s329 + $0x7540] sm:$0xff]
        %v4169 = vld [vmem:[%s329 + $0x7548] sm:$0xff]
        %v4170 = vld [vmem:[%s329 + $0x7550] sm:$0xff]
        %v4171 = vld [vmem:[%s329 + $0x7558] sm:$0xff]
        %v4172 = vld [vmem:[%s329 + $0x7560] sm:$0xff]
        %v4173 = vld [vmem:[%s329 + $0x7568] sm:$0xff]
        %v4174 = vld [vmem:[%s329 + $0x7570] sm:$0xff]
        %v4175 = vld [vmem:[%s329 + $0x7578] sm:$0xff]
        %v4176 = vld [vmem:[%s329 + $0x7580] sm:$0xff]
        %v4177 = vld [vmem:[%s329 + $0x7588] sm:$0xff]
        %v4178 = vld [vmem:[%s329 + $0x7590] sm:$0xff]
        %v4179 = vld [vmem:[%s329 + $0x7598] sm:$0xff]
        %v4180 = vld [vmem:[%s329 + $0x75a0] sm:$0xff]
        %v4181 = vld [vmem:[%s329 + $0x75a8] sm:$0xff]
        %v4182 = vld [vmem:[%s329 + $0x75b0] sm:$0xff]
        %v4183 = vld [vmem:[%s329 + $0x75b8] sm:$0xff]
        %v4184 = vld [vmem:[%s329 + $0x75c0] sm:$0xff]
        %v4185 = vld [vmem:[%s329 + $0x75c8] sm:$0xff]
        %v4186 = vld [vmem:[%s329 + $0x75d0] sm:$0xff]
        %v4187 = vld [vmem:[%s329 + $0x75d8] sm:$0xff]
        %v4188 = vld [vmem:[%s329 + $0x75e0] sm:$0xff]
        %v4189 = vld [vmem:[%s329 + $0x75e8] sm:$0xff]
        %v4190 = vld [vmem:[%s329 + $0x75f0] sm:$0xff]
        %v4191 = vld [vmem:[%s329 + $0x75f8] sm:$0xff]
        %v4192 = vld [vmem:[%s329 + $0x7600] sm:$0xff]
        %v4193 = vld [vmem:[%s329 + $0x7608] sm:$0xff]
        %v4194 = vld [vmem:[%s329 + $0x7610] sm:$0xff]
        %v4195 = vld [vmem:[%s329 + $0x7618] sm:$0xff]
        %v4196 = vld [vmem:[%s329 + $0x7620] sm:$0xff]
        %v4197 = vld [vmem:[%s329 + $0x7628] sm:$0xff]
        %v4198 = vld [vmem:[%s329 + $0x7630] sm:$0xff]
        %v4199 = vld [vmem:[%s329 + $0x7638] sm:$0xff]
        %v4200 = vld [vmem:[%s329 + $0x7640] sm:$0xff]
        %v4201 = vld [vmem:[%s329 + $0x7648] sm:$0xff]
        %v4202 = vld [vmem:[%s329 + $0x7650] sm:$0xff]
        %v4203 = vld [vmem:[%s329 + $0x7658] sm:$0xff]
        %v4204 = vld [vmem:[%s329 + $0x7660] sm:$0xff]
        %v4205 = vld [vmem:[%s329 + $0x7668] sm:$0xff]
        %v4206 = vld [vmem:[%s329 + $0x7670] sm:$0xff]
        %v4207 = vld [vmem:[%s329 + $0x7678] sm:$0xff]
        %v4208 = vld [vmem:[%s329 + $0x7680] sm:$0xff]
        %v4209 = vld [vmem:[%s329 + $0x7688] sm:$0xff]
        %v4210 = vld [vmem:[%s329 + $0x7690] sm:$0xff]
        %v4211 = vld [vmem:[%s329 + $0x7698] sm:$0xff]
        %v4212 = vld [vmem:[%s329 + $0x76a0] sm:$0xff]
        %v4213 = vld [vmem:[%s329 + $0x76a8] sm:$0xff]
        %v4214 = vld [vmem:[%s329 + $0x76b0] sm:$0xff]
        %v4215 = vld [vmem:[%s329 + $0x76b8] sm:$0xff]
        %v4216 = vld [vmem:[%s329 + $0x76c0] sm:$0xff]
        %v4217 = vld [vmem:[%s329 + $0x76c8] sm:$0xff]
        %v4218 = vld [vmem:[%s329 + $0x76d0] sm:$0xff]
        %v4219 = vld [vmem:[%s329 + $0x76d8] sm:$0xff]
        %v4220 = vld [vmem:[%s329 + $0x76e0] sm:$0xff]
        %v4221 = vld [vmem:[%s329 + $0x76e8] sm:$0xff]
        %v4222 = vld [vmem:[%s329 + $0x76f0] sm:$0xff]
        %v4223 = vld [vmem:[%s329 + $0x76f8] sm:$0xff]
        %v4224 = vld [vmem:[%s329 + $0x7700] sm:$0xff]
        %v4225 = vld [vmem:[%s329 + $0x7708] sm:$0xff]
        %v4226 = vld [vmem:[%s329 + $0x7710] sm:$0xff]
        %v4227 = vld [vmem:[%s329 + $0x7718] sm:$0xff]
        %v4228 = vld [vmem:[%s329 + $0x7720] sm:$0xff]
        %v4229 = vld [vmem:[%s329 + $0x7728] sm:$0xff]
        %v4230 = vld [vmem:[%s329 + $0x7730] sm:$0xff]
        %v4231 = vld [vmem:[%s329 + $0x7738] sm:$0xff]
        %v4232 = vld [vmem:[%s329 + $0x7740] sm:$0xff]
        %v4233 = vld [vmem:[%s329 + $0x7748] sm:$0xff]
        %v4234 = vld [vmem:[%s329 + $0x7750] sm:$0xff]
        %v4235 = vld [vmem:[%s329 + $0x7758] sm:$0xff]
        %v4236 = vld [vmem:[%s329 + $0x7760] sm:$0xff]
        %v4237 = vld [vmem:[%s329 + $0x7768] sm:$0xff]
        %v4238 = vld [vmem:[%s329 + $0x7770] sm:$0xff]
        %v4239 = vld [vmem:[%s329 + $0x7778] sm:$0xff]
        %v4240 = vld [vmem:[%s329 + $0x7780] sm:$0xff]
        %v4241 = vld [vmem:[%s329 + $0x7788] sm:$0xff]
        %v4242 = vld [vmem:[%s329 + $0x7790] sm:$0xff]
        %v4243 = vld [vmem:[%s329 + $0x7798] sm:$0xff]
        %v4244 = vld [vmem:[%s329 + $0x77a0] sm:$0xff]
        %v4245 = vld [vmem:[%s329 + $0x77a8] sm:$0xff]
        %v4246 = vld [vmem:[%s329 + $0x77b0] sm:$0xff]
        %v4247 = vld [vmem:[%s329 + $0x77b8] sm:$0xff]
        %v4248 = vld [vmem:[%s329 + $0x77c0] sm:$0xff]
        %v4249 = vld [vmem:[%s329 + $0x77c8] sm:$0xff]
        %v4250 = vld [vmem:[%s329 + $0x77d0] sm:$0xff]
        %v4251 = vld [vmem:[%s329 + $0x77d8] sm:$0xff]
        %v4252 = vld [vmem:[%s329 + $0x77e0] sm:$0xff]
        %v4253 = vld [vmem:[%s329 + $0x77e8] sm:$0xff]
        %v4254 = vld [vmem:[%s329 + $0x77f0] sm:$0xff]
        %v4255 = vld [vmem:[%s329 + $0x77f8] sm:$0xff]
        %v4256 = vld [vmem:[%s329 + $0x7800] sm:$0xff]
        %v4257 = vld [vmem:[%s329 + $0x7808] sm:$0xff]
        %v4258 = vld [vmem:[%s329 + $0x7810] sm:$0xff]
        %v4259 = vld [vmem:[%s329 + $0x7818] sm:$0xff]
        %v4260 = vld [vmem:[%s329 + $0x7820] sm:$0xff]
        %v4261 = vld [vmem:[%s329 + $0x7828] sm:$0xff]
        %v4262 = vld [vmem:[%s329 + $0x7830] sm:$0xff]
        %v4263 = vld [vmem:[%s329 + $0x7838] sm:$0xff]
        %v4264 = vld [vmem:[%s329 + $0x7840] sm:$0xff]
        %v4265 = vld [vmem:[%s329 + $0x7848] sm:$0xff]
        %v4266 = vld [vmem:[%s329 + $0x7850] sm:$0xff]
        %v4267 = vld [vmem:[%s329 + $0x7858] sm:$0xff]
        %v4268 = vld [vmem:[%s329 + $0x7860] sm:$0xff]
        %v4269 = vld [vmem:[%s329 + $0x7868] sm:$0xff]
        %v4270 = vld [vmem:[%s329 + $0x7870] sm:$0xff]
        %v4271 = vld [vmem:[%s329 + $0x7878] sm:$0xff]
        %v4272 = vld [vmem:[%s329 + $0x7880] sm:$0xff]
        %v4273 = vld [vmem:[%s329 + $0x7888] sm:$0xff]
        %v4274 = vld [vmem:[%s329 + $0x7890] sm:$0xff]
        %v4275 = vld [vmem:[%s329 + $0x7898] sm:$0xff]
        %v4276 = vld [vmem:[%s329 + $0x78a0] sm:$0xff]
        %v4277 = vld [vmem:[%s329 + $0x78a8] sm:$0xff]
        %v4278 = vld [vmem:[%s329 + $0x78b0] sm:$0xff]
        %v4279 = vld [vmem:[%s329 + $0x78b8] sm:$0xff]
        %v4280 = vld [vmem:[%s329 + $0x78c0] sm:$0xff]
        %v4281 = vld [vmem:[%s329 + $0x78c8] sm:$0xff]
        %v4282 = vld [vmem:[%s329 + $0x78d0] sm:$0xff]
        %v4283 = vld [vmem:[%s329 + $0x78d8] sm:$0xff]
        %v4284 = vld [vmem:[%s329 + $0x78e0] sm:$0xff]
        %v4285 = vld [vmem:[%s329 + $0x78e8] sm:$0xff]
        %v4286 = vld [vmem:[%s329 + $0x78f0] sm:$0xff]
        %v4287 = vld [vmem:[%s329 + $0x78f8] sm:$0xff]
        %v4288 = vld [vmem:[%s329 + $0x7900] sm:$0xff]
        %v4289 = vld [vmem:[%s329 + $0x7908] sm:$0xff]
        %v4290 = vld [vmem:[%s329 + $0x7910] sm:$0xff]
        %v4291 = vld [vmem:[%s329 + $0x7918] sm:$0xff]
        %v4292 = vld [vmem:[%s329 + $0x7920] sm:$0xff]
        %v4293 = vld [vmem:[%s329 + $0x7928] sm:$0xff]
        %v4294 = vld [vmem:[%s329 + $0x7930] sm:$0xff]
        %v4295 = vld [vmem:[%s329 + $0x7938] sm:$0xff]
        %v4296 = vld [vmem:[%s329 + $0x7940] sm:$0xff]
        %v4297 = vld [vmem:[%s329 + $0x7948] sm:$0xff]
        %v4298 = vld [vmem:[%s329 + $0x7950] sm:$0xff]
        %v4299 = vld [vmem:[%s329 + $0x7958] sm:$0xff]
        %v4300 = vld [vmem:[%s329 + $0x7960] sm:$0xff]
        %v4301 = vld [vmem:[%s329 + $0x7968] sm:$0xff]
        %v4302 = vld [vmem:[%s329 + $0x7970] sm:$0xff]
        %v4303 = vld [vmem:[%s329 + $0x7978] sm:$0xff]
        %v4304 = vld [vmem:[%s329 + $0x7980] sm:$0xff]
        %v4305 = vld [vmem:[%s329 + $0x7988] sm:$0xff]
        %v4306 = vld [vmem:[%s329 + $0x7990] sm:$0xff]
        %v4307 = vld [vmem:[%s329 + $0x7998] sm:$0xff]
        %v4308 = vld [vmem:[%s329 + $0x79a0] sm:$0xff]
        %v4309 = vld [vmem:[%s329 + $0x79a8] sm:$0xff]
        %v4310 = vld [vmem:[%s329 + $0x79b0] sm:$0xff]
        %v4311 = vld [vmem:[%s329 + $0x79b8] sm:$0xff]
        %v4312 = vld [vmem:[%s329 + $0x79c0] sm:$0xff]
        %v4313 = vld [vmem:[%s329 + $0x79c8] sm:$0xff]
        %v4314 = vld [vmem:[%s329 + $0x79d0] sm:$0xff]
        %v4315 = vld [vmem:[%s329 + $0x79d8] sm:$0xff]
        %v4316 = vld [vmem:[%s329 + $0x79e0] sm:$0xff]
        %v4317 = vld [vmem:[%s329 + $0x79e8] sm:$0xff]
        %v4318 = vld [vmem:[%s329 + $0x79f0] sm:$0xff]
        %v4319 = vld [vmem:[%s329 + $0x79f8] sm:$0xff]
        %v4320 = vld [vmem:[%s329 + $0x7a00] sm:$0xff]
        %v4321 = vld [vmem:[%s329 + $0x7a08] sm:$0xff]
        %v4322 = vld [vmem:[%s329 + $0x7a10] sm:$0xff]
        %v4323 = vld [vmem:[%s329 + $0x7a18] sm:$0xff]
        %v4324 = vld [vmem:[%s329 + $0x7a20] sm:$0xff]
        %v4325 = vld [vmem:[%s329 + $0x7a28] sm:$0xff]
        %v4326 = vld [vmem:[%s329 + $0x7a30] sm:$0xff]
        %v4327 = vld [vmem:[%s329 + $0x7a38] sm:$0xff]
        %v4328 = vld [vmem:[%s329 + $0x7a40] sm:$0xff]
        %v4329 = vld [vmem:[%s329 + $0x7a48] sm:$0xff]
        %v4330 = vld [vmem:[%s329 + $0x7a50] sm:$0xff]
        %v4331 = vld [vmem:[%s329 + $0x7a58] sm:$0xff]
        %v4332 = vld [vmem:[%s329 + $0x7a60] sm:$0xff]
        %v4333 = vld [vmem:[%s329 + $0x7a68] sm:$0xff]
        %v4334 = vld [vmem:[%s329 + $0x7a70] sm:$0xff]
        %v4335 = vld [vmem:[%s329 + $0x7a78] sm:$0xff]
        %v4336 = vld [vmem:[%s329 + $0x7a80] sm:$0xff]
        %v4337 = vld [vmem:[%s329 + $0x7a88] sm:$0xff]
        %v4338 = vld [vmem:[%s329 + $0x7a90] sm:$0xff]
        %v4339 = vld [vmem:[%s329 + $0x7a98] sm:$0xff]
        %v4340 = vld [vmem:[%s329 + $0x7aa0] sm:$0xff]
        %v4341 = vld [vmem:[%s329 + $0x7aa8] sm:$0xff]
        %v4342 = vld [vmem:[%s329 + $0x7ab0] sm:$0xff]
        %v4343 = vld [vmem:[%s329 + $0x7ab8] sm:$0xff]
        %v4344 = vld [vmem:[%s329 + $0x7ac0] sm:$0xff]
        %v4345 = vld [vmem:[%s329 + $0x7ac8] sm:$0xff]
        %v4346 = vld [vmem:[%s329 + $0x7ad0] sm:$0xff]
        %v4347 = vld [vmem:[%s329 + $0x7ad8] sm:$0xff]
        %v4348 = vld [vmem:[%s329 + $0x7ae0] sm:$0xff]
        %v4349 = vld [vmem:[%s329 + $0x7ae8] sm:$0xff]
        %v4350 = vld [vmem:[%s329 + $0x7af0] sm:$0xff]
        %v4351 = vld [vmem:[%s329 + $0x7af8] sm:$0xff]
        %v4352 = vld [vmem:[%s329 + $0x7b00] sm:$0xff]
        %v4353 = vld [vmem:[%s329 + $0x7b08] sm:$0xff]
        %v4354 = vld [vmem:[%s329 + $0x7b10] sm:$0xff]
        %v4355 = vld [vmem:[%s329 + $0x7b18] sm:$0xff]
        %v4356 = vld [vmem:[%s329 + $0x7b20] sm:$0xff]
        %v4357 = vld [vmem:[%s329 + $0x7b28] sm:$0xff]
        %v4358 = vld [vmem:[%s329 + $0x7b30] sm:$0xff]
        %v4359 = vld [vmem:[%s329 + $0x7b38] sm:$0xff]
        %v4360 = vld [vmem:[%s329 + $0x7b40] sm:$0xff]
        %v4361 = vld [vmem:[%s329 + $0x7b48] sm:$0xff]
        %v4362 = vld [vmem:[%s329 + $0x7b50] sm:$0xff]
        %v4363 = vld [vmem:[%s329 + $0x7b58] sm:$0xff]
        %v4364 = vld [vmem:[%s329 + $0x7b60] sm:$0xff]
        %v4365 = vld [vmem:[%s329 + $0x7b68] sm:$0xff]
        %v4366 = vld [vmem:[%s329 + $0x7b70] sm:$0xff]
        %v4367 = vld [vmem:[%s329 + $0x7b78] sm:$0xff]
        %v4368 = vld [vmem:[%s329 + $0x7b80] sm:$0xff]
        %v4369 = vld [vmem:[%s329 + $0x7b88] sm:$0xff]
        %v4370 = vld [vmem:[%s329 + $0x7b90] sm:$0xff]
        %v4371 = vld [vmem:[%s329 + $0x7b98] sm:$0xff]
        %v4372 = vld [vmem:[%s329 + $0x7ba0] sm:$0xff]
        %v4373 = vld [vmem:[%s329 + $0x7ba8] sm:$0xff]
        %v4374 = vld [vmem:[%s329 + $0x7bb0] sm:$0xff]
        %v4375 = vld [vmem:[%s329 + $0x7bb8] sm:$0xff]
        %v4376 = vld [vmem:[%s329 + $0x7bc0] sm:$0xff]
        %v4377 = vld [vmem:[%s329 + $0x7bc8] sm:$0xff]
        %v4378 = vld [vmem:[%s329 + $0x7bd0] sm:$0xff]
        %v4379 = vld [vmem:[%s329 + $0x7bd8] sm:$0xff]
        %v4380 = vld [vmem:[%s329 + $0x7be0] sm:$0xff]
        %v4381 = vld [vmem:[%s329 + $0x7be8] sm:$0xff]
        %v4382 = vld [vmem:[%s329 + $0x7bf0] sm:$0xff]
        %v4383 = vld [vmem:[%s329 + $0x7bf8] sm:$0xff]
        %v4384 = vld [vmem:[%s329 + $0x7c00] sm:$0xff]
        %v4385 = vld [vmem:[%s329 + $0x7c08] sm:$0xff]
        %v4386 = vld [vmem:[%s329 + $0x7c10] sm:$0xff]
        %v4387 = vld [vmem:[%s329 + $0x7c18] sm:$0xff]
        %v4388 = vld [vmem:[%s329 + $0x7c20] sm:$0xff]
        %v4389 = vld [vmem:[%s329 + $0x7c28] sm:$0xff]
        %v4390 = vld [vmem:[%s329 + $0x7c30] sm:$0xff]
        %v4391 = vld [vmem:[%s329 + $0x7c38] sm:$0xff]
        %v4392 = vld [vmem:[%s329 + $0x7c40] sm:$0xff]
        %v4393 = vld [vmem:[%s329 + $0x7c48] sm:$0xff]
        %v4394 = vld [vmem:[%s329 + $0x7c50] sm:$0xff]
        %v4395 = vld [vmem:[%s329 + $0x7c58] sm:$0xff]
        %v4396 = vld [vmem:[%s329 + $0x7c60] sm:$0xff]
        %v4397 = vld [vmem:[%s329 + $0x7c68] sm:$0xff]
        %v4398 = vld [vmem:[%s329 + $0x7c70] sm:$0xff]
        %v4399 = vld [vmem:[%s329 + $0x7c78] sm:$0xff]
        %v4400 = vld [vmem:[%s329 + $0x7c80] sm:$0xff]
        %v4401 = vld [vmem:[%s329 + $0x7c88] sm:$0xff]
        %v4402 = vld [vmem:[%s329 + $0x7c90] sm:$0xff]
        %v4403 = vld [vmem:[%s329 + $0x7c98] sm:$0xff]
        %v4404 = vld [vmem:[%s329 + $0x7ca0] sm:$0xff]
        %v4405 = vld [vmem:[%s329 + $0x7ca8] sm:$0xff]
        %v4406 = vld [vmem:[%s329 + $0x7cb0] sm:$0xff]
        %v4407 = vld [vmem:[%s329 + $0x7cb8] sm:$0xff]
        %v4408 = vld [vmem:[%s329 + $0x7cc0] sm:$0xff]
        %v4409 = vld [vmem:[%s329 + $0x7cc8] sm:$0xff]
        %v4410 = vld [vmem:[%s329 + $0x7cd0] sm:$0xff]
        %v4411 = vld [vmem:[%s329 + $0x7cd8] sm:$0xff]
        %v4412 = vld [vmem:[%s329 + $0x7ce0] sm:$0xff]
        %v4413 = vld [vmem:[%s329 + $0x7ce8] sm:$0xff]
        %v4414 = vld [vmem:[%s329 + $0x7cf0] sm:$0xff]
        %v4415 = vld [vmem:[%s329 + $0x7cf8] sm:$0xff]
        %v4416 = vld [vmem:[%s329 + $0x7d00] sm:$0xff]
        %v4417 = vld [vmem:[%s329 + $0x7d08] sm:$0xff]
        %v4418 = vld [vmem:[%s329 + $0x7d10] sm:$0xff]
        %v4419 = vld [vmem:[%s329 + $0x7d18] sm:$0xff]
        %v4420 = vld [vmem:[%s329 + $0x7d20] sm:$0xff]
        %v4421 = vld [vmem:[%s329 + $0x7d28] sm:$0xff]
        %v4422 = vld [vmem:[%s329 + $0x7d30] sm:$0xff]
        %v4423 = vld [vmem:[%s329 + $0x7d38] sm:$0xff]
        %v4424 = vld [vmem:[%s329 + $0x7d40] sm:$0xff]
        %v4425 = vld [vmem:[%s329 + $0x7d48] sm:$0xff]
        %v4426 = vld [vmem:[%s329 + $0x7d50] sm:$0xff]
        %v4427 = vld [vmem:[%s329 + $0x7d58] sm:$0xff]
        %v4428 = vld [vmem:[%s329 + $0x7d60] sm:$0xff]
        %v4429 = vld [vmem:[%s329 + $0x7d68] sm:$0xff]
        %v4430 = vld [vmem:[%s329 + $0x7d70] sm:$0xff]
        %v4431 = vld [vmem:[%s329 + $0x7d78] sm:$0xff]
        %v4432 = vld [vmem:[%s329 + $0x7d80] sm:$0xff]
        %v4433 = vld [vmem:[%s329 + $0x7d88] sm:$0xff]
        %v4434 = vld [vmem:[%s329 + $0x7d90] sm:$0xff]
        %v4435 = vld [vmem:[%s329 + $0x7d98] sm:$0xff]
        %v4436 = vld [vmem:[%s329 + $0x7da0] sm:$0xff]
        %v4437 = vld [vmem:[%s329 + $0x7da8] sm:$0xff]
        %v4438 = vld [vmem:[%s329 + $0x7db0] sm:$0xff]
        %v4439 = vld [vmem:[%s329 + $0x7db8] sm:$0xff]
        %v4440 = vld [vmem:[%s329 + $0x7dc0] sm:$0xff]
        %v4441 = vld [vmem:[%s329 + $0x7dc8] sm:$0xff]
        %v4442 = vld [vmem:[%s329 + $0x7dd0] sm:$0xff]
        %v4443 = vld [vmem:[%s329 + $0x7dd8] sm:$0xff]
        %v4444 = vld [vmem:[%s329 + $0x7de0] sm:$0xff]
        %v4445 = vld [vmem:[%s329 + $0x7de8] sm:$0xff]
        %v4446 = vld [vmem:[%s329 + $0x7df0] sm:$0xff]
        %v4447 = vld [vmem:[%s329 + $0x7df8] sm:$0xff]
        %v4448 = vld [vmem:[%s329 + $0x7e00] sm:$0xff]
        %v4449 = vld [vmem:[%s329 + $0x7e08] sm:$0xff]
        %v4450 = vld [vmem:[%s329 + $0x7e10] sm:$0xff]
        %v4451 = vld [vmem:[%s329 + $0x7e18] sm:$0xff]
        %v4452 = vld [vmem:[%s329 + $0x7e20] sm:$0xff]
        %v4453 = vld [vmem:[%s329 + $0x7e28] sm:$0xff]
        %v4454 = vld [vmem:[%s329 + $0x7e30] sm:$0xff]
        %v4455 = vld [vmem:[%s329 + $0x7e38] sm:$0xff]
        %v4456 = vld [vmem:[%s329 + $0x7e40] sm:$0xff]
        %v4457 = vld [vmem:[%s329 + $0x7e48] sm:$0xff]
        %v4458 = vld [vmem:[%s329 + $0x7e50] sm:$0xff]
        %v4459 = vld [vmem:[%s329 + $0x7e58] sm:$0xff]
        %v4460 = vld [vmem:[%s329 + $0x7e60] sm:$0xff]
        %v4461 = vld [vmem:[%s329 + $0x7e68] sm:$0xff]
        %v4462 = vld [vmem:[%s329 + $0x7e70] sm:$0xff]
        %v4463 = vld [vmem:[%s329 + $0x7e78] sm:$0xff]
        %v4464 = vld [vmem:[%s329 + $0x7e80] sm:$0xff]
        %v4465 = vld [vmem:[%s329 + $0x7e88] sm:$0xff]
        %v4466 = vld [vmem:[%s329 + $0x7e90] sm:$0xff]
        %v4467 = vld [vmem:[%s329 + $0x7e98] sm:$0xff]
        %v4468 = vld [vmem:[%s329 + $0x7ea0] sm:$0xff]
        %v4469 = vld [vmem:[%s329 + $0x7ea8] sm:$0xff]
        %v4470 = vld [vmem:[%s329 + $0x7eb0] sm:$0xff]
        %v4471 = vld [vmem:[%s329 + $0x7eb8] sm:$0xff]
        %v4472 = vld [vmem:[%s329 + $0x7ec0] sm:$0xff]
        %v4473 = vld [vmem:[%s329 + $0x7ec8] sm:$0xff]
        %v4474 = vld [vmem:[%s329 + $0x7ed0] sm:$0xff]
        %v4475 = vld [vmem:[%s329 + $0x7ed8] sm:$0xff]
        %v4476 = vld [vmem:[%s329 + $0x7ee0] sm:$0xff]
        %v4477 = vld [vmem:[%s329 + $0x7ee8] sm:$0xff]
        %v4478 = vld [vmem:[%s329 + $0x7ef0] sm:$0xff]
        %v4479 = vld [vmem:[%s329 + $0x7ef8] sm:$0xff]
        %v4480 = vld [vmem:[%s329 + $0x7f00] sm:$0xff]
        %v4481 = vld [vmem:[%s329 + $0x7f08] sm:$0xff]
        %v4482 = vld [vmem:[%s329 + $0x7f10] sm:$0xff]
        %v4483 = vld [vmem:[%s329 + $0x7f18] sm:$0xff]
        %v4484 = vld [vmem:[%s329 + $0x7f20] sm:$0xff]
        %v4485 = vld [vmem:[%s329 + $0x7f28] sm:$0xff]
        %v4486 = vld [vmem:[%s329 + $0x7f30] sm:$0xff]
        %v4487 = vld [vmem:[%s329 + $0x7f38] sm:$0xff]
        %v4488 = vld [vmem:[%s329 + $0x7f40] sm:$0xff]
        %v4489 = vld [vmem:[%s329 + $0x7f48] sm:$0xff]
        %v4490 = vld [vmem:[%s329 + $0x7f50] sm:$0xff]
        %v4491 = vld [vmem:[%s329 + $0x7f58] sm:$0xff]
        %v4492 = vld [vmem:[%s329 + $0x7f60] sm:$0xff]
        %v4493 = vld [vmem:[%s329 + $0x7f68] sm:$0xff]
        %v4494 = vld [vmem:[%s329 + $0x7f70] sm:$0xff]
        %v4495 = vld [vmem:[%s329 + $0x7f78] sm:$0xff]
        %v4496 = vld [vmem:[%s329 + $0x7f80] sm:$0xff]
        %v4497 = vld [vmem:[%s329 + $0x7f88] sm:$0xff]
        %v4498 = vld [vmem:[%s329 + $0x7f90] sm:$0xff]
        %v4499 = vld [vmem:[%s329 + $0x7f98] sm:$0xff]
        %v4500 = vld [vmem:[%s329 + $0x7fa0] sm:$0xff]
        %v4501 = vld [vmem:[%s329 + $0x7fa8] sm:$0xff]
        %v4502 = vld [vmem:[%s329 + $0x7fb0] sm:$0xff]
        %v4503 = vld [vmem:[%s329 + $0x7fb8] sm:$0xff]
        %v4504 = vld [vmem:[%s329 + $0x7fc0] sm:$0xff]
        %v4505 = vld [vmem:[%s329 + $0x7fc8] sm:$0xff]
        %v4506 = vld [vmem:[%s329 + $0x7fd0] sm:$0xff]
        %v4507 = vld [vmem:[%s329 + $0x7fd8] sm:$0xff]
        %v4508 = vld [vmem:[%s329 + $0x7fe0] sm:$0xff]
        %v4509 = vld [vmem:[%s329 + $0x7fe8] sm:$0xff]
        %v4510 = vld [vmem:[%s329 + $0x7ff0] sm:$0xff]
        %v4511 = vld [vmem:[%s329 + $0x7ff8] sm:$0xff]
        %v4544 = vcombine.high %v384, %v384
        %v4546 = vunpack.c.l.s4 1983009808
        %v4547 = vunpack.c.0.s8 %v4546
        %v4548 = vlaneseq
        %v4549 = vshrl.u32 %v4548, 7
        %v4550 = vsub.s32 %v4547, %v4549
        %v4551 = vrot.slane %v384, %v4550
        %v4553 = vunpack.c.l.s4 1983009808
        %v4554 = vunpack.c.0.s8 %v4553
        %v4555 = vlaneseq
        %v4556 = vshrl.u32 %v4555, 7
        %v4557 = vsub.s32 %v4554, %v4556
        %v4558 = vrot.slane %v4544, %v4557
        %v4559 = vcombine.high %v4551, %v4551
        %v4560 = vcombine.high %v4558, %v4558
        %v4561 = vcombine.high %v385, %v385
        %v4563 = vunpack.c.l.s4 1983009808
        %v4564 = vunpack.c.0.s8 %v4563
        %v4565 = vlaneseq
        %v4566 = vshrl.u32 %v4565, 7
        %v4567 = vsub.s32 %v4564, %v4566
        %v4568 = vrot.slane %v385, %v4567
        %v4570 = vunpack.c.l.s4 1983009808
        %v4571 = vunpack.c.0.s8 %v4570
        %v4572 = vlaneseq
        %v4573 = vshrl.u32 %v4572, 7
        %v4574 = vsub.s32 %v4571, %v4573
        %v4575 = vrot.slane %v4561, %v4574
        %v4576 = vcombine.high %v4568, %v4568
        %v4577 = vcombine.high %v4575, %v4575
        %v4578 = vcombine.high %v386, %v386
        %v4580 = vunpack.c.l.s4 1983009808
        %v4581 = vunpack.c.0.s8 %v4580
        %v4582 = vlaneseq
        %v4583 = vshrl.u32 %v4582, 7
        %v4584 = vsub.s32 %v4581, %v4583
        %v4585 = vrot.slane %v386, %v4584
        %v4587 = vunpack.c.l.s4 1983009808
        %v4588 = vunpack.c.0.s8 %v4587
        %v4589 = vlaneseq
        %v4590 = vshrl.u32 %v4589, 7
        %v4591 = vsub.s32 %v4588, %v4590
        %v4592 = vrot.slane %v4578, %v4591
        %v4593 = vcombine.high %v4585, %v4585
        %v4594 = vcombine.high %v4592, %v4592
        %v4595 = vcombine.high %v387, %v387
        %v4597 = vunpack.c.l.s4 1983009808
        %v4598 = vunpack.c.0.s8 %v4597
        %v4599 = vlaneseq
        %v4600 = vshrl.u32 %v4599, 7
        %v4601 = vsub.s32 %v4598, %v4600
        %v4602 = vrot.slane %v387, %v4601
        %v4604 = vunpack.c.l.s4 1983009808
        %v4605 = vunpack.c.0.s8 %v4604
        %v4606 = vlaneseq
        %v4607 = vshrl.u32 %v4606, 7
        %v4608 = vsub.s32 %v4605, %v4607
        %v4609 = vrot.slane %v4595, %v4608
        %v4610 = vcombine.high %v4602, %v4602
        %v4611 = vcombine.high %v4609, %v4609
        %v4612 = vcombine.high %v388, %v388
        %v4614 = vunpack.c.l.s4 1983009808
        %v4615 = vunpack.c.0.s8 %v4614
        %v4616 = vlaneseq
        %v4617 = vshrl.u32 %v4616, 7
        %v4618 = vsub.s32 %v4615, %v4617
        %v4619 = vrot.slane %v388, %v4618
        %v4621 = vunpack.c.l.s4 1983009808
        %v4622 = vunpack.c.0.s8 %v4621
        %v4623 = vlaneseq
        %v4624 = vshrl.u32 %v4623, 7
        %v4625 = vsub.s32 %v4622, %v4624
        %v4626 = vrot.slane %v4612, %v4625
        %v4627 = vcombine.high %v4619, %v4619
        %v4628 = vcombine.high %v4626, %v4626
        %v4629 = vcombine.high %v389, %v389
        %v4631 = vunpack.c.l.s4 1983009808
        %v4632 = vunpack.c.0.s8 %v4631
        %v4633 = vlaneseq
        %v4634 = vshrl.u32 %v4633, 7
        %v4635 = vsub.s32 %v4632, %v4634
        %v4636 = vrot.slane %v389, %v4635
        %v4638 = vunpack.c.l.s4 1983009808
        %v4639 = vunpack.c.0.s8 %v4638
        %v4640 = vlaneseq
        %v4641 = vshrl.u32 %v4640, 7
        %v4642 = vsub.s32 %v4639, %v4641
        %v4643 = vrot.slane %v4629, %v4642
        %v4644 = vcombine.high %v4636, %v4636
        %v4645 = vcombine.high %v4643, %v4643
        %v4646 = vcombine.high %v390, %v390
        %v4648 = vunpack.c.l.s4 1983009808
        %v4649 = vunpack.c.0.s8 %v4648
        %v4650 = vlaneseq
        %v4651 = vshrl.u32 %v4650, 7
        %v4652 = vsub.s32 %v4649, %v4651
        %v4653 = vrot.slane %v390, %v4652
        %v4655 = vunpack.c.l.s4 1983009808
        %v4656 = vunpack.c.0.s8 %v4655
        %v4657 = vlaneseq
        %v4658 = vshrl.u32 %v4657, 7
        %v4659 = vsub.s32 %v4656, %v4658
        %v4660 = vrot.slane %v4646, %v4659
        %v4661 = vcombine.high %v4653, %v4653
        %v4662 = vcombine.high %v4660, %v4660
        %v4663 = vcombine.high %v391, %v391
        %v4665 = vunpack.c.l.s4 1983009808
        %v4666 = vunpack.c.0.s8 %v4665
        %v4667 = vlaneseq
        %v4668 = vshrl.u32 %v4667, 7
        %v4669 = vsub.s32 %v4666, %v4668
        %v4670 = vrot.slane %v391, %v4669
        %v4672 = vunpack.c.l.s4 1983009808
        %v4673 = vunpack.c.0.s8 %v4672
        %v4674 = vlaneseq
        %v4675 = vshrl.u32 %v4674, 7
        %v4676 = vsub.s32 %v4673, %v4675
        %v4677 = vrot.slane %v4663, %v4676
        %v4678 = vcombine.high %v4670, %v4670
        %v4679 = vcombine.high %v4677, %v4677
        %v4680 = vcombine.high %v392, %v392
        %v4682 = vunpack.c.l.s4 1983009808
        %v4683 = vunpack.c.0.s8 %v4682
        %v4684 = vlaneseq
        %v4685 = vshrl.u32 %v4684, 7
        %v4686 = vsub.s32 %v4683, %v4685
        %v4687 = vrot.slane %v392, %v4686
        %v4689 = vunpack.c.l.s4 1983009808
        %v4690 = vunpack.c.0.s8 %v4689
        %v4691 = vlaneseq
        %v4692 = vshrl.u32 %v4691, 7
        %v4693 = vsub.s32 %v4690, %v4692
        %v4694 = vrot.slane %v4680, %v4693
        %v4695 = vcombine.high %v4687, %v4687
        %v4696 = vcombine.high %v4694, %v4694
        %v4697 = vcombine.high %v393, %v393
        %v4699 = vunpack.c.l.s4 1983009808
        %v4700 = vunpack.c.0.s8 %v4699
        %v4701 = vlaneseq
        %v4702 = vshrl.u32 %v4701, 7
        %v4703 = vsub.s32 %v4700, %v4702
        %v4704 = vrot.slane %v393, %v4703
        %v4706 = vunpack.c.l.s4 1983009808
        %v4707 = vunpack.c.0.s8 %v4706
        %v4708 = vlaneseq
        %v4709 = vshrl.u32 %v4708, 7
        %v4710 = vsub.s32 %v4707, %v4709
        %v4711 = vrot.slane %v4697, %v4710
        %v4712 = vcombine.high %v4704, %v4704
        %v4713 = vcombine.high %v4711, %v4711
        %v4714 = vcombine.high %v394, %v394
        %v4716 = vunpack.c.l.s4 1983009808
        %v4717 = vunpack.c.0.s8 %v4716
        %v4718 = vlaneseq
        %v4719 = vshrl.u32 %v4718, 7
        %v4720 = vsub.s32 %v4717, %v4719
        %v4721 = vrot.slane %v394, %v4720
        %v4723 = vunpack.c.l.s4 1983009808
        %v4724 = vunpack.c.0.s8 %v4723
        %v4725 = vlaneseq
        %v4726 = vshrl.u32 %v4725, 7
        %v4727 = vsub.s32 %v4724, %v4726
        %v4728 = vrot.slane %v4714, %v4727
        %v4729 = vcombine.high %v4721, %v4721
        %v4730 = vcombine.high %v4728, %v4728
        %v4731 = vcombine.high %v395, %v395
        %v4733 = vunpack.c.l.s4 1983009808
        %v4734 = vunpack.c.0.s8 %v4733
        %v4735 = vlaneseq
        %v4736 = vshrl.u32 %v4735, 7
        %v4737 = vsub.s32 %v4734, %v4736
        %v4738 = vrot.slane %v395, %v4737
        %v4740 = vunpack.c.l.s4 1983009808
        %v4741 = vunpack.c.0.s8 %v4740
        %v4742 = vlaneseq
        %v4743 = vshrl.u32 %v4742, 7
        %v4744 = vsub.s32 %v4741, %v4743
        %v4745 = vrot.slane %v4731, %v4744
        %v4746 = vcombine.high %v4738, %v4738
        %v4747 = vcombine.high %v4745, %v4745
        %v4748 = vcombine.high %v396, %v396
        %v4750 = vunpack.c.l.s4 1983009808
        %v4751 = vunpack.c.0.s8 %v4750
        %v4752 = vlaneseq
        %v4753 = vshrl.u32 %v4752, 7
        %v4754 = vsub.s32 %v4751, %v4753
        %v4755 = vrot.slane %v396, %v4754
        %v4757 = vunpack.c.l.s4 1983009808
        %v4758 = vunpack.c.0.s8 %v4757
        %v4759 = vlaneseq
        %v4760 = vshrl.u32 %v4759, 7
        %v4761 = vsub.s32 %v4758, %v4760
        %v4762 = vrot.slane %v4748, %v4761
        %v4763 = vcombine.high %v4755, %v4755
        %v4764 = vcombine.high %v4762, %v4762
        %v4765 = vcombine.high %v397, %v397
        %v4767 = vunpack.c.l.s4 1983009808
        %v4768 = vunpack.c.0.s8 %v4767
        %v4769 = vlaneseq
        %v4770 = vshrl.u32 %v4769, 7
        %v4771 = vsub.s32 %v4768, %v4770
        %v4772 = vrot.slane %v397, %v4771
        %v4774 = vunpack.c.l.s4 1983009808
        %v4775 = vunpack.c.0.s8 %v4774
        %v4776 = vlaneseq
        %v4777 = vshrl.u32 %v4776, 7
        %v4778 = vsub.s32 %v4775, %v4777
        %v4779 = vrot.slane %v4765, %v4778
        %v4780 = vcombine.high %v4772, %v4772
        %v4781 = vcombine.high %v4779, %v4779
        %v4782 = vcombine.high %v398, %v398
        %v4784 = vunpack.c.l.s4 1983009808
        %v4785 = vunpack.c.0.s8 %v4784
        %v4786 = vlaneseq
        %v4787 = vshrl.u32 %v4786, 7
        %v4788 = vsub.s32 %v4785, %v4787
        %v4789 = vrot.slane %v398, %v4788
        %v4791 = vunpack.c.l.s4 1983009808
        %v4792 = vunpack.c.0.s8 %v4791
        %v4793 = vlaneseq
        %v4794 = vshrl.u32 %v4793, 7
        %v4795 = vsub.s32 %v4792, %v4794
        %v4796 = vrot.slane %v4782, %v4795
        %v4797 = vcombine.high %v4789, %v4789
        %v4798 = vcombine.high %v4796, %v4796
        %v4799 = vcombine.high %v399, %v399
        %v4801 = vunpack.c.l.s4 1983009808
        %v4802 = vunpack.c.0.s8 %v4801
        %v4803 = vlaneseq
        %v4804 = vshrl.u32 %v4803, 7
        %v4805 = vsub.s32 %v4802, %v4804
        %v4806 = vrot.slane %v399, %v4805
        %v4808 = vunpack.c.l.s4 1983009808
        %v4809 = vunpack.c.0.s8 %v4808
        %v4810 = vlaneseq
        %v4811 = vshrl.u32 %v4810, 7
        %v4812 = vsub.s32 %v4809, %v4811
        %v4813 = vrot.slane %v4799, %v4812
        %v4814 = vcombine.high %v4806, %v4806
        %v4815 = vcombine.high %v4813, %v4813
        %v4816 = vcombine.high %v400, %v400
        %v4818 = vunpack.c.l.s4 1983009808
        %v4819 = vunpack.c.0.s8 %v4818
        %v4820 = vlaneseq
        %v4821 = vshrl.u32 %v4820, 7
        %v4822 = vsub.s32 %v4819, %v4821
        %v4823 = vrot.slane %v400, %v4822
        %v4825 = vunpack.c.l.s4 1983009808
        %v4826 = vunpack.c.0.s8 %v4825
        %v4827 = vlaneseq
        %v4828 = vshrl.u32 %v4827, 7
        %v4829 = vsub.s32 %v4826, %v4828
        %v4830 = vrot.slane %v4816, %v4829
        %v4831 = vcombine.high %v4823, %v4823
        %v4832 = vcombine.high %v4830, %v4830
        %v4833 = vcombine.high %v401, %v401
        %v4835 = vunpack.c.l.s4 1983009808
        %v4836 = vunpack.c.0.s8 %v4835
        %v4837 = vlaneseq
        %v4838 = vshrl.u32 %v4837, 7
        %v4839 = vsub.s32 %v4836, %v4838
        %v4840 = vrot.slane %v401, %v4839
        %v4842 = vunpack.c.l.s4 1983009808
        %v4843 = vunpack.c.0.s8 %v4842
        %v4844 = vlaneseq
        %v4845 = vshrl.u32 %v4844, 7
        %v4846 = vsub.s32 %v4843, %v4845
        %v4847 = vrot.slane %v4833, %v4846
        %v4848 = vcombine.high %v4840, %v4840
        %v4849 = vcombine.high %v4847, %v4847
        %v4850 = vcombine.high %v402, %v402
        %v4852 = vunpack.c.l.s4 1983009808
        %v4853 = vunpack.c.0.s8 %v4852
        %v4854 = vlaneseq
        %v4855 = vshrl.u32 %v4854, 7
        %v4856 = vsub.s32 %v4853, %v4855
        %v4857 = vrot.slane %v402, %v4856
        %v4859 = vunpack.c.l.s4 1983009808
        %v4860 = vunpack.c.0.s8 %v4859
        %v4861 = vlaneseq
        %v4862 = vshrl.u32 %v4861, 7
        %v4863 = vsub.s32 %v4860, %v4862
        %v4864 = vrot.slane %v4850, %v4863
        %v4865 = vcombine.high %v4857, %v4857
        %v4866 = vcombine.high %v4864, %v4864
        %v4867 = vcombine.high %v403, %v403
        %v4869 = vunpack.c.l.s4 1983009808
        %v4870 = vunpack.c.0.s8 %v4869
        %v4871 = vlaneseq
        %v4872 = vshrl.u32 %v4871, 7
        %v4873 = vsub.s32 %v4870, %v4872
        %v4874 = vrot.slane %v403, %v4873
        %v4876 = vunpack.c.l.s4 1983009808
        %v4877 = vunpack.c.0.s8 %v4876
        %v4878 = vlaneseq
        %v4879 = vshrl.u32 %v4878, 7
        %v4880 = vsub.s32 %v4877, %v4879
        %v4881 = vrot.slane %v4867, %v4880
        %v4882 = vcombine.high %v4874, %v4874
        %v4883 = vcombine.high %v4881, %v4881
        %v4884 = vcombine.high %v404, %v404
        %v4886 = vunpack.c.l.s4 1983009808
        %v4887 = vunpack.c.0.s8 %v4886
        %v4888 = vlaneseq
        %v4889 = vshrl.u32 %v4888, 7
        %v4890 = vsub.s32 %v4887, %v4889
        %v4891 = vrot.slane %v404, %v4890
        %v4893 = vunpack.c.l.s4 1983009808
        %v4894 = vunpack.c.0.s8 %v4893
        %v4895 = vlaneseq
        %v4896 = vshrl.u32 %v4895, 7
        %v4897 = vsub.s32 %v4894, %v4896
        %v4898 = vrot.slane %v4884, %v4897
        %v4899 = vcombine.high %v4891, %v4891
        %v4900 = vcombine.high %v4898, %v4898
        %v4901 = vcombine.high %v405, %v405
        %v4903 = vunpack.c.l.s4 1983009808
        %v4904 = vunpack.c.0.s8 %v4903
        %v4905 = vlaneseq
        %v4906 = vshrl.u32 %v4905, 7
        %v4907 = vsub.s32 %v4904, %v4906
        %v4908 = vrot.slane %v405, %v4907
        %v4910 = vunpack.c.l.s4 1983009808
        %v4911 = vunpack.c.0.s8 %v4910
        %v4912 = vlaneseq
        %v4913 = vshrl.u32 %v4912, 7
        %v4914 = vsub.s32 %v4911, %v4913
        %v4915 = vrot.slane %v4901, %v4914
        %v4916 = vcombine.high %v4908, %v4908
        %v4917 = vcombine.high %v4915, %v4915
        %v4918 = vcombine.high %v406, %v406
        %v4920 = vunpack.c.l.s4 1983009808
        %v4921 = vunpack.c.0.s8 %v4920
        %v4922 = vlaneseq
        %v4923 = vshrl.u32 %v4922, 7
        %v4924 = vsub.s32 %v4921, %v4923
        %v4925 = vrot.slane %v406, %v4924
        %v4927 = vunpack.c.l.s4 1983009808
        %v4928 = vunpack.c.0.s8 %v4927
        %v4929 = vlaneseq
        %v4930 = vshrl.u32 %v4929, 7
        %v4931 = vsub.s32 %v4928, %v4930
        %v4932 = vrot.slane %v4918, %v4931
        %v4933 = vcombine.high %v4925, %v4925
        %v4934 = vcombine.high %v4932, %v4932
        %v4935 = vcombine.high %v407, %v407
        %v4937 = vunpack.c.l.s4 1983009808
        %v4938 = vunpack.c.0.s8 %v4937
        %v4939 = vlaneseq
        %v4940 = vshrl.u32 %v4939, 7
        %v4941 = vsub.s32 %v4938, %v4940
        %v4942 = vrot.slane %v407, %v4941
        %v4944 = vunpack.c.l.s4 1983009808
        %v4945 = vunpack.c.0.s8 %v4944
        %v4946 = vlaneseq
        %v4947 = vshrl.u32 %v4946, 7
        %v4948 = vsub.s32 %v4945, %v4947
        %v4949 = vrot.slane %v4935, %v4948
        %v4950 = vcombine.high %v4942, %v4942
        %v4951 = vcombine.high %v4949, %v4949
        %v4952 = vcombine.high %v408, %v408
        %v4954 = vunpack.c.l.s4 1983009808
        %v4955 = vunpack.c.0.s8 %v4954
        %v4956 = vlaneseq
        %v4957 = vshrl.u32 %v4956, 7
        %v4958 = vsub.s32 %v4955, %v4957
        %v4959 = vrot.slane %v408, %v4958
        %v4961 = vunpack.c.l.s4 1983009808
        %v4962 = vunpack.c.0.s8 %v4961
        %v4963 = vlaneseq
        %v4964 = vshrl.u32 %v4963, 7
        %v4965 = vsub.s32 %v4962, %v4964
        %v4966 = vrot.slane %v4952, %v4965
        %v4967 = vcombine.high %v4959, %v4959
        %v4968 = vcombine.high %v4966, %v4966
        %v4969 = vcombine.high %v409, %v409
        %v4971 = vunpack.c.l.s4 1983009808
        %v4972 = vunpack.c.0.s8 %v4971
        %v4973 = vlaneseq
        %v4974 = vshrl.u32 %v4973, 7
        %v4975 = vsub.s32 %v4972, %v4974
        %v4976 = vrot.slane %v409, %v4975
        %v4978 = vunpack.c.l.s4 1983009808
        %v4979 = vunpack.c.0.s8 %v4978
        %v4980 = vlaneseq
        %v4981 = vshrl.u32 %v4980, 7
        %v4982 = vsub.s32 %v4979, %v4981
        %v4983 = vrot.slane %v4969, %v4982
        %v4984 = vcombine.high %v4976, %v4976
        %v4985 = vcombine.high %v4983, %v4983
        %v4986 = vcombine.high %v410, %v410
        %v4988 = vunpack.c.l.s4 1983009808
        %v4989 = vunpack.c.0.s8 %v4988
        %v4990 = vlaneseq
        %v4991 = vshrl.u32 %v4990, 7
        %v4992 = vsub.s32 %v4989, %v4991
        %v4993 = vrot.slane %v410, %v4992
        %v4995 = vunpack.c.l.s4 1983009808
        %v4996 = vunpack.c.0.s8 %v4995
        %v4997 = vlaneseq
        %v4998 = vshrl.u32 %v4997, 7
        %v4999 = vsub.s32 %v4996, %v4998
        %v5000 = vrot.slane %v4986, %v4999
        %v5001 = vcombine.high %v4993, %v4993
        %v5002 = vcombine.high %v5000, %v5000
        %v5003 = vcombine.high %v411, %v411
        %v5005 = vunpack.c.l.s4 1983009808
        %v5006 = vunpack.c.0.s8 %v5005
        %v5007 = vlaneseq
        %v5008 = vshrl.u32 %v5007, 7
        %v5009 = vsub.s32 %v5006, %v5008
        %v5010 = vrot.slane %v411, %v5009
        %v5012 = vunpack.c.l.s4 1983009808
        %v5013 = vunpack.c.0.s8 %v5012
        %v5014 = vlaneseq
        %v5015 = vshrl.u32 %v5014, 7
        %v5016 = vsub.s32 %v5013, %v5015
        %v5017 = vrot.slane %v5003, %v5016
        %v5018 = vcombine.high %v5010, %v5010
        %v5019 = vcombine.high %v5017, %v5017
        %v5020 = vcombine.high %v412, %v412
        %v5022 = vunpack.c.l.s4 1983009808
        %v5023 = vunpack.c.0.s8 %v5022
        %v5024 = vlaneseq
        %v5025 = vshrl.u32 %v5024, 7
        %v5026 = vsub.s32 %v5023, %v5025
        %v5027 = vrot.slane %v412, %v5026
        %v5029 = vunpack.c.l.s4 1983009808
        %v5030 = vunpack.c.0.s8 %v5029
        %v5031 = vlaneseq
        %v5032 = vshrl.u32 %v5031, 7
        %v5033 = vsub.s32 %v5030, %v5032
        %v5034 = vrot.slane %v5020, %v5033
        %v5035 = vcombine.high %v5027, %v5027
        %v5036 = vcombine.high %v5034, %v5034
        %v5037 = vcombine.high %v413, %v413
        %v5039 = vunpack.c.l.s4 1983009808
        %v5040 = vunpack.c.0.s8 %v5039
        %v5041 = vlaneseq
        %v5042 = vshrl.u32 %v5041, 7
        %v5043 = vsub.s32 %v5040, %v5042
        %v5044 = vrot.slane %v413, %v5043
        %v5046 = vunpack.c.l.s4 1983009808
        %v5047 = vunpack.c.0.s8 %v5046
        %v5048 = vlaneseq
        %v5049 = vshrl.u32 %v5048, 7
        %v5050 = vsub.s32 %v5047, %v5049
        %v5051 = vrot.slane %v5037, %v5050
        %v5052 = vcombine.high %v5044, %v5044
        %v5053 = vcombine.high %v5051, %v5051
        %v5054 = vcombine.high %v414, %v414
        %v5056 = vunpack.c.l.s4 1983009808
        %v5057 = vunpack.c.0.s8 %v5056
        %v5058 = vlaneseq
        %v5059 = vshrl.u32 %v5058, 7
        %v5060 = vsub.s32 %v5057, %v5059
        %v5061 = vrot.slane %v414, %v5060
        %v5063 = vunpack.c.l.s4 1983009808
        %v5064 = vunpack.c.0.s8 %v5063
        %v5065 = vlaneseq
        %v5066 = vshrl.u32 %v5065, 7
        %v5067 = vsub.s32 %v5064, %v5066
        %v5068 = vrot.slane %v5054, %v5067
        %v5069 = vcombine.high %v5061, %v5061
        %v5070 = vcombine.high %v5068, %v5068
        %v5071 = vcombine.high %v415, %v415
        %v5073 = vunpack.c.l.s4 1983009808
        %v5074 = vunpack.c.0.s8 %v5073
        %v5075 = vlaneseq
        %v5076 = vshrl.u32 %v5075, 7
        %v5077 = vsub.s32 %v5074, %v5076
        %v5078 = vrot.slane %v415, %v5077
        %v5080 = vunpack.c.l.s4 1983009808
        %v5081 = vunpack.c.0.s8 %v5080
        %v5082 = vlaneseq
        %v5083 = vshrl.u32 %v5082, 7
        %v5084 = vsub.s32 %v5081, %v5083
        %v5085 = vrot.slane %v5071, %v5084
        %v5086 = vcombine.high %v5078, %v5078
        %v5087 = vcombine.high %v5085, %v5085
        %5216 = vmatprep.subr.mxu0 %v447
        %5217 = vmatpush1.msra.mxu0 %v446
        %5218 = vmatprep.subr.mxu0 %v445
        %5219 = vmatpush1.msra.mxu0 %v444
        %5220 = vmatprep.subr.mxu0 %v443
        %5221 = vmatpush1.msra.mxu0 %v442
        %5222 = vmatprep.subr.mxu0 %v441
        %5223 = vmatpush1.msra.mxu0 %v440
        %5224 = vmatprep.subr.mxu0 %v439
        %5225 = vmatpush1.msra.mxu0 %v438
        %5226 = vmatprep.subr.mxu0 %v437
        %5227 = vmatpush1.msra.mxu0 %v436
        %5228 = vmatprep.subr.mxu0 %v435
        %5229 = vmatpush1.msra.mxu0 %v434
        %5230 = vmatprep.subr.mxu0 %v433
        %5231 = vmatpush1.msra.mxu0 %v432
        %5232 = vmatprep.subr.mxu0 %v431
        %5233 = vmatpush1.msra.mxu0 %v430
        %5234 = vmatprep.subr.mxu0 %v429
        %5235 = vmatpush1.msra.mxu0 %v428
        %5236 = vmatprep.subr.mxu0 %v427
        %5237 = vmatpush1.msra.mxu0 %v426
        %5238 = vmatprep.subr.mxu0 %v425
        %5239 = vmatpush1.msra.mxu0 %v424
        %5240 = vmatprep.subr.mxu0 %v423
        %5241 = vmatpush1.msra.mxu0 %v422
        %5242 = vmatprep.subr.mxu0 %v421
        %5243 = vmatpush1.msra.mxu0 %v420
        %5244 = vmatprep.subr.mxu0 %v419
        %5245 = vmatpush1.msra.mxu0 %v418
        %5246 = vmatprep.subr.mxu0 %v417
        %5247 = vmatpush1.msra.mxu0 %v416
        %5248 = vmatprep.subr.mxu0 %v479
        %5249 = vmatpush2.msra.mxu0 %v478
        %5250 = vmatprep.subr.mxu0 %v477
        %5251 = vmatpush2.msra.mxu0 %v476
        %5252 = vmatprep.subr.mxu0 %v475
        %5253 = vmatpush2.msra.mxu0 %v474
        %5254 = vmatprep.subr.mxu0 %v473
        %5255 = vmatpush2.msra.mxu0 %v472
        %5256 = vmatprep.subr.mxu0 %v471
        %5257 = vmatpush2.msra.mxu0 %v470
        %5258 = vmatprep.subr.mxu0 %v469
        %5259 = vmatpush2.msra.mxu0 %v468
        %5260 = vmatprep.subr.mxu0 %v467
        %5261 = vmatpush2.msra.mxu0 %v466
        %5262 = vmatprep.subr.mxu0 %v465
        %5263 = vmatpush2.msra.mxu0 %v464
        %5264 = vmatprep.subr.mxu0 %v463
        %5265 = vmatpush2.msra.mxu0 %v462
        %5266 = vmatprep.subr.mxu0 %v461
        %5267 = vmatpush2.msra.mxu0 %v460
        %5268 = vmatprep.subr.mxu0 %v459
        %5269 = vmatpush2.msra.mxu0 %v458
        %5270 = vmatprep.subr.mxu0 %v457
        %5271 = vmatpush2.msra.mxu0 %v456
        %5272 = vmatprep.subr.mxu0 %v455
        %5273 = vmatpush2.msra.mxu0 %v454
        %5274 = vmatprep.subr.mxu0 %v453
        %5275 = vmatpush2.msra.mxu0 %v452
        %5276 = vmatprep.subr.mxu0 %v451
        %5277 = vmatpush2.msra.mxu0 %v450
        %5278 = vmatprep.subr.mxu0 %v449
        %5279 = vmatpush2.msra.mxu0 %v448
        %5280 = vmatprep.mubr.f32.mxu0 %v4559
        %5281 = vmatmul.mubr.f32.gmra.mxu0 %v4551
        %v5282 = vpop.f32.mrf.mxu0
        %v5283 = vadd.f32 0.0, %v5282
        %v5284 = vpop.f32.mrf.mxu0
        %v5285 = vadd.f32 0.0, %v5284
        %5286 = vdwg.mxu0
        %5287 = vmatprep.subr.mxu0 %v511
        %5288 = vmatpush1.msra.mxu0 %v510
        %5289 = vmatprep.subr.mxu0 %v509
        %5290 = vmatpush1.msra.mxu0 %v508
        %5291 = vmatprep.subr.mxu0 %v507
        %5292 = vmatpush1.msra.mxu0 %v506
        %5293 = vmatprep.subr.mxu0 %v505
        %5294 = vmatpush1.msra.mxu0 %v504
        %5295 = vmatprep.subr.mxu0 %v503
        %5296 = vmatpush1.msra.mxu0 %v502
        %5297 = vmatprep.subr.mxu0 %v501
        %5298 = vmatpush1.msra.mxu0 %v500
        %5299 = vmatprep.subr.mxu0 %v499
        %5300 = vmatpush1.msra.mxu0 %v498
        %5301 = vmatprep.subr.mxu0 %v497
        %5302 = vmatpush1.msra.mxu0 %v496
        %5303 = vmatprep.subr.mxu0 %v495
        %5304 = vmatpush1.msra.mxu0 %v494
        %5305 = vmatprep.subr.mxu0 %v493
        %5306 = vmatpush1.msra.mxu0 %v492
        %5307 = vmatprep.subr.mxu0 %v491
        %5308 = vmatpush1.msra.mxu0 %v490
        %5309 = vmatprep.subr.mxu0 %v489
        %5310 = vmatpush1.msra.mxu0 %v488
        %5311 = vmatprep.subr.mxu0 %v487
        %5312 = vmatpush1.msra.mxu0 %v486
        %5313 = vmatprep.subr.mxu0 %v485
        %5314 = vmatpush1.msra.mxu0 %v484
        %5315 = vmatprep.subr.mxu0 %v483
        %5316 = vmatpush1.msra.mxu0 %v482
        %5317 = vmatprep.subr.mxu0 %v481
        %5318 = vmatpush1.msra.mxu0 %v480
        %5319 = vmatprep.subr.mxu0 %v543
        %5320 = vmatpush2.msra.mxu0 %v542
        %5321 = vmatprep.subr.mxu0 %v541
        %5322 = vmatpush2.msra.mxu0 %v540
        %5323 = vmatprep.subr.mxu0 %v539
        %5324 = vmatpush2.msra.mxu0 %v538
        %5325 = vmatprep.subr.mxu0 %v537
        %5326 = vmatpush2.msra.mxu0 %v536
        %5327 = vmatprep.subr.mxu0 %v535
        %5328 = vmatpush2.msra.mxu0 %v534
        %5329 = vmatprep.subr.mxu0 %v533
        %5330 = vmatpush2.msra.mxu0 %v532
        %5331 = vmatprep.subr.mxu0 %v531
        %5332 = vmatpush2.msra.mxu0 %v530
        %5333 = vmatprep.subr.mxu0 %v529
        %5334 = vmatpush2.msra.mxu0 %v528
        %5335 = vmatprep.subr.mxu0 %v527
        %5336 = vmatpush2.msra.mxu0 %v526
        %5337 = vmatprep.subr.mxu0 %v525
        %5338 = vmatpush2.msra.mxu0 %v524
        %5339 = vmatprep.subr.mxu0 %v523
        %5340 = vmatpush2.msra.mxu0 %v522
        %5341 = vmatprep.subr.mxu0 %v521
        %5342 = vmatpush2.msra.mxu0 %v520
        %5343 = vmatprep.subr.mxu0 %v519
        %5344 = vmatpush2.msra.mxu0 %v518
        %5345 = vmatprep.subr.mxu0 %v517
        %5346 = vmatpush2.msra.mxu0 %v516
        %5347 = vmatprep.subr.mxu0 %v515
        %5348 = vmatpush2.msra.mxu0 %v514
        %5349 = vmatprep.subr.mxu0 %v513
        %5350 = vmatpush2.msra.mxu0 %v512
        %5351 = vmatprep.mubr.f32.mxu0 %v4560
        %5352 = vmatmul.mubr.f32.gmra.mxu0 %v4558
        %v5353 = vpop.f32.mrf.mxu0
        %v5354 = vadd.f32 %v5283, %v5353
        %v5355 = vpop.f32.mrf.mxu0
        %v5356 = vadd.f32 %v5285, %v5355
        %5357 = vdwg.mxu0
        %5358 = vmatprep.subr.mxu0 %v575
        %5359 = vmatpush1.msra.mxu0 %v574
        %5360 = vmatprep.subr.mxu0 %v573
        %5361 = vmatpush1.msra.mxu0 %v572
        %5362 = vmatprep.subr.mxu0 %v571
        %5363 = vmatpush1.msra.mxu0 %v570
        %5364 = vmatprep.subr.mxu0 %v569
        %5365 = vmatpush1.msra.mxu0 %v568
        %5366 = vmatprep.subr.mxu0 %v567
        %5367 = vmatpush1.msra.mxu0 %v566
        %5368 = vmatprep.subr.mxu0 %v565
        %5369 = vmatpush1.msra.mxu0 %v564
        %5370 = vmatprep.subr.mxu0 %v563
        %5371 = vmatpush1.msra.mxu0 %v562
        %5372 = vmatprep.subr.mxu0 %v561
        %5373 = vmatpush1.msra.mxu0 %v560
        %5374 = vmatprep.subr.mxu0 %v559
        %5375 = vmatpush1.msra.mxu0 %v558
        %5376 = vmatprep.subr.mxu0 %v557
        %5377 = vmatpush1.msra.mxu0 %v556
        %5378 = vmatprep.subr.mxu0 %v555
        %5379 = vmatpush1.msra.mxu0 %v554
        %5380 = vmatprep.subr.mxu0 %v553
        %5381 = vmatpush1.msra.mxu0 %v552
        %5382 = vmatprep.subr.mxu0 %v551
        %5383 = vmatpush1.msra.mxu0 %v550
        %5384 = vmatprep.subr.mxu0 %v549
        %5385 = vmatpush1.msra.mxu0 %v548
        %5386 = vmatprep.subr.mxu0 %v547
        %5387 = vmatpush1.msra.mxu0 %v546
        %5388 = vmatprep.subr.mxu0 %v545
        %5389 = vmatpush1.msra.mxu0 %v544
        %5390 = vmatprep.subr.mxu0 %v607
        %5391 = vmatpush2.msra.mxu0 %v606
        %5392 = vmatprep.subr.mxu0 %v605
        %5393 = vmatpush2.msra.mxu0 %v604
        %5394 = vmatprep.subr.mxu0 %v603
        %5395 = vmatpush2.msra.mxu0 %v602
        %5396 = vmatprep.subr.mxu0 %v601
        %5397 = vmatpush2.msra.mxu0 %v600
        %5398 = vmatprep.subr.mxu0 %v599
        %5399 = vmatpush2.msra.mxu0 %v598
        %5400 = vmatprep.subr.mxu0 %v597
        %5401 = vmatpush2.msra.mxu0 %v596
        %5402 = vmatprep.subr.mxu0 %v595
        %5403 = vmatpush2.msra.mxu0 %v594
        %5404 = vmatprep.subr.mxu0 %v593
        %5405 = vmatpush2.msra.mxu0 %v592
        %5406 = vmatprep.subr.mxu0 %v591
        %5407 = vmatpush2.msra.mxu0 %v590
        %5408 = vmatprep.subr.mxu0 %v589
        %5409 = vmatpush2.msra.mxu0 %v588
        %5410 = vmatprep.subr.mxu0 %v587
        %5411 = vmatpush2.msra.mxu0 %v586
        %5412 = vmatprep.subr.mxu0 %v585
        %5413 = vmatpush2.msra.mxu0 %v584
        %5414 = vmatprep.subr.mxu0 %v583
        %5415 = vmatpush2.msra.mxu0 %v582
        %5416 = vmatprep.subr.mxu0 %v581
        %5417 = vmatpush2.msra.mxu0 %v580
        %5418 = vmatprep.subr.mxu0 %v579
        %5419 = vmatpush2.msra.mxu0 %v578
        %5420 = vmatprep.subr.mxu0 %v577
        %5421 = vmatpush2.msra.mxu0 %v576
        %5422 = vmatprep.mubr.f32.mxu0 %v4576
        %5423 = vmatmul.mubr.f32.gmra.mxu0 %v4568
        %v5424 = vpop.f32.mrf.mxu0
        %v5425 = vadd.f32 %v5354, %v5424
        %v5426 = vpop.f32.mrf.mxu0
        %v5427 = vadd.f32 %v5356, %v5426
        %5428 = vdwg.mxu0
        %5429 = vmatprep.subr.mxu0 %v639
        %5430 = vmatpush1.msra.mxu0 %v638
        %5431 = vmatprep.subr.mxu0 %v637
        %5432 = vmatpush1.msra.mxu0 %v636
        %5433 = vmatprep.subr.mxu0 %v635
        %5434 = vmatpush1.msra.mxu0 %v634
        %5435 = vmatprep.subr.mxu0 %v633
        %5436 = vmatpush1.msra.mxu0 %v632
        %5437 = vmatprep.subr.mxu0 %v631
        %5438 = vmatpush1.msra.mxu0 %v630
        %5439 = vmatprep.subr.mxu0 %v629
        %5440 = vmatpush1.msra.mxu0 %v628
        %5441 = vmatprep.subr.mxu0 %v627
        %5442 = vmatpush1.msra.mxu0 %v626
        %5443 = vmatprep.subr.mxu0 %v625
        %5444 = vmatpush1.msra.mxu0 %v624
        %5445 = vmatprep.subr.mxu0 %v623
        %5446 = vmatpush1.msra.mxu0 %v622
        %5447 = vmatprep.subr.mxu0 %v621
        %5448 = vmatpush1.msra.mxu0 %v620
        %5449 = vmatprep.subr.mxu0 %v619
        %5450 = vmatpush1.msra.mxu0 %v618
        %5451 = vmatprep.subr.mxu0 %v617
        %5452 = vmatpush1.msra.mxu0 %v616
        %5453 = vmatprep.subr.mxu0 %v615
        %5454 = vmatpush1.msra.mxu0 %v614
        %5455 = vmatprep.subr.mxu0 %v613
        %5456 = vmatpush1.msra.mxu0 %v612
        %5457 = vmatprep.subr.mxu0 %v611
        %5458 = vmatpush1.msra.mxu0 %v610
        %5459 = vmatprep.subr.mxu0 %v609
        %5460 = vmatpush1.msra.mxu0 %v608
        %5461 = vmatprep.subr.mxu0 %v671
        %5462 = vmatpush2.msra.mxu0 %v670
        %5463 = vmatprep.subr.mxu0 %v669
        %5464 = vmatpush2.msra.mxu0 %v668
        %5465 = vmatprep.subr.mxu0 %v667
        %5466 = vmatpush2.msra.mxu0 %v666
        %5467 = vmatprep.subr.mxu0 %v665
        %5468 = vmatpush2.msra.mxu0 %v664
        %5469 = vmatprep.subr.mxu0 %v663
        %5470 = vmatpush2.msra.mxu0 %v662
        %5471 = vmatprep.subr.mxu0 %v661
        %5472 = vmatpush2.msra.mxu0 %v660
        %5473 = vmatprep.subr.mxu0 %v659
        %5474 = vmatpush2.msra.mxu0 %v658
        %5475 = vmatprep.subr.mxu0 %v657
        %5476 = vmatpush2.msra.mxu0 %v656
        %5477 = vmatprep.subr.mxu0 %v655
        %5478 = vmatpush2.msra.mxu0 %v654
        %5479 = vmatprep.subr.mxu0 %v653
        %5480 = vmatpush2.msra.mxu0 %v652
        %5481 = vmatprep.subr.mxu0 %v651
        %5482 = vmatpush2.msra.mxu0 %v650
        %5483 = vmatprep.subr.mxu0 %v649
        %5484 = vmatpush2.msra.mxu0 %v648
        %5485 = vmatprep.subr.mxu0 %v647
        %5486 = vmatpush2.msra.mxu0 %v646
        %5487 = vmatprep.subr.mxu0 %v645
        %5488 = vmatpush2.msra.mxu0 %v644
        %5489 = vmatprep.subr.mxu0 %v643
        %5490 = vmatpush2.msra.mxu0 %v642
        %5491 = vmatprep.subr.mxu0 %v641
        %5492 = vmatpush2.msra.mxu0 %v640
        %5493 = vmatprep.mubr.f32.mxu0 %v4577
        %5494 = vmatmul.mubr.f32.gmra.mxu0 %v4575
        %v5495 = vpop.f32.mrf.mxu0
        %v5496 = vadd.f32 %v5425, %v5495
        %v5497 = vpop.f32.mrf.mxu0
        %v5498 = vadd.f32 %v5427, %v5497
        %5499 = vdwg.mxu0
        %5500 = vmatprep.subr.mxu0 %v703
        %5501 = vmatpush1.msra.mxu0 %v702
        %5502 = vmatprep.subr.mxu0 %v701
        %5503 = vmatpush1.msra.mxu0 %v700
        %5504 = vmatprep.subr.mxu0 %v699
        %5505 = vmatpush1.msra.mxu0 %v698
        %5506 = vmatprep.subr.mxu0 %v697
        %5507 = vmatpush1.msra.mxu0 %v696
        %5508 = vmatprep.subr.mxu0 %v695
        %5509 = vmatpush1.msra.mxu0 %v694
        %5510 = vmatprep.subr.mxu0 %v693
        %5511 = vmatpush1.msra.mxu0 %v692
        %5512 = vmatprep.subr.mxu0 %v691
        %5513 = vmatpush1.msra.mxu0 %v690
        %5514 = vmatprep.subr.mxu0 %v689
        %5515 = vmatpush1.msra.mxu0 %v688
        %5516 = vmatprep.subr.mxu0 %v687
        %5517 = vmatpush1.msra.mxu0 %v686
        %5518 = vmatprep.subr.mxu0 %v685
        %5519 = vmatpush1.msra.mxu0 %v684
        %5520 = vmatprep.subr.mxu0 %v683
        %5521 = vmatpush1.msra.mxu0 %v682
        %5522 = vmatprep.subr.mxu0 %v681
        %5523 = vmatpush1.msra.mxu0 %v680
        %5524 = vmatprep.subr.mxu0 %v679
        %5525 = vmatpush1.msra.mxu0 %v678
        %5526 = vmatprep.subr.mxu0 %v677
        %5527 = vmatpush1.msra.mxu0 %v676
        %5528 = vmatprep.subr.mxu0 %v675
        %5529 = vmatpush1.msra.mxu0 %v674
        %5530 = vmatprep.subr.mxu0 %v673
        %5531 = vmatpush1.msra.mxu0 %v672
        %5532 = vmatprep.subr.mxu0 %v735
        %5533 = vmatpush2.msra.mxu0 %v734
        %5534 = vmatprep.subr.mxu0 %v733
        %5535 = vmatpush2.msra.mxu0 %v732
        %5536 = vmatprep.subr.mxu0 %v731
        %5537 = vmatpush2.msra.mxu0 %v730
        %5538 = vmatprep.subr.mxu0 %v729
        %5539 = vmatpush2.msra.mxu0 %v728
        %5540 = vmatprep.subr.mxu0 %v727
        %5541 = vmatpush2.msra.mxu0 %v726
        %5542 = vmatprep.subr.mxu0 %v725
        %5543 = vmatpush2.msra.mxu0 %v724
        %5544 = vmatprep.subr.mxu0 %v723
        %5545 = vmatpush2.msra.mxu0 %v722
        %5546 = vmatprep.subr.mxu0 %v721
        %5547 = vmatpush2.msra.mxu0 %v720
        %5548 = vmatprep.subr.mxu0 %v719
        %5549 = vmatpush2.msra.mxu0 %v718
        %5550 = vmatprep.subr.mxu0 %v717
        %5551 = vmatpush2.msra.mxu0 %v716
        %5552 = vmatprep.subr.mxu0 %v715
        %5553 = vmatpush2.msra.mxu0 %v714
        %5554 = vmatprep.subr.mxu0 %v713
        %5555 = vmatpush2.msra.mxu0 %v712
        %5556 = vmatprep.subr.mxu0 %v711
        %5557 = vmatpush2.msra.mxu0 %v710
        %5558 = vmatprep.subr.mxu0 %v709
        %5559 = vmatpush2.msra.mxu0 %v708
        %5560 = vmatprep.subr.mxu0 %v707
        %5561 = vmatpush2.msra.mxu0 %v706
        %5562 = vmatprep.subr.mxu0 %v705
        %5563 = vmatpush2.msra.mxu0 %v704
        %5564 = vmatprep.mubr.f32.mxu0 %v4593
        %5565 = vmatmul.mubr.f32.gmra.mxu0 %v4585
        %v5566 = vpop.f32.mrf.mxu0
        %v5567 = vadd.f32 %v5496, %v5566
        %v5568 = vpop.f32.mrf.mxu0
        %v5569 = vadd.f32 %v5498, %v5568
        %5570 = vdwg.mxu0
        %5571 = vmatprep.subr.mxu0 %v767
        %5572 = vmatpush1.msra.mxu0 %v766
        %5573 = vmatprep.subr.mxu0 %v765
        %5574 = vmatpush1.msra.mxu0 %v764
        %5575 = vmatprep.subr.mxu0 %v763
        %5576 = vmatpush1.msra.mxu0 %v762
        %5577 = vmatprep.subr.mxu0 %v761
        %5578 = vmatpush1.msra.mxu0 %v760
        %5579 = vmatprep.subr.mxu0 %v759
        %5580 = vmatpush1.msra.mxu0 %v758
        %5581 = vmatprep.subr.mxu0 %v757
        %5582 = vmatpush1.msra.mxu0 %v756
        %5583 = vmatprep.subr.mxu0 %v755
        %5584 = vmatpush1.msra.mxu0 %v754
        %5585 = vmatprep.subr.mxu0 %v753
        %5586 = vmatpush1.msra.mxu0 %v752
        %5587 = vmatprep.subr.mxu0 %v751
        %5588 = vmatpush1.msra.mxu0 %v750
        %5589 = vmatprep.subr.mxu0 %v749
        %5590 = vmatpush1.msra.mxu0 %v748
        %5591 = vmatprep.subr.mxu0 %v747
        %5592 = vmatpush1.msra.mxu0 %v746
        %5593 = vmatprep.subr.mxu0 %v745
        %5594 = vmatpush1.msra.mxu0 %v744
        %5595 = vmatprep.subr.mxu0 %v743
        %5596 = vmatpush1.msra.mxu0 %v742
        %5597 = vmatprep.subr.mxu0 %v741
        %5598 = vmatpush1.msra.mxu0 %v740
        %5599 = vmatprep.subr.mxu0 %v739
        %5600 = vmatpush1.msra.mxu0 %v738
        %5601 = vmatprep.subr.mxu0 %v737
        %5602 = vmatpush1.msra.mxu0 %v736
        %5603 = vmatprep.subr.mxu0 %v799
        %5604 = vmatpush2.msra.mxu0 %v798
        %5605 = vmatprep.subr.mxu0 %v797
        %5606 = vmatpush2.msra.mxu0 %v796
        %5607 = vmatprep.subr.mxu0 %v795
        %5608 = vmatpush2.msra.mxu0 %v794
        %5609 = vmatprep.subr.mxu0 %v793
        %5610 = vmatpush2.msra.mxu0 %v792
        %5611 = vmatprep.subr.mxu0 %v791
        %5612 = vmatpush2.msra.mxu0 %v790
        %5613 = vmatprep.subr.mxu0 %v789
        %5614 = vmatpush2.msra.mxu0 %v788
        %5615 = vmatprep.subr.mxu0 %v787
        %5616 = vmatpush2.msra.mxu0 %v786
        %5617 = vmatprep.subr.mxu0 %v785
        %5618 = vmatpush2.msra.mxu0 %v784
        %5619 = vmatprep.subr.mxu0 %v783
        %5620 = vmatpush2.msra.mxu0 %v782
        %5621 = vmatprep.subr.mxu0 %v781
        %5622 = vmatpush2.msra.mxu0 %v780
        %5623 = vmatprep.subr.mxu0 %v779
        %5624 = vmatpush2.msra.mxu0 %v778
        %5625 = vmatprep.subr.mxu0 %v777
        %5626 = vmatpush2.msra.mxu0 %v776
        %5627 = vmatprep.subr.mxu0 %v775
        %5628 = vmatpush2.msra.mxu0 %v774
        %5629 = vmatprep.subr.mxu0 %v773
        %5630 = vmatpush2.msra.mxu0 %v772
        %5631 = vmatprep.subr.mxu0 %v771
        %5632 = vmatpush2.msra.mxu0 %v770
        %5633 = vmatprep.subr.mxu0 %v769
        %5634 = vmatpush2.msra.mxu0 %v768
        %5635 = vmatprep.mubr.f32.mxu0 %v4594
        %5636 = vmatmul.mubr.f32.gmra.mxu0 %v4592
        %v5637 = vpop.f32.mrf.mxu0
        %v5638 = vadd.f32 %v5567, %v5637
        %v5639 = vpop.f32.mrf.mxu0
        %v5640 = vadd.f32 %v5569, %v5639
        %5641 = vdwg.mxu0
        %5642 = vmatprep.subr.mxu0 %v831
        %5643 = vmatpush1.msra.mxu0 %v830
        %5644 = vmatprep.subr.mxu0 %v829
        %5645 = vmatpush1.msra.mxu0 %v828
        %5646 = vmatprep.subr.mxu0 %v827
        %5647 = vmatpush1.msra.mxu0 %v826
        %5648 = vmatprep.subr.mxu0 %v825
        %5649 = vmatpush1.msra.mxu0 %v824
        %5650 = vmatprep.subr.mxu0 %v823
        %5651 = vmatpush1.msra.mxu0 %v822
        %5652 = vmatprep.subr.mxu0 %v821
        %5653 = vmatpush1.msra.mxu0 %v820
        %5654 = vmatprep.subr.mxu0 %v819
        %5655 = vmatpush1.msra.mxu0 %v818
        %5656 = vmatprep.subr.mxu0 %v817
        %5657 = vmatpush1.msra.mxu0 %v816
        %5658 = vmatprep.subr.mxu0 %v815
        %5659 = vmatpush1.msra.mxu0 %v814
        %5660 = vmatprep.subr.mxu0 %v813
        %5661 = vmatpush1.msra.mxu0 %v812
        %5662 = vmatprep.subr.mxu0 %v811
        %5663 = vmatpush1.msra.mxu0 %v810
        %5664 = vmatprep.subr.mxu0 %v809
        %5665 = vmatpush1.msra.mxu0 %v808
        %5666 = vmatprep.subr.mxu0 %v807
        %5667 = vmatpush1.msra.mxu0 %v806
        %5668 = vmatprep.subr.mxu0 %v805
        %5669 = vmatpush1.msra.mxu0 %v804
        %5670 = vmatprep.subr.mxu0 %v803
        %5671 = vmatpush1.msra.mxu0 %v802
        %5672 = vmatprep.subr.mxu0 %v801
        %5673 = vmatpush1.msra.mxu0 %v800
        %5674 = vmatprep.subr.mxu0 %v863
        %5675 = vmatpush2.msra.mxu0 %v862
        %5676 = vmatprep.subr.mxu0 %v861
        %5677 = vmatpush2.msra.mxu0 %v860
        %5678 = vmatprep.subr.mxu0 %v859
        %5679 = vmatpush2.msra.mxu0 %v858
        %5680 = vmatprep.subr.mxu0 %v857
        %5681 = vmatpush2.msra.mxu0 %v856
        %5682 = vmatprep.subr.mxu0 %v855
        %5683 = vmatpush2.msra.mxu0 %v854
        %5684 = vmatprep.subr.mxu0 %v853
        %5685 = vmatpush2.msra.mxu0 %v852
        %5686 = vmatprep.subr.mxu0 %v851
        %5687 = vmatpush2.msra.mxu0 %v850
        %5688 = vmatprep.subr.mxu0 %v849
        %5689 = vmatpush2.msra.mxu0 %v848
        %5690 = vmatprep.subr.mxu0 %v847
        %5691 = vmatpush2.msra.mxu0 %v846
        %5692 = vmatprep.subr.mxu0 %v845
        %5693 = vmatpush2.msra.mxu0 %v844
        %5694 = vmatprep.subr.mxu0 %v843
        %5695 = vmatpush2.msra.mxu0 %v842
        %5696 = vmatprep.subr.mxu0 %v841
        %5697 = vmatpush2.msra.mxu0 %v840
        %5698 = vmatprep.subr.mxu0 %v839
        %5699 = vmatpush2.msra.mxu0 %v838
        %5700 = vmatprep.subr.mxu0 %v837
        %5701 = vmatpush2.msra.mxu0 %v836
        %5702 = vmatprep.subr.mxu0 %v835
        %5703 = vmatpush2.msra.mxu0 %v834
        %5704 = vmatprep.subr.mxu0 %v833
        %5705 = vmatpush2.msra.mxu0 %v832
        %5706 = vmatprep.mubr.f32.mxu0 %v4610
        %5707 = vmatmul.mubr.f32.gmra.mxu0 %v4602
        %v5708 = vpop.f32.mrf.mxu0
        %v5709 = vadd.f32 %v5638, %v5708
        %v5710 = vpop.f32.mrf.mxu0
        %v5711 = vadd.f32 %v5640, %v5710
        %5712 = vdwg.mxu0
        %5713 = vmatprep.subr.mxu0 %v895
        %5714 = vmatpush1.msra.mxu0 %v894
        %5715 = vmatprep.subr.mxu0 %v893
        %5716 = vmatpush1.msra.mxu0 %v892
        %5717 = vmatprep.subr.mxu0 %v891
        %5718 = vmatpush1.msra.mxu0 %v890
        %5719 = vmatprep.subr.mxu0 %v889
        %5720 = vmatpush1.msra.mxu0 %v888
        %5721 = vmatprep.subr.mxu0 %v887
        %5722 = vmatpush1.msra.mxu0 %v886
        %5723 = vmatprep.subr.mxu0 %v885
        %5724 = vmatpush1.msra.mxu0 %v884
        %5725 = vmatprep.subr.mxu0 %v883
        %5726 = vmatpush1.msra.mxu0 %v882
        %5727 = vmatprep.subr.mxu0 %v881
        %5728 = vmatpush1.msra.mxu0 %v880
        %5729 = vmatprep.subr.mxu0 %v879
        %5730 = vmatpush1.msra.mxu0 %v878
        %5731 = vmatprep.subr.mxu0 %v877
        %5732 = vmatpush1.msra.mxu0 %v876
        %5733 = vmatprep.subr.mxu0 %v875
        %5734 = vmatpush1.msra.mxu0 %v874
        %5735 = vmatprep.subr.mxu0 %v873
        %5736 = vmatpush1.msra.mxu0 %v872
        %5737 = vmatprep.subr.mxu0 %v871
        %5738 = vmatpush1.msra.mxu0 %v870
        %5739 = vmatprep.subr.mxu0 %v869
        %5740 = vmatpush1.msra.mxu0 %v868
        %5741 = vmatprep.subr.mxu0 %v867
        %5742 = vmatpush1.msra.mxu0 %v866
        %5743 = vmatprep.subr.mxu0 %v865
        %5744 = vmatpush1.msra.mxu0 %v864
        %5745 = vmatprep.subr.mxu0 %v927
        %5746 = vmatpush2.msra.mxu0 %v926
        %5747 = vmatprep.subr.mxu0 %v925
        %5748 = vmatpush2.msra.mxu0 %v924
        %5749 = vmatprep.subr.mxu0 %v923
        %5750 = vmatpush2.msra.mxu0 %v922
        %5751 = vmatprep.subr.mxu0 %v921
        %5752 = vmatpush2.msra.mxu0 %v920
        %5753 = vmatprep.subr.mxu0 %v919
        %5754 = vmatpush2.msra.mxu0 %v918
        %5755 = vmatprep.subr.mxu0 %v917
        %5756 = vmatpush2.msra.mxu0 %v916
        %5757 = vmatprep.subr.mxu0 %v915
        %5758 = vmatpush2.msra.mxu0 %v914
        %5759 = vmatprep.subr.mxu0 %v913
        %5760 = vmatpush2.msra.mxu0 %v912
        %5761 = vmatprep.subr.mxu0 %v911
        %5762 = vmatpush2.msra.mxu0 %v910
        %5763 = vmatprep.subr.mxu0 %v909
        %5764 = vmatpush2.msra.mxu0 %v908
        %5765 = vmatprep.subr.mxu0 %v907
        %5766 = vmatpush2.msra.mxu0 %v906
        %5767 = vmatprep.subr.mxu0 %v905
        %5768 = vmatpush2.msra.mxu0 %v904
        %5769 = vmatprep.subr.mxu0 %v903
        %5770 = vmatpush2.msra.mxu0 %v902
        %5771 = vmatprep.subr.mxu0 %v901
        %5772 = vmatpush2.msra.mxu0 %v900
        %5773 = vmatprep.subr.mxu0 %v899
        %5774 = vmatpush2.msra.mxu0 %v898
        %5775 = vmatprep.subr.mxu0 %v897
        %5776 = vmatpush2.msra.mxu0 %v896
        %5777 = vmatprep.mubr.f32.mxu0 %v4611
        %5778 = vmatmul.mubr.f32.gmra.mxu0 %v4609
        %v5779 = vpop.f32.mrf.mxu0
        %v5780 = vadd.f32 %v5709, %v5779
        %v5781 = vpop.f32.mrf.mxu0
        %v5782 = vadd.f32 %v5711, %v5781
        %5783 = vdwg.mxu0
        %5784 = vmatprep.subr.mxu0 %v959
        %5785 = vmatpush1.msra.mxu0 %v958
        %5786 = vmatprep.subr.mxu0 %v957
        %5787 = vmatpush1.msra.mxu0 %v956
        %5788 = vmatprep.subr.mxu0 %v955
        %5789 = vmatpush1.msra.mxu0 %v954
        %5790 = vmatprep.subr.mxu0 %v953
        %5791 = vmatpush1.msra.mxu0 %v952
        %5792 = vmatprep.subr.mxu0 %v951
        %5793 = vmatpush1.msra.mxu0 %v950
        %5794 = vmatprep.subr.mxu0 %v949
        %5795 = vmatpush1.msra.mxu0 %v948
        %5796 = vmatprep.subr.mxu0 %v947
        %5797 = vmatpush1.msra.mxu0 %v946
        %5798 = vmatprep.subr.mxu0 %v945
        %5799 = vmatpush1.msra.mxu0 %v944
        %5800 = vmatprep.subr.mxu0 %v943
        %5801 = vmatpush1.msra.mxu0 %v942
        %5802 = vmatprep.subr.mxu0 %v941
        %5803 = vmatpush1.msra.mxu0 %v940
        %5804 = vmatprep.subr.mxu0 %v939
        %5805 = vmatpush1.msra.mxu0 %v938
        %5806 = vmatprep.subr.mxu0 %v937
        %5807 = vmatpush1.msra.mxu0 %v936
        %5808 = vmatprep.subr.mxu0 %v935
        %5809 = vmatpush1.msra.mxu0 %v934
        %5810 = vmatprep.subr.mxu0 %v933
        %5811 = vmatpush1.msra.mxu0 %v932
        %5812 = vmatprep.subr.mxu0 %v931
        %5813 = vmatpush1.msra.mxu0 %v930
        %5814 = vmatprep.subr.mxu0 %v929
        %5815 = vmatpush1.msra.mxu0 %v928
        %5816 = vmatprep.subr.mxu0 %v991
        %5817 = vmatpush2.msra.mxu0 %v990
        %5818 = vmatprep.subr.mxu0 %v989
        %5819 = vmatpush2.msra.mxu0 %v988
        %5820 = vmatprep.subr.mxu0 %v987
        %5821 = vmatpush2.msra.mxu0 %v986
        %5822 = vmatprep.subr.mxu0 %v985
        %5823 = vmatpush2.msra.mxu0 %v984
        %5824 = vmatprep.subr.mxu0 %v983
        %5825 = vmatpush2.msra.mxu0 %v982
        %5826 = vmatprep.subr.mxu0 %v981
        %5827 = vmatpush2.msra.mxu0 %v980
        %5828 = vmatprep.subr.mxu0 %v979
        %5829 = vmatpush2.msra.mxu0 %v978
        %5830 = vmatprep.subr.mxu0 %v977
        %5831 = vmatpush2.msra.mxu0 %v976
        %5832 = vmatprep.subr.mxu0 %v975
        %5833 = vmatpush2.msra.mxu0 %v974
        %5834 = vmatprep.subr.mxu0 %v973
        %5835 = vmatpush2.msra.mxu0 %v972
        %5836 = vmatprep.subr.mxu0 %v971
        %5837 = vmatpush2.msra.mxu0 %v970
        %5838 = vmatprep.subr.mxu0 %v969
        %5839 = vmatpush2.msra.mxu0 %v968
        %5840 = vmatprep.subr.mxu0 %v967
        %5841 = vmatpush2.msra.mxu0 %v966
        %5842 = vmatprep.subr.mxu0 %v965
        %5843 = vmatpush2.msra.mxu0 %v964
        %5844 = vmatprep.subr.mxu0 %v963
        %5845 = vmatpush2.msra.mxu0 %v962
        %5846 = vmatprep.subr.mxu0 %v961
        %5847 = vmatpush2.msra.mxu0 %v960
        %5848 = vmatprep.mubr.f32.mxu0 %v4627
        %5849 = vmatmul.mubr.f32.gmra.mxu0 %v4619
        %v5850 = vpop.f32.mrf.mxu0
        %v5851 = vadd.f32 %v5780, %v5850
        %v5852 = vpop.f32.mrf.mxu0
        %v5853 = vadd.f32 %v5782, %v5852
        %5854 = vdwg.mxu0
        %5855 = vmatprep.subr.mxu0 %v1023
        %5856 = vmatpush1.msra.mxu0 %v1022
        %5857 = vmatprep.subr.mxu0 %v1021
        %5858 = vmatpush1.msra.mxu0 %v1020
        %5859 = vmatprep.subr.mxu0 %v1019
        %5860 = vmatpush1.msra.mxu0 %v1018
        %5861 = vmatprep.subr.mxu0 %v1017
        %5862 = vmatpush1.msra.mxu0 %v1016
        %5863 = vmatprep.subr.mxu0 %v1015
        %5864 = vmatpush1.msra.mxu0 %v1014
        %5865 = vmatprep.subr.mxu0 %v1013
        %5866 = vmatpush1.msra.mxu0 %v1012
        %5867 = vmatprep.subr.mxu0 %v1011
        %5868 = vmatpush1.msra.mxu0 %v1010
        %5869 = vmatprep.subr.mxu0 %v1009
        %5870 = vmatpush1.msra.mxu0 %v1008
        %5871 = vmatprep.subr.mxu0 %v1007
        %5872 = vmatpush1.msra.mxu0 %v1006
        %5873 = vmatprep.subr.mxu0 %v1005
        %5874 = vmatpush1.msra.mxu0 %v1004
        %5875 = vmatprep.subr.mxu0 %v1003
        %5876 = vmatpush1.msra.mxu0 %v1002
        %5877 = vmatprep.subr.mxu0 %v1001
        %5878 = vmatpush1.msra.mxu0 %v1000
        %5879 = vmatprep.subr.mxu0 %v999
        %5880 = vmatpush1.msra.mxu0 %v998
        %5881 = vmatprep.subr.mxu0 %v997
        %5882 = vmatpush1.msra.mxu0 %v996
        %5883 = vmatprep.subr.mxu0 %v995
        %5884 = vmatpush1.msra.mxu0 %v994
        %5885 = vmatprep.subr.mxu0 %v993
        %5886 = vmatpush1.msra.mxu0 %v992
        %5887 = vmatprep.subr.mxu0 %v1055
        %5888 = vmatpush2.msra.mxu0 %v1054
        %5889 = vmatprep.subr.mxu0 %v1053
        %5890 = vmatpush2.msra.mxu0 %v1052
        %5891 = vmatprep.subr.mxu0 %v1051
        %5892 = vmatpush2.msra.mxu0 %v1050
        %5893 = vmatprep.subr.mxu0 %v1049
        %5894 = vmatpush2.msra.mxu0 %v1048
        %5895 = vmatprep.subr.mxu0 %v1047
        %5896 = vmatpush2.msra.mxu0 %v1046
        %5897 = vmatprep.subr.mxu0 %v1045
        %5898 = vmatpush2.msra.mxu0 %v1044
        %5899 = vmatprep.subr.mxu0 %v1043
        %5900 = vmatpush2.msra.mxu0 %v1042
        %5901 = vmatprep.subr.mxu0 %v1041
        %5902 = vmatpush2.msra.mxu0 %v1040
        %5903 = vmatprep.subr.mxu0 %v1039
        %5904 = vmatpush2.msra.mxu0 %v1038
        %5905 = vmatprep.subr.mxu0 %v1037
        %5906 = vmatpush2.msra.mxu0 %v1036
        %5907 = vmatprep.subr.mxu0 %v1035
        %5908 = vmatpush2.msra.mxu0 %v1034
        %5909 = vmatprep.subr.mxu0 %v1033
        %5910 = vmatpush2.msra.mxu0 %v1032
        %5911 = vmatprep.subr.mxu0 %v1031
        %5912 = vmatpush2.msra.mxu0 %v1030
        %5913 = vmatprep.subr.mxu0 %v1029
        %5914 = vmatpush2.msra.mxu0 %v1028
        %5915 = vmatprep.subr.mxu0 %v1027
        %5916 = vmatpush2.msra.mxu0 %v1026
        %5917 = vmatprep.subr.mxu0 %v1025
        %5918 = vmatpush2.msra.mxu0 %v1024
        %5919 = vmatprep.mubr.f32.mxu0 %v4628
        %5920 = vmatmul.mubr.f32.gmra.mxu0 %v4626
        %v5921 = vpop.f32.mrf.mxu0
        %v5922 = vadd.f32 %v5851, %v5921
        %v5923 = vpop.f32.mrf.mxu0
        %v5924 = vadd.f32 %v5853, %v5923
        %5925 = vdwg.mxu0
        %5926 = vmatprep.subr.mxu0 %v1087
        %5927 = vmatpush1.msra.mxu0 %v1086
        %5928 = vmatprep.subr.mxu0 %v1085
        %5929 = vmatpush1.msra.mxu0 %v1084
        %5930 = vmatprep.subr.mxu0 %v1083
        %5931 = vmatpush1.msra.mxu0 %v1082
        %5932 = vmatprep.subr.mxu0 %v1081
        %5933 = vmatpush1.msra.mxu0 %v1080
        %5934 = vmatprep.subr.mxu0 %v1079
        %5935 = vmatpush1.msra.mxu0 %v1078
        %5936 = vmatprep.subr.mxu0 %v1077
        %5937 = vmatpush1.msra.mxu0 %v1076
        %5938 = vmatprep.subr.mxu0 %v1075
        %5939 = vmatpush1.msra.mxu0 %v1074
        %5940 = vmatprep.subr.mxu0 %v1073
        %5941 = vmatpush1.msra.mxu0 %v1072
        %5942 = vmatprep.subr.mxu0 %v1071
        %5943 = vmatpush1.msra.mxu0 %v1070
        %5944 = vmatprep.subr.mxu0 %v1069
        %5945 = vmatpush1.msra.mxu0 %v1068
        %5946 = vmatprep.subr.mxu0 %v1067
        %5947 = vmatpush1.msra.mxu0 %v1066
        %5948 = vmatprep.subr.mxu0 %v1065
        %5949 = vmatpush1.msra.mxu0 %v1064
        %5950 = vmatprep.subr.mxu0 %v1063
        %5951 = vmatpush1.msra.mxu0 %v1062
        %5952 = vmatprep.subr.mxu0 %v1061
        %5953 = vmatpush1.msra.mxu0 %v1060
        %5954 = vmatprep.subr.mxu0 %v1059
        %5955 = vmatpush1.msra.mxu0 %v1058
        %5956 = vmatprep.subr.mxu0 %v1057
        %5957 = vmatpush1.msra.mxu0 %v1056
        %5958 = vmatprep.subr.mxu0 %v1119
        %5959 = vmatpush2.msra.mxu0 %v1118
        %5960 = vmatprep.subr.mxu0 %v1117
        %5961 = vmatpush2.msra.mxu0 %v1116
        %5962 = vmatprep.subr.mxu0 %v1115
        %5963 = vmatpush2.msra.mxu0 %v1114
        %5964 = vmatprep.subr.mxu0 %v1113
        %5965 = vmatpush2.msra.mxu0 %v1112
        %5966 = vmatprep.subr.mxu0 %v1111
        %5967 = vmatpush2.msra.mxu0 %v1110
        %5968 = vmatprep.subr.mxu0 %v1109
        %5969 = vmatpush2.msra.mxu0 %v1108
        %5970 = vmatprep.subr.mxu0 %v1107
        %5971 = vmatpush2.msra.mxu0 %v1106
        %5972 = vmatprep.subr.mxu0 %v1105
        %5973 = vmatpush2.msra.mxu0 %v1104
        %5974 = vmatprep.subr.mxu0 %v1103
        %5975 = vmatpush2.msra.mxu0 %v1102
        %5976 = vmatprep.subr.mxu0 %v1101
        %5977 = vmatpush2.msra.mxu0 %v1100
        %5978 = vmatprep.subr.mxu0 %v1099
        %5979 = vmatpush2.msra.mxu0 %v1098
        %5980 = vmatprep.subr.mxu0 %v1097
        %5981 = vmatpush2.msra.mxu0 %v1096
        %5982 = vmatprep.subr.mxu0 %v1095
        %5983 = vmatpush2.msra.mxu0 %v1094
        %5984 = vmatprep.subr.mxu0 %v1093
        %5985 = vmatpush2.msra.mxu0 %v1092
        %5986 = vmatprep.subr.mxu0 %v1091
        %5987 = vmatpush2.msra.mxu0 %v1090
        %5988 = vmatprep.subr.mxu0 %v1089
        %5989 = vmatpush2.msra.mxu0 %v1088
        %5990 = vmatprep.mubr.f32.mxu0 %v4644
        %5991 = vmatmul.mubr.f32.gmra.mxu0 %v4636
        %v5992 = vpop.f32.mrf.mxu0
        %v5993 = vadd.f32 %v5922, %v5992
        %v5994 = vpop.f32.mrf.mxu0
        %v5995 = vadd.f32 %v5924, %v5994
        %5996 = vdwg.mxu0
        %5997 = vmatprep.subr.mxu0 %v1151
        %5998 = vmatpush1.msra.mxu0 %v1150
        %5999 = vmatprep.subr.mxu0 %v1149
        %6000 = vmatpush1.msra.mxu0 %v1148
        %6001 = vmatprep.subr.mxu0 %v1147
        %6002 = vmatpush1.msra.mxu0 %v1146
        %6003 = vmatprep.subr.mxu0 %v1145
        %6004 = vmatpush1.msra.mxu0 %v1144
        %6005 = vmatprep.subr.mxu0 %v1143
        %6006 = vmatpush1.msra.mxu0 %v1142
        %6007 = vmatprep.subr.mxu0 %v1141
        %6008 = vmatpush1.msra.mxu0 %v1140
        %6009 = vmatprep.subr.mxu0 %v1139
        %6010 = vmatpush1.msra.mxu0 %v1138
        %6011 = vmatprep.subr.mxu0 %v1137
        %6012 = vmatpush1.msra.mxu0 %v1136
        %6013 = vmatprep.subr.mxu0 %v1135
        %6014 = vmatpush1.msra.mxu0 %v1134
        %6015 = vmatprep.subr.mxu0 %v1133
        %6016 = vmatpush1.msra.mxu0 %v1132
        %6017 = vmatprep.subr.mxu0 %v1131
        %6018 = vmatpush1.msra.mxu0 %v1130
        %6019 = vmatprep.subr.mxu0 %v1129
        %6020 = vmatpush1.msra.mxu0 %v1128
        %6021 = vmatprep.subr.mxu0 %v1127
        %6022 = vmatpush1.msra.mxu0 %v1126
        %6023 = vmatprep.subr.mxu0 %v1125
        %6024 = vmatpush1.msra.mxu0 %v1124
        %6025 = vmatprep.subr.mxu0 %v1123
        %6026 = vmatpush1.msra.mxu0 %v1122
        %6027 = vmatprep.subr.mxu0 %v1121
        %6028 = vmatpush1.msra.mxu0 %v1120
        %6029 = vmatprep.subr.mxu0 %v1183
        %6030 = vmatpush2.msra.mxu0 %v1182
        %6031 = vmatprep.subr.mxu0 %v1181
        %6032 = vmatpush2.msra.mxu0 %v1180
        %6033 = vmatprep.subr.mxu0 %v1179
        %6034 = vmatpush2.msra.mxu0 %v1178
        %6035 = vmatprep.subr.mxu0 %v1177
        %6036 = vmatpush2.msra.mxu0 %v1176
        %6037 = vmatprep.subr.mxu0 %v1175
        %6038 = vmatpush2.msra.mxu0 %v1174
        %6039 = vmatprep.subr.mxu0 %v1173
        %6040 = vmatpush2.msra.mxu0 %v1172
        %6041 = vmatprep.subr.mxu0 %v1171
        %6042 = vmatpush2.msra.mxu0 %v1170
        %6043 = vmatprep.subr.mxu0 %v1169
        %6044 = vmatpush2.msra.mxu0 %v1168
        %6045 = vmatprep.subr.mxu0 %v1167
        %6046 = vmatpush2.msra.mxu0 %v1166
        %6047 = vmatprep.subr.mxu0 %v1165
        %6048 = vmatpush2.msra.mxu0 %v1164
        %6049 = vmatprep.subr.mxu0 %v1163
        %6050 = vmatpush2.msra.mxu0 %v1162
        %6051 = vmatprep.subr.mxu0 %v1161
        %6052 = vmatpush2.msra.mxu0 %v1160
        %6053 = vmatprep.subr.mxu0 %v1159
        %6054 = vmatpush2.msra.mxu0 %v1158
        %6055 = vmatprep.subr.mxu0 %v1157
        %6056 = vmatpush2.msra.mxu0 %v1156
        %6057 = vmatprep.subr.mxu0 %v1155
        %6058 = vmatpush2.msra.mxu0 %v1154
        %6059 = vmatprep.subr.mxu0 %v1153
        %6060 = vmatpush2.msra.mxu0 %v1152
        %6061 = vmatprep.mubr.f32.mxu0 %v4645
        %6062 = vmatmul.mubr.f32.gmra.mxu0 %v4643
        %v6063 = vpop.f32.mrf.mxu0
        %v6064 = vadd.f32 %v5993, %v6063
        %v6065 = vpop.f32.mrf.mxu0
        %v6066 = vadd.f32 %v5995, %v6065
        %6067 = vdwg.mxu0
        %6068 = vmatprep.subr.mxu0 %v1215
        %6069 = vmatpush1.msra.mxu0 %v1214
        %6070 = vmatprep.subr.mxu0 %v1213
        %6071 = vmatpush1.msra.mxu0 %v1212
        %6072 = vmatprep.subr.mxu0 %v1211
        %6073 = vmatpush1.msra.mxu0 %v1210
        %6074 = vmatprep.subr.mxu0 %v1209
        %6075 = vmatpush1.msra.mxu0 %v1208
        %6076 = vmatprep.subr.mxu0 %v1207
        %6077 = vmatpush1.msra.mxu0 %v1206
        %6078 = vmatprep.subr.mxu0 %v1205
        %6079 = vmatpush1.msra.mxu0 %v1204
        %6080 = vmatprep.subr.mxu0 %v1203
        %6081 = vmatpush1.msra.mxu0 %v1202
        %6082 = vmatprep.subr.mxu0 %v1201
        %6083 = vmatpush1.msra.mxu0 %v1200
        %6084 = vmatprep.subr.mxu0 %v1199
        %6085 = vmatpush1.msra.mxu0 %v1198
        %6086 = vmatprep.subr.mxu0 %v1197
        %6087 = vmatpush1.msra.mxu0 %v1196
        %6088 = vmatprep.subr.mxu0 %v1195
        %6089 = vmatpush1.msra.mxu0 %v1194
        %6090 = vmatprep.subr.mxu0 %v1193
        %6091 = vmatpush1.msra.mxu0 %v1192
        %6092 = vmatprep.subr.mxu0 %v1191
        %6093 = vmatpush1.msra.mxu0 %v1190
        %6094 = vmatprep.subr.mxu0 %v1189
        %6095 = vmatpush1.msra.mxu0 %v1188
        %6096 = vmatprep.subr.mxu0 %v1187
        %6097 = vmatpush1.msra.mxu0 %v1186
        %6098 = vmatprep.subr.mxu0 %v1185
        %6099 = vmatpush1.msra.mxu0 %v1184
        %6100 = vmatprep.subr.mxu0 %v1247
        %6101 = vmatpush2.msra.mxu0 %v1246
        %6102 = vmatprep.subr.mxu0 %v1245
        %6103 = vmatpush2.msra.mxu0 %v1244
        %6104 = vmatprep.subr.mxu0 %v1243
        %6105 = vmatpush2.msra.mxu0 %v1242
        %6106 = vmatprep.subr.mxu0 %v1241
        %6107 = vmatpush2.msra.mxu0 %v1240
        %6108 = vmatprep.subr.mxu0 %v1239
        %6109 = vmatpush2.msra.mxu0 %v1238
        %6110 = vmatprep.subr.mxu0 %v1237
        %6111 = vmatpush2.msra.mxu0 %v1236
        %6112 = vmatprep.subr.mxu0 %v1235
        %6113 = vmatpush2.msra.mxu0 %v1234
        %6114 = vmatprep.subr.mxu0 %v1233
        %6115 = vmatpush2.msra.mxu0 %v1232
        %6116 = vmatprep.subr.mxu0 %v1231
        %6117 = vmatpush2.msra.mxu0 %v1230
        %6118 = vmatprep.subr.mxu0 %v1229
        %6119 = vmatpush2.msra.mxu0 %v1228
        %6120 = vmatprep.subr.mxu0 %v1227
        %6121 = vmatpush2.msra.mxu0 %v1226
        %6122 = vmatprep.subr.mxu0 %v1225
        %6123 = vmatpush2.msra.mxu0 %v1224
        %6124 = vmatprep.subr.mxu0 %v1223
        %6125 = vmatpush2.msra.mxu0 %v1222
        %6126 = vmatprep.subr.mxu0 %v1221
        %6127 = vmatpush2.msra.mxu0 %v1220
        %6128 = vmatprep.subr.mxu0 %v1219
        %6129 = vmatpush2.msra.mxu0 %v1218
        %6130 = vmatprep.subr.mxu0 %v1217
        %6131 = vmatpush2.msra.mxu0 %v1216
        %6132 = vmatprep.mubr.f32.mxu0 %v4661
        %6133 = vmatmul.mubr.f32.gmra.mxu0 %v4653
        %v6134 = vpop.f32.mrf.mxu0
        %v6135 = vadd.f32 %v6064, %v6134
        %v6136 = vpop.f32.mrf.mxu0
        %v6137 = vadd.f32 %v6066, %v6136
        %6138 = vdwg.mxu0
        %6139 = vmatprep.subr.mxu0 %v1279
        %6140 = vmatpush1.msra.mxu0 %v1278
        %6141 = vmatprep.subr.mxu0 %v1277
        %6142 = vmatpush1.msra.mxu0 %v1276
        %6143 = vmatprep.subr.mxu0 %v1275
        %6144 = vmatpush1.msra.mxu0 %v1274
        %6145 = vmatprep.subr.mxu0 %v1273
        %6146 = vmatpush1.msra.mxu0 %v1272
        %6147 = vmatprep.subr.mxu0 %v1271
        %6148 = vmatpush1.msra.mxu0 %v1270
        %6149 = vmatprep.subr.mxu0 %v1269
        %6150 = vmatpush1.msra.mxu0 %v1268
        %6151 = vmatprep.subr.mxu0 %v1267
        %6152 = vmatpush1.msra.mxu0 %v1266
        %6153 = vmatprep.subr.mxu0 %v1265
        %6154 = vmatpush1.msra.mxu0 %v1264
        %6155 = vmatprep.subr.mxu0 %v1263
        %6156 = vmatpush1.msra.mxu0 %v1262
        %6157 = vmatprep.subr.mxu0 %v1261
        %6158 = vmatpush1.msra.mxu0 %v1260
        %6159 = vmatprep.subr.mxu0 %v1259
        %6160 = vmatpush1.msra.mxu0 %v1258
        %6161 = vmatprep.subr.mxu0 %v1257
        %6162 = vmatpush1.msra.mxu0 %v1256
        %6163 = vmatprep.subr.mxu0 %v1255
        %6164 = vmatpush1.msra.mxu0 %v1254
        %6165 = vmatprep.subr.mxu0 %v1253
        %6166 = vmatpush1.msra.mxu0 %v1252
        %6167 = vmatprep.subr.mxu0 %v1251
        %6168 = vmatpush1.msra.mxu0 %v1250
        %6169 = vmatprep.subr.mxu0 %v1249
        %6170 = vmatpush1.msra.mxu0 %v1248
        %6171 = vmatprep.subr.mxu0 %v1311
        %6172 = vmatpush2.msra.mxu0 %v1310
        %6173 = vmatprep.subr.mxu0 %v1309
        %6174 = vmatpush2.msra.mxu0 %v1308
        %6175 = vmatprep.subr.mxu0 %v1307
        %6176 = vmatpush2.msra.mxu0 %v1306
        %6177 = vmatprep.subr.mxu0 %v1305
        %6178 = vmatpush2.msra.mxu0 %v1304
        %6179 = vmatprep.subr.mxu0 %v1303
        %6180 = vmatpush2.msra.mxu0 %v1302
        %6181 = vmatprep.subr.mxu0 %v1301
        %6182 = vmatpush2.msra.mxu0 %v1300
        %6183 = vmatprep.subr.mxu0 %v1299
        %6184 = vmatpush2.msra.mxu0 %v1298
        %6185 = vmatprep.subr.mxu0 %v1297
        %6186 = vmatpush2.msra.mxu0 %v1296
        %6187 = vmatprep.subr.mxu0 %v1295
        %6188 = vmatpush2.msra.mxu0 %v1294
        %6189 = vmatprep.subr.mxu0 %v1293
        %6190 = vmatpush2.msra.mxu0 %v1292
        %6191 = vmatprep.subr.mxu0 %v1291
        %6192 = vmatpush2.msra.mxu0 %v1290
        %6193 = vmatprep.subr.mxu0 %v1289
        %6194 = vmatpush2.msra.mxu0 %v1288
        %6195 = vmatprep.subr.mxu0 %v1287
        %6196 = vmatpush2.msra.mxu0 %v1286
        %6197 = vmatprep.subr.mxu0 %v1285
        %6198 = vmatpush2.msra.mxu0 %v1284
        %6199 = vmatprep.subr.mxu0 %v1283
        %6200 = vmatpush2.msra.mxu0 %v1282
        %6201 = vmatprep.subr.mxu0 %v1281
        %6202 = vmatpush2.msra.mxu0 %v1280
        %6203 = vmatprep.mubr.f32.mxu0 %v4662
        %6204 = vmatmul.mubr.f32.gmra.mxu0 %v4660
        %v6205 = vpop.f32.mrf.mxu0
        %v6206 = vadd.f32 %v6135, %v6205
        %v6207 = vpop.f32.mrf.mxu0
        %v6208 = vadd.f32 %v6137, %v6207
        %6209 = vdwg.mxu0
        %6210 = vmatprep.subr.mxu0 %v1343
        %6211 = vmatpush1.msra.mxu0 %v1342
        %6212 = vmatprep.subr.mxu0 %v1341
        %6213 = vmatpush1.msra.mxu0 %v1340
        %6214 = vmatprep.subr.mxu0 %v1339
        %6215 = vmatpush1.msra.mxu0 %v1338
        %6216 = vmatprep.subr.mxu0 %v1337
        %6217 = vmatpush1.msra.mxu0 %v1336
        %6218 = vmatprep.subr.mxu0 %v1335
        %6219 = vmatpush1.msra.mxu0 %v1334
        %6220 = vmatprep.subr.mxu0 %v1333
        %6221 = vmatpush1.msra.mxu0 %v1332
        %6222 = vmatprep.subr.mxu0 %v1331
        %6223 = vmatpush1.msra.mxu0 %v1330
        %6224 = vmatprep.subr.mxu0 %v1329
        %6225 = vmatpush1.msra.mxu0 %v1328
        %6226 = vmatprep.subr.mxu0 %v1327
        %6227 = vmatpush1.msra.mxu0 %v1326
        %6228 = vmatprep.subr.mxu0 %v1325
        %6229 = vmatpush1.msra.mxu0 %v1324
        %6230 = vmatprep.subr.mxu0 %v1323
        %6231 = vmatpush1.msra.mxu0 %v1322
        %6232 = vmatprep.subr.mxu0 %v1321
        %6233 = vmatpush1.msra.mxu0 %v1320
        %6234 = vmatprep.subr.mxu0 %v1319
        %6235 = vmatpush1.msra.mxu0 %v1318
        %6236 = vmatprep.subr.mxu0 %v1317
        %6237 = vmatpush1.msra.mxu0 %v1316
        %6238 = vmatprep.subr.mxu0 %v1315
        %6239 = vmatpush1.msra.mxu0 %v1314
        %6240 = vmatprep.subr.mxu0 %v1313
        %6241 = vmatpush1.msra.mxu0 %v1312
        %6242 = vmatprep.subr.mxu0 %v1375
        %6243 = vmatpush2.msra.mxu0 %v1374
        %6244 = vmatprep.subr.mxu0 %v1373
        %6245 = vmatpush2.msra.mxu0 %v1372
        %6246 = vmatprep.subr.mxu0 %v1371
        %6247 = vmatpush2.msra.mxu0 %v1370
        %6248 = vmatprep.subr.mxu0 %v1369
        %6249 = vmatpush2.msra.mxu0 %v1368
        %6250 = vmatprep.subr.mxu0 %v1367
        %6251 = vmatpush2.msra.mxu0 %v1366
        %6252 = vmatprep.subr.mxu0 %v1365
        %6253 = vmatpush2.msra.mxu0 %v1364
        %6254 = vmatprep.subr.mxu0 %v1363
        %6255 = vmatpush2.msra.mxu0 %v1362
        %6256 = vmatprep.subr.mxu0 %v1361
        %6257 = vmatpush2.msra.mxu0 %v1360
        %6258 = vmatprep.subr.mxu0 %v1359
        %6259 = vmatpush2.msra.mxu0 %v1358
        %6260 = vmatprep.subr.mxu0 %v1357
        %6261 = vmatpush2.msra.mxu0 %v1356
        %6262 = vmatprep.subr.mxu0 %v1355
        %6263 = vmatpush2.msra.mxu0 %v1354
        %6264 = vmatprep.subr.mxu0 %v1353
        %6265 = vmatpush2.msra.mxu0 %v1352
        %6266 = vmatprep.subr.mxu0 %v1351
        %6267 = vmatpush2.msra.mxu0 %v1350
        %6268 = vmatprep.subr.mxu0 %v1349
        %6269 = vmatpush2.msra.mxu0 %v1348
        %6270 = vmatprep.subr.mxu0 %v1347
        %6271 = vmatpush2.msra.mxu0 %v1346
        %6272 = vmatprep.subr.mxu0 %v1345
        %6273 = vmatpush2.msra.mxu0 %v1344
        %6274 = vmatprep.mubr.f32.mxu0 %v4678
        %6275 = vmatmul.mubr.f32.gmra.mxu0 %v4670
        %v6276 = vpop.f32.mrf.mxu0
        %v6277 = vadd.f32 %v6206, %v6276
        %v6278 = vpop.f32.mrf.mxu0
        %v6279 = vadd.f32 %v6208, %v6278
        %6280 = vdwg.mxu0
        %6281 = vmatprep.subr.mxu0 %v1407
        %6282 = vmatpush1.msra.mxu0 %v1406
        %6283 = vmatprep.subr.mxu0 %v1405
        %6284 = vmatpush1.msra.mxu0 %v1404
        %6285 = vmatprep.subr.mxu0 %v1403
        %6286 = vmatpush1.msra.mxu0 %v1402
        %6287 = vmatprep.subr.mxu0 %v1401
        %6288 = vmatpush1.msra.mxu0 %v1400
        %6289 = vmatprep.subr.mxu0 %v1399
        %6290 = vmatpush1.msra.mxu0 %v1398
        %6291 = vmatprep.subr.mxu0 %v1397
        %6292 = vmatpush1.msra.mxu0 %v1396
        %6293 = vmatprep.subr.mxu0 %v1395
        %6294 = vmatpush1.msra.mxu0 %v1394
        %6295 = vmatprep.subr.mxu0 %v1393
        %6296 = vmatpush1.msra.mxu0 %v1392
        %6297 = vmatprep.subr.mxu0 %v1391
        %6298 = vmatpush1.msra.mxu0 %v1390
        %6299 = vmatprep.subr.mxu0 %v1389
        %6300 = vmatpush1.msra.mxu0 %v1388
        %6301 = vmatprep.subr.mxu0 %v1387
        %6302 = vmatpush1.msra.mxu0 %v1386
        %6303 = vmatprep.subr.mxu0 %v1385
        %6304 = vmatpush1.msra.mxu0 %v1384
        %6305 = vmatprep.subr.mxu0 %v1383
        %6306 = vmatpush1.msra.mxu0 %v1382
        %6307 = vmatprep.subr.mxu0 %v1381
        %6308 = vmatpush1.msra.mxu0 %v1380
        %6309 = vmatprep.subr.mxu0 %v1379
        %6310 = vmatpush1.msra.mxu0 %v1378
        %6311 = vmatprep.subr.mxu0 %v1377
        %6312 = vmatpush1.msra.mxu0 %v1376
        %6313 = vmatprep.subr.mxu0 %v1439
        %6314 = vmatpush2.msra.mxu0 %v1438
        %6315 = vmatprep.subr.mxu0 %v1437
        %6316 = vmatpush2.msra.mxu0 %v1436
        %6317 = vmatprep.subr.mxu0 %v1435
        %6318 = vmatpush2.msra.mxu0 %v1434
        %6319 = vmatprep.subr.mxu0 %v1433
        %6320 = vmatpush2.msra.mxu0 %v1432
        %6321 = vmatprep.subr.mxu0 %v1431
        %6322 = vmatpush2.msra.mxu0 %v1430
        %6323 = vmatprep.subr.mxu0 %v1429
        %6324 = vmatpush2.msra.mxu0 %v1428
        %6325 = vmatprep.subr.mxu0 %v1427
        %6326 = vmatpush2.msra.mxu0 %v1426
        %6327 = vmatprep.subr.mxu0 %v1425
        %6328 = vmatpush2.msra.mxu0 %v1424
        %6329 = vmatprep.subr.mxu0 %v1423
        %6330 = vmatpush2.msra.mxu0 %v1422
        %6331 = vmatprep.subr.mxu0 %v1421
        %6332 = vmatpush2.msra.mxu0 %v1420
        %6333 = vmatprep.subr.mxu0 %v1419
        %6334 = vmatpush2.msra.mxu0 %v1418
        %6335 = vmatprep.subr.mxu0 %v1417
        %6336 = vmatpush2.msra.mxu0 %v1416
        %6337 = vmatprep.subr.mxu0 %v1415
        %6338 = vmatpush2.msra.mxu0 %v1414
        %6339 = vmatprep.subr.mxu0 %v1413
        %6340 = vmatpush2.msra.mxu0 %v1412
        %6341 = vmatprep.subr.mxu0 %v1411
        %6342 = vmatpush2.msra.mxu0 %v1410
        %6343 = vmatprep.subr.mxu0 %v1409
        %6344 = vmatpush2.msra.mxu0 %v1408
        %6345 = vmatprep.mubr.f32.mxu0 %v4679
        %6346 = vmatmul.mubr.f32.gmra.mxu0 %v4677
        %v6347 = vpop.f32.mrf.mxu0
        %v6348 = vadd.f32 %v6277, %v6347
        %v6349 = vpop.f32.mrf.mxu0
        %v6350 = vadd.f32 %v6279, %v6349
        %6351 = vdwg.mxu0
        %6352 = vmatprep.subr.mxu0 %v1471
        %6353 = vmatpush1.msra.mxu0 %v1470
        %6354 = vmatprep.subr.mxu0 %v1469
        %6355 = vmatpush1.msra.mxu0 %v1468
        %6356 = vmatprep.subr.mxu0 %v1467
        %6357 = vmatpush1.msra.mxu0 %v1466
        %6358 = vmatprep.subr.mxu0 %v1465
        %6359 = vmatpush1.msra.mxu0 %v1464
        %6360 = vmatprep.subr.mxu0 %v1463
        %6361 = vmatpush1.msra.mxu0 %v1462
        %6362 = vmatprep.subr.mxu0 %v1461
        %6363 = vmatpush1.msra.mxu0 %v1460
        %6364 = vmatprep.subr.mxu0 %v1459
        %6365 = vmatpush1.msra.mxu0 %v1458
        %6366 = vmatprep.subr.mxu0 %v1457
        %6367 = vmatpush1.msra.mxu0 %v1456
        %6368 = vmatprep.subr.mxu0 %v1455
        %6369 = vmatpush1.msra.mxu0 %v1454
        %6370 = vmatprep.subr.mxu0 %v1453
        %6371 = vmatpush1.msra.mxu0 %v1452
        %6372 = vmatprep.subr.mxu0 %v1451
        %6373 = vmatpush1.msra.mxu0 %v1450
        %6374 = vmatprep.subr.mxu0 %v1449
        %6375 = vmatpush1.msra.mxu0 %v1448
        %6376 = vmatprep.subr.mxu0 %v1447
        %6377 = vmatpush1.msra.mxu0 %v1446
        %6378 = vmatprep.subr.mxu0 %v1445
        %6379 = vmatpush1.msra.mxu0 %v1444
        %6380 = vmatprep.subr.mxu0 %v1443
        %6381 = vmatpush1.msra.mxu0 %v1442
        %6382 = vmatprep.subr.mxu0 %v1441
        %6383 = vmatpush1.msra.mxu0 %v1440
        %6384 = vmatprep.subr.mxu0 %v1503
        %6385 = vmatpush2.msra.mxu0 %v1502
        %6386 = vmatprep.subr.mxu0 %v1501
        %6387 = vmatpush2.msra.mxu0 %v1500
        %6388 = vmatprep.subr.mxu0 %v1499
        %6389 = vmatpush2.msra.mxu0 %v1498
        %6390 = vmatprep.subr.mxu0 %v1497
        %6391 = vmatpush2.msra.mxu0 %v1496
        %6392 = vmatprep.subr.mxu0 %v1495
        %6393 = vmatpush2.msra.mxu0 %v1494
        %6394 = vmatprep.subr.mxu0 %v1493
        %6395 = vmatpush2.msra.mxu0 %v1492
        %6396 = vmatprep.subr.mxu0 %v1491
        %6397 = vmatpush2.msra.mxu0 %v1490
        %6398 = vmatprep.subr.mxu0 %v1489
        %6399 = vmatpush2.msra.mxu0 %v1488
        %6400 = vmatprep.subr.mxu0 %v1487
        %6401 = vmatpush2.msra.mxu0 %v1486
        %6402 = vmatprep.subr.mxu0 %v1485
        %6403 = vmatpush2.msra.mxu0 %v1484
        %6404 = vmatprep.subr.mxu0 %v1483
        %6405 = vmatpush2.msra.mxu0 %v1482
        %6406 = vmatprep.subr.mxu0 %v1481
        %6407 = vmatpush2.msra.mxu0 %v1480
        %6408 = vmatprep.subr.mxu0 %v1479
        %6409 = vmatpush2.msra.mxu0 %v1478
        %6410 = vmatprep.subr.mxu0 %v1477
        %6411 = vmatpush2.msra.mxu0 %v1476
        %6412 = vmatprep.subr.mxu0 %v1475
        %6413 = vmatpush2.msra.mxu0 %v1474
        %6414 = vmatprep.subr.mxu0 %v1473
        %6415 = vmatpush2.msra.mxu0 %v1472
        %6416 = vmatprep.mubr.f32.mxu0 %v4695
        %6417 = vmatmul.mubr.f32.gmra.mxu0 %v4687
        %v6418 = vpop.f32.mrf.mxu0
        %v6419 = vadd.f32 %v6348, %v6418
        %v6420 = vpop.f32.mrf.mxu0
        %v6421 = vadd.f32 %v6350, %v6420
        %6422 = vdwg.mxu0
        %6423 = vmatprep.subr.mxu0 %v1535
        %6424 = vmatpush1.msra.mxu0 %v1534
        %6425 = vmatprep.subr.mxu0 %v1533
        %6426 = vmatpush1.msra.mxu0 %v1532
        %6427 = vmatprep.subr.mxu0 %v1531
        %6428 = vmatpush1.msra.mxu0 %v1530
        %6429 = vmatprep.subr.mxu0 %v1529
        %6430 = vmatpush1.msra.mxu0 %v1528
        %6431 = vmatprep.subr.mxu0 %v1527
        %6432 = vmatpush1.msra.mxu0 %v1526
        %6433 = vmatprep.subr.mxu0 %v1525
        %6434 = vmatpush1.msra.mxu0 %v1524
        %6435 = vmatprep.subr.mxu0 %v1523
        %6436 = vmatpush1.msra.mxu0 %v1522
        %6437 = vmatprep.subr.mxu0 %v1521
        %6438 = vmatpush1.msra.mxu0 %v1520
        %6439 = vmatprep.subr.mxu0 %v1519
        %6440 = vmatpush1.msra.mxu0 %v1518
        %6441 = vmatprep.subr.mxu0 %v1517
        %6442 = vmatpush1.msra.mxu0 %v1516
        %6443 = vmatprep.subr.mxu0 %v1515
        %6444 = vmatpush1.msra.mxu0 %v1514
        %6445 = vmatprep.subr.mxu0 %v1513
        %6446 = vmatpush1.msra.mxu0 %v1512
        %6447 = vmatprep.subr.mxu0 %v1511
        %6448 = vmatpush1.msra.mxu0 %v1510
        %6449 = vmatprep.subr.mxu0 %v1509
        %6450 = vmatpush1.msra.mxu0 %v1508
        %6451 = vmatprep.subr.mxu0 %v1507
        %6452 = vmatpush1.msra.mxu0 %v1506
        %6453 = vmatprep.subr.mxu0 %v1505
        %6454 = vmatpush1.msra.mxu0 %v1504
        %6455 = vmatprep.subr.mxu0 %v1567
        %6456 = vmatpush2.msra.mxu0 %v1566
        %6457 = vmatprep.subr.mxu0 %v1565
        %6458 = vmatpush2.msra.mxu0 %v1564
        %6459 = vmatprep.subr.mxu0 %v1563
        %6460 = vmatpush2.msra.mxu0 %v1562
        %6461 = vmatprep.subr.mxu0 %v1561
        %6462 = vmatpush2.msra.mxu0 %v1560
        %6463 = vmatprep.subr.mxu0 %v1559
        %6464 = vmatpush2.msra.mxu0 %v1558
        %6465 = vmatprep.subr.mxu0 %v1557
        %6466 = vmatpush2.msra.mxu0 %v1556
        %6467 = vmatprep.subr.mxu0 %v1555
        %6468 = vmatpush2.msra.mxu0 %v1554
        %6469 = vmatprep.subr.mxu0 %v1553
        %6470 = vmatpush2.msra.mxu0 %v1552
        %6471 = vmatprep.subr.mxu0 %v1551
        %6472 = vmatpush2.msra.mxu0 %v1550
        %6473 = vmatprep.subr.mxu0 %v1549
        %6474 = vmatpush2.msra.mxu0 %v1548
        %6475 = vmatprep.subr.mxu0 %v1547
        %6476 = vmatpush2.msra.mxu0 %v1546
        %6477 = vmatprep.subr.mxu0 %v1545
        %6478 = vmatpush2.msra.mxu0 %v1544
        %6479 = vmatprep.subr.mxu0 %v1543
        %6480 = vmatpush2.msra.mxu0 %v1542
        %6481 = vmatprep.subr.mxu0 %v1541
        %6482 = vmatpush2.msra.mxu0 %v1540
        %6483 = vmatprep.subr.mxu0 %v1539
        %6484 = vmatpush2.msra.mxu0 %v1538
        %6485 = vmatprep.subr.mxu0 %v1537
        %6486 = vmatpush2.msra.mxu0 %v1536
        %6487 = vmatprep.mubr.f32.mxu0 %v4696
        %6488 = vmatmul.mubr.f32.gmra.mxu0 %v4694
        %v6489 = vpop.f32.mrf.mxu0
        %v6490 = vadd.f32 %v6419, %v6489
        %v6491 = vpop.f32.mrf.mxu0
        %v6492 = vadd.f32 %v6421, %v6491
        %6493 = vdwg.mxu0
        %6494 = vmatprep.subr.mxu0 %v1599
        %6495 = vmatpush1.msra.mxu0 %v1598
        %6496 = vmatprep.subr.mxu0 %v1597
        %6497 = vmatpush1.msra.mxu0 %v1596
        %6498 = vmatprep.subr.mxu0 %v1595
        %6499 = vmatpush1.msra.mxu0 %v1594
        %6500 = vmatprep.subr.mxu0 %v1593
        %6501 = vmatpush1.msra.mxu0 %v1592
        %6502 = vmatprep.subr.mxu0 %v1591
        %6503 = vmatpush1.msra.mxu0 %v1590
        %6504 = vmatprep.subr.mxu0 %v1589
        %6505 = vmatpush1.msra.mxu0 %v1588
        %6506 = vmatprep.subr.mxu0 %v1587
        %6507 = vmatpush1.msra.mxu0 %v1586
        %6508 = vmatprep.subr.mxu0 %v1585
        %6509 = vmatpush1.msra.mxu0 %v1584
        %6510 = vmatprep.subr.mxu0 %v1583
        %6511 = vmatpush1.msra.mxu0 %v1582
        %6512 = vmatprep.subr.mxu0 %v1581
        %6513 = vmatpush1.msra.mxu0 %v1580
        %6514 = vmatprep.subr.mxu0 %v1579
        %6515 = vmatpush1.msra.mxu0 %v1578
        %6516 = vmatprep.subr.mxu0 %v1577
        %6517 = vmatpush1.msra.mxu0 %v1576
        %6518 = vmatprep.subr.mxu0 %v1575
        %6519 = vmatpush1.msra.mxu0 %v1574
        %6520 = vmatprep.subr.mxu0 %v1573
        %6521 = vmatpush1.msra.mxu0 %v1572
        %6522 = vmatprep.subr.mxu0 %v1571
        %6523 = vmatpush1.msra.mxu0 %v1570
        %6524 = vmatprep.subr.mxu0 %v1569
        %6525 = vmatpush1.msra.mxu0 %v1568
        %6526 = vmatprep.subr.mxu0 %v1631
        %6527 = vmatpush2.msra.mxu0 %v1630
        %6528 = vmatprep.subr.mxu0 %v1629
        %6529 = vmatpush2.msra.mxu0 %v1628
        %6530 = vmatprep.subr.mxu0 %v1627
        %6531 = vmatpush2.msra.mxu0 %v1626
        %6532 = vmatprep.subr.mxu0 %v1625
        %6533 = vmatpush2.msra.mxu0 %v1624
        %6534 = vmatprep.subr.mxu0 %v1623
        %6535 = vmatpush2.msra.mxu0 %v1622
        %6536 = vmatprep.subr.mxu0 %v1621
        %6537 = vmatpush2.msra.mxu0 %v1620
        %6538 = vmatprep.subr.mxu0 %v1619
        %6539 = vmatpush2.msra.mxu0 %v1618
        %6540 = vmatprep.subr.mxu0 %v1617
        %6541 = vmatpush2.msra.mxu0 %v1616
        %6542 = vmatprep.subr.mxu0 %v1615
        %6543 = vmatpush2.msra.mxu0 %v1614
        %6544 = vmatprep.subr.mxu0 %v1613
        %6545 = vmatpush2.msra.mxu0 %v1612
        %6546 = vmatprep.subr.mxu0 %v1611
        %6547 = vmatpush2.msra.mxu0 %v1610
        %6548 = vmatprep.subr.mxu0 %v1609
        %6549 = vmatpush2.msra.mxu0 %v1608
        %6550 = vmatprep.subr.mxu0 %v1607
        %6551 = vmatpush2.msra.mxu0 %v1606
        %6552 = vmatprep.subr.mxu0 %v1605
        %6553 = vmatpush2.msra.mxu0 %v1604
        %6554 = vmatprep.subr.mxu0 %v1603
        %6555 = vmatpush2.msra.mxu0 %v1602
        %6556 = vmatprep.subr.mxu0 %v1601
        %6557 = vmatpush2.msra.mxu0 %v1600
        %6558 = vmatprep.mubr.f32.mxu0 %v4712
        %6559 = vmatmul.mubr.f32.gmra.mxu0 %v4704
        %v6560 = vpop.f32.mrf.mxu0
        %v6561 = vadd.f32 %v6490, %v6560
        %v6562 = vpop.f32.mrf.mxu0
        %v6563 = vadd.f32 %v6492, %v6562
        %6564 = vdwg.mxu0
        %6565 = vmatprep.subr.mxu0 %v1663
        %6566 = vmatpush1.msra.mxu0 %v1662
        %6567 = vmatprep.subr.mxu0 %v1661
        %6568 = vmatpush1.msra.mxu0 %v1660
        %6569 = vmatprep.subr.mxu0 %v1659
        %6570 = vmatpush1.msra.mxu0 %v1658
        %6571 = vmatprep.subr.mxu0 %v1657
        %6572 = vmatpush1.msra.mxu0 %v1656
        %6573 = vmatprep.subr.mxu0 %v1655
        %6574 = vmatpush1.msra.mxu0 %v1654
        %6575 = vmatprep.subr.mxu0 %v1653
        %6576 = vmatpush1.msra.mxu0 %v1652
        %6577 = vmatprep.subr.mxu0 %v1651
        %6578 = vmatpush1.msra.mxu0 %v1650
        %6579 = vmatprep.subr.mxu0 %v1649
        %6580 = vmatpush1.msra.mxu0 %v1648
        %6581 = vmatprep.subr.mxu0 %v1647
        %6582 = vmatpush1.msra.mxu0 %v1646
        %6583 = vmatprep.subr.mxu0 %v1645
        %6584 = vmatpush1.msra.mxu0 %v1644
        %6585 = vmatprep.subr.mxu0 %v1643
        %6586 = vmatpush1.msra.mxu0 %v1642
        %6587 = vmatprep.subr.mxu0 %v1641
        %6588 = vmatpush1.msra.mxu0 %v1640
        %6589 = vmatprep.subr.mxu0 %v1639
        %6590 = vmatpush1.msra.mxu0 %v1638
        %6591 = vmatprep.subr.mxu0 %v1637
        %6592 = vmatpush1.msra.mxu0 %v1636
        %6593 = vmatprep.subr.mxu0 %v1635
        %6594 = vmatpush1.msra.mxu0 %v1634
        %6595 = vmatprep.subr.mxu0 %v1633
        %6596 = vmatpush1.msra.mxu0 %v1632
        %6597 = vmatprep.subr.mxu0 %v1695
        %6598 = vmatpush2.msra.mxu0 %v1694
        %6599 = vmatprep.subr.mxu0 %v1693
        %6600 = vmatpush2.msra.mxu0 %v1692
        %6601 = vmatprep.subr.mxu0 %v1691
        %6602 = vmatpush2.msra.mxu0 %v1690
        %6603 = vmatprep.subr.mxu0 %v1689
        %6604 = vmatpush2.msra.mxu0 %v1688
        %6605 = vmatprep.subr.mxu0 %v1687
        %6606 = vmatpush2.msra.mxu0 %v1686
        %6607 = vmatprep.subr.mxu0 %v1685
        %6608 = vmatpush2.msra.mxu0 %v1684
        %6609 = vmatprep.subr.mxu0 %v1683
        %6610 = vmatpush2.msra.mxu0 %v1682
        %6611 = vmatprep.subr.mxu0 %v1681
        %6612 = vmatpush2.msra.mxu0 %v1680
        %6613 = vmatprep.subr.mxu0 %v1679
        %6614 = vmatpush2.msra.mxu0 %v1678
        %6615 = vmatprep.subr.mxu0 %v1677
        %6616 = vmatpush2.msra.mxu0 %v1676
        %6617 = vmatprep.subr.mxu0 %v1675
        %6618 = vmatpush2.msra.mxu0 %v1674
        %6619 = vmatprep.subr.mxu0 %v1673
        %6620 = vmatpush2.msra.mxu0 %v1672
        %6621 = vmatprep.subr.mxu0 %v1671
        %6622 = vmatpush2.msra.mxu0 %v1670
        %6623 = vmatprep.subr.mxu0 %v1669
        %6624 = vmatpush2.msra.mxu0 %v1668
        %6625 = vmatprep.subr.mxu0 %v1667
        %6626 = vmatpush2.msra.mxu0 %v1666
        %6627 = vmatprep.subr.mxu0 %v1665
        %6628 = vmatpush2.msra.mxu0 %v1664
        %6629 = vmatprep.mubr.f32.mxu0 %v4713
        %6630 = vmatmul.mubr.f32.gmra.mxu0 %v4711
        %v6631 = vpop.f32.mrf.mxu0
        %v6632 = vadd.f32 %v6561, %v6631
        %v6633 = vpop.f32.mrf.mxu0
        %v6634 = vadd.f32 %v6563, %v6633
        %6635 = vdwg.mxu0
        %6636 = vmatprep.subr.mxu0 %v1727
        %6637 = vmatpush1.msra.mxu0 %v1726
        %6638 = vmatprep.subr.mxu0 %v1725
        %6639 = vmatpush1.msra.mxu0 %v1724
        %6640 = vmatprep.subr.mxu0 %v1723
        %6641 = vmatpush1.msra.mxu0 %v1722
        %6642 = vmatprep.subr.mxu0 %v1721
        %6643 = vmatpush1.msra.mxu0 %v1720
        %6644 = vmatprep.subr.mxu0 %v1719
        %6645 = vmatpush1.msra.mxu0 %v1718
        %6646 = vmatprep.subr.mxu0 %v1717
        %6647 = vmatpush1.msra.mxu0 %v1716
        %6648 = vmatprep.subr.mxu0 %v1715
        %6649 = vmatpush1.msra.mxu0 %v1714
        %6650 = vmatprep.subr.mxu0 %v1713
        %6651 = vmatpush1.msra.mxu0 %v1712
        %6652 = vmatprep.subr.mxu0 %v1711
        %6653 = vmatpush1.msra.mxu0 %v1710
        %6654 = vmatprep.subr.mxu0 %v1709
        %6655 = vmatpush1.msra.mxu0 %v1708
        %6656 = vmatprep.subr.mxu0 %v1707
        %6657 = vmatpush1.msra.mxu0 %v1706
        %6658 = vmatprep.subr.mxu0 %v1705
        %6659 = vmatpush1.msra.mxu0 %v1704
        %6660 = vmatprep.subr.mxu0 %v1703
        %6661 = vmatpush1.msra.mxu0 %v1702
        %6662 = vmatprep.subr.mxu0 %v1701
        %6663 = vmatpush1.msra.mxu0 %v1700
        %6664 = vmatprep.subr.mxu0 %v1699
        %6665 = vmatpush1.msra.mxu0 %v1698
        %6666 = vmatprep.subr.mxu0 %v1697
        %6667 = vmatpush1.msra.mxu0 %v1696
        %6668 = vmatprep.subr.mxu0 %v1759
        %6669 = vmatpush2.msra.mxu0 %v1758
        %6670 = vmatprep.subr.mxu0 %v1757
        %6671 = vmatpush2.msra.mxu0 %v1756
        %6672 = vmatprep.subr.mxu0 %v1755
        %6673 = vmatpush2.msra.mxu0 %v1754
        %6674 = vmatprep.subr.mxu0 %v1753
        %6675 = vmatpush2.msra.mxu0 %v1752
        %6676 = vmatprep.subr.mxu0 %v1751
        %6677 = vmatpush2.msra.mxu0 %v1750
        %6678 = vmatprep.subr.mxu0 %v1749
        %6679 = vmatpush2.msra.mxu0 %v1748
        %6680 = vmatprep.subr.mxu0 %v1747
        %6681 = vmatpush2.msra.mxu0 %v1746
        %6682 = vmatprep.subr.mxu0 %v1745
        %6683 = vmatpush2.msra.mxu0 %v1744
        %6684 = vmatprep.subr.mxu0 %v1743
        %6685 = vmatpush2.msra.mxu0 %v1742
        %6686 = vmatprep.subr.mxu0 %v1741
        %6687 = vmatpush2.msra.mxu0 %v1740
        %6688 = vmatprep.subr.mxu0 %v1739
        %6689 = vmatpush2.msra.mxu0 %v1738
        %6690 = vmatprep.subr.mxu0 %v1737
        %6691 = vmatpush2.msra.mxu0 %v1736
        %6692 = vmatprep.subr.mxu0 %v1735
        %6693 = vmatpush2.msra.mxu0 %v1734
        %6694 = vmatprep.subr.mxu0 %v1733
        %6695 = vmatpush2.msra.mxu0 %v1732
        %6696 = vmatprep.subr.mxu0 %v1731
        %6697 = vmatpush2.msra.mxu0 %v1730
        %6698 = vmatprep.subr.mxu0 %v1729
        %6699 = vmatpush2.msra.mxu0 %v1728
        %6700 = vmatprep.mubr.f32.mxu0 %v4729
        %6701 = vmatmul.mubr.f32.gmra.mxu0 %v4721
        %v6702 = vpop.f32.mrf.mxu0
        %v6703 = vadd.f32 %v6632, %v6702
        %v6704 = vpop.f32.mrf.mxu0
        %v6705 = vadd.f32 %v6634, %v6704
        %6706 = vdwg.mxu0
        %6707 = vmatprep.subr.mxu0 %v1791
        %6708 = vmatpush1.msra.mxu0 %v1790
        %6709 = vmatprep.subr.mxu0 %v1789
        %6710 = vmatpush1.msra.mxu0 %v1788
        %6711 = vmatprep.subr.mxu0 %v1787
        %6712 = vmatpush1.msra.mxu0 %v1786
        %6713 = vmatprep.subr.mxu0 %v1785
        %6714 = vmatpush1.msra.mxu0 %v1784
        %6715 = vmatprep.subr.mxu0 %v1783
        %6716 = vmatpush1.msra.mxu0 %v1782
        %6717 = vmatprep.subr.mxu0 %v1781
        %6718 = vmatpush1.msra.mxu0 %v1780
        %6719 = vmatprep.subr.mxu0 %v1779
        %6720 = vmatpush1.msra.mxu0 %v1778
        %6721 = vmatprep.subr.mxu0 %v1777
        %6722 = vmatpush1.msra.mxu0 %v1776
        %6723 = vmatprep.subr.mxu0 %v1775
        %6724 = vmatpush1.msra.mxu0 %v1774
        %6725 = vmatprep.subr.mxu0 %v1773
        %6726 = vmatpush1.msra.mxu0 %v1772
        %6727 = vmatprep.subr.mxu0 %v1771
        %6728 = vmatpush1.msra.mxu0 %v1770
        %6729 = vmatprep.subr.mxu0 %v1769
        %6730 = vmatpush1.msra.mxu0 %v1768
        %6731 = vmatprep.subr.mxu0 %v1767
        %6732 = vmatpush1.msra.mxu0 %v1766
        %6733 = vmatprep.subr.mxu0 %v1765
        %6734 = vmatpush1.msra.mxu0 %v1764
        %6735 = vmatprep.subr.mxu0 %v1763
        %6736 = vmatpush1.msra.mxu0 %v1762
        %6737 = vmatprep.subr.mxu0 %v1761
        %6738 = vmatpush1.msra.mxu0 %v1760
        %6739 = vmatprep.subr.mxu0 %v1823
        %6740 = vmatpush2.msra.mxu0 %v1822
        %6741 = vmatprep.subr.mxu0 %v1821
        %6742 = vmatpush2.msra.mxu0 %v1820
        %6743 = vmatprep.subr.mxu0 %v1819
        %6744 = vmatpush2.msra.mxu0 %v1818
        %6745 = vmatprep.subr.mxu0 %v1817
        %6746 = vmatpush2.msra.mxu0 %v1816
        %6747 = vmatprep.subr.mxu0 %v1815
        %6748 = vmatpush2.msra.mxu0 %v1814
        %6749 = vmatprep.subr.mxu0 %v1813
        %6750 = vmatpush2.msra.mxu0 %v1812
        %6751 = vmatprep.subr.mxu0 %v1811
        %6752 = vmatpush2.msra.mxu0 %v1810
        %6753 = vmatprep.subr.mxu0 %v1809
        %6754 = vmatpush2.msra.mxu0 %v1808
        %6755 = vmatprep.subr.mxu0 %v1807
        %6756 = vmatpush2.msra.mxu0 %v1806
        %6757 = vmatprep.subr.mxu0 %v1805
        %6758 = vmatpush2.msra.mxu0 %v1804
        %6759 = vmatprep.subr.mxu0 %v1803
        %6760 = vmatpush2.msra.mxu0 %v1802
        %6761 = vmatprep.subr.mxu0 %v1801
        %6762 = vmatpush2.msra.mxu0 %v1800
        %6763 = vmatprep.subr.mxu0 %v1799
        %6764 = vmatpush2.msra.mxu0 %v1798
        %6765 = vmatprep.subr.mxu0 %v1797
        %6766 = vmatpush2.msra.mxu0 %v1796
        %6767 = vmatprep.subr.mxu0 %v1795
        %6768 = vmatpush2.msra.mxu0 %v1794
        %6769 = vmatprep.subr.mxu0 %v1793
        %6770 = vmatpush2.msra.mxu0 %v1792
        %6771 = vmatprep.mubr.f32.mxu0 %v4730
        %6772 = vmatmul.mubr.f32.gmra.mxu0 %v4728
        %v6773 = vpop.f32.mrf.mxu0
        %v6774 = vadd.f32 %v6703, %v6773
        %v6775 = vpop.f32.mrf.mxu0
        %v6776 = vadd.f32 %v6705, %v6775
        %6777 = vdwg.mxu0
        %6778 = vmatprep.subr.mxu0 %v1855
        %6779 = vmatpush1.msra.mxu0 %v1854
        %6780 = vmatprep.subr.mxu0 %v1853
        %6781 = vmatpush1.msra.mxu0 %v1852
        %6782 = vmatprep.subr.mxu0 %v1851
        %6783 = vmatpush1.msra.mxu0 %v1850
        %6784 = vmatprep.subr.mxu0 %v1849
        %6785 = vmatpush1.msra.mxu0 %v1848
        %6786 = vmatprep.subr.mxu0 %v1847
        %6787 = vmatpush1.msra.mxu0 %v1846
        %6788 = vmatprep.subr.mxu0 %v1845
        %6789 = vmatpush1.msra.mxu0 %v1844
        %6790 = vmatprep.subr.mxu0 %v1843
        %6791 = vmatpush1.msra.mxu0 %v1842
        %6792 = vmatprep.subr.mxu0 %v1841
        %6793 = vmatpush1.msra.mxu0 %v1840
        %6794 = vmatprep.subr.mxu0 %v1839
        %6795 = vmatpush1.msra.mxu0 %v1838
        %6796 = vmatprep.subr.mxu0 %v1837
        %6797 = vmatpush1.msra.mxu0 %v1836
        %6798 = vmatprep.subr.mxu0 %v1835
        %6799 = vmatpush1.msra.mxu0 %v1834
        %6800 = vmatprep.subr.mxu0 %v1833
        %6801 = vmatpush1.msra.mxu0 %v1832
        %6802 = vmatprep.subr.mxu0 %v1831
        %6803 = vmatpush1.msra.mxu0 %v1830
        %6804 = vmatprep.subr.mxu0 %v1829
        %6805 = vmatpush1.msra.mxu0 %v1828
        %6806 = vmatprep.subr.mxu0 %v1827
        %6807 = vmatpush1.msra.mxu0 %v1826
        %6808 = vmatprep.subr.mxu0 %v1825
        %6809 = vmatpush1.msra.mxu0 %v1824
        %6810 = vmatprep.subr.mxu0 %v1887
        %6811 = vmatpush2.msra.mxu0 %v1886
        %6812 = vmatprep.subr.mxu0 %v1885
        %6813 = vmatpush2.msra.mxu0 %v1884
        %6814 = vmatprep.subr.mxu0 %v1883
        %6815 = vmatpush2.msra.mxu0 %v1882
        %6816 = vmatprep.subr.mxu0 %v1881
        %6817 = vmatpush2.msra.mxu0 %v1880
        %6818 = vmatprep.subr.mxu0 %v1879
        %6819 = vmatpush2.msra.mxu0 %v1878
        %6820 = vmatprep.subr.mxu0 %v1877
        %6821 = vmatpush2.msra.mxu0 %v1876
        %6822 = vmatprep.subr.mxu0 %v1875
        %6823 = vmatpush2.msra.mxu0 %v1874
        %6824 = vmatprep.subr.mxu0 %v1873
        %6825 = vmatpush2.msra.mxu0 %v1872
        %6826 = vmatprep.subr.mxu0 %v1871
        %6827 = vmatpush2.msra.mxu0 %v1870
        %6828 = vmatprep.subr.mxu0 %v1869
        %6829 = vmatpush2.msra.mxu0 %v1868
        %6830 = vmatprep.subr.mxu0 %v1867
        %6831 = vmatpush2.msra.mxu0 %v1866
        %6832 = vmatprep.subr.mxu0 %v1865
        %6833 = vmatpush2.msra.mxu0 %v1864
        %6834 = vmatprep.subr.mxu0 %v1863
        %6835 = vmatpush2.msra.mxu0 %v1862
        %6836 = vmatprep.subr.mxu0 %v1861
        %6837 = vmatpush2.msra.mxu0 %v1860
        %6838 = vmatprep.subr.mxu0 %v1859
        %6839 = vmatpush2.msra.mxu0 %v1858
        %6840 = vmatprep.subr.mxu0 %v1857
        %6841 = vmatpush2.msra.mxu0 %v1856
        %6842 = vmatprep.mubr.f32.mxu0 %v4746
        %6843 = vmatmul.mubr.f32.gmra.mxu0 %v4738
        %v6844 = vpop.f32.mrf.mxu0
        %v6845 = vadd.f32 %v6774, %v6844
        %v6846 = vpop.f32.mrf.mxu0
        %v6847 = vadd.f32 %v6776, %v6846
        %6848 = vdwg.mxu0
        %6849 = vmatprep.subr.mxu0 %v1919
        %6850 = vmatpush1.msra.mxu0 %v1918
        %6851 = vmatprep.subr.mxu0 %v1917
        %6852 = vmatpush1.msra.mxu0 %v1916
        %6853 = vmatprep.subr.mxu0 %v1915
        %6854 = vmatpush1.msra.mxu0 %v1914
        %6855 = vmatprep.subr.mxu0 %v1913
        %6856 = vmatpush1.msra.mxu0 %v1912
        %6857 = vmatprep.subr.mxu0 %v1911
        %6858 = vmatpush1.msra.mxu0 %v1910
        %6859 = vmatprep.subr.mxu0 %v1909
        %6860 = vmatpush1.msra.mxu0 %v1908
        %6861 = vmatprep.subr.mxu0 %v1907
        %6862 = vmatpush1.msra.mxu0 %v1906
        %6863 = vmatprep.subr.mxu0 %v1905
        %6864 = vmatpush1.msra.mxu0 %v1904
        %6865 = vmatprep.subr.mxu0 %v1903
        %6866 = vmatpush1.msra.mxu0 %v1902
        %6867 = vmatprep.subr.mxu0 %v1901
        %6868 = vmatpush1.msra.mxu0 %v1900
        %6869 = vmatprep.subr.mxu0 %v1899
        %6870 = vmatpush1.msra.mxu0 %v1898
        %6871 = vmatprep.subr.mxu0 %v1897
        %6872 = vmatpush1.msra.mxu0 %v1896
        %6873 = vmatprep.subr.mxu0 %v1895
        %6874 = vmatpush1.msra.mxu0 %v1894
        %6875 = vmatprep.subr.mxu0 %v1893
        %6876 = vmatpush1.msra.mxu0 %v1892
        %6877 = vmatprep.subr.mxu0 %v1891
        %6878 = vmatpush1.msra.mxu0 %v1890
        %6879 = vmatprep.subr.mxu0 %v1889
        %6880 = vmatpush1.msra.mxu0 %v1888
        %6881 = vmatprep.subr.mxu0 %v1951
        %6882 = vmatpush2.msra.mxu0 %v1950
        %6883 = vmatprep.subr.mxu0 %v1949
        %6884 = vmatpush2.msra.mxu0 %v1948
        %6885 = vmatprep.subr.mxu0 %v1947
        %6886 = vmatpush2.msra.mxu0 %v1946
        %6887 = vmatprep.subr.mxu0 %v1945
        %6888 = vmatpush2.msra.mxu0 %v1944
        %6889 = vmatprep.subr.mxu0 %v1943
        %6890 = vmatpush2.msra.mxu0 %v1942
        %6891 = vmatprep.subr.mxu0 %v1941
        %6892 = vmatpush2.msra.mxu0 %v1940
        %6893 = vmatprep.subr.mxu0 %v1939
        %6894 = vmatpush2.msra.mxu0 %v1938
        %6895 = vmatprep.subr.mxu0 %v1937
        %6896 = vmatpush2.msra.mxu0 %v1936
        %6897 = vmatprep.subr.mxu0 %v1935
        %6898 = vmatpush2.msra.mxu0 %v1934
        %6899 = vmatprep.subr.mxu0 %v1933
        %6900 = vmatpush2.msra.mxu0 %v1932
        %6901 = vmatprep.subr.mxu0 %v1931
        %6902 = vmatpush2.msra.mxu0 %v1930
        %6903 = vmatprep.subr.mxu0 %v1929
        %6904 = vmatpush2.msra.mxu0 %v1928
        %6905 = vmatprep.subr.mxu0 %v1927
        %6906 = vmatpush2.msra.mxu0 %v1926
        %6907 = vmatprep.subr.mxu0 %v1925
        %6908 = vmatpush2.msra.mxu0 %v1924
        %6909 = vmatprep.subr.mxu0 %v1923
        %6910 = vmatpush2.msra.mxu0 %v1922
        %6911 = vmatprep.subr.mxu0 %v1921
        %6912 = vmatpush2.msra.mxu0 %v1920
        %6913 = vmatprep.mubr.f32.mxu0 %v4747
        %6914 = vmatmul.mubr.f32.gmra.mxu0 %v4745
        %v6915 = vpop.f32.mrf.mxu0
        %v6916 = vadd.f32 %v6845, %v6915
        %v6917 = vpop.f32.mrf.mxu0
        %v6918 = vadd.f32 %v6847, %v6917
        %6919 = vdwg.mxu0
        %6920 = vmatprep.subr.mxu0 %v1983
        %6921 = vmatpush1.msra.mxu0 %v1982
        %6922 = vmatprep.subr.mxu0 %v1981
        %6923 = vmatpush1.msra.mxu0 %v1980
        %6924 = vmatprep.subr.mxu0 %v1979
        %6925 = vmatpush1.msra.mxu0 %v1978
        %6926 = vmatprep.subr.mxu0 %v1977
        %6927 = vmatpush1.msra.mxu0 %v1976
        %6928 = vmatprep.subr.mxu0 %v1975
        %6929 = vmatpush1.msra.mxu0 %v1974
        %6930 = vmatprep.subr.mxu0 %v1973
        %6931 = vmatpush1.msra.mxu0 %v1972
        %6932 = vmatprep.subr.mxu0 %v1971
        %6933 = vmatpush1.msra.mxu0 %v1970
        %6934 = vmatprep.subr.mxu0 %v1969
        %6935 = vmatpush1.msra.mxu0 %v1968
        %6936 = vmatprep.subr.mxu0 %v1967
        %6937 = vmatpush1.msra.mxu0 %v1966
        %6938 = vmatprep.subr.mxu0 %v1965
        %6939 = vmatpush1.msra.mxu0 %v1964
        %6940 = vmatprep.subr.mxu0 %v1963
        %6941 = vmatpush1.msra.mxu0 %v1962
        %6942 = vmatprep.subr.mxu0 %v1961
        %6943 = vmatpush1.msra.mxu0 %v1960
        %6944 = vmatprep.subr.mxu0 %v1959
        %6945 = vmatpush1.msra.mxu0 %v1958
        %6946 = vmatprep.subr.mxu0 %v1957
        %6947 = vmatpush1.msra.mxu0 %v1956
        %6948 = vmatprep.subr.mxu0 %v1955
        %6949 = vmatpush1.msra.mxu0 %v1954
        %6950 = vmatprep.subr.mxu0 %v1953
        %6951 = vmatpush1.msra.mxu0 %v1952
        %6952 = vmatprep.subr.mxu0 %v2015
        %6953 = vmatpush2.msra.mxu0 %v2014
        %6954 = vmatprep.subr.mxu0 %v2013
        %6955 = vmatpush2.msra.mxu0 %v2012
        %6956 = vmatprep.subr.mxu0 %v2011
        %6957 = vmatpush2.msra.mxu0 %v2010
        %6958 = vmatprep.subr.mxu0 %v2009
        %6959 = vmatpush2.msra.mxu0 %v2008
        %6960 = vmatprep.subr.mxu0 %v2007
        %6961 = vmatpush2.msra.mxu0 %v2006
        %6962 = vmatprep.subr.mxu0 %v2005
        %6963 = vmatpush2.msra.mxu0 %v2004
        %6964 = vmatprep.subr.mxu0 %v2003
        %6965 = vmatpush2.msra.mxu0 %v2002
        %6966 = vmatprep.subr.mxu0 %v2001
        %6967 = vmatpush2.msra.mxu0 %v2000
        %6968 = vmatprep.subr.mxu0 %v1999
        %6969 = vmatpush2.msra.mxu0 %v1998
        %6970 = vmatprep.subr.mxu0 %v1997
        %6971 = vmatpush2.msra.mxu0 %v1996
        %6972 = vmatprep.subr.mxu0 %v1995
        %6973 = vmatpush2.msra.mxu0 %v1994
        %6974 = vmatprep.subr.mxu0 %v1993
        %6975 = vmatpush2.msra.mxu0 %v1992
        %6976 = vmatprep.subr.mxu0 %v1991
        %6977 = vmatpush2.msra.mxu0 %v1990
        %6978 = vmatprep.subr.mxu0 %v1989
        %6979 = vmatpush2.msra.mxu0 %v1988
        %6980 = vmatprep.subr.mxu0 %v1987
        %6981 = vmatpush2.msra.mxu0 %v1986
        %6982 = vmatprep.subr.mxu0 %v1985
        %6983 = vmatpush2.msra.mxu0 %v1984
        %6984 = vmatprep.mubr.f32.mxu0 %v4763
        %6985 = vmatmul.mubr.f32.gmra.mxu0 %v4755
        %v6986 = vpop.f32.mrf.mxu0
        %v6987 = vadd.f32 %v6916, %v6986
        %v6988 = vpop.f32.mrf.mxu0
        %v6989 = vadd.f32 %v6918, %v6988
        %6990 = vdwg.mxu0
        %6991 = vmatprep.subr.mxu0 %v2047
        %6992 = vmatpush1.msra.mxu0 %v2046
        %6993 = vmatprep.subr.mxu0 %v2045
        %6994 = vmatpush1.msra.mxu0 %v2044
        %6995 = vmatprep.subr.mxu0 %v2043
        %6996 = vmatpush1.msra.mxu0 %v2042
        %6997 = vmatprep.subr.mxu0 %v2041
        %6998 = vmatpush1.msra.mxu0 %v2040
        %6999 = vmatprep.subr.mxu0 %v2039
        %7000 = vmatpush1.msra.mxu0 %v2038
        %7001 = vmatprep.subr.mxu0 %v2037
        %7002 = vmatpush1.msra.mxu0 %v2036
        %7003 = vmatprep.subr.mxu0 %v2035
        %7004 = vmatpush1.msra.mxu0 %v2034
        %7005 = vmatprep.subr.mxu0 %v2033
        %7006 = vmatpush1.msra.mxu0 %v2032
        %7007 = vmatprep.subr.mxu0 %v2031
        %7008 = vmatpush1.msra.mxu0 %v2030
        %7009 = vmatprep.subr.mxu0 %v2029
        %7010 = vmatpush1.msra.mxu0 %v2028
        %7011 = vmatprep.subr.mxu0 %v2027
        %7012 = vmatpush1.msra.mxu0 %v2026
        %7013 = vmatprep.subr.mxu0 %v2025
        %7014 = vmatpush1.msra.mxu0 %v2024
        %7015 = vmatprep.subr.mxu0 %v2023
        %7016 = vmatpush1.msra.mxu0 %v2022
        %7017 = vmatprep.subr.mxu0 %v2021
        %7018 = vmatpush1.msra.mxu0 %v2020
        %7019 = vmatprep.subr.mxu0 %v2019
        %7020 = vmatpush1.msra.mxu0 %v2018
        %7021 = vmatprep.subr.mxu0 %v2017
        %7022 = vmatpush1.msra.mxu0 %v2016
        %7023 = vmatprep.subr.mxu0 %v2079
        %7024 = vmatpush2.msra.mxu0 %v2078
        %7025 = vmatprep.subr.mxu0 %v2077
        %7026 = vmatpush2.msra.mxu0 %v2076
        %7027 = vmatprep.subr.mxu0 %v2075
        %7028 = vmatpush2.msra.mxu0 %v2074
        %7029 = vmatprep.subr.mxu0 %v2073
        %7030 = vmatpush2.msra.mxu0 %v2072
        %7031 = vmatprep.subr.mxu0 %v2071
        %7032 = vmatpush2.msra.mxu0 %v2070
        %7033 = vmatprep.subr.mxu0 %v2069
        %7034 = vmatpush2.msra.mxu0 %v2068
        %7035 = vmatprep.subr.mxu0 %v2067
        %7036 = vmatpush2.msra.mxu0 %v2066
        %7037 = vmatprep.subr.mxu0 %v2065
        %7038 = vmatpush2.msra.mxu0 %v2064
        %7039 = vmatprep.subr.mxu0 %v2063
        %7040 = vmatpush2.msra.mxu0 %v2062
        %7041 = vmatprep.subr.mxu0 %v2061
        %7042 = vmatpush2.msra.mxu0 %v2060
        %7043 = vmatprep.subr.mxu0 %v2059
        %7044 = vmatpush2.msra.mxu0 %v2058
        %7045 = vmatprep.subr.mxu0 %v2057
        %7046 = vmatpush2.msra.mxu0 %v2056
        %7047 = vmatprep.subr.mxu0 %v2055
        %7048 = vmatpush2.msra.mxu0 %v2054
        %7049 = vmatprep.subr.mxu0 %v2053
        %7050 = vmatpush2.msra.mxu0 %v2052
        %7051 = vmatprep.subr.mxu0 %v2051
        %7052 = vmatpush2.msra.mxu0 %v2050
        %7053 = vmatprep.subr.mxu0 %v2049
        %7054 = vmatpush2.msra.mxu0 %v2048
        %7055 = vmatprep.mubr.f32.mxu0 %v4764
        %7056 = vmatmul.mubr.f32.gmra.mxu0 %v4762
        %v7057 = vpop.f32.mrf.mxu0
        %v7058 = vadd.f32 %v6987, %v7057
        %v7059 = vpop.f32.mrf.mxu0
        %v7060 = vadd.f32 %v6989, %v7059
        %7061 = vdwg.mxu0
        %7062 = vmatprep.subr.mxu0 %v2111
        %7063 = vmatpush1.msra.mxu0 %v2110
        %7064 = vmatprep.subr.mxu0 %v2109
        %7065 = vmatpush1.msra.mxu0 %v2108
        %7066 = vmatprep.subr.mxu0 %v2107
        %7067 = vmatpush1.msra.mxu0 %v2106
        %7068 = vmatprep.subr.mxu0 %v2105
        %7069 = vmatpush1.msra.mxu0 %v2104
        %7070 = vmatprep.subr.mxu0 %v2103
        %7071 = vmatpush1.msra.mxu0 %v2102
        %7072 = vmatprep.subr.mxu0 %v2101
        %7073 = vmatpush1.msra.mxu0 %v2100
        %7074 = vmatprep.subr.mxu0 %v2099
        %7075 = vmatpush1.msra.mxu0 %v2098
        %7076 = vmatprep.subr.mxu0 %v2097
        %7077 = vmatpush1.msra.mxu0 %v2096
        %7078 = vmatprep.subr.mxu0 %v2095
        %7079 = vmatpush1.msra.mxu0 %v2094
        %7080 = vmatprep.subr.mxu0 %v2093
        %7081 = vmatpush1.msra.mxu0 %v2092
        %7082 = vmatprep.subr.mxu0 %v2091
        %7083 = vmatpush1.msra.mxu0 %v2090
        %7084 = vmatprep.subr.mxu0 %v2089
        %7085 = vmatpush1.msra.mxu0 %v2088
        %7086 = vmatprep.subr.mxu0 %v2087
        %7087 = vmatpush1.msra.mxu0 %v2086
        %7088 = vmatprep.subr.mxu0 %v2085
        %7089 = vmatpush1.msra.mxu0 %v2084
        %7090 = vmatprep.subr.mxu0 %v2083
        %7091 = vmatpush1.msra.mxu0 %v2082
        %7092 = vmatprep.subr.mxu0 %v2081
        %7093 = vmatpush1.msra.mxu0 %v2080
        %7094 = vmatprep.subr.mxu0 %v2143
        %7095 = vmatpush2.msra.mxu0 %v2142
        %7096 = vmatprep.subr.mxu0 %v2141
        %7097 = vmatpush2.msra.mxu0 %v2140
        %7098 = vmatprep.subr.mxu0 %v2139
        %7099 = vmatpush2.msra.mxu0 %v2138
        %7100 = vmatprep.subr.mxu0 %v2137
        %7101 = vmatpush2.msra.mxu0 %v2136
        %7102 = vmatprep.subr.mxu0 %v2135
        %7103 = vmatpush2.msra.mxu0 %v2134
        %7104 = vmatprep.subr.mxu0 %v2133
        %7105 = vmatpush2.msra.mxu0 %v2132
        %7106 = vmatprep.subr.mxu0 %v2131
        %7107 = vmatpush2.msra.mxu0 %v2130
        %7108 = vmatprep.subr.mxu0 %v2129
        %7109 = vmatpush2.msra.mxu0 %v2128
        %7110 = vmatprep.subr.mxu0 %v2127
        %7111 = vmatpush2.msra.mxu0 %v2126
        %7112 = vmatprep.subr.mxu0 %v2125
        %7113 = vmatpush2.msra.mxu0 %v2124
        %7114 = vmatprep.subr.mxu0 %v2123
        %7115 = vmatpush2.msra.mxu0 %v2122
        %7116 = vmatprep.subr.mxu0 %v2121
        %7117 = vmatpush2.msra.mxu0 %v2120
        %7118 = vmatprep.subr.mxu0 %v2119
        %7119 = vmatpush2.msra.mxu0 %v2118
        %7120 = vmatprep.subr.mxu0 %v2117
        %7121 = vmatpush2.msra.mxu0 %v2116
        %7122 = vmatprep.subr.mxu0 %v2115
        %7123 = vmatpush2.msra.mxu0 %v2114
        %7124 = vmatprep.subr.mxu0 %v2113
        %7125 = vmatpush2.msra.mxu0 %v2112
        %7126 = vmatprep.mubr.f32.mxu0 %v4780
        %7127 = vmatmul.mubr.f32.gmra.mxu0 %v4772
        %v7128 = vpop.f32.mrf.mxu0
        %v7129 = vadd.f32 %v7058, %v7128
        %v7130 = vpop.f32.mrf.mxu0
        %v7131 = vadd.f32 %v7060, %v7130
        %7132 = vdwg.mxu0
        %7133 = vmatprep.subr.mxu0 %v2175
        %7134 = vmatpush1.msra.mxu0 %v2174
        %7135 = vmatprep.subr.mxu0 %v2173
        %7136 = vmatpush1.msra.mxu0 %v2172
        %7137 = vmatprep.subr.mxu0 %v2171
        %7138 = vmatpush1.msra.mxu0 %v2170
        %7139 = vmatprep.subr.mxu0 %v2169
        %7140 = vmatpush1.msra.mxu0 %v2168
        %7141 = vmatprep.subr.mxu0 %v2167
        %7142 = vmatpush1.msra.mxu0 %v2166
        %7143 = vmatprep.subr.mxu0 %v2165
        %7144 = vmatpush1.msra.mxu0 %v2164
        %7145 = vmatprep.subr.mxu0 %v2163
        %7146 = vmatpush1.msra.mxu0 %v2162
        %7147 = vmatprep.subr.mxu0 %v2161
        %7148 = vmatpush1.msra.mxu0 %v2160
        %7149 = vmatprep.subr.mxu0 %v2159
        %7150 = vmatpush1.msra.mxu0 %v2158
        %7151 = vmatprep.subr.mxu0 %v2157
        %7152 = vmatpush1.msra.mxu0 %v2156
        %7153 = vmatprep.subr.mxu0 %v2155
        %7154 = vmatpush1.msra.mxu0 %v2154
        %7155 = vmatprep.subr.mxu0 %v2153
        %7156 = vmatpush1.msra.mxu0 %v2152
        %7157 = vmatprep.subr.mxu0 %v2151
        %7158 = vmatpush1.msra.mxu0 %v2150
        %7159 = vmatprep.subr.mxu0 %v2149
        %7160 = vmatpush1.msra.mxu0 %v2148
        %7161 = vmatprep.subr.mxu0 %v2147
        %7162 = vmatpush1.msra.mxu0 %v2146
        %7163 = vmatprep.subr.mxu0 %v2145
        %7164 = vmatpush1.msra.mxu0 %v2144
        %7165 = vmatprep.subr.mxu0 %v2207
        %7166 = vmatpush2.msra.mxu0 %v2206
        %7167 = vmatprep.subr.mxu0 %v2205
        %7168 = vmatpush2.msra.mxu0 %v2204
        %7169 = vmatprep.subr.mxu0 %v2203
        %7170 = vmatpush2.msra.mxu0 %v2202
        %7171 = vmatprep.subr.mxu0 %v2201
        %7172 = vmatpush2.msra.mxu0 %v2200
        %7173 = vmatprep.subr.mxu0 %v2199
        %7174 = vmatpush2.msra.mxu0 %v2198
        %7175 = vmatprep.subr.mxu0 %v2197
        %7176 = vmatpush2.msra.mxu0 %v2196
        %7177 = vmatprep.subr.mxu0 %v2195
        %7178 = vmatpush2.msra.mxu0 %v2194
        %7179 = vmatprep.subr.mxu0 %v2193
        %7180 = vmatpush2.msra.mxu0 %v2192
        %7181 = vmatprep.subr.mxu0 %v2191
        %7182 = vmatpush2.msra.mxu0 %v2190
        %7183 = vmatprep.subr.mxu0 %v2189
        %7184 = vmatpush2.msra.mxu0 %v2188
        %7185 = vmatprep.subr.mxu0 %v2187
        %7186 = vmatpush2.msra.mxu0 %v2186
        %7187 = vmatprep.subr.mxu0 %v2185
        %7188 = vmatpush2.msra.mxu0 %v2184
        %7189 = vmatprep.subr.mxu0 %v2183
        %7190 = vmatpush2.msra.mxu0 %v2182
        %7191 = vmatprep.subr.mxu0 %v2181
        %7192 = vmatpush2.msra.mxu0 %v2180
        %7193 = vmatprep.subr.mxu0 %v2179
        %7194 = vmatpush2.msra.mxu0 %v2178
        %7195 = vmatprep.subr.mxu0 %v2177
        %7196 = vmatpush2.msra.mxu0 %v2176
        %7197 = vmatprep.mubr.f32.mxu0 %v4781
        %7198 = vmatmul.mubr.f32.gmra.mxu0 %v4779
        %v7199 = vpop.f32.mrf.mxu0
        %v7200 = vadd.f32 %v7129, %v7199
        %v7201 = vpop.f32.mrf.mxu0
        %v7202 = vadd.f32 %v7131, %v7201
        %7203 = vdwg.mxu0
        %7204 = vmatprep.subr.mxu0 %v2239
        %7205 = vmatpush1.msra.mxu0 %v2238
        %7206 = vmatprep.subr.mxu0 %v2237
        %7207 = vmatpush1.msra.mxu0 %v2236
        %7208 = vmatprep.subr.mxu0 %v2235
        %7209 = vmatpush1.msra.mxu0 %v2234
        %7210 = vmatprep.subr.mxu0 %v2233
        %7211 = vmatpush1.msra.mxu0 %v2232
        %7212 = vmatprep.subr.mxu0 %v2231
        %7213 = vmatpush1.msra.mxu0 %v2230
        %7214 = vmatprep.subr.mxu0 %v2229
        %7215 = vmatpush1.msra.mxu0 %v2228
        %7216 = vmatprep.subr.mxu0 %v2227
        %7217 = vmatpush1.msra.mxu0 %v2226
        %7218 = vmatprep.subr.mxu0 %v2225
        %7219 = vmatpush1.msra.mxu0 %v2224
        %7220 = vmatprep.subr.mxu0 %v2223
        %7221 = vmatpush1.msra.mxu0 %v2222
        %7222 = vmatprep.subr.mxu0 %v2221
        %7223 = vmatpush1.msra.mxu0 %v2220
        %7224 = vmatprep.subr.mxu0 %v2219
        %7225 = vmatpush1.msra.mxu0 %v2218
        %7226 = vmatprep.subr.mxu0 %v2217
        %7227 = vmatpush1.msra.mxu0 %v2216
        %7228 = vmatprep.subr.mxu0 %v2215
        %7229 = vmatpush1.msra.mxu0 %v2214
        %7230 = vmatprep.subr.mxu0 %v2213
        %7231 = vmatpush1.msra.mxu0 %v2212
        %7232 = vmatprep.subr.mxu0 %v2211
        %7233 = vmatpush1.msra.mxu0 %v2210
        %7234 = vmatprep.subr.mxu0 %v2209
        %7235 = vmatpush1.msra.mxu0 %v2208
        %7236 = vmatprep.subr.mxu0 %v2271
        %7237 = vmatpush2.msra.mxu0 %v2270
        %7238 = vmatprep.subr.mxu0 %v2269
        %7239 = vmatpush2.msra.mxu0 %v2268
        %7240 = vmatprep.subr.mxu0 %v2267
        %7241 = vmatpush2.msra.mxu0 %v2266
        %7242 = vmatprep.subr.mxu0 %v2265
        %7243 = vmatpush2.msra.mxu0 %v2264
        %7244 = vmatprep.subr.mxu0 %v2263
        %7245 = vmatpush2.msra.mxu0 %v2262
        %7246 = vmatprep.subr.mxu0 %v2261
        %7247 = vmatpush2.msra.mxu0 %v2260
        %7248 = vmatprep.subr.mxu0 %v2259
        %7249 = vmatpush2.msra.mxu0 %v2258
        %7250 = vmatprep.subr.mxu0 %v2257
        %7251 = vmatpush2.msra.mxu0 %v2256
        %7252 = vmatprep.subr.mxu0 %v2255
        %7253 = vmatpush2.msra.mxu0 %v2254
        %7254 = vmatprep.subr.mxu0 %v2253
        %7255 = vmatpush2.msra.mxu0 %v2252
        %7256 = vmatprep.subr.mxu0 %v2251
        %7257 = vmatpush2.msra.mxu0 %v2250
        %7258 = vmatprep.subr.mxu0 %v2249
        %7259 = vmatpush2.msra.mxu0 %v2248
        %7260 = vmatprep.subr.mxu0 %v2247
        %7261 = vmatpush2.msra.mxu0 %v2246
        %7262 = vmatprep.subr.mxu0 %v2245
        %7263 = vmatpush2.msra.mxu0 %v2244
        %7264 = vmatprep.subr.mxu0 %v2243
        %7265 = vmatpush2.msra.mxu0 %v2242
        %7266 = vmatprep.subr.mxu0 %v2241
        %7267 = vmatpush2.msra.mxu0 %v2240
        %7268 = vmatprep.mubr.f32.mxu0 %v4797
        %7269 = vmatmul.mubr.f32.gmra.mxu0 %v4789
        %v7270 = vpop.f32.mrf.mxu0
        %v7271 = vadd.f32 %v7200, %v7270
        %v7272 = vpop.f32.mrf.mxu0
        %v7273 = vadd.f32 %v7202, %v7272
        %7274 = vdwg.mxu0
        %7275 = vmatprep.subr.mxu0 %v2303
        %7276 = vmatpush1.msra.mxu0 %v2302
        %7277 = vmatprep.subr.mxu0 %v2301
        %7278 = vmatpush1.msra.mxu0 %v2300
        %7279 = vmatprep.subr.mxu0 %v2299
        %7280 = vmatpush1.msra.mxu0 %v2298
        %7281 = vmatprep.subr.mxu0 %v2297
        %7282 = vmatpush1.msra.mxu0 %v2296
        %7283 = vmatprep.subr.mxu0 %v2295
        %7284 = vmatpush1.msra.mxu0 %v2294
        %7285 = vmatprep.subr.mxu0 %v2293
        %7286 = vmatpush1.msra.mxu0 %v2292
        %7287 = vmatprep.subr.mxu0 %v2291
        %7288 = vmatpush1.msra.mxu0 %v2290
        %7289 = vmatprep.subr.mxu0 %v2289
        %7290 = vmatpush1.msra.mxu0 %v2288
        %7291 = vmatprep.subr.mxu0 %v2287
        %7292 = vmatpush1.msra.mxu0 %v2286
        %7293 = vmatprep.subr.mxu0 %v2285
        %7294 = vmatpush1.msra.mxu0 %v2284
        %7295 = vmatprep.subr.mxu0 %v2283
        %7296 = vmatpush1.msra.mxu0 %v2282
        %7297 = vmatprep.subr.mxu0 %v2281
        %7298 = vmatpush1.msra.mxu0 %v2280
        %7299 = vmatprep.subr.mxu0 %v2279
        %7300 = vmatpush1.msra.mxu0 %v2278
        %7301 = vmatprep.subr.mxu0 %v2277
        %7302 = vmatpush1.msra.mxu0 %v2276
        %7303 = vmatprep.subr.mxu0 %v2275
        %7304 = vmatpush1.msra.mxu0 %v2274
        %7305 = vmatprep.subr.mxu0 %v2273
        %7306 = vmatpush1.msra.mxu0 %v2272
        %7307 = vmatprep.subr.mxu0 %v2335
        %7308 = vmatpush2.msra.mxu0 %v2334
        %7309 = vmatprep.subr.mxu0 %v2333
        %7310 = vmatpush2.msra.mxu0 %v2332
        %7311 = vmatprep.subr.mxu0 %v2331
        %7312 = vmatpush2.msra.mxu0 %v2330
        %7313 = vmatprep.subr.mxu0 %v2329
        %7314 = vmatpush2.msra.mxu0 %v2328
        %7315 = vmatprep.subr.mxu0 %v2327
        %7316 = vmatpush2.msra.mxu0 %v2326
        %7317 = vmatprep.subr.mxu0 %v2325
        %7318 = vmatpush2.msra.mxu0 %v2324
        %7319 = vmatprep.subr.mxu0 %v2323
        %7320 = vmatpush2.msra.mxu0 %v2322
        %7321 = vmatprep.subr.mxu0 %v2321
        %7322 = vmatpush2.msra.mxu0 %v2320
        %7323 = vmatprep.subr.mxu0 %v2319
        %7324 = vmatpush2.msra.mxu0 %v2318
        %7325 = vmatprep.subr.mxu0 %v2317
        %7326 = vmatpush2.msra.mxu0 %v2316
        %7327 = vmatprep.subr.mxu0 %v2315
        %7328 = vmatpush2.msra.mxu0 %v2314
        %7329 = vmatprep.subr.mxu0 %v2313
        %7330 = vmatpush2.msra.mxu0 %v2312
        %7331 = vmatprep.subr.mxu0 %v2311
        %7332 = vmatpush2.msra.mxu0 %v2310
        %7333 = vmatprep.subr.mxu0 %v2309
        %7334 = vmatpush2.msra.mxu0 %v2308
        %7335 = vmatprep.subr.mxu0 %v2307
        %7336 = vmatpush2.msra.mxu0 %v2306
        %7337 = vmatprep.subr.mxu0 %v2305
        %7338 = vmatpush2.msra.mxu0 %v2304
        %7339 = vmatprep.mubr.f32.mxu0 %v4798
        %7340 = vmatmul.mubr.f32.gmra.mxu0 %v4796
        %v7341 = vpop.f32.mrf.mxu0
        %v7342 = vadd.f32 %v7271, %v7341
        %v7343 = vpop.f32.mrf.mxu0
        %v7344 = vadd.f32 %v7273, %v7343
        %7345 = vdwg.mxu0
        %7346 = vmatprep.subr.mxu0 %v2367
        %7347 = vmatpush1.msra.mxu0 %v2366
        %7348 = vmatprep.subr.mxu0 %v2365
        %7349 = vmatpush1.msra.mxu0 %v2364
        %7350 = vmatprep.subr.mxu0 %v2363
        %7351 = vmatpush1.msra.mxu0 %v2362
        %7352 = vmatprep.subr.mxu0 %v2361
        %7353 = vmatpush1.msra.mxu0 %v2360
        %7354 = vmatprep.subr.mxu0 %v2359
        %7355 = vmatpush1.msra.mxu0 %v2358
        %7356 = vmatprep.subr.mxu0 %v2357
        %7357 = vmatpush1.msra.mxu0 %v2356
        %7358 = vmatprep.subr.mxu0 %v2355
        %7359 = vmatpush1.msra.mxu0 %v2354
        %7360 = vmatprep.subr.mxu0 %v2353
        %7361 = vmatpush1.msra.mxu0 %v2352
        %7362 = vmatprep.subr.mxu0 %v2351
        %7363 = vmatpush1.msra.mxu0 %v2350
        %7364 = vmatprep.subr.mxu0 %v2349
        %7365 = vmatpush1.msra.mxu0 %v2348
        %7366 = vmatprep.subr.mxu0 %v2347
        %7367 = vmatpush1.msra.mxu0 %v2346
        %7368 = vmatprep.subr.mxu0 %v2345
        %7369 = vmatpush1.msra.mxu0 %v2344
        %7370 = vmatprep.subr.mxu0 %v2343
        %7371 = vmatpush1.msra.mxu0 %v2342
        %7372 = vmatprep.subr.mxu0 %v2341
        %7373 = vmatpush1.msra.mxu0 %v2340
        %7374 = vmatprep.subr.mxu0 %v2339
        %7375 = vmatpush1.msra.mxu0 %v2338
        %7376 = vmatprep.subr.mxu0 %v2337
        %7377 = vmatpush1.msra.mxu0 %v2336
        %7378 = vmatprep.subr.mxu0 %v2399
        %7379 = vmatpush2.msra.mxu0 %v2398
        %7380 = vmatprep.subr.mxu0 %v2397
        %7381 = vmatpush2.msra.mxu0 %v2396
        %7382 = vmatprep.subr.mxu0 %v2395
        %7383 = vmatpush2.msra.mxu0 %v2394
        %7384 = vmatprep.subr.mxu0 %v2393
        %7385 = vmatpush2.msra.mxu0 %v2392
        %7386 = vmatprep.subr.mxu0 %v2391
        %7387 = vmatpush2.msra.mxu0 %v2390
        %7388 = vmatprep.subr.mxu0 %v2389
        %7389 = vmatpush2.msra.mxu0 %v2388
        %7390 = vmatprep.subr.mxu0 %v2387
        %7391 = vmatpush2.msra.mxu0 %v2386
        %7392 = vmatprep.subr.mxu0 %v2385
        %7393 = vmatpush2.msra.mxu0 %v2384
        %7394 = vmatprep.subr.mxu0 %v2383
        %7395 = vmatpush2.msra.mxu0 %v2382
        %7396 = vmatprep.subr.mxu0 %v2381
        %7397 = vmatpush2.msra.mxu0 %v2380
        %7398 = vmatprep.subr.mxu0 %v2379
        %7399 = vmatpush2.msra.mxu0 %v2378
        %7400 = vmatprep.subr.mxu0 %v2377
        %7401 = vmatpush2.msra.mxu0 %v2376
        %7402 = vmatprep.subr.mxu0 %v2375
        %7403 = vmatpush2.msra.mxu0 %v2374
        %7404 = vmatprep.subr.mxu0 %v2373
        %7405 = vmatpush2.msra.mxu0 %v2372
        %7406 = vmatprep.subr.mxu0 %v2371
        %7407 = vmatpush2.msra.mxu0 %v2370
        %7408 = vmatprep.subr.mxu0 %v2369
        %7409 = vmatpush2.msra.mxu0 %v2368
        %7410 = vmatprep.mubr.f32.mxu0 %v4814
        %7411 = vmatmul.mubr.f32.gmra.mxu0 %v4806
        %v7412 = vpop.f32.mrf.mxu0
        %v7413 = vadd.f32 %v7342, %v7412
        %v7414 = vpop.f32.mrf.mxu0
        %v7415 = vadd.f32 %v7344, %v7414
        %7416 = vdwg.mxu0
        %7417 = vmatprep.subr.mxu0 %v2431
        %7418 = vmatpush1.msra.mxu0 %v2430
        %7419 = vmatprep.subr.mxu0 %v2429
        %7420 = vmatpush1.msra.mxu0 %v2428
        %7421 = vmatprep.subr.mxu0 %v2427
        %7422 = vmatpush1.msra.mxu0 %v2426
        %7423 = vmatprep.subr.mxu0 %v2425
        %7424 = vmatpush1.msra.mxu0 %v2424
        %7425 = vmatprep.subr.mxu0 %v2423
        %7426 = vmatpush1.msra.mxu0 %v2422
        %7427 = vmatprep.subr.mxu0 %v2421
        %7428 = vmatpush1.msra.mxu0 %v2420
        %7429 = vmatprep.subr.mxu0 %v2419
        %7430 = vmatpush1.msra.mxu0 %v2418
        %7431 = vmatprep.subr.mxu0 %v2417
        %7432 = vmatpush1.msra.mxu0 %v2416
        %7433 = vmatprep.subr.mxu0 %v2415
        %7434 = vmatpush1.msra.mxu0 %v2414
        %7435 = vmatprep.subr.mxu0 %v2413
        %7436 = vmatpush1.msra.mxu0 %v2412
        %7437 = vmatprep.subr.mxu0 %v2411
        %7438 = vmatpush1.msra.mxu0 %v2410
        %7439 = vmatprep.subr.mxu0 %v2409
        %7440 = vmatpush1.msra.mxu0 %v2408
        %7441 = vmatprep.subr.mxu0 %v2407
        %7442 = vmatpush1.msra.mxu0 %v2406
        %7443 = vmatprep.subr.mxu0 %v2405
        %7444 = vmatpush1.msra.mxu0 %v2404
        %7445 = vmatprep.subr.mxu0 %v2403
        %7446 = vmatpush1.msra.mxu0 %v2402
        %7447 = vmatprep.subr.mxu0 %v2401
        %7448 = vmatpush1.msra.mxu0 %v2400
        %7449 = vmatprep.subr.mxu0 %v2463
        %7450 = vmatpush2.msra.mxu0 %v2462
        %7451 = vmatprep.subr.mxu0 %v2461
        %7452 = vmatpush2.msra.mxu0 %v2460
        %7453 = vmatprep.subr.mxu0 %v2459
        %7454 = vmatpush2.msra.mxu0 %v2458
        %7455 = vmatprep.subr.mxu0 %v2457
        %7456 = vmatpush2.msra.mxu0 %v2456
        %7457 = vmatprep.subr.mxu0 %v2455
        %7458 = vmatpush2.msra.mxu0 %v2454
        %7459 = vmatprep.subr.mxu0 %v2453
        %7460 = vmatpush2.msra.mxu0 %v2452
        %7461 = vmatprep.subr.mxu0 %v2451
        %7462 = vmatpush2.msra.mxu0 %v2450
        %7463 = vmatprep.subr.mxu0 %v2449
        %7464 = vmatpush2.msra.mxu0 %v2448
        %7465 = vmatprep.subr.mxu0 %v2447
        %7466 = vmatpush2.msra.mxu0 %v2446
        %7467 = vmatprep.subr.mxu0 %v2445
        %7468 = vmatpush2.msra.mxu0 %v2444
        %7469 = vmatprep.subr.mxu0 %v2443
        %7470 = vmatpush2.msra.mxu0 %v2442
        %7471 = vmatprep.subr.mxu0 %v2441
        %7472 = vmatpush2.msra.mxu0 %v2440
        %7473 = vmatprep.subr.mxu0 %v2439
        %7474 = vmatpush2.msra.mxu0 %v2438
        %7475 = vmatprep.subr.mxu0 %v2437
        %7476 = vmatpush2.msra.mxu0 %v2436
        %7477 = vmatprep.subr.mxu0 %v2435
        %7478 = vmatpush2.msra.mxu0 %v2434
        %7479 = vmatprep.subr.mxu0 %v2433
        %7480 = vmatpush2.msra.mxu0 %v2432
        %7481 = vmatprep.mubr.f32.mxu0 %v4815
        %7482 = vmatmul.mubr.f32.gmra.mxu0 %v4813
        %v7483 = vpop.f32.mrf.mxu0
        %v7484 = vadd.f32 %v7413, %v7483
        %v7485 = vpop.f32.mrf.mxu0
        %v7486 = vadd.f32 %v7415, %v7485
        %7487 = vdwg.mxu0
        %7488 = vmatprep.subr.mxu0 %v2495
        %7489 = vmatpush1.msra.mxu0 %v2494
        %7490 = vmatprep.subr.mxu0 %v2493
        %7491 = vmatpush1.msra.mxu0 %v2492
        %7492 = vmatprep.subr.mxu0 %v2491
        %7493 = vmatpush1.msra.mxu0 %v2490
        %7494 = vmatprep.subr.mxu0 %v2489
        %7495 = vmatpush1.msra.mxu0 %v2488
        %7496 = vmatprep.subr.mxu0 %v2487
        %7497 = vmatpush1.msra.mxu0 %v2486
        %7498 = vmatprep.subr.mxu0 %v2485
        %7499 = vmatpush1.msra.mxu0 %v2484
        %7500 = vmatprep.subr.mxu0 %v2483
        %7501 = vmatpush1.msra.mxu0 %v2482
        %7502 = vmatprep.subr.mxu0 %v2481
        %7503 = vmatpush1.msra.mxu0 %v2480
        %7504 = vmatprep.subr.mxu0 %v2479
        %7505 = vmatpush1.msra.mxu0 %v2478
        %7506 = vmatprep.subr.mxu0 %v2477
        %7507 = vmatpush1.msra.mxu0 %v2476
        %7508 = vmatprep.subr.mxu0 %v2475
        %7509 = vmatpush1.msra.mxu0 %v2474
        %7510 = vmatprep.subr.mxu0 %v2473
        %7511 = vmatpush1.msra.mxu0 %v2472
        %7512 = vmatprep.subr.mxu0 %v2471
        %7513 = vmatpush1.msra.mxu0 %v2470
        %7514 = vmatprep.subr.mxu0 %v2469
        %7515 = vmatpush1.msra.mxu0 %v2468
        %7516 = vmatprep.subr.mxu0 %v2467
        %7517 = vmatpush1.msra.mxu0 %v2466
        %7518 = vmatprep.subr.mxu0 %v2465
        %7519 = vmatpush1.msra.mxu0 %v2464
        %7520 = vmatprep.subr.mxu0 %v2527
        %7521 = vmatpush2.msra.mxu0 %v2526
        %7522 = vmatprep.subr.mxu0 %v2525
        %7523 = vmatpush2.msra.mxu0 %v2524
        %7524 = vmatprep.subr.mxu0 %v2523
        %7525 = vmatpush2.msra.mxu0 %v2522
        %7526 = vmatprep.subr.mxu0 %v2521
        %7527 = vmatpush2.msra.mxu0 %v2520
        %7528 = vmatprep.subr.mxu0 %v2519
        %7529 = vmatpush2.msra.mxu0 %v2518
        %7530 = vmatprep.subr.mxu0 %v2517
        %7531 = vmatpush2.msra.mxu0 %v2516
        %7532 = vmatprep.subr.mxu0 %v2515
        %7533 = vmatpush2.msra.mxu0 %v2514
        %7534 = vmatprep.subr.mxu0 %v2513
        %7535 = vmatpush2.msra.mxu0 %v2512
        %7536 = vmatprep.subr.mxu0 %v2511
        %7537 = vmatpush2.msra.mxu0 %v2510
        %7538 = vmatprep.subr.mxu0 %v2509
        %7539 = vmatpush2.msra.mxu0 %v2508
        %7540 = vmatprep.subr.mxu0 %v2507
        %7541 = vmatpush2.msra.mxu0 %v2506
        %7542 = vmatprep.subr.mxu0 %v2505
        %7543 = vmatpush2.msra.mxu0 %v2504
        %7544 = vmatprep.subr.mxu0 %v2503
        %7545 = vmatpush2.msra.mxu0 %v2502
        %7546 = vmatprep.subr.mxu0 %v2501
        %7547 = vmatpush2.msra.mxu0 %v2500
        %7548 = vmatprep.subr.mxu0 %v2499
        %7549 = vmatpush2.msra.mxu0 %v2498
        %7550 = vmatprep.subr.mxu0 %v2497
        %7551 = vmatpush2.msra.mxu0 %v2496
        %7552 = vmatprep.mubr.f32.mxu0 %v4831
        %7553 = vmatmul.mubr.f32.gmra.mxu0 %v4823
        %v7554 = vpop.f32.mrf.mxu0
        %v7555 = vadd.f32 %v7484, %v7554
        %v7556 = vpop.f32.mrf.mxu0
        %v7557 = vadd.f32 %v7486, %v7556
        %7558 = vdwg.mxu0
        %7559 = vmatprep.subr.mxu0 %v2559
        %7560 = vmatpush1.msra.mxu0 %v2558
        %7561 = vmatprep.subr.mxu0 %v2557
        %7562 = vmatpush1.msra.mxu0 %v2556
        %7563 = vmatprep.subr.mxu0 %v2555
        %7564 = vmatpush1.msra.mxu0 %v2554
        %7565 = vmatprep.subr.mxu0 %v2553
        %7566 = vmatpush1.msra.mxu0 %v2552
        %7567 = vmatprep.subr.mxu0 %v2551
        %7568 = vmatpush1.msra.mxu0 %v2550
        %7569 = vmatprep.subr.mxu0 %v2549
        %7570 = vmatpush1.msra.mxu0 %v2548
        %7571 = vmatprep.subr.mxu0 %v2547
        %7572 = vmatpush1.msra.mxu0 %v2546
        %7573 = vmatprep.subr.mxu0 %v2545
        %7574 = vmatpush1.msra.mxu0 %v2544
        %7575 = vmatprep.subr.mxu0 %v2543
        %7576 = vmatpush1.msra.mxu0 %v2542
        %7577 = vmatprep.subr.mxu0 %v2541
        %7578 = vmatpush1.msra.mxu0 %v2540
        %7579 = vmatprep.subr.mxu0 %v2539
        %7580 = vmatpush1.msra.mxu0 %v2538
        %7581 = vmatprep.subr.mxu0 %v2537
        %7582 = vmatpush1.msra.mxu0 %v2536
        %7583 = vmatprep.subr.mxu0 %v2535
        %7584 = vmatpush1.msra.mxu0 %v2534
        %7585 = vmatprep.subr.mxu0 %v2533
        %7586 = vmatpush1.msra.mxu0 %v2532
        %7587 = vmatprep.subr.mxu0 %v2531
        %7588 = vmatpush1.msra.mxu0 %v2530
        %7589 = vmatprep.subr.mxu0 %v2529
        %7590 = vmatpush1.msra.mxu0 %v2528
        %7591 = vmatprep.subr.mxu0 %v2591
        %7592 = vmatpush2.msra.mxu0 %v2590
        %7593 = vmatprep.subr.mxu0 %v2589
        %7594 = vmatpush2.msra.mxu0 %v2588
        %7595 = vmatprep.subr.mxu0 %v2587
        %7596 = vmatpush2.msra.mxu0 %v2586
        %7597 = vmatprep.subr.mxu0 %v2585
        %7598 = vmatpush2.msra.mxu0 %v2584
        %7599 = vmatprep.subr.mxu0 %v2583
        %7600 = vmatpush2.msra.mxu0 %v2582
        %7601 = vmatprep.subr.mxu0 %v2581
        %7602 = vmatpush2.msra.mxu0 %v2580
        %7603 = vmatprep.subr.mxu0 %v2579
        %7604 = vmatpush2.msra.mxu0 %v2578
        %7605 = vmatprep.subr.mxu0 %v2577
        %7606 = vmatpush2.msra.mxu0 %v2576
        %7607 = vmatprep.subr.mxu0 %v2575
        %7608 = vmatpush2.msra.mxu0 %v2574
        %7609 = vmatprep.subr.mxu0 %v2573
        %7610 = vmatpush2.msra.mxu0 %v2572
        %7611 = vmatprep.subr.mxu0 %v2571
        %7612 = vmatpush2.msra.mxu0 %v2570
        %7613 = vmatprep.subr.mxu0 %v2569
        %7614 = vmatpush2.msra.mxu0 %v2568
        %7615 = vmatprep.subr.mxu0 %v2567
        %7616 = vmatpush2.msra.mxu0 %v2566
        %7617 = vmatprep.subr.mxu0 %v2565
        %7618 = vmatpush2.msra.mxu0 %v2564
        %7619 = vmatprep.subr.mxu0 %v2563
        %7620 = vmatpush2.msra.mxu0 %v2562
        %7621 = vmatprep.subr.mxu0 %v2561
        %7622 = vmatpush2.msra.mxu0 %v2560
        %7623 = vmatprep.mubr.f32.mxu0 %v4832
        %7624 = vmatmul.mubr.f32.gmra.mxu0 %v4830
        %v7625 = vpop.f32.mrf.mxu0
        %v7626 = vadd.f32 %v7555, %v7625
        %v7627 = vpop.f32.mrf.mxu0
        %v7628 = vadd.f32 %v7557, %v7627
        %7629 = vdwg.mxu0
        %7630 = vmatprep.subr.mxu0 %v2623
        %7631 = vmatpush1.msra.mxu0 %v2622
        %7632 = vmatprep.subr.mxu0 %v2621
        %7633 = vmatpush1.msra.mxu0 %v2620
        %7634 = vmatprep.subr.mxu0 %v2619
        %7635 = vmatpush1.msra.mxu0 %v2618
        %7636 = vmatprep.subr.mxu0 %v2617
        %7637 = vmatpush1.msra.mxu0 %v2616
        %7638 = vmatprep.subr.mxu0 %v2615
        %7639 = vmatpush1.msra.mxu0 %v2614
        %7640 = vmatprep.subr.mxu0 %v2613
        %7641 = vmatpush1.msra.mxu0 %v2612
        %7642 = vmatprep.subr.mxu0 %v2611
        %7643 = vmatpush1.msra.mxu0 %v2610
        %7644 = vmatprep.subr.mxu0 %v2609
        %7645 = vmatpush1.msra.mxu0 %v2608
        %7646 = vmatprep.subr.mxu0 %v2607
        %7647 = vmatpush1.msra.mxu0 %v2606
        %7648 = vmatprep.subr.mxu0 %v2605
        %7649 = vmatpush1.msra.mxu0 %v2604
        %7650 = vmatprep.subr.mxu0 %v2603
        %7651 = vmatpush1.msra.mxu0 %v2602
        %7652 = vmatprep.subr.mxu0 %v2601
        %7653 = vmatpush1.msra.mxu0 %v2600
        %7654 = vmatprep.subr.mxu0 %v2599
        %7655 = vmatpush1.msra.mxu0 %v2598
        %7656 = vmatprep.subr.mxu0 %v2597
        %7657 = vmatpush1.msra.mxu0 %v2596
        %7658 = vmatprep.subr.mxu0 %v2595
        %7659 = vmatpush1.msra.mxu0 %v2594
        %7660 = vmatprep.subr.mxu0 %v2593
        %7661 = vmatpush1.msra.mxu0 %v2592
        %7662 = vmatprep.subr.mxu0 %v2655
        %7663 = vmatpush2.msra.mxu0 %v2654
        %7664 = vmatprep.subr.mxu0 %v2653
        %7665 = vmatpush2.msra.mxu0 %v2652
        %7666 = vmatprep.subr.mxu0 %v2651
        %7667 = vmatpush2.msra.mxu0 %v2650
        %7668 = vmatprep.subr.mxu0 %v2649
        %7669 = vmatpush2.msra.mxu0 %v2648
        %7670 = vmatprep.subr.mxu0 %v2647
        %7671 = vmatpush2.msra.mxu0 %v2646
        %7672 = vmatprep.subr.mxu0 %v2645
        %7673 = vmatpush2.msra.mxu0 %v2644
        %7674 = vmatprep.subr.mxu0 %v2643
        %7675 = vmatpush2.msra.mxu0 %v2642
        %7676 = vmatprep.subr.mxu0 %v2641
        %7677 = vmatpush2.msra.mxu0 %v2640
        %7678 = vmatprep.subr.mxu0 %v2639
        %7679 = vmatpush2.msra.mxu0 %v2638
        %7680 = vmatprep.subr.mxu0 %v2637
        %7681 = vmatpush2.msra.mxu0 %v2636
        %7682 = vmatprep.subr.mxu0 %v2635
        %7683 = vmatpush2.msra.mxu0 %v2634
        %7684 = vmatprep.subr.mxu0 %v2633
        %7685 = vmatpush2.msra.mxu0 %v2632
        %7686 = vmatprep.subr.mxu0 %v2631
        %7687 = vmatpush2.msra.mxu0 %v2630
        %7688 = vmatprep.subr.mxu0 %v2629
        %7689 = vmatpush2.msra.mxu0 %v2628
        %7690 = vmatprep.subr.mxu0 %v2627
        %7691 = vmatpush2.msra.mxu0 %v2626
        %7692 = vmatprep.subr.mxu0 %v2625
        %7693 = vmatpush2.msra.mxu0 %v2624
        %7694 = vmatprep.mubr.f32.mxu0 %v4848
        %7695 = vmatmul.mubr.f32.gmra.mxu0 %v4840
        %v7696 = vpop.f32.mrf.mxu0
        %v7697 = vadd.f32 %v7626, %v7696
        %v7698 = vpop.f32.mrf.mxu0
        %v7699 = vadd.f32 %v7628, %v7698
        %7700 = vdwg.mxu0
        %7701 = vmatprep.subr.mxu0 %v2687
        %7702 = vmatpush1.msra.mxu0 %v2686
        %7703 = vmatprep.subr.mxu0 %v2685
        %7704 = vmatpush1.msra.mxu0 %v2684
        %7705 = vmatprep.subr.mxu0 %v2683
        %7706 = vmatpush1.msra.mxu0 %v2682
        %7707 = vmatprep.subr.mxu0 %v2681
        %7708 = vmatpush1.msra.mxu0 %v2680
        %7709 = vmatprep.subr.mxu0 %v2679
        %7710 = vmatpush1.msra.mxu0 %v2678
        %7711 = vmatprep.subr.mxu0 %v2677
        %7712 = vmatpush1.msra.mxu0 %v2676
        %7713 = vmatprep.subr.mxu0 %v2675
        %7714 = vmatpush1.msra.mxu0 %v2674
        %7715 = vmatprep.subr.mxu0 %v2673
        %7716 = vmatpush1.msra.mxu0 %v2672
        %7717 = vmatprep.subr.mxu0 %v2671
        %7718 = vmatpush1.msra.mxu0 %v2670
        %7719 = vmatprep.subr.mxu0 %v2669
        %7720 = vmatpush1.msra.mxu0 %v2668
        %7721 = vmatprep.subr.mxu0 %v2667
        %7722 = vmatpush1.msra.mxu0 %v2666
        %7723 = vmatprep.subr.mxu0 %v2665
        %7724 = vmatpush1.msra.mxu0 %v2664
        %7725 = vmatprep.subr.mxu0 %v2663
        %7726 = vmatpush1.msra.mxu0 %v2662
        %7727 = vmatprep.subr.mxu0 %v2661
        %7728 = vmatpush1.msra.mxu0 %v2660
        %7729 = vmatprep.subr.mxu0 %v2659
        %7730 = vmatpush1.msra.mxu0 %v2658
        %7731 = vmatprep.subr.mxu0 %v2657
        %7732 = vmatpush1.msra.mxu0 %v2656
        %7733 = vmatprep.subr.mxu0 %v2719
        %7734 = vmatpush2.msra.mxu0 %v2718
        %7735 = vmatprep.subr.mxu0 %v2717
        %7736 = vmatpush2.msra.mxu0 %v2716
        %7737 = vmatprep.subr.mxu0 %v2715
        %7738 = vmatpush2.msra.mxu0 %v2714
        %7739 = vmatprep.subr.mxu0 %v2713
        %7740 = vmatpush2.msra.mxu0 %v2712
        %7741 = vmatprep.subr.mxu0 %v2711
        %7742 = vmatpush2.msra.mxu0 %v2710
        %7743 = vmatprep.subr.mxu0 %v2709
        %7744 = vmatpush2.msra.mxu0 %v2708
        %7745 = vmatprep.subr.mxu0 %v2707
        %7746 = vmatpush2.msra.mxu0 %v2706
        %7747 = vmatprep.subr.mxu0 %v2705
        %7748 = vmatpush2.msra.mxu0 %v2704
        %7749 = vmatprep.subr.mxu0 %v2703
        %7750 = vmatpush2.msra.mxu0 %v2702
        %7751 = vmatprep.subr.mxu0 %v2701
        %7752 = vmatpush2.msra.mxu0 %v2700
        %7753 = vmatprep.subr.mxu0 %v2699
        %7754 = vmatpush2.msra.mxu0 %v2698
        %7755 = vmatprep.subr.mxu0 %v2697
        %7756 = vmatpush2.msra.mxu0 %v2696
        %7757 = vmatprep.subr.mxu0 %v2695
        %7758 = vmatpush2.msra.mxu0 %v2694
        %7759 = vmatprep.subr.mxu0 %v2693
        %7760 = vmatpush2.msra.mxu0 %v2692
        %7761 = vmatprep.subr.mxu0 %v2691
        %7762 = vmatpush2.msra.mxu0 %v2690
        %7763 = vmatprep.subr.mxu0 %v2689
        %7764 = vmatpush2.msra.mxu0 %v2688
        %7765 = vmatprep.mubr.f32.mxu0 %v4849
        %7766 = vmatmul.mubr.f32.gmra.mxu0 %v4847
        %v7767 = vpop.f32.mrf.mxu0
        %v7768 = vadd.f32 %v7697, %v7767
        %v7769 = vpop.f32.mrf.mxu0
        %v7770 = vadd.f32 %v7699, %v7769
        %7771 = vdwg.mxu0
        %7772 = vmatprep.subr.mxu0 %v2751
        %7773 = vmatpush1.msra.mxu0 %v2750
        %7774 = vmatprep.subr.mxu0 %v2749
        %7775 = vmatpush1.msra.mxu0 %v2748
        %7776 = vmatprep.subr.mxu0 %v2747
        %7777 = vmatpush1.msra.mxu0 %v2746
        %7778 = vmatprep.subr.mxu0 %v2745
        %7779 = vmatpush1.msra.mxu0 %v2744
        %7780 = vmatprep.subr.mxu0 %v2743
        %7781 = vmatpush1.msra.mxu0 %v2742
        %7782 = vmatprep.subr.mxu0 %v2741
        %7783 = vmatpush1.msra.mxu0 %v2740
        %7784 = vmatprep.subr.mxu0 %v2739
        %7785 = vmatpush1.msra.mxu0 %v2738
        %7786 = vmatprep.subr.mxu0 %v2737
        %7787 = vmatpush1.msra.mxu0 %v2736
        %7788 = vmatprep.subr.mxu0 %v2735
        %7789 = vmatpush1.msra.mxu0 %v2734
        %7790 = vmatprep.subr.mxu0 %v2733
        %7791 = vmatpush1.msra.mxu0 %v2732
        %7792 = vmatprep.subr.mxu0 %v2731
        %7793 = vmatpush1.msra.mxu0 %v2730
        %7794 = vmatprep.subr.mxu0 %v2729
        %7795 = vmatpush1.msra.mxu0 %v2728
        %7796 = vmatprep.subr.mxu0 %v2727
        %7797 = vmatpush1.msra.mxu0 %v2726
        %7798 = vmatprep.subr.mxu0 %v2725
        %7799 = vmatpush1.msra.mxu0 %v2724
        %7800 = vmatprep.subr.mxu0 %v2723
        %7801 = vmatpush1.msra.mxu0 %v2722
        %7802 = vmatprep.subr.mxu0 %v2721
        %7803 = vmatpush1.msra.mxu0 %v2720
        %7804 = vmatprep.subr.mxu0 %v2783
        %7805 = vmatpush2.msra.mxu0 %v2782
        %7806 = vmatprep.subr.mxu0 %v2781
        %7807 = vmatpush2.msra.mxu0 %v2780
        %7808 = vmatprep.subr.mxu0 %v2779
        %7809 = vmatpush2.msra.mxu0 %v2778
        %7810 = vmatprep.subr.mxu0 %v2777
        %7811 = vmatpush2.msra.mxu0 %v2776
        %7812 = vmatprep.subr.mxu0 %v2775
        %7813 = vmatpush2.msra.mxu0 %v2774
        %7814 = vmatprep.subr.mxu0 %v2773
        %7815 = vmatpush2.msra.mxu0 %v2772
        %7816 = vmatprep.subr.mxu0 %v2771
        %7817 = vmatpush2.msra.mxu0 %v2770
        %7818 = vmatprep.subr.mxu0 %v2769
        %7819 = vmatpush2.msra.mxu0 %v2768
        %7820 = vmatprep.subr.mxu0 %v2767
        %7821 = vmatpush2.msra.mxu0 %v2766
        %7822 = vmatprep.subr.mxu0 %v2765
        %7823 = vmatpush2.msra.mxu0 %v2764
        %7824 = vmatprep.subr.mxu0 %v2763
        %7825 = vmatpush2.msra.mxu0 %v2762
        %7826 = vmatprep.subr.mxu0 %v2761
        %7827 = vmatpush2.msra.mxu0 %v2760
        %7828 = vmatprep.subr.mxu0 %v2759
        %7829 = vmatpush2.msra.mxu0 %v2758
        %7830 = vmatprep.subr.mxu0 %v2757
        %7831 = vmatpush2.msra.mxu0 %v2756
        %7832 = vmatprep.subr.mxu0 %v2755
        %7833 = vmatpush2.msra.mxu0 %v2754
        %7834 = vmatprep.subr.mxu0 %v2753
        %7835 = vmatpush2.msra.mxu0 %v2752
        %7836 = vmatprep.mubr.f32.mxu0 %v4865
        %7837 = vmatmul.mubr.f32.gmra.mxu0 %v4857
        %v7838 = vpop.f32.mrf.mxu0
        %v7839 = vadd.f32 %v7768, %v7838
        %v7840 = vpop.f32.mrf.mxu0
        %v7841 = vadd.f32 %v7770, %v7840
        %7842 = vdwg.mxu0
        %7843 = vmatprep.subr.mxu0 %v2815
        %7844 = vmatpush1.msra.mxu0 %v2814
        %7845 = vmatprep.subr.mxu0 %v2813
        %7846 = vmatpush1.msra.mxu0 %v2812
        %7847 = vmatprep.subr.mxu0 %v2811
        %7848 = vmatpush1.msra.mxu0 %v2810
        %7849 = vmatprep.subr.mxu0 %v2809
        %7850 = vmatpush1.msra.mxu0 %v2808
        %7851 = vmatprep.subr.mxu0 %v2807
        %7852 = vmatpush1.msra.mxu0 %v2806
        %7853 = vmatprep.subr.mxu0 %v2805
        %7854 = vmatpush1.msra.mxu0 %v2804
        %7855 = vmatprep.subr.mxu0 %v2803
        %7856 = vmatpush1.msra.mxu0 %v2802
        %7857 = vmatprep.subr.mxu0 %v2801
        %7858 = vmatpush1.msra.mxu0 %v2800
        %7859 = vmatprep.subr.mxu0 %v2799
        %7860 = vmatpush1.msra.mxu0 %v2798
        %7861 = vmatprep.subr.mxu0 %v2797
        %7862 = vmatpush1.msra.mxu0 %v2796
        %7863 = vmatprep.subr.mxu0 %v2795
        %7864 = vmatpush1.msra.mxu0 %v2794
        %7865 = vmatprep.subr.mxu0 %v2793
        %7866 = vmatpush1.msra.mxu0 %v2792
        %7867 = vmatprep.subr.mxu0 %v2791
        %7868 = vmatpush1.msra.mxu0 %v2790
        %7869 = vmatprep.subr.mxu0 %v2789
        %7870 = vmatpush1.msra.mxu0 %v2788
        %7871 = vmatprep.subr.mxu0 %v2787
        %7872 = vmatpush1.msra.mxu0 %v2786
        %7873 = vmatprep.subr.mxu0 %v2785
        %7874 = vmatpush1.msra.mxu0 %v2784
        %7875 = vmatprep.subr.mxu0 %v2847
        %7876 = vmatpush2.msra.mxu0 %v2846
        %7877 = vmatprep.subr.mxu0 %v2845
        %7878 = vmatpush2.msra.mxu0 %v2844
        %7879 = vmatprep.subr.mxu0 %v2843
        %7880 = vmatpush2.msra.mxu0 %v2842
        %7881 = vmatprep.subr.mxu0 %v2841
        %7882 = vmatpush2.msra.mxu0 %v2840
        %7883 = vmatprep.subr.mxu0 %v2839
        %7884 = vmatpush2.msra.mxu0 %v2838
        %7885 = vmatprep.subr.mxu0 %v2837
        %7886 = vmatpush2.msra.mxu0 %v2836
        %7887 = vmatprep.subr.mxu0 %v2835
        %7888 = vmatpush2.msra.mxu0 %v2834
        %7889 = vmatprep.subr.mxu0 %v2833
        %7890 = vmatpush2.msra.mxu0 %v2832
        %7891 = vmatprep.subr.mxu0 %v2831
        %7892 = vmatpush2.msra.mxu0 %v2830
        %7893 = vmatprep.subr.mxu0 %v2829
        %7894 = vmatpush2.msra.mxu0 %v2828
        %7895 = vmatprep.subr.mxu0 %v2827
        %7896 = vmatpush2.msra.mxu0 %v2826
        %7897 = vmatprep.subr.mxu0 %v2825
        %7898 = vmatpush2.msra.mxu0 %v2824
        %7899 = vmatprep.subr.mxu0 %v2823
        %7900 = vmatpush2.msra.mxu0 %v2822
        %7901 = vmatprep.subr.mxu0 %v2821
        %7902 = vmatpush2.msra.mxu0 %v2820
        %7903 = vmatprep.subr.mxu0 %v2819
        %7904 = vmatpush2.msra.mxu0 %v2818
        %7905 = vmatprep.subr.mxu0 %v2817
        %7906 = vmatpush2.msra.mxu0 %v2816
        %7907 = vmatprep.mubr.f32.mxu0 %v4866
        %7908 = vmatmul.mubr.f32.gmra.mxu0 %v4864
        %v7909 = vpop.f32.mrf.mxu0
        %v7910 = vadd.f32 %v7839, %v7909
        %v7911 = vpop.f32.mrf.mxu0
        %v7912 = vadd.f32 %v7841, %v7911
        %7913 = vdwg.mxu0
        %7914 = vmatprep.subr.mxu0 %v2879
        %7915 = vmatpush1.msra.mxu0 %v2878
        %7916 = vmatprep.subr.mxu0 %v2877
        %7917 = vmatpush1.msra.mxu0 %v2876
        %7918 = vmatprep.subr.mxu0 %v2875
        %7919 = vmatpush1.msra.mxu0 %v2874
        %7920 = vmatprep.subr.mxu0 %v2873
        %7921 = vmatpush1.msra.mxu0 %v2872
        %7922 = vmatprep.subr.mxu0 %v2871
        %7923 = vmatpush1.msra.mxu0 %v2870
        %7924 = vmatprep.subr.mxu0 %v2869
        %7925 = vmatpush1.msra.mxu0 %v2868
        %7926 = vmatprep.subr.mxu0 %v2867
        %7927 = vmatpush1.msra.mxu0 %v2866
        %7928 = vmatprep.subr.mxu0 %v2865
        %7929 = vmatpush1.msra.mxu0 %v2864
        %7930 = vmatprep.subr.mxu0 %v2863
        %7931 = vmatpush1.msra.mxu0 %v2862
        %7932 = vmatprep.subr.mxu0 %v2861
        %7933 = vmatpush1.msra.mxu0 %v2860
        %7934 = vmatprep.subr.mxu0 %v2859
        %7935 = vmatpush1.msra.mxu0 %v2858
        %7936 = vmatprep.subr.mxu0 %v2857
        %7937 = vmatpush1.msra.mxu0 %v2856
        %7938 = vmatprep.subr.mxu0 %v2855
        %7939 = vmatpush1.msra.mxu0 %v2854
        %7940 = vmatprep.subr.mxu0 %v2853
        %7941 = vmatpush1.msra.mxu0 %v2852
        %7942 = vmatprep.subr.mxu0 %v2851
        %7943 = vmatpush1.msra.mxu0 %v2850
        %7944 = vmatprep.subr.mxu0 %v2849
        %7945 = vmatpush1.msra.mxu0 %v2848
        %7946 = vmatprep.subr.mxu0 %v2911
        %7947 = vmatpush2.msra.mxu0 %v2910
        %7948 = vmatprep.subr.mxu0 %v2909
        %7949 = vmatpush2.msra.mxu0 %v2908
        %7950 = vmatprep.subr.mxu0 %v2907
        %7951 = vmatpush2.msra.mxu0 %v2906
        %7952 = vmatprep.subr.mxu0 %v2905
        %7953 = vmatpush2.msra.mxu0 %v2904
        %7954 = vmatprep.subr.mxu0 %v2903
        %7955 = vmatpush2.msra.mxu0 %v2902
        %7956 = vmatprep.subr.mxu0 %v2901
        %7957 = vmatpush2.msra.mxu0 %v2900
        %7958 = vmatprep.subr.mxu0 %v2899
        %7959 = vmatpush2.msra.mxu0 %v2898
        %7960 = vmatprep.subr.mxu0 %v2897
        %7961 = vmatpush2.msra.mxu0 %v2896
        %7962 = vmatprep.subr.mxu0 %v2895
        %7963 = vmatpush2.msra.mxu0 %v2894
        %7964 = vmatprep.subr.mxu0 %v2893
        %7965 = vmatpush2.msra.mxu0 %v2892
        %7966 = vmatprep.subr.mxu0 %v2891
        %7967 = vmatpush2.msra.mxu0 %v2890
        %7968 = vmatprep.subr.mxu0 %v2889
        %7969 = vmatpush2.msra.mxu0 %v2888
        %7970 = vmatprep.subr.mxu0 %v2887
        %7971 = vmatpush2.msra.mxu0 %v2886
        %7972 = vmatprep.subr.mxu0 %v2885
        %7973 = vmatpush2.msra.mxu0 %v2884
        %7974 = vmatprep.subr.mxu0 %v2883
        %7975 = vmatpush2.msra.mxu0 %v2882
        %7976 = vmatprep.subr.mxu0 %v2881
        %7977 = vmatpush2.msra.mxu0 %v2880
        %7978 = vmatprep.mubr.f32.mxu0 %v4882
        %7979 = vmatmul.mubr.f32.gmra.mxu0 %v4874
        %v7980 = vpop.f32.mrf.mxu0
        %v7981 = vadd.f32 %v7910, %v7980
        %v7982 = vpop.f32.mrf.mxu0
        %v7983 = vadd.f32 %v7912, %v7982
        %7984 = vdwg.mxu0
        %7985 = vmatprep.subr.mxu0 %v2943
        %7986 = vmatpush1.msra.mxu0 %v2942
        %7987 = vmatprep.subr.mxu0 %v2941
        %7988 = vmatpush1.msra.mxu0 %v2940
        %7989 = vmatprep.subr.mxu0 %v2939
        %7990 = vmatpush1.msra.mxu0 %v2938
        %7991 = vmatprep.subr.mxu0 %v2937
        %7992 = vmatpush1.msra.mxu0 %v2936
        %7993 = vmatprep.subr.mxu0 %v2935
        %7994 = vmatpush1.msra.mxu0 %v2934
        %7995 = vmatprep.subr.mxu0 %v2933
        %7996 = vmatpush1.msra.mxu0 %v2932
        %7997 = vmatprep.subr.mxu0 %v2931
        %7998 = vmatpush1.msra.mxu0 %v2930
        %7999 = vmatprep.subr.mxu0 %v2929
        %8000 = vmatpush1.msra.mxu0 %v2928
        %8001 = vmatprep.subr.mxu0 %v2927
        %8002 = vmatpush1.msra.mxu0 %v2926
        %8003 = vmatprep.subr.mxu0 %v2925
        %8004 = vmatpush1.msra.mxu0 %v2924
        %8005 = vmatprep.subr.mxu0 %v2923
        %8006 = vmatpush1.msra.mxu0 %v2922
        %8007 = vmatprep.subr.mxu0 %v2921
        %8008 = vmatpush1.msra.mxu0 %v2920
        %8009 = vmatprep.subr.mxu0 %v2919
        %8010 = vmatpush1.msra.mxu0 %v2918
        %8011 = vmatprep.subr.mxu0 %v2917
        %8012 = vmatpush1.msra.mxu0 %v2916
        %8013 = vmatprep.subr.mxu0 %v2915
        %8014 = vmatpush1.msra.mxu0 %v2914
        %8015 = vmatprep.subr.mxu0 %v2913
        %8016 = vmatpush1.msra.mxu0 %v2912
        %8017 = vmatprep.subr.mxu0 %v2975
        %8018 = vmatpush2.msra.mxu0 %v2974
        %8019 = vmatprep.subr.mxu0 %v2973
        %8020 = vmatpush2.msra.mxu0 %v2972
        %8021 = vmatprep.subr.mxu0 %v2971
        %8022 = vmatpush2.msra.mxu0 %v2970
        %8023 = vmatprep.subr.mxu0 %v2969
        %8024 = vmatpush2.msra.mxu0 %v2968
        %8025 = vmatprep.subr.mxu0 %v2967
        %8026 = vmatpush2.msra.mxu0 %v2966
        %8027 = vmatprep.subr.mxu0 %v2965
        %8028 = vmatpush2.msra.mxu0 %v2964
        %8029 = vmatprep.subr.mxu0 %v2963
        %8030 = vmatpush2.msra.mxu0 %v2962
        %8031 = vmatprep.subr.mxu0 %v2961
        %8032 = vmatpush2.msra.mxu0 %v2960
        %8033 = vmatprep.subr.mxu0 %v2959
        %8034 = vmatpush2.msra.mxu0 %v2958
        %8035 = vmatprep.subr.mxu0 %v2957
        %8036 = vmatpush2.msra.mxu0 %v2956
        %8037 = vmatprep.subr.mxu0 %v2955
        %8038 = vmatpush2.msra.mxu0 %v2954
        %8039 = vmatprep.subr.mxu0 %v2953
        %8040 = vmatpush2.msra.mxu0 %v2952
        %8041 = vmatprep.subr.mxu0 %v2951
        %8042 = vmatpush2.msra.mxu0 %v2950
        %8043 = vmatprep.subr.mxu0 %v2949
        %8044 = vmatpush2.msra.mxu0 %v2948
        %8045 = vmatprep.subr.mxu0 %v2947
        %8046 = vmatpush2.msra.mxu0 %v2946
        %8047 = vmatprep.subr.mxu0 %v2945
        %8048 = vmatpush2.msra.mxu0 %v2944
        %8049 = vmatprep.mubr.f32.mxu0 %v4883
        %8050 = vmatmul.mubr.f32.gmra.mxu0 %v4881
        %v8051 = vpop.f32.mrf.mxu0
        %v8052 = vadd.f32 %v7981, %v8051
        %v8053 = vpop.f32.mrf.mxu0
        %v8054 = vadd.f32 %v7983, %v8053
        %8055 = vdwg.mxu0
        %8056 = vmatprep.subr.mxu0 %v3007
        %8057 = vmatpush1.msra.mxu0 %v3006
        %8058 = vmatprep.subr.mxu0 %v3005
        %8059 = vmatpush1.msra.mxu0 %v3004
        %8060 = vmatprep.subr.mxu0 %v3003
        %8061 = vmatpush1.msra.mxu0 %v3002
        %8062 = vmatprep.subr.mxu0 %v3001
        %8063 = vmatpush1.msra.mxu0 %v3000
        %8064 = vmatprep.subr.mxu0 %v2999
        %8065 = vmatpush1.msra.mxu0 %v2998
        %8066 = vmatprep.subr.mxu0 %v2997
        %8067 = vmatpush1.msra.mxu0 %v2996
        %8068 = vmatprep.subr.mxu0 %v2995
        %8069 = vmatpush1.msra.mxu0 %v2994
        %8070 = vmatprep.subr.mxu0 %v2993
        %8071 = vmatpush1.msra.mxu0 %v2992
        %8072 = vmatprep.subr.mxu0 %v2991
        %8073 = vmatpush1.msra.mxu0 %v2990
        %8074 = vmatprep.subr.mxu0 %v2989
        %8075 = vmatpush1.msra.mxu0 %v2988
        %8076 = vmatprep.subr.mxu0 %v2987
        %8077 = vmatpush1.msra.mxu0 %v2986
        %8078 = vmatprep.subr.mxu0 %v2985
        %8079 = vmatpush1.msra.mxu0 %v2984
        %8080 = vmatprep.subr.mxu0 %v2983
        %8081 = vmatpush1.msra.mxu0 %v2982
        %8082 = vmatprep.subr.mxu0 %v2981
        %8083 = vmatpush1.msra.mxu0 %v2980
        %8084 = vmatprep.subr.mxu0 %v2979
        %8085 = vmatpush1.msra.mxu0 %v2978
        %8086 = vmatprep.subr.mxu0 %v2977
        %8087 = vmatpush1.msra.mxu0 %v2976
        %8088 = vmatprep.subr.mxu0 %v3039
        %8089 = vmatpush2.msra.mxu0 %v3038
        %8090 = vmatprep.subr.mxu0 %v3037
        %8091 = vmatpush2.msra.mxu0 %v3036
        %8092 = vmatprep.subr.mxu0 %v3035
        %8093 = vmatpush2.msra.mxu0 %v3034
        %8094 = vmatprep.subr.mxu0 %v3033
        %8095 = vmatpush2.msra.mxu0 %v3032
        %8096 = vmatprep.subr.mxu0 %v3031
        %8097 = vmatpush2.msra.mxu0 %v3030
        %8098 = vmatprep.subr.mxu0 %v3029
        %8099 = vmatpush2.msra.mxu0 %v3028
        %8100 = vmatprep.subr.mxu0 %v3027
        %8101 = vmatpush2.msra.mxu0 %v3026
        %8102 = vmatprep.subr.mxu0 %v3025
        %8103 = vmatpush2.msra.mxu0 %v3024
        %8104 = vmatprep.subr.mxu0 %v3023
        %8105 = vmatpush2.msra.mxu0 %v3022
        %8106 = vmatprep.subr.mxu0 %v3021
        %8107 = vmatpush2.msra.mxu0 %v3020
        %8108 = vmatprep.subr.mxu0 %v3019
        %8109 = vmatpush2.msra.mxu0 %v3018
        %8110 = vmatprep.subr.mxu0 %v3017
        %8111 = vmatpush2.msra.mxu0 %v3016
        %8112 = vmatprep.subr.mxu0 %v3015
        %8113 = vmatpush2.msra.mxu0 %v3014
        %8114 = vmatprep.subr.mxu0 %v3013
        %8115 = vmatpush2.msra.mxu0 %v3012
        %8116 = vmatprep.subr.mxu0 %v3011
        %8117 = vmatpush2.msra.mxu0 %v3010
        %8118 = vmatprep.subr.mxu0 %v3009
        %8119 = vmatpush2.msra.mxu0 %v3008
        %8120 = vmatprep.mubr.f32.mxu0 %v4899
        %8121 = vmatmul.mubr.f32.gmra.mxu0 %v4891
        %v8122 = vpop.f32.mrf.mxu0
        %v8123 = vadd.f32 %v8052, %v8122
        %v8124 = vpop.f32.mrf.mxu0
        %v8125 = vadd.f32 %v8054, %v8124
        %8126 = vdwg.mxu0
        %8127 = vmatprep.subr.mxu0 %v3071
        %8128 = vmatpush1.msra.mxu0 %v3070
        %8129 = vmatprep.subr.mxu0 %v3069
        %8130 = vmatpush1.msra.mxu0 %v3068
        %8131 = vmatprep.subr.mxu0 %v3067
        %8132 = vmatpush1.msra.mxu0 %v3066
        %8133 = vmatprep.subr.mxu0 %v3065
        %8134 = vmatpush1.msra.mxu0 %v3064
        %8135 = vmatprep.subr.mxu0 %v3063
        %8136 = vmatpush1.msra.mxu0 %v3062
        %8137 = vmatprep.subr.mxu0 %v3061
        %8138 = vmatpush1.msra.mxu0 %v3060
        %8139 = vmatprep.subr.mxu0 %v3059
        %8140 = vmatpush1.msra.mxu0 %v3058
        %8141 = vmatprep.subr.mxu0 %v3057
        %8142 = vmatpush1.msra.mxu0 %v3056
        %8143 = vmatprep.subr.mxu0 %v3055
        %8144 = vmatpush1.msra.mxu0 %v3054
        %8145 = vmatprep.subr.mxu0 %v3053
        %8146 = vmatpush1.msra.mxu0 %v3052
        %8147 = vmatprep.subr.mxu0 %v3051
        %8148 = vmatpush1.msra.mxu0 %v3050
        %8149 = vmatprep.subr.mxu0 %v3049
        %8150 = vmatpush1.msra.mxu0 %v3048
        %8151 = vmatprep.subr.mxu0 %v3047
        %8152 = vmatpush1.msra.mxu0 %v3046
        %8153 = vmatprep.subr.mxu0 %v3045
        %8154 = vmatpush1.msra.mxu0 %v3044
        %8155 = vmatprep.subr.mxu0 %v3043
        %8156 = vmatpush1.msra.mxu0 %v3042
        %8157 = vmatprep.subr.mxu0 %v3041
        %8158 = vmatpush1.msra.mxu0 %v3040
        %8159 = vmatprep.subr.mxu0 %v3103
        %8160 = vmatpush2.msra.mxu0 %v3102
        %8161 = vmatprep.subr.mxu0 %v3101
        %8162 = vmatpush2.msra.mxu0 %v3100
        %8163 = vmatprep.subr.mxu0 %v3099
        %8164 = vmatpush2.msra.mxu0 %v3098
        %8165 = vmatprep.subr.mxu0 %v3097
        %8166 = vmatpush2.msra.mxu0 %v3096
        %8167 = vmatprep.subr.mxu0 %v3095
        %8168 = vmatpush2.msra.mxu0 %v3094
        %8169 = vmatprep.subr.mxu0 %v3093
        %8170 = vmatpush2.msra.mxu0 %v3092
        %8171 = vmatprep.subr.mxu0 %v3091
        %8172 = vmatpush2.msra.mxu0 %v3090
        %8173 = vmatprep.subr.mxu0 %v3089
        %8174 = vmatpush2.msra.mxu0 %v3088
        %8175 = vmatprep.subr.mxu0 %v3087
        %8176 = vmatpush2.msra.mxu0 %v3086
        %8177 = vmatprep.subr.mxu0 %v3085
        %8178 = vmatpush2.msra.mxu0 %v3084
        %8179 = vmatprep.subr.mxu0 %v3083
        %8180 = vmatpush2.msra.mxu0 %v3082
        %8181 = vmatprep.subr.mxu0 %v3081
        %8182 = vmatpush2.msra.mxu0 %v3080
        %8183 = vmatprep.subr.mxu0 %v3079
        %8184 = vmatpush2.msra.mxu0 %v3078
        %8185 = vmatprep.subr.mxu0 %v3077
        %8186 = vmatpush2.msra.mxu0 %v3076
        %8187 = vmatprep.subr.mxu0 %v3075
        %8188 = vmatpush2.msra.mxu0 %v3074
        %8189 = vmatprep.subr.mxu0 %v3073
        %8190 = vmatpush2.msra.mxu0 %v3072
        %8191 = vmatprep.mubr.f32.mxu0 %v4900
        %8192 = vmatmul.mubr.f32.gmra.mxu0 %v4898
        %v8193 = vpop.f32.mrf.mxu0
        %v8194 = vadd.f32 %v8123, %v8193
        %v8195 = vpop.f32.mrf.mxu0
        %v8196 = vadd.f32 %v8125, %v8195
        %8197 = vdwg.mxu0
        %8198 = vmatprep.subr.mxu0 %v3135
        %8199 = vmatpush1.msra.mxu0 %v3134
        %8200 = vmatprep.subr.mxu0 %v3133
        %8201 = vmatpush1.msra.mxu0 %v3132
        %8202 = vmatprep.subr.mxu0 %v3131
        %8203 = vmatpush1.msra.mxu0 %v3130
        %8204 = vmatprep.subr.mxu0 %v3129
        %8205 = vmatpush1.msra.mxu0 %v3128
        %8206 = vmatprep.subr.mxu0 %v3127
        %8207 = vmatpush1.msra.mxu0 %v3126
        %8208 = vmatprep.subr.mxu0 %v3125
        %8209 = vmatpush1.msra.mxu0 %v3124
        %8210 = vmatprep.subr.mxu0 %v3123
        %8211 = vmatpush1.msra.mxu0 %v3122
        %8212 = vmatprep.subr.mxu0 %v3121
        %8213 = vmatpush1.msra.mxu0 %v3120
        %8214 = vmatprep.subr.mxu0 %v3119
        %8215 = vmatpush1.msra.mxu0 %v3118
        %8216 = vmatprep.subr.mxu0 %v3117
        %8217 = vmatpush1.msra.mxu0 %v3116
        %8218 = vmatprep.subr.mxu0 %v3115
        %8219 = vmatpush1.msra.mxu0 %v3114
        %8220 = vmatprep.subr.mxu0 %v3113
        %8221 = vmatpush1.msra.mxu0 %v3112
        %8222 = vmatprep.subr.mxu0 %v3111
        %8223 = vmatpush1.msra.mxu0 %v3110
        %8224 = vmatprep.subr.mxu0 %v3109
        %8225 = vmatpush1.msra.mxu0 %v3108
        %8226 = vmatprep.subr.mxu0 %v3107
        %8227 = vmatpush1.msra.mxu0 %v3106
        %8228 = vmatprep.subr.mxu0 %v3105
        %8229 = vmatpush1.msra.mxu0 %v3104
        %8230 = vmatprep.subr.mxu0 %v3167
        %8231 = vmatpush2.msra.mxu0 %v3166
        %8232 = vmatprep.subr.mxu0 %v3165
        %8233 = vmatpush2.msra.mxu0 %v3164
        %8234 = vmatprep.subr.mxu0 %v3163
        %8235 = vmatpush2.msra.mxu0 %v3162
        %8236 = vmatprep.subr.mxu0 %v3161
        %8237 = vmatpush2.msra.mxu0 %v3160
        %8238 = vmatprep.subr.mxu0 %v3159
        %8239 = vmatpush2.msra.mxu0 %v3158
        %8240 = vmatprep.subr.mxu0 %v3157
        %8241 = vmatpush2.msra.mxu0 %v3156
        %8242 = vmatprep.subr.mxu0 %v3155
        %8243 = vmatpush2.msra.mxu0 %v3154
        %8244 = vmatprep.subr.mxu0 %v3153
        %8245 = vmatpush2.msra.mxu0 %v3152
        %8246 = vmatprep.subr.mxu0 %v3151
        %8247 = vmatpush2.msra.mxu0 %v3150
        %8248 = vmatprep.subr.mxu0 %v3149
        %8249 = vmatpush2.msra.mxu0 %v3148
        %8250 = vmatprep.subr.mxu0 %v3147
        %8251 = vmatpush2.msra.mxu0 %v3146
        %8252 = vmatprep.subr.mxu0 %v3145
        %8253 = vmatpush2.msra.mxu0 %v3144
        %8254 = vmatprep.subr.mxu0 %v3143
        %8255 = vmatpush2.msra.mxu0 %v3142
        %8256 = vmatprep.subr.mxu0 %v3141
        %8257 = vmatpush2.msra.mxu0 %v3140
        %8258 = vmatprep.subr.mxu0 %v3139
        %8259 = vmatpush2.msra.mxu0 %v3138
        %8260 = vmatprep.subr.mxu0 %v3137
        %8261 = vmatpush2.msra.mxu0 %v3136
        %8262 = vmatprep.mubr.f32.mxu0 %v4916
        %8263 = vmatmul.mubr.f32.gmra.mxu0 %v4908
        %v8264 = vpop.f32.mrf.mxu0
        %v8265 = vadd.f32 %v8194, %v8264
        %v8266 = vpop.f32.mrf.mxu0
        %v8267 = vadd.f32 %v8196, %v8266
        %8268 = vdwg.mxu0
        %8269 = vmatprep.subr.mxu0 %v3199
        %8270 = vmatpush1.msra.mxu0 %v3198
        %8271 = vmatprep.subr.mxu0 %v3197
        %8272 = vmatpush1.msra.mxu0 %v3196
        %8273 = vmatprep.subr.mxu0 %v3195
        %8274 = vmatpush1.msra.mxu0 %v3194
        %8275 = vmatprep.subr.mxu0 %v3193
        %8276 = vmatpush1.msra.mxu0 %v3192
        %8277 = vmatprep.subr.mxu0 %v3191
        %8278 = vmatpush1.msra.mxu0 %v3190
        %8279 = vmatprep.subr.mxu0 %v3189
        %8280 = vmatpush1.msra.mxu0 %v3188
        %8281 = vmatprep.subr.mxu0 %v3187
        %8282 = vmatpush1.msra.mxu0 %v3186
        %8283 = vmatprep.subr.mxu0 %v3185
        %8284 = vmatpush1.msra.mxu0 %v3184
        %8285 = vmatprep.subr.mxu0 %v3183
        %8286 = vmatpush1.msra.mxu0 %v3182
        %8287 = vmatprep.subr.mxu0 %v3181
        %8288 = vmatpush1.msra.mxu0 %v3180
        %8289 = vmatprep.subr.mxu0 %v3179
        %8290 = vmatpush1.msra.mxu0 %v3178
        %8291 = vmatprep.subr.mxu0 %v3177
        %8292 = vmatpush1.msra.mxu0 %v3176
        %8293 = vmatprep.subr.mxu0 %v3175
        %8294 = vmatpush1.msra.mxu0 %v3174
        %8295 = vmatprep.subr.mxu0 %v3173
        %8296 = vmatpush1.msra.mxu0 %v3172
        %8297 = vmatprep.subr.mxu0 %v3171
        %8298 = vmatpush1.msra.mxu0 %v3170
        %8299 = vmatprep.subr.mxu0 %v3169
        %8300 = vmatpush1.msra.mxu0 %v3168
        %8301 = vmatprep.subr.mxu0 %v3231
        %8302 = vmatpush2.msra.mxu0 %v3230
        %8303 = vmatprep.subr.mxu0 %v3229
        %8304 = vmatpush2.msra.mxu0 %v3228
        %8305 = vmatprep.subr.mxu0 %v3227
        %8306 = vmatpush2.msra.mxu0 %v3226
        %8307 = vmatprep.subr.mxu0 %v3225
        %8308 = vmatpush2.msra.mxu0 %v3224
        %8309 = vmatprep.subr.mxu0 %v3223
        %8310 = vmatpush2.msra.mxu0 %v3222
        %8311 = vmatprep.subr.mxu0 %v3221
        %8312 = vmatpush2.msra.mxu0 %v3220
        %8313 = vmatprep.subr.mxu0 %v3219
        %8314 = vmatpush2.msra.mxu0 %v3218
        %8315 = vmatprep.subr.mxu0 %v3217
        %8316 = vmatpush2.msra.mxu0 %v3216
        %8317 = vmatprep.subr.mxu0 %v3215
        %8318 = vmatpush2.msra.mxu0 %v3214
        %8319 = vmatprep.subr.mxu0 %v3213
        %8320 = vmatpush2.msra.mxu0 %v3212
        %8321 = vmatprep.subr.mxu0 %v3211
        %8322 = vmatpush2.msra.mxu0 %v3210
        %8323 = vmatprep.subr.mxu0 %v3209
        %8324 = vmatpush2.msra.mxu0 %v3208
        %8325 = vmatprep.subr.mxu0 %v3207
        %8326 = vmatpush2.msra.mxu0 %v3206
        %8327 = vmatprep.subr.mxu0 %v3205
        %8328 = vmatpush2.msra.mxu0 %v3204
        %8329 = vmatprep.subr.mxu0 %v3203
        %8330 = vmatpush2.msra.mxu0 %v3202
        %8331 = vmatprep.subr.mxu0 %v3201
        %8332 = vmatpush2.msra.mxu0 %v3200
        %8333 = vmatprep.mubr.f32.mxu0 %v4917
        %8334 = vmatmul.mubr.f32.gmra.mxu0 %v4915
        %v8335 = vpop.f32.mrf.mxu0
        %v8336 = vadd.f32 %v8265, %v8335
        %v8337 = vpop.f32.mrf.mxu0
        %v8338 = vadd.f32 %v8267, %v8337
        %8339 = vdwg.mxu0
        %8340 = vmatprep.subr.mxu0 %v3263
        %8341 = vmatpush1.msra.mxu0 %v3262
        %8342 = vmatprep.subr.mxu0 %v3261
        %8343 = vmatpush1.msra.mxu0 %v3260
        %8344 = vmatprep.subr.mxu0 %v3259
        %8345 = vmatpush1.msra.mxu0 %v3258
        %8346 = vmatprep.subr.mxu0 %v3257
        %8347 = vmatpush1.msra.mxu0 %v3256
        %8348 = vmatprep.subr.mxu0 %v3255
        %8349 = vmatpush1.msra.mxu0 %v3254
        %8350 = vmatprep.subr.mxu0 %v3253
        %8351 = vmatpush1.msra.mxu0 %v3252
        %8352 = vmatprep.subr.mxu0 %v3251
        %8353 = vmatpush1.msra.mxu0 %v3250
        %8354 = vmatprep.subr.mxu0 %v3249
        %8355 = vmatpush1.msra.mxu0 %v3248
        %8356 = vmatprep.subr.mxu0 %v3247
        %8357 = vmatpush1.msra.mxu0 %v3246
        %8358 = vmatprep.subr.mxu0 %v3245
        %8359 = vmatpush1.msra.mxu0 %v3244
        %8360 = vmatprep.subr.mxu0 %v3243
        %8361 = vmatpush1.msra.mxu0 %v3242
        %8362 = vmatprep.subr.mxu0 %v3241
        %8363 = vmatpush1.msra.mxu0 %v3240
        %8364 = vmatprep.subr.mxu0 %v3239
        %8365 = vmatpush1.msra.mxu0 %v3238
        %8366 = vmatprep.subr.mxu0 %v3237
        %8367 = vmatpush1.msra.mxu0 %v3236
        %8368 = vmatprep.subr.mxu0 %v3235
        %8369 = vmatpush1.msra.mxu0 %v3234
        %8370 = vmatprep.subr.mxu0 %v3233
        %8371 = vmatpush1.msra.mxu0 %v3232
        %8372 = vmatprep.subr.mxu0 %v3295
        %8373 = vmatpush2.msra.mxu0 %v3294
        %8374 = vmatprep.subr.mxu0 %v3293
        %8375 = vmatpush2.msra.mxu0 %v3292
        %8376 = vmatprep.subr.mxu0 %v3291
        %8377 = vmatpush2.msra.mxu0 %v3290
        %8378 = vmatprep.subr.mxu0 %v3289
        %8379 = vmatpush2.msra.mxu0 %v3288
        %8380 = vmatprep.subr.mxu0 %v3287
        %8381 = vmatpush2.msra.mxu0 %v3286
        %8382 = vmatprep.subr.mxu0 %v3285
        %8383 = vmatpush2.msra.mxu0 %v3284
        %8384 = vmatprep.subr.mxu0 %v3283
        %8385 = vmatpush2.msra.mxu0 %v3282
        %8386 = vmatprep.subr.mxu0 %v3281
        %8387 = vmatpush2.msra.mxu0 %v3280
        %8388 = vmatprep.subr.mxu0 %v3279
        %8389 = vmatpush2.msra.mxu0 %v3278
        %8390 = vmatprep.subr.mxu0 %v3277
        %8391 = vmatpush2.msra.mxu0 %v3276
        %8392 = vmatprep.subr.mxu0 %v3275
        %8393 = vmatpush2.msra.mxu0 %v3274
        %8394 = vmatprep.subr.mxu0 %v3273
        %8395 = vmatpush2.msra.mxu0 %v3272
        %8396 = vmatprep.subr.mxu0 %v3271
        %8397 = vmatpush2.msra.mxu0 %v3270
        %8398 = vmatprep.subr.mxu0 %v3269
        %8399 = vmatpush2.msra.mxu0 %v3268
        %8400 = vmatprep.subr.mxu0 %v3267
        %8401 = vmatpush2.msra.mxu0 %v3266
        %8402 = vmatprep.subr.mxu0 %v3265
        %8403 = vmatpush2.msra.mxu0 %v3264
        %8404 = vmatprep.mubr.f32.mxu0 %v4933
        %8405 = vmatmul.mubr.f32.gmra.mxu0 %v4925
        %v8406 = vpop.f32.mrf.mxu0
        %v8407 = vadd.f32 %v8336, %v8406
        %v8408 = vpop.f32.mrf.mxu0
        %v8409 = vadd.f32 %v8338, %v8408
        %8410 = vdwg.mxu0
        %8411 = vmatprep.subr.mxu0 %v3327
        %8412 = vmatpush1.msra.mxu0 %v3326
        %8413 = vmatprep.subr.mxu0 %v3325
        %8414 = vmatpush1.msra.mxu0 %v3324
        %8415 = vmatprep.subr.mxu0 %v3323
        %8416 = vmatpush1.msra.mxu0 %v3322
        %8417 = vmatprep.subr.mxu0 %v3321
        %8418 = vmatpush1.msra.mxu0 %v3320
        %8419 = vmatprep.subr.mxu0 %v3319
        %8420 = vmatpush1.msra.mxu0 %v3318
        %8421 = vmatprep.subr.mxu0 %v3317
        %8422 = vmatpush1.msra.mxu0 %v3316
        %8423 = vmatprep.subr.mxu0 %v3315
        %8424 = vmatpush1.msra.mxu0 %v3314
        %8425 = vmatprep.subr.mxu0 %v3313
        %8426 = vmatpush1.msra.mxu0 %v3312
        %8427 = vmatprep.subr.mxu0 %v3311
        %8428 = vmatpush1.msra.mxu0 %v3310
        %8429 = vmatprep.subr.mxu0 %v3309
        %8430 = vmatpush1.msra.mxu0 %v3308
        %8431 = vmatprep.subr.mxu0 %v3307
        %8432 = vmatpush1.msra.mxu0 %v3306
        %8433 = vmatprep.subr.mxu0 %v3305
        %8434 = vmatpush1.msra.mxu0 %v3304
        %8435 = vmatprep.subr.mxu0 %v3303
        %8436 = vmatpush1.msra.mxu0 %v3302
        %8437 = vmatprep.subr.mxu0 %v3301
        %8438 = vmatpush1.msra.mxu0 %v3300
        %8439 = vmatprep.subr.mxu0 %v3299
        %8440 = vmatpush1.msra.mxu0 %v3298
        %8441 = vmatprep.subr.mxu0 %v3297
        %8442 = vmatpush1.msra.mxu0 %v3296
        %8443 = vmatprep.subr.mxu0 %v3359
        %8444 = vmatpush2.msra.mxu0 %v3358
        %8445 = vmatprep.subr.mxu0 %v3357
        %8446 = vmatpush2.msra.mxu0 %v3356
        %8447 = vmatprep.subr.mxu0 %v3355
        %8448 = vmatpush2.msra.mxu0 %v3354
        %8449 = vmatprep.subr.mxu0 %v3353
        %8450 = vmatpush2.msra.mxu0 %v3352
        %8451 = vmatprep.subr.mxu0 %v3351
        %8452 = vmatpush2.msra.mxu0 %v3350
        %8453 = vmatprep.subr.mxu0 %v3349
        %8454 = vmatpush2.msra.mxu0 %v3348
        %8455 = vmatprep.subr.mxu0 %v3347
        %8456 = vmatpush2.msra.mxu0 %v3346
        %8457 = vmatprep.subr.mxu0 %v3345
        %8458 = vmatpush2.msra.mxu0 %v3344
        %8459 = vmatprep.subr.mxu0 %v3343
        %8460 = vmatpush2.msra.mxu0 %v3342
        %8461 = vmatprep.subr.mxu0 %v3341
        %8462 = vmatpush2.msra.mxu0 %v3340
        %8463 = vmatprep.subr.mxu0 %v3339
        %8464 = vmatpush2.msra.mxu0 %v3338
        %8465 = vmatprep.subr.mxu0 %v3337
        %8466 = vmatpush2.msra.mxu0 %v3336
        %8467 = vmatprep.subr.mxu0 %v3335
        %8468 = vmatpush2.msra.mxu0 %v3334
        %8469 = vmatprep.subr.mxu0 %v3333
        %8470 = vmatpush2.msra.mxu0 %v3332
        %8471 = vmatprep.subr.mxu0 %v3331
        %8472 = vmatpush2.msra.mxu0 %v3330
        %8473 = vmatprep.subr.mxu0 %v3329
        %8474 = vmatpush2.msra.mxu0 %v3328
        %8475 = vmatprep.mubr.f32.mxu0 %v4934
        %8476 = vmatmul.mubr.f32.gmra.mxu0 %v4932
        %v8477 = vpop.f32.mrf.mxu0
        %v8478 = vadd.f32 %v8407, %v8477
        %v8479 = vpop.f32.mrf.mxu0
        %v8480 = vadd.f32 %v8409, %v8479
        %8481 = vdwg.mxu0
        %8482 = vmatprep.subr.mxu0 %v3391
        %8483 = vmatpush1.msra.mxu0 %v3390
        %8484 = vmatprep.subr.mxu0 %v3389
        %8485 = vmatpush1.msra.mxu0 %v3388
        %8486 = vmatprep.subr.mxu0 %v3387
        %8487 = vmatpush1.msra.mxu0 %v3386
        %8488 = vmatprep.subr.mxu0 %v3385
        %8489 = vmatpush1.msra.mxu0 %v3384
        %8490 = vmatprep.subr.mxu0 %v3383
        %8491 = vmatpush1.msra.mxu0 %v3382
        %8492 = vmatprep.subr.mxu0 %v3381
        %8493 = vmatpush1.msra.mxu0 %v3380
        %8494 = vmatprep.subr.mxu0 %v3379
        %8495 = vmatpush1.msra.mxu0 %v3378
        %8496 = vmatprep.subr.mxu0 %v3377
        %8497 = vmatpush1.msra.mxu0 %v3376
        %8498 = vmatprep.subr.mxu0 %v3375
        %8499 = vmatpush1.msra.mxu0 %v3374
        %8500 = vmatprep.subr.mxu0 %v3373
        %8501 = vmatpush1.msra.mxu0 %v3372
        %8502 = vmatprep.subr.mxu0 %v3371
        %8503 = vmatpush1.msra.mxu0 %v3370
        %8504 = vmatprep.subr.mxu0 %v3369
        %8505 = vmatpush1.msra.mxu0 %v3368
        %8506 = vmatprep.subr.mxu0 %v3367
        %8507 = vmatpush1.msra.mxu0 %v3366
        %8508 = vmatprep.subr.mxu0 %v3365
        %8509 = vmatpush1.msra.mxu0 %v3364
        %8510 = vmatprep.subr.mxu0 %v3363
        %8511 = vmatpush1.msra.mxu0 %v3362
        %8512 = vmatprep.subr.mxu0 %v3361
        %8513 = vmatpush1.msra.mxu0 %v3360
        %8514 = vmatprep.subr.mxu0 %v3423
        %8515 = vmatpush2.msra.mxu0 %v3422
        %8516 = vmatprep.subr.mxu0 %v3421
        %8517 = vmatpush2.msra.mxu0 %v3420
        %8518 = vmatprep.subr.mxu0 %v3419
        %8519 = vmatpush2.msra.mxu0 %v3418
        %8520 = vmatprep.subr.mxu0 %v3417
        %8521 = vmatpush2.msra.mxu0 %v3416
        %8522 = vmatprep.subr.mxu0 %v3415
        %8523 = vmatpush2.msra.mxu0 %v3414
        %8524 = vmatprep.subr.mxu0 %v3413
        %8525 = vmatpush2.msra.mxu0 %v3412
        %8526 = vmatprep.subr.mxu0 %v3411
        %8527 = vmatpush2.msra.mxu0 %v3410
        %8528 = vmatprep.subr.mxu0 %v3409
        %8529 = vmatpush2.msra.mxu0 %v3408
        %8530 = vmatprep.subr.mxu0 %v3407
        %8531 = vmatpush2.msra.mxu0 %v3406
        %8532 = vmatprep.subr.mxu0 %v3405
        %8533 = vmatpush2.msra.mxu0 %v3404
        %8534 = vmatprep.subr.mxu0 %v3403
        %8535 = vmatpush2.msra.mxu0 %v3402
        %8536 = vmatprep.subr.mxu0 %v3401
        %8537 = vmatpush2.msra.mxu0 %v3400
        %8538 = vmatprep.subr.mxu0 %v3399
        %8539 = vmatpush2.msra.mxu0 %v3398
        %8540 = vmatprep.subr.mxu0 %v3397
        %8541 = vmatpush2.msra.mxu0 %v3396
        %8542 = vmatprep.subr.mxu0 %v3395
        %8543 = vmatpush2.msra.mxu0 %v3394
        %8544 = vmatprep.subr.mxu0 %v3393
        %8545 = vmatpush2.msra.mxu0 %v3392
        %8546 = vmatprep.mubr.f32.mxu0 %v4950
        %8547 = vmatmul.mubr.f32.gmra.mxu0 %v4942
        %v8548 = vpop.f32.mrf.mxu0
        %v8549 = vadd.f32 %v8478, %v8548
        %v8550 = vpop.f32.mrf.mxu0
        %v8551 = vadd.f32 %v8480, %v8550
        %8552 = vdwg.mxu0
        %8553 = vmatprep.subr.mxu0 %v3455
        %8554 = vmatpush1.msra.mxu0 %v3454
        %8555 = vmatprep.subr.mxu0 %v3453
        %8556 = vmatpush1.msra.mxu0 %v3452
        %8557 = vmatprep.subr.mxu0 %v3451
        %8558 = vmatpush1.msra.mxu0 %v3450
        %8559 = vmatprep.subr.mxu0 %v3449
        %8560 = vmatpush1.msra.mxu0 %v3448
        %8561 = vmatprep.subr.mxu0 %v3447
        %8562 = vmatpush1.msra.mxu0 %v3446
        %8563 = vmatprep.subr.mxu0 %v3445
        %8564 = vmatpush1.msra.mxu0 %v3444
        %8565 = vmatprep.subr.mxu0 %v3443
        %8566 = vmatpush1.msra.mxu0 %v3442
        %8567 = vmatprep.subr.mxu0 %v3441
        %8568 = vmatpush1.msra.mxu0 %v3440
        %8569 = vmatprep.subr.mxu0 %v3439
        %8570 = vmatpush1.msra.mxu0 %v3438
        %8571 = vmatprep.subr.mxu0 %v3437
        %8572 = vmatpush1.msra.mxu0 %v3436
        %8573 = vmatprep.subr.mxu0 %v3435
        %8574 = vmatpush1.msra.mxu0 %v3434
        %8575 = vmatprep.subr.mxu0 %v3433
        %8576 = vmatpush1.msra.mxu0 %v3432
        %8577 = vmatprep.subr.mxu0 %v3431
        %8578 = vmatpush1.msra.mxu0 %v3430
        %8579 = vmatprep.subr.mxu0 %v3429
        %8580 = vmatpush1.msra.mxu0 %v3428
        %8581 = vmatprep.subr.mxu0 %v3427
        %8582 = vmatpush1.msra.mxu0 %v3426
        %8583 = vmatprep.subr.mxu0 %v3425
        %8584 = vmatpush1.msra.mxu0 %v3424
        %8585 = vmatprep.subr.mxu0 %v3487
        %8586 = vmatpush2.msra.mxu0 %v3486
        %8587 = vmatprep.subr.mxu0 %v3485
        %8588 = vmatpush2.msra.mxu0 %v3484
        %8589 = vmatprep.subr.mxu0 %v3483
        %8590 = vmatpush2.msra.mxu0 %v3482
        %8591 = vmatprep.subr.mxu0 %v3481
        %8592 = vmatpush2.msra.mxu0 %v3480
        %8593 = vmatprep.subr.mxu0 %v3479
        %8594 = vmatpush2.msra.mxu0 %v3478
        %8595 = vmatprep.subr.mxu0 %v3477
        %8596 = vmatpush2.msra.mxu0 %v3476
        %8597 = vmatprep.subr.mxu0 %v3475
        %8598 = vmatpush2.msra.mxu0 %v3474
        %8599 = vmatprep.subr.mxu0 %v3473
        %8600 = vmatpush2.msra.mxu0 %v3472
        %8601 = vmatprep.subr.mxu0 %v3471
        %8602 = vmatpush2.msra.mxu0 %v3470
        %8603 = vmatprep.subr.mxu0 %v3469
        %8604 = vmatpush2.msra.mxu0 %v3468
        %8605 = vmatprep.subr.mxu0 %v3467
        %8606 = vmatpush2.msra.mxu0 %v3466
        %8607 = vmatprep.subr.mxu0 %v3465
        %8608 = vmatpush2.msra.mxu0 %v3464
        %8609 = vmatprep.subr.mxu0 %v3463
        %8610 = vmatpush2.msra.mxu0 %v3462
        %8611 = vmatprep.subr.mxu0 %v3461
        %8612 = vmatpush2.msra.mxu0 %v3460
        %8613 = vmatprep.subr.mxu0 %v3459
        %8614 = vmatpush2.msra.mxu0 %v3458
        %8615 = vmatprep.subr.mxu0 %v3457
        %8616 = vmatpush2.msra.mxu0 %v3456
        %8617 = vmatprep.mubr.f32.mxu0 %v4951
        %8618 = vmatmul.mubr.f32.gmra.mxu0 %v4949
        %v8619 = vpop.f32.mrf.mxu0
        %v8620 = vadd.f32 %v8549, %v8619
        %v8621 = vpop.f32.mrf.mxu0
        %v8622 = vadd.f32 %v8551, %v8621
        %8623 = vdwg.mxu0
        %8624 = vmatprep.subr.mxu0 %v3519
        %8625 = vmatpush1.msra.mxu0 %v3518
        %8626 = vmatprep.subr.mxu0 %v3517
        %8627 = vmatpush1.msra.mxu0 %v3516
        %8628 = vmatprep.subr.mxu0 %v3515
        %8629 = vmatpush1.msra.mxu0 %v3514
        %8630 = vmatprep.subr.mxu0 %v3513
        %8631 = vmatpush1.msra.mxu0 %v3512
        %8632 = vmatprep.subr.mxu0 %v3511
        %8633 = vmatpush1.msra.mxu0 %v3510
        %8634 = vmatprep.subr.mxu0 %v3509
        %8635 = vmatpush1.msra.mxu0 %v3508
        %8636 = vmatprep.subr.mxu0 %v3507
        %8637 = vmatpush1.msra.mxu0 %v3506
        %8638 = vmatprep.subr.mxu0 %v3505
        %8639 = vmatpush1.msra.mxu0 %v3504
        %8640 = vmatprep.subr.mxu0 %v3503
        %8641 = vmatpush1.msra.mxu0 %v3502
        %8642 = vmatprep.subr.mxu0 %v3501
        %8643 = vmatpush1.msra.mxu0 %v3500
        %8644 = vmatprep.subr.mxu0 %v3499
        %8645 = vmatpush1.msra.mxu0 %v3498
        %8646 = vmatprep.subr.mxu0 %v3497
        %8647 = vmatpush1.msra.mxu0 %v3496
        %8648 = vmatprep.subr.mxu0 %v3495
        %8649 = vmatpush1.msra.mxu0 %v3494
        %8650 = vmatprep.subr.mxu0 %v3493
        %8651 = vmatpush1.msra.mxu0 %v3492
        %8652 = vmatprep.subr.mxu0 %v3491
        %8653 = vmatpush1.msra.mxu0 %v3490
        %8654 = vmatprep.subr.mxu0 %v3489
        %8655 = vmatpush1.msra.mxu0 %v3488
        %8656 = vmatprep.subr.mxu0 %v3551
        %8657 = vmatpush2.msra.mxu0 %v3550
        %8658 = vmatprep.subr.mxu0 %v3549
        %8659 = vmatpush2.msra.mxu0 %v3548
        %8660 = vmatprep.subr.mxu0 %v3547
        %8661 = vmatpush2.msra.mxu0 %v3546
        %8662 = vmatprep.subr.mxu0 %v3545
        %8663 = vmatpush2.msra.mxu0 %v3544
        %8664 = vmatprep.subr.mxu0 %v3543
        %8665 = vmatpush2.msra.mxu0 %v3542
        %8666 = vmatprep.subr.mxu0 %v3541
        %8667 = vmatpush2.msra.mxu0 %v3540
        %8668 = vmatprep.subr.mxu0 %v3539
        %8669 = vmatpush2.msra.mxu0 %v3538
        %8670 = vmatprep.subr.mxu0 %v3537
        %8671 = vmatpush2.msra.mxu0 %v3536
        %8672 = vmatprep.subr.mxu0 %v3535
        %8673 = vmatpush2.msra.mxu0 %v3534
        %8674 = vmatprep.subr.mxu0 %v3533
        %8675 = vmatpush2.msra.mxu0 %v3532
        %8676 = vmatprep.subr.mxu0 %v3531
        %8677 = vmatpush2.msra.mxu0 %v3530
        %8678 = vmatprep.subr.mxu0 %v3529
        %8679 = vmatpush2.msra.mxu0 %v3528
        %8680 = vmatprep.subr.mxu0 %v3527
        %8681 = vmatpush2.msra.mxu0 %v3526
        %8682 = vmatprep.subr.mxu0 %v3525
        %8683 = vmatpush2.msra.mxu0 %v3524
        %8684 = vmatprep.subr.mxu0 %v3523
        %8685 = vmatpush2.msra.mxu0 %v3522
        %8686 = vmatprep.subr.mxu0 %v3521
        %8687 = vmatpush2.msra.mxu0 %v3520
        %8688 = vmatprep.mubr.f32.mxu0 %v4967
        %8689 = vmatmul.mubr.f32.gmra.mxu0 %v4959
        %v8690 = vpop.f32.mrf.mxu0
        %v8691 = vadd.f32 %v8620, %v8690
        %v8692 = vpop.f32.mrf.mxu0
        %v8693 = vadd.f32 %v8622, %v8692
        %8694 = vdwg.mxu0
        %8695 = vmatprep.subr.mxu0 %v3583
        %8696 = vmatpush1.msra.mxu0 %v3582
        %8697 = vmatprep.subr.mxu0 %v3581
        %8698 = vmatpush1.msra.mxu0 %v3580
        %8699 = vmatprep.subr.mxu0 %v3579
        %8700 = vmatpush1.msra.mxu0 %v3578
        %8701 = vmatprep.subr.mxu0 %v3577
        %8702 = vmatpush1.msra.mxu0 %v3576
        %8703 = vmatprep.subr.mxu0 %v3575
        %8704 = vmatpush1.msra.mxu0 %v3574
        %8705 = vmatprep.subr.mxu0 %v3573
        %8706 = vmatpush1.msra.mxu0 %v3572
        %8707 = vmatprep.subr.mxu0 %v3571
        %8708 = vmatpush1.msra.mxu0 %v3570
        %8709 = vmatprep.subr.mxu0 %v3569
        %8710 = vmatpush1.msra.mxu0 %v3568
        %8711 = vmatprep.subr.mxu0 %v3567
        %8712 = vmatpush1.msra.mxu0 %v3566
        %8713 = vmatprep.subr.mxu0 %v3565
        %8714 = vmatpush1.msra.mxu0 %v3564
        %8715 = vmatprep.subr.mxu0 %v3563
        %8716 = vmatpush1.msra.mxu0 %v3562
        %8717 = vmatprep.subr.mxu0 %v3561
        %8718 = vmatpush1.msra.mxu0 %v3560
        %8719 = vmatprep.subr.mxu0 %v3559
        %8720 = vmatpush1.msra.mxu0 %v3558
        %8721 = vmatprep.subr.mxu0 %v3557
        %8722 = vmatpush1.msra.mxu0 %v3556
        %8723 = vmatprep.subr.mxu0 %v3555
        %8724 = vmatpush1.msra.mxu0 %v3554
        %8725 = vmatprep.subr.mxu0 %v3553
        %8726 = vmatpush1.msra.mxu0 %v3552
        %8727 = vmatprep.subr.mxu0 %v3615
        %8728 = vmatpush2.msra.mxu0 %v3614
        %8729 = vmatprep.subr.mxu0 %v3613
        %8730 = vmatpush2.msra.mxu0 %v3612
        %8731 = vmatprep.subr.mxu0 %v3611
        %8732 = vmatpush2.msra.mxu0 %v3610
        %8733 = vmatprep.subr.mxu0 %v3609
        %8734 = vmatpush2.msra.mxu0 %v3608
        %8735 = vmatprep.subr.mxu0 %v3607
        %8736 = vmatpush2.msra.mxu0 %v3606
        %8737 = vmatprep.subr.mxu0 %v3605
        %8738 = vmatpush2.msra.mxu0 %v3604
        %8739 = vmatprep.subr.mxu0 %v3603
        %8740 = vmatpush2.msra.mxu0 %v3602
        %8741 = vmatprep.subr.mxu0 %v3601
        %8742 = vmatpush2.msra.mxu0 %v3600
        %8743 = vmatprep.subr.mxu0 %v3599
        %8744 = vmatpush2.msra.mxu0 %v3598
        %8745 = vmatprep.subr.mxu0 %v3597
        %8746 = vmatpush2.msra.mxu0 %v3596
        %8747 = vmatprep.subr.mxu0 %v3595
        %8748 = vmatpush2.msra.mxu0 %v3594
        %8749 = vmatprep.subr.mxu0 %v3593
        %8750 = vmatpush2.msra.mxu0 %v3592
        %8751 = vmatprep.subr.mxu0 %v3591
        %8752 = vmatpush2.msra.mxu0 %v3590
        %8753 = vmatprep.subr.mxu0 %v3589
        %8754 = vmatpush2.msra.mxu0 %v3588
        %8755 = vmatprep.subr.mxu0 %v3587
        %8756 = vmatpush2.msra.mxu0 %v3586
        %8757 = vmatprep.subr.mxu0 %v3585
        %8758 = vmatpush2.msra.mxu0 %v3584
        %8759 = vmatprep.mubr.f32.mxu0 %v4968
        %8760 = vmatmul.mubr.f32.gmra.mxu0 %v4966
        %v8761 = vpop.f32.mrf.mxu0
        %v8762 = vadd.f32 %v8691, %v8761
        %v8763 = vpop.f32.mrf.mxu0
        %v8764 = vadd.f32 %v8693, %v8763
        %8765 = vdwg.mxu0
        %8766 = vmatprep.subr.mxu0 %v3647
        %8767 = vmatpush1.msra.mxu0 %v3646
        %8768 = vmatprep.subr.mxu0 %v3645
        %8769 = vmatpush1.msra.mxu0 %v3644
        %8770 = vmatprep.subr.mxu0 %v3643
        %8771 = vmatpush1.msra.mxu0 %v3642
        %8772 = vmatprep.subr.mxu0 %v3641
        %8773 = vmatpush1.msra.mxu0 %v3640
        %8774 = vmatprep.subr.mxu0 %v3639
        %8775 = vmatpush1.msra.mxu0 %v3638
        %8776 = vmatprep.subr.mxu0 %v3637
        %8777 = vmatpush1.msra.mxu0 %v3636
        %8778 = vmatprep.subr.mxu0 %v3635
        %8779 = vmatpush1.msra.mxu0 %v3634
        %8780 = vmatprep.subr.mxu0 %v3633
        %8781 = vmatpush1.msra.mxu0 %v3632
        %8782 = vmatprep.subr.mxu0 %v3631
        %8783 = vmatpush1.msra.mxu0 %v3630
        %8784 = vmatprep.subr.mxu0 %v3629
        %8785 = vmatpush1.msra.mxu0 %v3628
        %8786 = vmatprep.subr.mxu0 %v3627
        %8787 = vmatpush1.msra.mxu0 %v3626
        %8788 = vmatprep.subr.mxu0 %v3625
        %8789 = vmatpush1.msra.mxu0 %v3624
        %8790 = vmatprep.subr.mxu0 %v3623
        %8791 = vmatpush1.msra.mxu0 %v3622
        %8792 = vmatprep.subr.mxu0 %v3621
        %8793 = vmatpush1.msra.mxu0 %v3620
        %8794 = vmatprep.subr.mxu0 %v3619
        %8795 = vmatpush1.msra.mxu0 %v3618
        %8796 = vmatprep.subr.mxu0 %v3617
        %8797 = vmatpush1.msra.mxu0 %v3616
        %8798 = vmatprep.subr.mxu0 %v3679
        %8799 = vmatpush2.msra.mxu0 %v3678
        %8800 = vmatprep.subr.mxu0 %v3677
        %8801 = vmatpush2.msra.mxu0 %v3676
        %8802 = vmatprep.subr.mxu0 %v3675
        %8803 = vmatpush2.msra.mxu0 %v3674
        %8804 = vmatprep.subr.mxu0 %v3673
        %8805 = vmatpush2.msra.mxu0 %v3672
        %8806 = vmatprep.subr.mxu0 %v3671
        %8807 = vmatpush2.msra.mxu0 %v3670
        %8808 = vmatprep.subr.mxu0 %v3669
        %8809 = vmatpush2.msra.mxu0 %v3668
        %8810 = vmatprep.subr.mxu0 %v3667
        %8811 = vmatpush2.msra.mxu0 %v3666
        %8812 = vmatprep.subr.mxu0 %v3665
        %8813 = vmatpush2.msra.mxu0 %v3664
        %8814 = vmatprep.subr.mxu0 %v3663
        %8815 = vmatpush2.msra.mxu0 %v3662
        %8816 = vmatprep.subr.mxu0 %v3661
        %8817 = vmatpush2.msra.mxu0 %v3660
        %8818 = vmatprep.subr.mxu0 %v3659
        %8819 = vmatpush2.msra.mxu0 %v3658
        %8820 = vmatprep.subr.mxu0 %v3657
        %8821 = vmatpush2.msra.mxu0 %v3656
        %8822 = vmatprep.subr.mxu0 %v3655
        %8823 = vmatpush2.msra.mxu0 %v3654
        %8824 = vmatprep.subr.mxu0 %v3653
        %8825 = vmatpush2.msra.mxu0 %v3652
        %8826 = vmatprep.subr.mxu0 %v3651
        %8827 = vmatpush2.msra.mxu0 %v3650
        %8828 = vmatprep.subr.mxu0 %v3649
        %8829 = vmatpush2.msra.mxu0 %v3648
        %8830 = vmatprep.mubr.f32.mxu0 %v4984
        %8831 = vmatmul.mubr.f32.gmra.mxu0 %v4976
        %v8832 = vpop.f32.mrf.mxu0
        %v8833 = vadd.f32 %v8762, %v8832
        %v8834 = vpop.f32.mrf.mxu0
        %v8835 = vadd.f32 %v8764, %v8834
        %8836 = vdwg.mxu0
        %8837 = vmatprep.subr.mxu0 %v3711
        %8838 = vmatpush1.msra.mxu0 %v3710
        %8839 = vmatprep.subr.mxu0 %v3709
        %8840 = vmatpush1.msra.mxu0 %v3708
        %8841 = vmatprep.subr.mxu0 %v3707
        %8842 = vmatpush1.msra.mxu0 %v3706
        %8843 = vmatprep.subr.mxu0 %v3705
        %8844 = vmatpush1.msra.mxu0 %v3704
        %8845 = vmatprep.subr.mxu0 %v3703
        %8846 = vmatpush1.msra.mxu0 %v3702
        %8847 = vmatprep.subr.mxu0 %v3701
        %8848 = vmatpush1.msra.mxu0 %v3700
        %8849 = vmatprep.subr.mxu0 %v3699
        %8850 = vmatpush1.msra.mxu0 %v3698
        %8851 = vmatprep.subr.mxu0 %v3697
        %8852 = vmatpush1.msra.mxu0 %v3696
        %8853 = vmatprep.subr.mxu0 %v3695
        %8854 = vmatpush1.msra.mxu0 %v3694
        %8855 = vmatprep.subr.mxu0 %v3693
        %8856 = vmatpush1.msra.mxu0 %v3692
        %8857 = vmatprep.subr.mxu0 %v3691
        %8858 = vmatpush1.msra.mxu0 %v3690
        %8859 = vmatprep.subr.mxu0 %v3689
        %8860 = vmatpush1.msra.mxu0 %v3688
        %8861 = vmatprep.subr.mxu0 %v3687
        %8862 = vmatpush1.msra.mxu0 %v3686
        %8863 = vmatprep.subr.mxu0 %v3685
        %8864 = vmatpush1.msra.mxu0 %v3684
        %8865 = vmatprep.subr.mxu0 %v3683
        %8866 = vmatpush1.msra.mxu0 %v3682
        %8867 = vmatprep.subr.mxu0 %v3681
        %8868 = vmatpush1.msra.mxu0 %v3680
        %8869 = vmatprep.subr.mxu0 %v3743
        %8870 = vmatpush2.msra.mxu0 %v3742
        %8871 = vmatprep.subr.mxu0 %v3741
        %8872 = vmatpush2.msra.mxu0 %v3740
        %8873 = vmatprep.subr.mxu0 %v3739
        %8874 = vmatpush2.msra.mxu0 %v3738
        %8875 = vmatprep.subr.mxu0 %v3737
        %8876 = vmatpush2.msra.mxu0 %v3736
        %8877 = vmatprep.subr.mxu0 %v3735
        %8878 = vmatpush2.msra.mxu0 %v3734
        %8879 = vmatprep.subr.mxu0 %v3733
        %8880 = vmatpush2.msra.mxu0 %v3732
        %8881 = vmatprep.subr.mxu0 %v3731
        %8882 = vmatpush2.msra.mxu0 %v3730
        %8883 = vmatprep.subr.mxu0 %v3729
        %8884 = vmatpush2.msra.mxu0 %v3728
        %8885 = vmatprep.subr.mxu0 %v3727
        %8886 = vmatpush2.msra.mxu0 %v3726
        %8887 = vmatprep.subr.mxu0 %v3725
        %8888 = vmatpush2.msra.mxu0 %v3724
        %8889 = vmatprep.subr.mxu0 %v3723
        %8890 = vmatpush2.msra.mxu0 %v3722
        %8891 = vmatprep.subr.mxu0 %v3721
        %8892 = vmatpush2.msra.mxu0 %v3720
        %8893 = vmatprep.subr.mxu0 %v3719
        %8894 = vmatpush2.msra.mxu0 %v3718
        %8895 = vmatprep.subr.mxu0 %v3717
        %8896 = vmatpush2.msra.mxu0 %v3716
        %8897 = vmatprep.subr.mxu0 %v3715
        %8898 = vmatpush2.msra.mxu0 %v3714
        %8899 = vmatprep.subr.mxu0 %v3713
        %8900 = vmatpush2.msra.mxu0 %v3712
        %8901 = vmatprep.mubr.f32.mxu0 %v4985
        %8902 = vmatmul.mubr.f32.gmra.mxu0 %v4983
        %v8903 = vpop.f32.mrf.mxu0
        %v8904 = vadd.f32 %v8833, %v8903
        %v8905 = vpop.f32.mrf.mxu0
        %v8906 = vadd.f32 %v8835, %v8905
        %8907 = vdwg.mxu0
        %8908 = vmatprep.subr.mxu0 %v3775
        %8909 = vmatpush1.msra.mxu0 %v3774
        %8910 = vmatprep.subr.mxu0 %v3773
        %8911 = vmatpush1.msra.mxu0 %v3772
        %8912 = vmatprep.subr.mxu0 %v3771
        %8913 = vmatpush1.msra.mxu0 %v3770
        %8914 = vmatprep.subr.mxu0 %v3769
        %8915 = vmatpush1.msra.mxu0 %v3768
        %8916 = vmatprep.subr.mxu0 %v3767
        %8917 = vmatpush1.msra.mxu0 %v3766
        %8918 = vmatprep.subr.mxu0 %v3765
        %8919 = vmatpush1.msra.mxu0 %v3764
        %8920 = vmatprep.subr.mxu0 %v3763
        %8921 = vmatpush1.msra.mxu0 %v3762
        %8922 = vmatprep.subr.mxu0 %v3761
        %8923 = vmatpush1.msra.mxu0 %v3760
        %8924 = vmatprep.subr.mxu0 %v3759
        %8925 = vmatpush1.msra.mxu0 %v3758
        %8926 = vmatprep.subr.mxu0 %v3757
        %8927 = vmatpush1.msra.mxu0 %v3756
        %8928 = vmatprep.subr.mxu0 %v3755
        %8929 = vmatpush1.msra.mxu0 %v3754
        %8930 = vmatprep.subr.mxu0 %v3753
        %8931 = vmatpush1.msra.mxu0 %v3752
        %8932 = vmatprep.subr.mxu0 %v3751
        %8933 = vmatpush1.msra.mxu0 %v3750
        %8934 = vmatprep.subr.mxu0 %v3749
        %8935 = vmatpush1.msra.mxu0 %v3748
        %8936 = vmatprep.subr.mxu0 %v3747
        %8937 = vmatpush1.msra.mxu0 %v3746
        %8938 = vmatprep.subr.mxu0 %v3745
        %8939 = vmatpush1.msra.mxu0 %v3744
        %8940 = vmatprep.subr.mxu0 %v3807
        %8941 = vmatpush2.msra.mxu0 %v3806
        %8942 = vmatprep.subr.mxu0 %v3805
        %8943 = vmatpush2.msra.mxu0 %v3804
        %8944 = vmatprep.subr.mxu0 %v3803
        %8945 = vmatpush2.msra.mxu0 %v3802
        %8946 = vmatprep.subr.mxu0 %v3801
        %8947 = vmatpush2.msra.mxu0 %v3800
        %8948 = vmatprep.subr.mxu0 %v3799
        %8949 = vmatpush2.msra.mxu0 %v3798
        %8950 = vmatprep.subr.mxu0 %v3797
        %8951 = vmatpush2.msra.mxu0 %v3796
        %8952 = vmatprep.subr.mxu0 %v3795
        %8953 = vmatpush2.msra.mxu0 %v3794
        %8954 = vmatprep.subr.mxu0 %v3793
        %8955 = vmatpush2.msra.mxu0 %v3792
        %8956 = vmatprep.subr.mxu0 %v3791
        %8957 = vmatpush2.msra.mxu0 %v3790
        %8958 = vmatprep.subr.mxu0 %v3789
        %8959 = vmatpush2.msra.mxu0 %v3788
        %8960 = vmatprep.subr.mxu0 %v3787
        %8961 = vmatpush2.msra.mxu0 %v3786
        %8962 = vmatprep.subr.mxu0 %v3785
        %8963 = vmatpush2.msra.mxu0 %v3784
        %8964 = vmatprep.subr.mxu0 %v3783
        %8965 = vmatpush2.msra.mxu0 %v3782
        %8966 = vmatprep.subr.mxu0 %v3781
        %8967 = vmatpush2.msra.mxu0 %v3780
        %8968 = vmatprep.subr.mxu0 %v3779
        %8969 = vmatpush2.msra.mxu0 %v3778
        %8970 = vmatprep.subr.mxu0 %v3777
        %8971 = vmatpush2.msra.mxu0 %v3776
        %8972 = vmatprep.mubr.f32.mxu0 %v5001
        %8973 = vmatmul.mubr.f32.gmra.mxu0 %v4993
        %v8974 = vpop.f32.mrf.mxu0
        %v8975 = vadd.f32 %v8904, %v8974
        %v8976 = vpop.f32.mrf.mxu0
        %v8977 = vadd.f32 %v8906, %v8976
        %8978 = vdwg.mxu0
        %8979 = vmatprep.subr.mxu0 %v3839
        %8980 = vmatpush1.msra.mxu0 %v3838
        %8981 = vmatprep.subr.mxu0 %v3837
        %8982 = vmatpush1.msra.mxu0 %v3836
        %8983 = vmatprep.subr.mxu0 %v3835
        %8984 = vmatpush1.msra.mxu0 %v3834
        %8985 = vmatprep.subr.mxu0 %v3833
        %8986 = vmatpush1.msra.mxu0 %v3832
        %8987 = vmatprep.subr.mxu0 %v3831
        %8988 = vmatpush1.msra.mxu0 %v3830
        %8989 = vmatprep.subr.mxu0 %v3829
        %8990 = vmatpush1.msra.mxu0 %v3828
        %8991 = vmatprep.subr.mxu0 %v3827
        %8992 = vmatpush1.msra.mxu0 %v3826
        %8993 = vmatprep.subr.mxu0 %v3825
        %8994 = vmatpush1.msra.mxu0 %v3824
        %8995 = vmatprep.subr.mxu0 %v3823
        %8996 = vmatpush1.msra.mxu0 %v3822
        %8997 = vmatprep.subr.mxu0 %v3821
        %8998 = vmatpush1.msra.mxu0 %v3820
        %8999 = vmatprep.subr.mxu0 %v3819
        %9000 = vmatpush1.msra.mxu0 %v3818
        %9001 = vmatprep.subr.mxu0 %v3817
        %9002 = vmatpush1.msra.mxu0 %v3816
        %9003 = vmatprep.subr.mxu0 %v3815
        %9004 = vmatpush1.msra.mxu0 %v3814
        %9005 = vmatprep.subr.mxu0 %v3813
        %9006 = vmatpush1.msra.mxu0 %v3812
        %9007 = vmatprep.subr.mxu0 %v3811
        %9008 = vmatpush1.msra.mxu0 %v3810
        %9009 = vmatprep.subr.mxu0 %v3809
        %9010 = vmatpush1.msra.mxu0 %v3808
        %9011 = vmatprep.subr.mxu0 %v3871
        %9012 = vmatpush2.msra.mxu0 %v3870
        %9013 = vmatprep.subr.mxu0 %v3869
        %9014 = vmatpush2.msra.mxu0 %v3868
        %9015 = vmatprep.subr.mxu0 %v3867
        %9016 = vmatpush2.msra.mxu0 %v3866
        %9017 = vmatprep.subr.mxu0 %v3865
        %9018 = vmatpush2.msra.mxu0 %v3864
        %9019 = vmatprep.subr.mxu0 %v3863
        %9020 = vmatpush2.msra.mxu0 %v3862
        %9021 = vmatprep.subr.mxu0 %v3861
        %9022 = vmatpush2.msra.mxu0 %v3860
        %9023 = vmatprep.subr.mxu0 %v3859
        %9024 = vmatpush2.msra.mxu0 %v3858
        %9025 = vmatprep.subr.mxu0 %v3857
        %9026 = vmatpush2.msra.mxu0 %v3856
        %9027 = vmatprep.subr.mxu0 %v3855
        %9028 = vmatpush2.msra.mxu0 %v3854
        %9029 = vmatprep.subr.mxu0 %v3853
        %9030 = vmatpush2.msra.mxu0 %v3852
        %9031 = vmatprep.subr.mxu0 %v3851
        %9032 = vmatpush2.msra.mxu0 %v3850
        %9033 = vmatprep.subr.mxu0 %v3849
        %9034 = vmatpush2.msra.mxu0 %v3848
        %9035 = vmatprep.subr.mxu0 %v3847
        %9036 = vmatpush2.msra.mxu0 %v3846
        %9037 = vmatprep.subr.mxu0 %v3845
        %9038 = vmatpush2.msra.mxu0 %v3844
        %9039 = vmatprep.subr.mxu0 %v3843
        %9040 = vmatpush2.msra.mxu0 %v3842
        %9041 = vmatprep.subr.mxu0 %v3841
        %9042 = vmatpush2.msra.mxu0 %v3840
        %9043 = vmatprep.mubr.f32.mxu0 %v5002
        %9044 = vmatmul.mubr.f32.gmra.mxu0 %v5000
        %v9045 = vpop.f32.mrf.mxu0
        %v9046 = vadd.f32 %v8975, %v9045
        %v9047 = vpop.f32.mrf.mxu0
        %v9048 = vadd.f32 %v8977, %v9047
        %9049 = vdwg.mxu0
        %9050 = vmatprep.subr.mxu0 %v3903
        %9051 = vmatpush1.msra.mxu0 %v3902
        %9052 = vmatprep.subr.mxu0 %v3901
        %9053 = vmatpush1.msra.mxu0 %v3900
        %9054 = vmatprep.subr.mxu0 %v3899
        %9055 = vmatpush1.msra.mxu0 %v3898
        %9056 = vmatprep.subr.mxu0 %v3897
        %9057 = vmatpush1.msra.mxu0 %v3896
        %9058 = vmatprep.subr.mxu0 %v3895
        %9059 = vmatpush1.msra.mxu0 %v3894
        %9060 = vmatprep.subr.mxu0 %v3893
        %9061 = vmatpush1.msra.mxu0 %v3892
        %9062 = vmatprep.subr.mxu0 %v3891
        %9063 = vmatpush1.msra.mxu0 %v3890
        %9064 = vmatprep.subr.mxu0 %v3889
        %9065 = vmatpush1.msra.mxu0 %v3888
        %9066 = vmatprep.subr.mxu0 %v3887
        %9067 = vmatpush1.msra.mxu0 %v3886
        %9068 = vmatprep.subr.mxu0 %v3885
        %9069 = vmatpush1.msra.mxu0 %v3884
        %9070 = vmatprep.subr.mxu0 %v3883
        %9071 = vmatpush1.msra.mxu0 %v3882
        %9072 = vmatprep.subr.mxu0 %v3881
        %9073 = vmatpush1.msra.mxu0 %v3880
        %9074 = vmatprep.subr.mxu0 %v3879
        %9075 = vmatpush1.msra.mxu0 %v3878
        %9076 = vmatprep.subr.mxu0 %v3877
        %9077 = vmatpush1.msra.mxu0 %v3876
        %9078 = vmatprep.subr.mxu0 %v3875
        %9079 = vmatpush1.msra.mxu0 %v3874
        %9080 = vmatprep.subr.mxu0 %v3873
        %9081 = vmatpush1.msra.mxu0 %v3872
        %9082 = vmatprep.subr.mxu0 %v3935
        %9083 = vmatpush2.msra.mxu0 %v3934
        %9084 = vmatprep.subr.mxu0 %v3933
        %9085 = vmatpush2.msra.mxu0 %v3932
        %9086 = vmatprep.subr.mxu0 %v3931
        %9087 = vmatpush2.msra.mxu0 %v3930
        %9088 = vmatprep.subr.mxu0 %v3929
        %9089 = vmatpush2.msra.mxu0 %v3928
        %9090 = vmatprep.subr.mxu0 %v3927
        %9091 = vmatpush2.msra.mxu0 %v3926
        %9092 = vmatprep.subr.mxu0 %v3925
        %9093 = vmatpush2.msra.mxu0 %v3924
        %9094 = vmatprep.subr.mxu0 %v3923
        %9095 = vmatpush2.msra.mxu0 %v3922
        %9096 = vmatprep.subr.mxu0 %v3921
        %9097 = vmatpush2.msra.mxu0 %v3920
        %9098 = vmatprep.subr.mxu0 %v3919
        %9099 = vmatpush2.msra.mxu0 %v3918
        %9100 = vmatprep.subr.mxu0 %v3917
        %9101 = vmatpush2.msra.mxu0 %v3916
        %9102 = vmatprep.subr.mxu0 %v3915
        %9103 = vmatpush2.msra.mxu0 %v3914
        %9104 = vmatprep.subr.mxu0 %v3913
        %9105 = vmatpush2.msra.mxu0 %v3912
        %9106 = vmatprep.subr.mxu0 %v3911
        %9107 = vmatpush2.msra.mxu0 %v3910
        %9108 = vmatprep.subr.mxu0 %v3909
        %9109 = vmatpush2.msra.mxu0 %v3908
        %9110 = vmatprep.subr.mxu0 %v3907
        %9111 = vmatpush2.msra.mxu0 %v3906
        %9112 = vmatprep.subr.mxu0 %v3905
        %9113 = vmatpush2.msra.mxu0 %v3904
        %9114 = vmatprep.mubr.f32.mxu0 %v5018
        %9115 = vmatmul.mubr.f32.gmra.mxu0 %v5010
        %v9116 = vpop.f32.mrf.mxu0
        %v9117 = vadd.f32 %v9046, %v9116
        %v9118 = vpop.f32.mrf.mxu0
        %v9119 = vadd.f32 %v9048, %v9118
        %9120 = vdwg.mxu0
        %9121 = vmatprep.subr.mxu0 %v3967
        %9122 = vmatpush1.msra.mxu0 %v3966
        %9123 = vmatprep.subr.mxu0 %v3965
        %9124 = vmatpush1.msra.mxu0 %v3964
        %9125 = vmatprep.subr.mxu0 %v3963
        %9126 = vmatpush1.msra.mxu0 %v3962
        %9127 = vmatprep.subr.mxu0 %v3961
        %9128 = vmatpush1.msra.mxu0 %v3960
        %9129 = vmatprep.subr.mxu0 %v3959
        %9130 = vmatpush1.msra.mxu0 %v3958
        %9131 = vmatprep.subr.mxu0 %v3957
        %9132 = vmatpush1.msra.mxu0 %v3956
        %9133 = vmatprep.subr.mxu0 %v3955
        %9134 = vmatpush1.msra.mxu0 %v3954
        %9135 = vmatprep.subr.mxu0 %v3953
        %9136 = vmatpush1.msra.mxu0 %v3952
        %9137 = vmatprep.subr.mxu0 %v3951
        %9138 = vmatpush1.msra.mxu0 %v3950
        %9139 = vmatprep.subr.mxu0 %v3949
        %9140 = vmatpush1.msra.mxu0 %v3948
        %9141 = vmatprep.subr.mxu0 %v3947
        %9142 = vmatpush1.msra.mxu0 %v3946
        %9143 = vmatprep.subr.mxu0 %v3945
        %9144 = vmatpush1.msra.mxu0 %v3944
        %9145 = vmatprep.subr.mxu0 %v3943
        %9146 = vmatpush1.msra.mxu0 %v3942
        %9147 = vmatprep.subr.mxu0 %v3941
        %9148 = vmatpush1.msra.mxu0 %v3940
        %9149 = vmatprep.subr.mxu0 %v3939
        %9150 = vmatpush1.msra.mxu0 %v3938
        %9151 = vmatprep.subr.mxu0 %v3937
        %9152 = vmatpush1.msra.mxu0 %v3936
        %9153 = vmatprep.subr.mxu0 %v3999
        %9154 = vmatpush2.msra.mxu0 %v3998
        %9155 = vmatprep.subr.mxu0 %v3997
        %9156 = vmatpush2.msra.mxu0 %v3996
        %9157 = vmatprep.subr.mxu0 %v3995
        %9158 = vmatpush2.msra.mxu0 %v3994
        %9159 = vmatprep.subr.mxu0 %v3993
        %9160 = vmatpush2.msra.mxu0 %v3992
        %9161 = vmatprep.subr.mxu0 %v3991
        %9162 = vmatpush2.msra.mxu0 %v3990
        %9163 = vmatprep.subr.mxu0 %v3989
        %9164 = vmatpush2.msra.mxu0 %v3988
        %9165 = vmatprep.subr.mxu0 %v3987
        %9166 = vmatpush2.msra.mxu0 %v3986
        %9167 = vmatprep.subr.mxu0 %v3985
        %9168 = vmatpush2.msra.mxu0 %v3984
        %9169 = vmatprep.subr.mxu0 %v3983
        %9170 = vmatpush2.msra.mxu0 %v3982
        %9171 = vmatprep.subr.mxu0 %v3981
        %9172 = vmatpush2.msra.mxu0 %v3980
        %9173 = vmatprep.subr.mxu0 %v3979
        %9174 = vmatpush2.msra.mxu0 %v3978
        %9175 = vmatprep.subr.mxu0 %v3977
        %9176 = vmatpush2.msra.mxu0 %v3976
        %9177 = vmatprep.subr.mxu0 %v3975
        %9178 = vmatpush2.msra.mxu0 %v3974
        %9179 = vmatprep.subr.mxu0 %v3973
        %9180 = vmatpush2.msra.mxu0 %v3972
        %9181 = vmatprep.subr.mxu0 %v3971
        %9182 = vmatpush2.msra.mxu0 %v3970
        %9183 = vmatprep.subr.mxu0 %v3969
        %9184 = vmatpush2.msra.mxu0 %v3968
        %9185 = vmatprep.mubr.f32.mxu0 %v5019
        %9186 = vmatmul.mubr.f32.gmra.mxu0 %v5017
        %v9187 = vpop.f32.mrf.mxu0
        %v9188 = vadd.f32 %v9117, %v9187
        %v9189 = vpop.f32.mrf.mxu0
        %v9190 = vadd.f32 %v9119, %v9189
        %9191 = vdwg.mxu0
        %9192 = vmatprep.subr.mxu0 %v4031
        %9193 = vmatpush1.msra.mxu0 %v4030
        %9194 = vmatprep.subr.mxu0 %v4029
        %9195 = vmatpush1.msra.mxu0 %v4028
        %9196 = vmatprep.subr.mxu0 %v4027
        %9197 = vmatpush1.msra.mxu0 %v4026
        %9198 = vmatprep.subr.mxu0 %v4025
        %9199 = vmatpush1.msra.mxu0 %v4024
        %9200 = vmatprep.subr.mxu0 %v4023
        %9201 = vmatpush1.msra.mxu0 %v4022
        %9202 = vmatprep.subr.mxu0 %v4021
        %9203 = vmatpush1.msra.mxu0 %v4020
        %9204 = vmatprep.subr.mxu0 %v4019
        %9205 = vmatpush1.msra.mxu0 %v4018
        %9206 = vmatprep.subr.mxu0 %v4017
        %9207 = vmatpush1.msra.mxu0 %v4016
        %9208 = vmatprep.subr.mxu0 %v4015
        %9209 = vmatpush1.msra.mxu0 %v4014
        %9210 = vmatprep.subr.mxu0 %v4013
        %9211 = vmatpush1.msra.mxu0 %v4012
        %9212 = vmatprep.subr.mxu0 %v4011
        %9213 = vmatpush1.msra.mxu0 %v4010
        %9214 = vmatprep.subr.mxu0 %v4009
        %9215 = vmatpush1.msra.mxu0 %v4008
        %9216 = vmatprep.subr.mxu0 %v4007
        %9217 = vmatpush1.msra.mxu0 %v4006
        %9218 = vmatprep.subr.mxu0 %v4005
        %9219 = vmatpush1.msra.mxu0 %v4004
        %9220 = vmatprep.subr.mxu0 %v4003
        %9221 = vmatpush1.msra.mxu0 %v4002
        %9222 = vmatprep.subr.mxu0 %v4001
        %9223 = vmatpush1.msra.mxu0 %v4000
        %9224 = vmatprep.subr.mxu0 %v4063
        %9225 = vmatpush2.msra.mxu0 %v4062
        %9226 = vmatprep.subr.mxu0 %v4061
        %9227 = vmatpush2.msra.mxu0 %v4060
        %9228 = vmatprep.subr.mxu0 %v4059
        %9229 = vmatpush2.msra.mxu0 %v4058
        %9230 = vmatprep.subr.mxu0 %v4057
        %9231 = vmatpush2.msra.mxu0 %v4056
        %9232 = vmatprep.subr.mxu0 %v4055
        %9233 = vmatpush2.msra.mxu0 %v4054
        %9234 = vmatprep.subr.mxu0 %v4053
        %9235 = vmatpush2.msra.mxu0 %v4052
        %9236 = vmatprep.subr.mxu0 %v4051
        %9237 = vmatpush2.msra.mxu0 %v4050
        %9238 = vmatprep.subr.mxu0 %v4049
        %9239 = vmatpush2.msra.mxu0 %v4048
        %9240 = vmatprep.subr.mxu0 %v4047
        %9241 = vmatpush2.msra.mxu0 %v4046
        %9242 = vmatprep.subr.mxu0 %v4045
        %9243 = vmatpush2.msra.mxu0 %v4044
        %9244 = vmatprep.subr.mxu0 %v4043
        %9245 = vmatpush2.msra.mxu0 %v4042
        %9246 = vmatprep.subr.mxu0 %v4041
        %9247 = vmatpush2.msra.mxu0 %v4040
        %9248 = vmatprep.subr.mxu0 %v4039
        %9249 = vmatpush2.msra.mxu0 %v4038
        %9250 = vmatprep.subr.mxu0 %v4037
        %9251 = vmatpush2.msra.mxu0 %v4036
        %9252 = vmatprep.subr.mxu0 %v4035
        %9253 = vmatpush2.msra.mxu0 %v4034
        %9254 = vmatprep.subr.mxu0 %v4033
        %9255 = vmatpush2.msra.mxu0 %v4032
        %9256 = vmatprep.mubr.f32.mxu0 %v5035
        %9257 = vmatmul.mubr.f32.gmra.mxu0 %v5027
        %v9258 = vpop.f32.mrf.mxu0
        %v9259 = vadd.f32 %v9188, %v9258
        %v9260 = vpop.f32.mrf.mxu0
        %v9261 = vadd.f32 %v9190, %v9260
        %9262 = vdwg.mxu0
        %9263 = vmatprep.subr.mxu0 %v4095
        %9264 = vmatpush1.msra.mxu0 %v4094
        %9265 = vmatprep.subr.mxu0 %v4093
        %9266 = vmatpush1.msra.mxu0 %v4092
        %9267 = vmatprep.subr.mxu0 %v4091
        %9268 = vmatpush1.msra.mxu0 %v4090
        %9269 = vmatprep.subr.mxu0 %v4089
        %9270 = vmatpush1.msra.mxu0 %v4088
        %9271 = vmatprep.subr.mxu0 %v4087
        %9272 = vmatpush1.msra.mxu0 %v4086
        %9273 = vmatprep.subr.mxu0 %v4085
        %9274 = vmatpush1.msra.mxu0 %v4084
        %9275 = vmatprep.subr.mxu0 %v4083
        %9276 = vmatpush1.msra.mxu0 %v4082
        %9277 = vmatprep.subr.mxu0 %v4081
        %9278 = vmatpush1.msra.mxu0 %v4080
        %9279 = vmatprep.subr.mxu0 %v4079
        %9280 = vmatpush1.msra.mxu0 %v4078
        %9281 = vmatprep.subr.mxu0 %v4077
        %9282 = vmatpush1.msra.mxu0 %v4076
        %9283 = vmatprep.subr.mxu0 %v4075
        %9284 = vmatpush1.msra.mxu0 %v4074
        %9285 = vmatprep.subr.mxu0 %v4073
        %9286 = vmatpush1.msra.mxu0 %v4072
        %9287 = vmatprep.subr.mxu0 %v4071
        %9288 = vmatpush1.msra.mxu0 %v4070
        %9289 = vmatprep.subr.mxu0 %v4069
        %9290 = vmatpush1.msra.mxu0 %v4068
        %9291 = vmatprep.subr.mxu0 %v4067
        %9292 = vmatpush1.msra.mxu0 %v4066
        %9293 = vmatprep.subr.mxu0 %v4065
        %9294 = vmatpush1.msra.mxu0 %v4064
        %9295 = vmatprep.subr.mxu0 %v4127
        %9296 = vmatpush2.msra.mxu0 %v4126
        %9297 = vmatprep.subr.mxu0 %v4125
        %9298 = vmatpush2.msra.mxu0 %v4124
        %9299 = vmatprep.subr.mxu0 %v4123
        %9300 = vmatpush2.msra.mxu0 %v4122
        %9301 = vmatprep.subr.mxu0 %v4121
        %9302 = vmatpush2.msra.mxu0 %v4120
        %9303 = vmatprep.subr.mxu0 %v4119
        %9304 = vmatpush2.msra.mxu0 %v4118
        %9305 = vmatprep.subr.mxu0 %v4117
        %9306 = vmatpush2.msra.mxu0 %v4116
        %9307 = vmatprep.subr.mxu0 %v4115
        %9308 = vmatpush2.msra.mxu0 %v4114
        %9309 = vmatprep.subr.mxu0 %v4113
        %9310 = vmatpush2.msra.mxu0 %v4112
        %9311 = vmatprep.subr.mxu0 %v4111
        %9312 = vmatpush2.msra.mxu0 %v4110
        %9313 = vmatprep.subr.mxu0 %v4109
        %9314 = vmatpush2.msra.mxu0 %v4108
        %9315 = vmatprep.subr.mxu0 %v4107
        %9316 = vmatpush2.msra.mxu0 %v4106
        %9317 = vmatprep.subr.mxu0 %v4105
        %9318 = vmatpush2.msra.mxu0 %v4104
        %9319 = vmatprep.subr.mxu0 %v4103
        %9320 = vmatpush2.msra.mxu0 %v4102
        %9321 = vmatprep.subr.mxu0 %v4101
        %9322 = vmatpush2.msra.mxu0 %v4100
        %9323 = vmatprep.subr.mxu0 %v4099
        %9324 = vmatpush2.msra.mxu0 %v4098
        %9325 = vmatprep.subr.mxu0 %v4097
        %9326 = vmatpush2.msra.mxu0 %v4096
        %9327 = vmatprep.mubr.f32.mxu0 %v5036
        %9328 = vmatmul.mubr.f32.gmra.mxu0 %v5034
        %v9329 = vpop.f32.mrf.mxu0
        %v9330 = vadd.f32 %v9259, %v9329
        %v9331 = vpop.f32.mrf.mxu0
        %v9332 = vadd.f32 %v9261, %v9331
        %9333 = vdwg.mxu0
        %9334 = vmatprep.subr.mxu0 %v4159
        %9335 = vmatpush1.msra.mxu0 %v4158
        %9336 = vmatprep.subr.mxu0 %v4157
        %9337 = vmatpush1.msra.mxu0 %v4156
        %9338 = vmatprep.subr.mxu0 %v4155
        %9339 = vmatpush1.msra.mxu0 %v4154
        %9340 = vmatprep.subr.mxu0 %v4153
        %9341 = vmatpush1.msra.mxu0 %v4152
        %9342 = vmatprep.subr.mxu0 %v4151
        %9343 = vmatpush1.msra.mxu0 %v4150
        %9344 = vmatprep.subr.mxu0 %v4149
        %9345 = vmatpush1.msra.mxu0 %v4148
        %9346 = vmatprep.subr.mxu0 %v4147
        %9347 = vmatpush1.msra.mxu0 %v4146
        %9348 = vmatprep.subr.mxu0 %v4145
        %9349 = vmatpush1.msra.mxu0 %v4144
        %9350 = vmatprep.subr.mxu0 %v4143
        %9351 = vmatpush1.msra.mxu0 %v4142
        %9352 = vmatprep.subr.mxu0 %v4141
        %9353 = vmatpush1.msra.mxu0 %v4140
        %9354 = vmatprep.subr.mxu0 %v4139
        %9355 = vmatpush1.msra.mxu0 %v4138
        %9356 = vmatprep.subr.mxu0 %v4137
        %9357 = vmatpush1.msra.mxu0 %v4136
        %9358 = vmatprep.subr.mxu0 %v4135
        %9359 = vmatpush1.msra.mxu0 %v4134
        %9360 = vmatprep.subr.mxu0 %v4133
        %9361 = vmatpush1.msra.mxu0 %v4132
        %9362 = vmatprep.subr.mxu0 %v4131
        %9363 = vmatpush1.msra.mxu0 %v4130
        %9364 = vmatprep.subr.mxu0 %v4129
        %9365 = vmatpush1.msra.mxu0 %v4128
        %9366 = vmatprep.subr.mxu0 %v4191
        %9367 = vmatpush2.msra.mxu0 %v4190
        %9368 = vmatprep.subr.mxu0 %v4189
        %9369 = vmatpush2.msra.mxu0 %v4188
        %9370 = vmatprep.subr.mxu0 %v4187
        %9371 = vmatpush2.msra.mxu0 %v4186
        %9372 = vmatprep.subr.mxu0 %v4185
        %9373 = vmatpush2.msra.mxu0 %v4184
        %9374 = vmatprep.subr.mxu0 %v4183
        %9375 = vmatpush2.msra.mxu0 %v4182
        %9376 = vmatprep.subr.mxu0 %v4181
        %9377 = vmatpush2.msra.mxu0 %v4180
        %9378 = vmatprep.subr.mxu0 %v4179
        %9379 = vmatpush2.msra.mxu0 %v4178
        %9380 = vmatprep.subr.mxu0 %v4177
        %9381 = vmatpush2.msra.mxu0 %v4176
        %9382 = vmatprep.subr.mxu0 %v4175
        %9383 = vmatpush2.msra.mxu0 %v4174
        %9384 = vmatprep.subr.mxu0 %v4173
        %9385 = vmatpush2.msra.mxu0 %v4172
        %9386 = vmatprep.subr.mxu0 %v4171
        %9387 = vmatpush2.msra.mxu0 %v4170
        %9388 = vmatprep.subr.mxu0 %v4169
        %9389 = vmatpush2.msra.mxu0 %v4168
        %9390 = vmatprep.subr.mxu0 %v4167
        %9391 = vmatpush2.msra.mxu0 %v4166
        %9392 = vmatprep.subr.mxu0 %v4165
        %9393 = vmatpush2.msra.mxu0 %v4164
        %9394 = vmatprep.subr.mxu0 %v4163
        %9395 = vmatpush2.msra.mxu0 %v4162
        %9396 = vmatprep.subr.mxu0 %v4161
        %9397 = vmatpush2.msra.mxu0 %v4160
        %9398 = vmatprep.mubr.f32.mxu0 %v5052
        %9399 = vmatmul.mubr.f32.gmra.mxu0 %v5044
        %v9400 = vpop.f32.mrf.mxu0
        %v9401 = vadd.f32 %v9330, %v9400
        %v9402 = vpop.f32.mrf.mxu0
        %v9403 = vadd.f32 %v9332, %v9402
        %9404 = vdwg.mxu0
        %9405 = vmatprep.subr.mxu0 %v4223
        %9406 = vmatpush1.msra.mxu0 %v4222
        %9407 = vmatprep.subr.mxu0 %v4221
        %9408 = vmatpush1.msra.mxu0 %v4220
        %9409 = vmatprep.subr.mxu0 %v4219
        %9410 = vmatpush1.msra.mxu0 %v4218
        %9411 = vmatprep.subr.mxu0 %v4217
        %9412 = vmatpush1.msra.mxu0 %v4216
        %9413 = vmatprep.subr.mxu0 %v4215
        %9414 = vmatpush1.msra.mxu0 %v4214
        %9415 = vmatprep.subr.mxu0 %v4213
        %9416 = vmatpush1.msra.mxu0 %v4212
        %9417 = vmatprep.subr.mxu0 %v4211
        %9418 = vmatpush1.msra.mxu0 %v4210
        %9419 = vmatprep.subr.mxu0 %v4209
        %9420 = vmatpush1.msra.mxu0 %v4208
        %9421 = vmatprep.subr.mxu0 %v4207
        %9422 = vmatpush1.msra.mxu0 %v4206
        %9423 = vmatprep.subr.mxu0 %v4205
        %9424 = vmatpush1.msra.mxu0 %v4204
        %9425 = vmatprep.subr.mxu0 %v4203
        %9426 = vmatpush1.msra.mxu0 %v4202
        %9427 = vmatprep.subr.mxu0 %v4201
        %9428 = vmatpush1.msra.mxu0 %v4200
        %9429 = vmatprep.subr.mxu0 %v4199
        %9430 = vmatpush1.msra.mxu0 %v4198
        %9431 = vmatprep.subr.mxu0 %v4197
        %9432 = vmatpush1.msra.mxu0 %v4196
        %9433 = vmatprep.subr.mxu0 %v4195
        %9434 = vmatpush1.msra.mxu0 %v4194
        %9435 = vmatprep.subr.mxu0 %v4193
        %9436 = vmatpush1.msra.mxu0 %v4192
        %9437 = vmatprep.subr.mxu0 %v4255
        %9438 = vmatpush2.msra.mxu0 %v4254
        %9439 = vmatprep.subr.mxu0 %v4253
        %9440 = vmatpush2.msra.mxu0 %v4252
        %9441 = vmatprep.subr.mxu0 %v4251
        %9442 = vmatpush2.msra.mxu0 %v4250
        %9443 = vmatprep.subr.mxu0 %v4249
        %9444 = vmatpush2.msra.mxu0 %v4248
        %9445 = vmatprep.subr.mxu0 %v4247
        %9446 = vmatpush2.msra.mxu0 %v4246
        %9447 = vmatprep.subr.mxu0 %v4245
        %9448 = vmatpush2.msra.mxu0 %v4244
        %9449 = vmatprep.subr.mxu0 %v4243
        %9450 = vmatpush2.msra.mxu0 %v4242
        %9451 = vmatprep.subr.mxu0 %v4241
        %9452 = vmatpush2.msra.mxu0 %v4240
        %9453 = vmatprep.subr.mxu0 %v4239
        %9454 = vmatpush2.msra.mxu0 %v4238
        %9455 = vmatprep.subr.mxu0 %v4237
        %9456 = vmatpush2.msra.mxu0 %v4236
        %9457 = vmatprep.subr.mxu0 %v4235
        %9458 = vmatpush2.msra.mxu0 %v4234
        %9459 = vmatprep.subr.mxu0 %v4233
        %9460 = vmatpush2.msra.mxu0 %v4232
        %9461 = vmatprep.subr.mxu0 %v4231
        %9462 = vmatpush2.msra.mxu0 %v4230
        %9463 = vmatprep.subr.mxu0 %v4229
        %9464 = vmatpush2.msra.mxu0 %v4228
        %9465 = vmatprep.subr.mxu0 %v4227
        %9466 = vmatpush2.msra.mxu0 %v4226
        %9467 = vmatprep.subr.mxu0 %v4225
        %9468 = vmatpush2.msra.mxu0 %v4224
        %9469 = vmatprep.mubr.f32.mxu0 %v5053
        %9470 = vmatmul.mubr.f32.gmra.mxu0 %v5051
        %v9471 = vpop.f32.mrf.mxu0
        %v9472 = vadd.f32 %v9401, %v9471
        %v9473 = vpop.f32.mrf.mxu0
        %v9474 = vadd.f32 %v9403, %v9473
        %9475 = vdwg.mxu0
        %9476 = vmatprep.subr.mxu0 %v4287
        %9477 = vmatpush1.msra.mxu0 %v4286
        %9478 = vmatprep.subr.mxu0 %v4285
        %9479 = vmatpush1.msra.mxu0 %v4284
        %9480 = vmatprep.subr.mxu0 %v4283
        %9481 = vmatpush1.msra.mxu0 %v4282
        %9482 = vmatprep.subr.mxu0 %v4281
        %9483 = vmatpush1.msra.mxu0 %v4280
        %9484 = vmatprep.subr.mxu0 %v4279
        %9485 = vmatpush1.msra.mxu0 %v4278
        %9486 = vmatprep.subr.mxu0 %v4277
        %9487 = vmatpush1.msra.mxu0 %v4276
        %9488 = vmatprep.subr.mxu0 %v4275
        %9489 = vmatpush1.msra.mxu0 %v4274
        %9490 = vmatprep.subr.mxu0 %v4273
        %9491 = vmatpush1.msra.mxu0 %v4272
        %9492 = vmatprep.subr.mxu0 %v4271
        %9493 = vmatpush1.msra.mxu0 %v4270
        %9494 = vmatprep.subr.mxu0 %v4269
        %9495 = vmatpush1.msra.mxu0 %v4268
        %9496 = vmatprep.subr.mxu0 %v4267
        %9497 = vmatpush1.msra.mxu0 %v4266
        %9498 = vmatprep.subr.mxu0 %v4265
        %9499 = vmatpush1.msra.mxu0 %v4264
        %9500 = vmatprep.subr.mxu0 %v4263
        %9501 = vmatpush1.msra.mxu0 %v4262
        %9502 = vmatprep.subr.mxu0 %v4261
        %9503 = vmatpush1.msra.mxu0 %v4260
        %9504 = vmatprep.subr.mxu0 %v4259
        %9505 = vmatpush1.msra.mxu0 %v4258
        %9506 = vmatprep.subr.mxu0 %v4257
        %9507 = vmatpush1.msra.mxu0 %v4256
        %9508 = vmatprep.subr.mxu0 %v4319
        %9509 = vmatpush2.msra.mxu0 %v4318
        %9510 = vmatprep.subr.mxu0 %v4317
        %9511 = vmatpush2.msra.mxu0 %v4316
        %9512 = vmatprep.subr.mxu0 %v4315
        %9513 = vmatpush2.msra.mxu0 %v4314
        %9514 = vmatprep.subr.mxu0 %v4313
        %9515 = vmatpush2.msra.mxu0 %v4312
        %9516 = vmatprep.subr.mxu0 %v4311
        %9517 = vmatpush2.msra.mxu0 %v4310
        %9518 = vmatprep.subr.mxu0 %v4309
        %9519 = vmatpush2.msra.mxu0 %v4308
        %9520 = vmatprep.subr.mxu0 %v4307
        %9521 = vmatpush2.msra.mxu0 %v4306
        %9522 = vmatprep.subr.mxu0 %v4305
        %9523 = vmatpush2.msra.mxu0 %v4304
        %9524 = vmatprep.subr.mxu0 %v4303
        %9525 = vmatpush2.msra.mxu0 %v4302
        %9526 = vmatprep.subr.mxu0 %v4301
        %9527 = vmatpush2.msra.mxu0 %v4300
        %9528 = vmatprep.subr.mxu0 %v4299
        %9529 = vmatpush2.msra.mxu0 %v4298
        %9530 = vmatprep.subr.mxu0 %v4297
        %9531 = vmatpush2.msra.mxu0 %v4296
        %9532 = vmatprep.subr.mxu0 %v4295
        %9533 = vmatpush2.msra.mxu0 %v4294
        %9534 = vmatprep.subr.mxu0 %v4293
        %9535 = vmatpush2.msra.mxu0 %v4292
        %9536 = vmatprep.subr.mxu0 %v4291
        %9537 = vmatpush2.msra.mxu0 %v4290
        %9538 = vmatprep.subr.mxu0 %v4289
        %9539 = vmatpush2.msra.mxu0 %v4288
        %9540 = vmatprep.mubr.f32.mxu0 %v5069
        %9541 = vmatmul.mubr.f32.gmra.mxu0 %v5061
        %v9542 = vpop.f32.mrf.mxu0
        %v9543 = vadd.f32 %v9472, %v9542
        %v9544 = vpop.f32.mrf.mxu0
        %v9545 = vadd.f32 %v9474, %v9544
        %9546 = vdwg.mxu0
        %9547 = vmatprep.subr.mxu0 %v4351
        %9548 = vmatpush1.msra.mxu0 %v4350
        %9549 = vmatprep.subr.mxu0 %v4349
        %9550 = vmatpush1.msra.mxu0 %v4348
        %9551 = vmatprep.subr.mxu0 %v4347
        %9552 = vmatpush1.msra.mxu0 %v4346
        %9553 = vmatprep.subr.mxu0 %v4345
        %9554 = vmatpush1.msra.mxu0 %v4344
        %9555 = vmatprep.subr.mxu0 %v4343
        %9556 = vmatpush1.msra.mxu0 %v4342
        %9557 = vmatprep.subr.mxu0 %v4341
        %9558 = vmatpush1.msra.mxu0 %v4340
        %9559 = vmatprep.subr.mxu0 %v4339
        %9560 = vmatpush1.msra.mxu0 %v4338
        %9561 = vmatprep.subr.mxu0 %v4337
        %9562 = vmatpush1.msra.mxu0 %v4336
        %9563 = vmatprep.subr.mxu0 %v4335
        %9564 = vmatpush1.msra.mxu0 %v4334
        %9565 = vmatprep.subr.mxu0 %v4333
        %9566 = vmatpush1.msra.mxu0 %v4332
        %9567 = vmatprep.subr.mxu0 %v4331
        %9568 = vmatpush1.msra.mxu0 %v4330
        %9569 = vmatprep.subr.mxu0 %v4329
        %9570 = vmatpush1.msra.mxu0 %v4328
        %9571 = vmatprep.subr.mxu0 %v4327
        %9572 = vmatpush1.msra.mxu0 %v4326
        %9573 = vmatprep.subr.mxu0 %v4325
        %9574 = vmatpush1.msra.mxu0 %v4324
        %9575 = vmatprep.subr.mxu0 %v4323
        %9576 = vmatpush1.msra.mxu0 %v4322
        %9577 = vmatprep.subr.mxu0 %v4321
        %9578 = vmatpush1.msra.mxu0 %v4320
        %9579 = vmatprep.subr.mxu0 %v4383
        %9580 = vmatpush2.msra.mxu0 %v4382
        %9581 = vmatprep.subr.mxu0 %v4381
        %9582 = vmatpush2.msra.mxu0 %v4380
        %9583 = vmatprep.subr.mxu0 %v4379
        %9584 = vmatpush2.msra.mxu0 %v4378
        %9585 = vmatprep.subr.mxu0 %v4377
        %9586 = vmatpush2.msra.mxu0 %v4376
        %9587 = vmatprep.subr.mxu0 %v4375
        %9588 = vmatpush2.msra.mxu0 %v4374
        %9589 = vmatprep.subr.mxu0 %v4373
        %9590 = vmatpush2.msra.mxu0 %v4372
        %9591 = vmatprep.subr.mxu0 %v4371
        %9592 = vmatpush2.msra.mxu0 %v4370
        %9593 = vmatprep.subr.mxu0 %v4369
        %9594 = vmatpush2.msra.mxu0 %v4368
        %9595 = vmatprep.subr.mxu0 %v4367
        %9596 = vmatpush2.msra.mxu0 %v4366
        %9597 = vmatprep.subr.mxu0 %v4365
        %9598 = vmatpush2.msra.mxu0 %v4364
        %9599 = vmatprep.subr.mxu0 %v4363
        %9600 = vmatpush2.msra.mxu0 %v4362
        %9601 = vmatprep.subr.mxu0 %v4361
        %9602 = vmatpush2.msra.mxu0 %v4360
        %9603 = vmatprep.subr.mxu0 %v4359
        %9604 = vmatpush2.msra.mxu0 %v4358
        %9605 = vmatprep.subr.mxu0 %v4357
        %9606 = vmatpush2.msra.mxu0 %v4356
        %9607 = vmatprep.subr.mxu0 %v4355
        %9608 = vmatpush2.msra.mxu0 %v4354
        %9609 = vmatprep.subr.mxu0 %v4353
        %9610 = vmatpush2.msra.mxu0 %v4352
        %9611 = vmatprep.mubr.f32.mxu0 %v5070
        %9612 = vmatmul.mubr.f32.gmra.mxu0 %v5068
        %v9613 = vpop.f32.mrf.mxu0
        %v9614 = vadd.f32 %v9543, %v9613
        %v9615 = vpop.f32.mrf.mxu0
        %v9616 = vadd.f32 %v9545, %v9615
        %9617 = vdwg.mxu0
        %9618 = vmatprep.subr.mxu0 %v4415
        %9619 = vmatpush1.msra.mxu0 %v4414
        %9620 = vmatprep.subr.mxu0 %v4413
        %9621 = vmatpush1.msra.mxu0 %v4412
        %9622 = vmatprep.subr.mxu0 %v4411
        %9623 = vmatpush1.msra.mxu0 %v4410
        %9624 = vmatprep.subr.mxu0 %v4409
        %9625 = vmatpush1.msra.mxu0 %v4408
        %9626 = vmatprep.subr.mxu0 %v4407
        %9627 = vmatpush1.msra.mxu0 %v4406
        %9628 = vmatprep.subr.mxu0 %v4405
        %9629 = vmatpush1.msra.mxu0 %v4404
        %9630 = vmatprep.subr.mxu0 %v4403
        %9631 = vmatpush1.msra.mxu0 %v4402
        %9632 = vmatprep.subr.mxu0 %v4401
        %9633 = vmatpush1.msra.mxu0 %v4400
        %9634 = vmatprep.subr.mxu0 %v4399
        %9635 = vmatpush1.msra.mxu0 %v4398
        %9636 = vmatprep.subr.mxu0 %v4397
        %9637 = vmatpush1.msra.mxu0 %v4396
        %9638 = vmatprep.subr.mxu0 %v4395
        %9639 = vmatpush1.msra.mxu0 %v4394
        %9640 = vmatprep.subr.mxu0 %v4393
        %9641 = vmatpush1.msra.mxu0 %v4392
        %9642 = vmatprep.subr.mxu0 %v4391
        %9643 = vmatpush1.msra.mxu0 %v4390
        %9644 = vmatprep.subr.mxu0 %v4389
        %9645 = vmatpush1.msra.mxu0 %v4388
        %9646 = vmatprep.subr.mxu0 %v4387
        %9647 = vmatpush1.msra.mxu0 %v4386
        %9648 = vmatprep.subr.mxu0 %v4385
        %9649 = vmatpush1.msra.mxu0 %v4384
        %9650 = vmatprep.subr.mxu0 %v4447
        %9651 = vmatpush2.msra.mxu0 %v4446
        %9652 = vmatprep.subr.mxu0 %v4445
        %9653 = vmatpush2.msra.mxu0 %v4444
        %9654 = vmatprep.subr.mxu0 %v4443
        %9655 = vmatpush2.msra.mxu0 %v4442
        %9656 = vmatprep.subr.mxu0 %v4441
        %9657 = vmatpush2.msra.mxu0 %v4440
        %9658 = vmatprep.subr.mxu0 %v4439
        %9659 = vmatpush2.msra.mxu0 %v4438
        %9660 = vmatprep.subr.mxu0 %v4437
        %9661 = vmatpush2.msra.mxu0 %v4436
        %9662 = vmatprep.subr.mxu0 %v4435
        %9663 = vmatpush2.msra.mxu0 %v4434
        %9664 = vmatprep.subr.mxu0 %v4433
        %9665 = vmatpush2.msra.mxu0 %v4432
        %9666 = vmatprep.subr.mxu0 %v4431
        %9667 = vmatpush2.msra.mxu0 %v4430
        %9668 = vmatprep.subr.mxu0 %v4429
        %9669 = vmatpush2.msra.mxu0 %v4428
        %9670 = vmatprep.subr.mxu0 %v4427
        %9671 = vmatpush2.msra.mxu0 %v4426
        %9672 = vmatprep.subr.mxu0 %v4425
        %9673 = vmatpush2.msra.mxu0 %v4424
        %9674 = vmatprep.subr.mxu0 %v4423
        %9675 = vmatpush2.msra.mxu0 %v4422
        %9676 = vmatprep.subr.mxu0 %v4421
        %9677 = vmatpush2.msra.mxu0 %v4420
        %9678 = vmatprep.subr.mxu0 %v4419
        %9679 = vmatpush2.msra.mxu0 %v4418
        %9680 = vmatprep.subr.mxu0 %v4417
        %9681 = vmatpush2.msra.mxu0 %v4416
        %9682 = vmatprep.mubr.f32.mxu0 %v5086
        %9683 = vmatmul.mubr.f32.gmra.mxu0 %v5078
        %v9684 = vpop.f32.mrf.mxu0
        %v9685 = vadd.f32 %v9614, %v9684
        %v9686 = vpop.f32.mrf.mxu0
        %v9687 = vadd.f32 %v9616, %v9686
        %9688 = vdwg.mxu0
        %9689 = vmatprep.subr.mxu0 %v4479
        %9690 = vmatpush1.msra.mxu0 %v4478
        %9691 = vmatprep.subr.mxu0 %v4477
        %9692 = vmatpush1.msra.mxu0 %v4476
        %9693 = vmatprep.subr.mxu0 %v4475
        %9694 = vmatpush1.msra.mxu0 %v4474
        %9695 = vmatprep.subr.mxu0 %v4473
        %9696 = vmatpush1.msra.mxu0 %v4472
        %9697 = vmatprep.subr.mxu0 %v4471
        %9698 = vmatpush1.msra.mxu0 %v4470
        %9699 = vmatprep.subr.mxu0 %v4469
        %9700 = vmatpush1.msra.mxu0 %v4468
        %9701 = vmatprep.subr.mxu0 %v4467
        %9702 = vmatpush1.msra.mxu0 %v4466
        %9703 = vmatprep.subr.mxu0 %v4465
        %9704 = vmatpush1.msra.mxu0 %v4464
        %9705 = vmatprep.subr.mxu0 %v4463
        %9706 = vmatpush1.msra.mxu0 %v4462
        %9707 = vmatprep.subr.mxu0 %v4461
        %9708 = vmatpush1.msra.mxu0 %v4460
        %9709 = vmatprep.subr.mxu0 %v4459
        %9710 = vmatpush1.msra.mxu0 %v4458
        %9711 = vmatprep.subr.mxu0 %v4457
        %9712 = vmatpush1.msra.mxu0 %v4456
        %9713 = vmatprep.subr.mxu0 %v4455
        %9714 = vmatpush1.msra.mxu0 %v4454
        %9715 = vmatprep.subr.mxu0 %v4453
        %9716 = vmatpush1.msra.mxu0 %v4452
        %9717 = vmatprep.subr.mxu0 %v4451
        %9718 = vmatpush1.msra.mxu0 %v4450
        %9719 = vmatprep.subr.mxu0 %v4449
        %9720 = vmatpush1.msra.mxu0 %v4448
        %9721 = vmatprep.subr.mxu0 %v4511
        %9722 = vmatpush2.msra.mxu0 %v4510
        %9723 = vmatprep.subr.mxu0 %v4509
        %9724 = vmatpush2.msra.mxu0 %v4508
        %9725 = vmatprep.subr.mxu0 %v4507
        %9726 = vmatpush2.msra.mxu0 %v4506
        %9727 = vmatprep.subr.mxu0 %v4505
        %9728 = vmatpush2.msra.mxu0 %v4504
        %9729 = vmatprep.subr.mxu0 %v4503
        %9730 = vmatpush2.msra.mxu0 %v4502
        %9731 = vmatprep.subr.mxu0 %v4501
        %9732 = vmatpush2.msra.mxu0 %v4500
        %9733 = vmatprep.subr.mxu0 %v4499
        %9734 = vmatpush2.msra.mxu0 %v4498
        %9735 = vmatprep.subr.mxu0 %v4497
        %9736 = vmatpush2.msra.mxu0 %v4496
        %9737 = vmatprep.subr.mxu0 %v4495
        %9738 = vmatpush2.msra.mxu0 %v4494
        %9739 = vmatprep.subr.mxu0 %v4493
        %9740 = vmatpush2.msra.mxu0 %v4492
        %9741 = vmatprep.subr.mxu0 %v4491
        %9742 = vmatpush2.msra.mxu0 %v4490
        %9743 = vmatprep.subr.mxu0 %v4489
        %9744 = vmatpush2.msra.mxu0 %v4488
        %9745 = vmatprep.subr.mxu0 %v4487
        %9746 = vmatpush2.msra.mxu0 %v4486
        %9747 = vmatprep.subr.mxu0 %v4485
        %9748 = vmatpush2.msra.mxu0 %v4484
        %9749 = vmatprep.subr.mxu0 %v4483
        %9750 = vmatpush2.msra.mxu0 %v4482
        %9751 = vmatprep.subr.mxu0 %v4481
        %9752 = vmatpush2.msra.mxu0 %v4480
        %9753 = vmatprep.mubr.f32.mxu0 %v5087
        %9754 = vmatmul.mubr.f32.gmra.mxu0 %v5085
        %v9755 = vpop.f32.mrf.mxu0
        %v9756 = vadd.f32 %v9685, %v9755
        %v9757 = vpop.f32.mrf.mxu0
        %v9758 = vadd.f32 %v9687, %v9757
        %9759 = vdwg.mxu0
        %v9762 = vcombine.low %v9756, %v9758
        %v9764 = vunpack.c.l.s4 1983009808
        %v9765 = vunpack.c.0.s8 %v9764
        %v9766 = vlaneseq
        %v9767 = vshrl.u32 %v9766, 7
        %v9768 = vsub.s32 %v9765, %v9767
        %v9769 = vrot.slane %v9762, %v9768
        %v9771 = vadd.f32 %v383, %v9769
        %9772 = vst [vmem:[#allocation2] sm:$0xf] %v9771
        %p9773 = scmp.eq.s32.totalorder %s27, 5
        // Predicated region
        $region77: #{tpu_custom_call.1} parent=47 // pred_check
          %p9774 = pneg %p9773
        $region78: #{tpu_custom_call.1} parent=47 // pred_check_branch
          %9776 = sbr.rel (%p9774) target = $region80
        $region79: #{tpu_custom_call.1} parent=47 // pred_region
          %v9777 = vld [vmem:[#allocation2] sm:$0xf]
          %v9778 = vld [vmem:[#allocation8] sm:$0x3]
          %v9780 = vlaneseq
          %v9781 = vshrl.u32 %v9780, 7
          %v9782 = vsub.s32 0, %v9781
          %v9783 = vrot.slane %v9778, %v9782
          %v9784 = vlaneseq
          %v9785 = vshrl.u32 %v9784, 7
          %v9786 = vsub.s32 1, %v9785
          %v9787 = vrot.slane %v9778, %v9786
          %v9788 = vcombine.low %v9783, %v9787
          %v9790 = vunpack.c.l.s4 1983009808
          %v9791 = vunpack.c.0.s8 %v9790
          %v9792 = vlaneseq
          %v9793 = vshrl.u32 %v9792, 7
          %v9794 = vsub.s32 %v9791, %v9793
          %v9795 = vrot.slane %v9788, %v9794
          %v9797 = vadd.f32 %v9777, %v9795
          %v9798 = vmax.f32 %v9797, 0.0
          %v9799 = vld [vmem:[#allocation9] sm:$0xff]
          %v9800 = vld [vmem:[#allocation9 + $0x8] sm:$0xff]
          %v9801 = vld [vmem:[#allocation9 + $0x10] sm:$0xff]
          %v9802 = vld [vmem:[#allocation9 + $0x18] sm:$0xff]
          %v9803 = vld [vmem:[#allocation9 + $0x20] sm:$0xff]
          %v9804 = vld [vmem:[#allocation9 + $0x28] sm:$0xff]
          %v9805 = vld [vmem:[#allocation9 + $0x30] sm:$0xff]
          %v9806 = vld [vmem:[#allocation9 + $0x38] sm:$0xff]
          %v9807 = vld [vmem:[#allocation9 + $0x40] sm:$0xff]
          %v9808 = vld [vmem:[#allocation9 + $0x48] sm:$0xff]
          %v9809 = vld [vmem:[#allocation9 + $0x50] sm:$0xff]
          %v9810 = vld [vmem:[#allocation9 + $0x58] sm:$0xff]
          %v9811 = vld [vmem:[#allocation9 + $0x60] sm:$0xff]
          %v9812 = vld [vmem:[#allocation9 + $0x68] sm:$0xff]
          %v9813 = vld [vmem:[#allocation9 + $0x70] sm:$0xff]
          %v9814 = vld [vmem:[#allocation9 + $0x78] sm:$0xff]
          %v9815 = vld [vmem:[#allocation9 + $0x80] sm:$0xff]
          %v9816 = vld [vmem:[#allocation9 + $0x88] sm:$0xff]
          %v9817 = vld [vmem:[#allocation9 + $0x90] sm:$0xff]
          %v9818 = vld [vmem:[#allocation9 + $0x98] sm:$0xff]
          %v9819 = vld [vmem:[#allocation9 + $0xa0] sm:$0xff]
          %v9820 = vld [vmem:[#allocation9 + $0xa8] sm:$0xff]
          %v9821 = vld [vmem:[#allocation9 + $0xb0] sm:$0xff]
          %v9822 = vld [vmem:[#allocation9 + $0xb8] sm:$0xff]
          %v9823 = vld [vmem:[#allocation9 + $0xc0] sm:$0xff]
          %v9824 = vld [vmem:[#allocation9 + $0xc8] sm:$0xff]
          %v9825 = vld [vmem:[#allocation9 + $0xd0] sm:$0xff]
          %v9826 = vld [vmem:[#allocation9 + $0xd8] sm:$0xff]
          %v9827 = vld [vmem:[#allocation9 + $0xe0] sm:$0xff]
          %v9828 = vld [vmem:[#allocation9 + $0xe8] sm:$0xff]
          %v9829 = vld [vmem:[#allocation9 + $0xf0] sm:$0xff]
          %v9830 = vld [vmem:[#allocation9 + $0xf8] sm:$0xff]
          %v9831 = vld [vmem:[#allocation11] sm:$0x1]
          %v9833 = vlaneseq
          %v9834 = vshrl.u32 %v9833, 7
          %v9835 = vsub.s32 0, %v9834
          %v9836 = vrot.slane %v9831, %v9835
          %v9840 = vunpack.c.l.s4 1983009808
          %v9841 = vunpack.c.0.s8 %v9840
          %v9842 = vlaneseq
          %v9843 = vshrl.u32 %v9842, 7
          %v9844 = vsub.s32 %v9841, %v9843
          %v9845 = vrot.slane %v9798, %v9844
          %v9846 = vcombine.high %v9845, %v9845
          %9849 = vmatprep.subr.mxu0 0.0
          %9850 = vmatpush1.msra.mxu0 %v9814
          %9851 = vmatprep.subr.mxu0 0.0
          %9852 = vmatpush1.msra.mxu0 %v9813
          %9853 = vmatprep.subr.mxu0 0.0
          %9854 = vmatpush1.msra.mxu0 %v9812
          %9855 = vmatprep.subr.mxu0 0.0
          %9856 = vmatpush1.msra.mxu0 %v9811
          %9857 = vmatprep.subr.mxu0 0.0
          %9858 = vmatpush1.msra.mxu0 %v9810
          %9859 = vmatprep.subr.mxu0 0.0
          %9860 = vmatpush1.msra.mxu0 %v9809
          %9861 = vmatprep.subr.mxu0 0.0
          %9862 = vmatpush1.msra.mxu0 %v9808
          %9863 = vmatprep.subr.mxu0 0.0
          %9864 = vmatpush1.msra.mxu0 %v9807
          %9865 = vmatprep.subr.mxu0 0.0
          %9866 = vmatpush1.msra.mxu0 %v9806
          %9867 = vmatprep.subr.mxu0 0.0
          %9868 = vmatpush1.msra.mxu0 %v9805
          %9869 = vmatprep.subr.mxu0 0.0
          %9870 = vmatpush1.msra.mxu0 %v9804
          %9871 = vmatprep.subr.mxu0 0.0
          %9872 = vmatpush1.msra.mxu0 %v9803
          %9873 = vmatprep.subr.mxu0 0.0
          %9874 = vmatpush1.msra.mxu0 %v9802
          %9875 = vmatprep.subr.mxu0 0.0
          %9876 = vmatpush1.msra.mxu0 %v9801
          %9877 = vmatprep.subr.mxu0 0.0
          %9878 = vmatpush1.msra.mxu0 %v9800
          %9879 = vmatprep.subr.mxu0 0.0
          %9880 = vmatpush1.msra.mxu0 %v9799
          %9881 = vmatprep.subr.mxu0 0.0
          %9882 = vmatpush2.msra.mxu0 %v9830
          %9883 = vmatprep.subr.mxu0 0.0
          %9884 = vmatpush2.msra.mxu0 %v9829
          %9885 = vmatprep.subr.mxu0 0.0
          %9886 = vmatpush2.msra.mxu0 %v9828
          %9887 = vmatprep.subr.mxu0 0.0
          %9888 = vmatpush2.msra.mxu0 %v9827
          %9889 = vmatprep.subr.mxu0 0.0
          %9890 = vmatpush2.msra.mxu0 %v9826
          %9891 = vmatprep.subr.mxu0 0.0
          %9892 = vmatpush2.msra.mxu0 %v9825
          %9893 = vmatprep.subr.mxu0 0.0
          %9894 = vmatpush2.msra.mxu0 %v9824
          %9895 = vmatprep.subr.mxu0 0.0
          %9896 = vmatpush2.msra.mxu0 %v9823
          %9897 = vmatprep.subr.mxu0 0.0
          %9898 = vmatpush2.msra.mxu0 %v9822
          %9899 = vmatprep.subr.mxu0 0.0
          %9900 = vmatpush2.msra.mxu0 %v9821
          %9901 = vmatprep.subr.mxu0 0.0
          %9902 = vmatpush2.msra.mxu0 %v9820
          %9903 = vmatprep.subr.mxu0 0.0
          %9904 = vmatpush2.msra.mxu0 %v9819
          %9905 = vmatprep.subr.mxu0 0.0
          %9906 = vmatpush2.msra.mxu0 %v9818
          %9907 = vmatprep.subr.mxu0 0.0
          %9908 = vmatpush2.msra.mxu0 %v9817
          %9909 = vmatprep.subr.mxu0 0.0
          %9910 = vmatpush2.msra.mxu0 %v9816
          %9911 = vmatprep.subr.mxu0 0.0
          %9912 = vmatpush2.msra.mxu0 %v9815
          %9913 = vmatprep.mubr.f32.mxu0 %v9846
          %9914 = vmatmul.mubr.f32.gmra.mxu0 %v9845
          %v9915 = vpop.f32.mrf.mxu0
          %v9916 = vadd.f32 %v9836, %v9915
          %v9917 = vpop.f32.mrf.mxu0
          %9918 = vdwg.mxu0
          %v9919 = vmax.f32 %v9916, 0.0
          %v9920 = vld [vmem:[%s5] sm:$0xff]
          %v9921 = vld [vmem:[%s5 + $0x8] sm:$0xff]
          %v9922 = vld [vmem:[%s5 + $0x10] sm:$0xff]
          %v9923 = vld [vmem:[%s5 + $0x18] sm:$0xff]
          %v9924 = vld [vmem:[%s5 + $0x20] sm:$0xff]
          %v9925 = vld [vmem:[%s5 + $0x28] sm:$0xff]
          %v9926 = vld [vmem:[%s5 + $0x30] sm:$0xff]
          %v9927 = vld [vmem:[%s5 + $0x38] sm:$0xff]
          %v9928 = vld [vmem:[%s5 + $0x40] sm:$0xff]
          %v9929 = vld [vmem:[%s5 + $0x48] sm:$0xff]
          %v9930 = vld [vmem:[%s5 + $0x50] sm:$0xff]
          %v9931 = vld [vmem:[%s5 + $0x58] sm:$0xff]
          %v9932 = vld [vmem:[%s5 + $0x60] sm:$0xff]
          %v9933 = vld [vmem:[%s5 + $0x68] sm:$0xff]
          %v9934 = vld [vmem:[%s5 + $0x70] sm:$0xff]
          %v9935 = vld [vmem:[%s5 + $0x78] sm:$0xff]
          %v9936 = vld [vmem:[#allocation12] sm:$0x1]
          %v9938 = vlaneseq
          %v9939 = vshrl.u32 %v9938, 7
          %v9940 = vsub.s32 0, %v9939
          %v9941 = vrot.slane %v9936, %v9940
          %9943 = vmatprep.subr.mxu0 0.0
          %9944 = vmatpush1.msra.mxu0 %v9935
          %9945 = vmatprep.subr.mxu0 0.0
          %9946 = vmatpush1.msra.mxu0 %v9934
          %9947 = vmatprep.subr.mxu0 0.0
          %9948 = vmatpush1.msra.mxu0 %v9933
          %9949 = vmatprep.subr.mxu0 0.0
          %9950 = vmatpush1.msra.mxu0 %v9932
          %9951 = vmatprep.subr.mxu0 0.0
          %9952 = vmatpush1.msra.mxu0 %v9931
          %9953 = vmatprep.subr.mxu0 0.0
          %9954 = vmatpush1.msra.mxu0 %v9930
          %9955 = vmatprep.subr.mxu0 0.0
          %9956 = vmatpush1.msra.mxu0 %v9929
          %9957 = vmatprep.subr.mxu0 0.0
          %9958 = vmatpush1.msra.mxu0 %v9928
          %9959 = vmatprep.subr.mxu0 0.0
          %9960 = vmatpush1.msra.mxu0 %v9927
          %9961 = vmatprep.subr.mxu0 0.0
          %9962 = vmatpush1.msra.mxu0 %v9926
          %9963 = vmatprep.subr.mxu0 0.0
          %9964 = vmatpush1.msra.mxu0 %v9925
          %9965 = vmatprep.subr.mxu0 0.0
          %9966 = vmatpush1.msra.mxu0 %v9924
          %9967 = vmatprep.subr.mxu0 0.0
          %9968 = vmatpush1.msra.mxu0 %v9923
          %9969 = vmatprep.subr.mxu0 0.0
          %9970 = vmatpush1.msra.mxu0 %v9922
          %9971 = vmatprep.subr.mxu0 0.0
          %9972 = vmatpush1.msra.mxu0 %v9921
          %9973 = vmatprep.subr.mxu0 0.0
          %9974 = vmatpush1.msra.mxu0 %v9920
          %9975 = vmatprep.subr.mxu0 0.0
          %9976 = vmatpush2.msra.mxu0 0.0
          %9977 = vmatprep.subr.mxu0 0.0
          %9978 = vmatpush2.msra.mxu0 0.0
          %9979 = vmatprep.subr.mxu0 0.0
          %9980 = vmatpush2.msra.mxu0 0.0
          %9981 = vmatprep.subr.mxu0 0.0
          %9982 = vmatpush2.msra.mxu0 0.0
          %9983 = vmatprep.subr.mxu0 0.0
          %9984 = vmatpush2.msra.mxu0 0.0
          %9985 = vmatprep.subr.mxu0 0.0
          %9986 = vmatpush2.msra.mxu0 0.0
          %9987 = vmatprep.subr.mxu0 0.0
          %9988 = vmatpush2.msra.mxu0 0.0
          %9989 = vmatprep.subr.mxu0 0.0
          %9990 = vmatpush2.msra.mxu0 0.0
          %9991 = vmatprep.subr.mxu0 0.0
          %9992 = vmatpush2.msra.mxu0 0.0
          %9993 = vmatprep.subr.mxu0 0.0
          %9994 = vmatpush2.msra.mxu0 0.0
          %9995 = vmatprep.subr.mxu0 0.0
          %9996 = vmatpush2.msra.mxu0 0.0
          %9997 = vmatprep.subr.mxu0 0.0
          %9998 = vmatpush2.msra.mxu0 0.0
          %9999 = vmatprep.subr.mxu0 0.0
          %10000 = vmatpush2.msra.mxu0 0.0
          %10001 = vmatprep.subr.mxu0 0.0
          %10002 = vmatpush2.msra.mxu0 0.0
          %10003 = vmatprep.subr.mxu0 0.0
          %10004 = vmatpush2.msra.mxu0 0.0
          %10005 = vmatprep.subr.mxu0 0.0
          %10006 = vmatpush2.msra.mxu0 0.0
          %10007 = vmatprep.mubr.f32.mxu0 0.0
          %10008 = vmatmul.mubr.f32.gmra.mxu0 %v9919
          %v10009 = vpop.f32.mrf.mxu0
          %v10010 = vadd.f32 %v9941, %v10009
          %v10011 = vpop.f32.mrf.mxu0
          %10012 = vdwg.mxu0
          %vm10013 = vcmask 74752
          %10014 = vst.msk [vmem:[#allocation14] sm:$0x3] %vm10013, %v10010
        $region80: #{tpu_custom_call.1} parent=47 // pred_fallthru
          _
        // Predicated region
        $region81: #{tpu_custom_call.1} parent=47 // pred_check
          %p10015 = pneg %p197
        $region82: #{tpu_custom_call.1} parent=47 // pred_check_branch
          %10017 = sbr.rel (%p10015) target = $region84
        $region83: #{tpu_custom_call.1} parent=47 // pred_region
          %s10019 = ssub.s32 32, 32
          %10020 = vsyncadd [#allocation5], %s10019
          %s10022 = sshll.u32 [#allocation14], 4
          %s10023 = int_to_ptr.vmem [resolvable:$true] %s10022
          %10025 = dma.vmem_to_hbm [thread:$0]  %s10023, 32, %s7, [#allocation5]
        $region84: #{tpu_custom_call.1} parent=47 // pred_fallthru
          _
        // Predicated region
        $region85: #{tpu_custom_call.1} parent=47 // pred_check
          %p10026 = pneg %p197
        $region86: #{tpu_custom_call.1} parent=47 // pred_check_branch
          %10028 = sbr.rel (%p10026) target = $region88
        $region87: #{tpu_custom_call.1} parent=47 // pred_region
          %10029 = dma.done [#allocation5], 32
        $region88: #{tpu_custom_call.1} parent=47 // pred_fallthru
          _
      $region48: #{tpu_custom_call.1} parent=5 // pred_fallthru
        _
      %p10030 = scmp.le.s32.totalorder 2, %s22
      // Predicated region
      $region89: #{tpu_custom_call.1} parent=5 // pred_check
        %p10031 = pneg %p10030
      $region90: #{tpu_custom_call.1} parent=5 // pred_check_branch
        %10033 = sbr.rel (%p10031) target = $region92
      $region91: #{tpu_custom_call.1} parent=5 // pred_region
        %s10034 = ssub.s32 %s22, 2
      $region92: #{tpu_custom_call.1} parent=5 // pred_fallthru
        _
    $region6: #{tpu_custom_call.1} parent=1 // loop_footer
      %s26 = sadd.s32 1, %s22
    $region7: #{tpu_custom_call.1} parent=1 // loop_footer_branch
      %21 = sbr.rel target = $region3
    $region8: #{tpu_custom_call.1} parent=1 // loop_exit
      _
    %10035 = vsyncpa [#allocation4], 1
    %s10036 = scalar_lea.sflag [#allocation4], 1
    %10037 = vsyncpa %s10036, 1
    %10038 = vsyncpa [#allocation7], 1
    %s10039 = scalar_lea.sflag [#allocation7], 1
    %10040 = vsyncpa %s10039, 1
    %10041 = vsyncpa [#allocation10], 1
    %10042 = vsyncpa [#allocation13], 1
    %10043 = vsyncpa [#allocation5], 1
    %s10044 = scalar_lea.sflag [#allocation5], 1
    %10045 = vsyncpa %s10044, 1

</llo_original>
